<compile_context>
chip_gen: v6e
topology: v6e:2x2x1
jax: 0.10.0
libtpu: 0.0.40
codegen_flags: <defaults>
</compile_context>

<pallas_src>
import jax
import jax.numpy as jnp
from jax.experimental import pallas as pl
from jax.experimental.pallas import tpu as pltpu

# ---------------- model hyper-parameters (small, consistent with the module) ----
BATCH = 2            # batch_size
MAX_SENT = 3         # max_sent_length
MAX_WORD = 6         # max_word_length
VOCAB = 30           # embedding vocab size
EMBED = 12           # embedding dim
WORD_H = 8           # word_hidden_size
SENT_H = 8           # sent_hidden_size
NUM_CLASSES = 14     # module default

BPAD = 8             # batch padded to one full sublane group -> aligned slices
OUT_PAD = 128        # FC output padded to one full lane group -> unmasked store


# ---------------- the single fused Pallas kernel --------------------------------
def han_kernel(idx_ref, emb_ref,
               wg_wih_ref, wg_whh_ref, wg_bih_ref, wg_bhh_ref,
               sg_wih_ref, sg_whh_ref, sg_bih_ref, sg_bhh_ref,
               ww_ref, wb_ref, wctx_ref,
               sw_ref, sb_ref, sctx_ref,
               fcw_ref, fcb_ref,
               out_ref,
               f_scr, sent_scr, fs_scr):
    HW, HS, BP = WORD_H, SENT_H, BPAD
    n_tok = MAX_SENT * MAX_WORD * BP

    # ---- embedding lookup: one-hot matmul (gather-free) ------------------------
    idx = idx_ref[...]                                                 # (n_tok, 1) i32
    iota = jax.lax.broadcasted_iota(jnp.int32, (n_tok, VOCAB), 1)
    onehot = jnp.where(idx == iota, jnp.float32(1.0), jnp.float32(0.0))
    emb_all = jnp.dot(onehot, emb_ref[...],
                      preferred_element_type=jnp.float32)              # (n_tok, EMBED)

    # ---- hoisted word-GRU input projection: all sentences, all timesteps, ------
    # ---- both directions, all 3 gates in ONE wide matmul -----------------------
    gi_word = (jnp.dot(emb_all, wg_wih_ref[...],
                       preferred_element_type=jnp.float32)
               + wg_bih_ref[...])                                      # (n_tok, 6*HW)

    whh_wf, whh_wb = wg_whh_ref[0], wg_whh_ref[1]                      # (HW, 3*HW)
    bhh_wf, bhh_wb = wg_bhh_ref[0], wg_bhh_ref[1]                      # (1, 3*HW)

    def gru_cell(gi, h, whh, bhh, hd):
        # gi: (BP, 3*hd) precomputed x @ W_ih + b_ih. PyTorch gate order [r, z, n].
        gh = jnp.dot(h, whh, preferred_element_type=jnp.float32) + bhh
        r = jax.nn.sigmoid(gi[:, 0:hd] + gh[:, 0:hd])
        z = jax.nn.sigmoid(gi[:, hd:2 * hd] + gh[:, hd:2 * hd])
        n = jnp.tanh(gi[:, 2 * hd:3 * hd] + r * gh[:, 2 * hd:3 * hd])
        return (1.0 - z) * n + z * h

    def attention(f_all, t_len, w_mat, b_row, ctx):
        # f_all: (t_len*BP, D), rows ordered time-major. Softmax over time per row.
        u = jnp.tanh(jnp.dot(f_all, w_mat, preferred_element_type=jnp.float32)
                     + b_row)                                          # (t_len*BP, D)
        sc = jnp.tanh(jnp.dot(u, ctx, preferred_element_type=jnp.float32))  # (t_len*BP,1)
        s_t = [sc[t * BP:(t + 1) * BP, :] for t in range(t_len)]
        m = s_t[0]
        for t in range(1, t_len):
            m = jnp.maximum(m, s_t[t])
        e_t = [jnp.exp(s - m) for s in s_t]
        denom = e_t[0]
        for t in range(1, t_len):
            denom = denom + e_t[t]
        inv = pl.reciprocal(denom, approx=True)                        # EUP, (BP, 1)
        out = (e_t[0] * inv) * f_all[0:BP, :]
        for t in range(1, t_len):
            out = out + (e_t[t] * inv) * f_all[t * BP:(t + 1) * BP, :]
        return out                                                     # (BP, D)

    # ---- word level: word hidden state carried across sentences ----------------
    h_wf = jnp.zeros((BP, HW), jnp.float32)
    h_wb = jnp.zeros((BP, HW), jnp.float32)
    for s in range(MAX_SENT):
        for w in range(MAX_WORD):                        # forward direction
            r0 = (s * MAX_WORD + w) * BP
            h_wf = gru_cell(gi_word[r0:r0 + BP, 0:3 * HW], h_wf, whh_wf, bhh_wf, HW)
            f_scr[w * BP:(w + 1) * BP, 0:HW] = h_wf
        for w in range(MAX_WORD - 1, -1, -1):            # backward direction
            r0 = (s * MAX_WORD + w) * BP
            h_wb = gru_cell(gi_word[r0:r0 + BP, 3 * HW:6 * HW], h_wb, whh_wb, bhh_wb, HW)
            f_scr[w * BP:(w + 1) * BP, HW:2 * HW] = h_wb
        f_all = f_scr[...]                                             # (W*BP, 2*HW)
        sent_vec = attention(f_all, MAX_WORD, ww_ref[...], wb_ref[...], wctx_ref[...])
        sent_scr[s * BP:(s + 1) * BP, :] = sent_vec

    # ---- sentence level ---------------------------------------------------------
    x_sent = sent_scr[...]                                             # (S*BP, 2*HW)
    gi_sent = (jnp.dot(x_sent, sg_wih_ref[...],
                       preferred_element_type=jnp.float32)
               + sg_bih_ref[...])                                      # (S*BP, 6*HS)
    whh_sf, whh_sb = sg_whh_ref[0], sg_whh_ref[1]
    bhh_sf, bhh_sb = sg_bhh_ref[0], sg_bhh_ref[1]
    h_sf = jnp.zeros((BP, HS), jnp.float32)
    h_sb = jnp.zeros((BP, HS), jnp.float32)
    for t in range(MAX_SENT):
        r0 = t * BP
        h_sf = gru_cell(gi_sent[r0:r0 + BP, 0:3 * HS], h_sf, whh_sf, bhh_sf, HS)
        fs_scr[r0:r0 + BP, 0:HS] = h_sf
    for t in range(MAX_SENT - 1, -1, -1):
        r0 = t * BP
        h_sb = gru_cell(gi_sent[r0:r0 + BP, 3 * HS:6 * HS], h_sb, whh_sb, bhh_sb, HS)
        fs_scr[r0:r0 + BP, HS:2 * HS] = h_sb
    v = attention(fs_scr[...], MAX_SENT, sw_ref[...], sb_ref[...], sctx_ref[...])

    # ---- final FC (weights pre-padded to 128 output lanes -> unmasked store) ----
    out_ref[...] = (jnp.dot(v, fcw_ref[...], preferred_element_type=jnp.float32)
                    + fcb_ref[...])


# ---------------- wrapper: one kernel launch for the whole forward --------------
def hier_att_forward(params, x_idx):
    """x_idx: (B, S, W) int32 word ids. Returns logits (B, NUM_CLASSES)."""
    B_, S_, W_ = x_idx.shape
    assert B_ <= BPAD
    # Token ids ordered (sentence, word, batch) with the batch padded to 8 sublanes so
    # every per-timestep block inside the kernel is a tile-aligned (8, lanes) slice.
    idx = jnp.transpose(x_idx, (1, 2, 0)).astype(jnp.int32)            # (S, W, B)
    idx = jnp.pad(idx, ((0, 0), (0, 0), (0, BPAD - B_)))
    idx = idx.reshape(S_ * W_ * BPAD, 1)

    # Pad the FC weights to 128 output lanes (zeros) -> lane-dense kernel output.
    fcw = jnp.zeros((2 * SENT_H, OUT_PAD), jnp.float32).at[:, :NUM_CLASSES].set(
        params["fc_w"])
    fcb = jnp.zeros((1, OUT_PAD), jnp.float32).at[:, :NUM_CLASSES].set(
        params["fc_b"])

    wg, sg = params["word_gru"], params["sent_gru"]
    logits_pad = pl.pallas_call(
        han_kernel,
        out_shape=jax.ShapeDtypeStruct((BPAD, OUT_PAD), jnp.float32),
        scratch_shapes=[
            pltpu.VMEM((W_ * BPAD, 2 * WORD_H), jnp.float32),   # word-level f_output
            pltpu.VMEM((S_ * BPAD, 2 * WORD_H), jnp.float32),   # sentence vectors
            pltpu.VMEM((S_ * BPAD, 2 * SENT_H), jnp.float32),   # sentence-level f_output
        ],
    )(idx, params["embedding"],
      wg["wih"], wg["whh"], wg["bih"], wg["bhh"],
      sg["wih"], sg["whh"], sg["bih"], sg["bhh"],
      params["word_w"], params["word_b"], params["word_c"],
      params["sent_w"], params["sent_b"], params["sent_c"],
      fcw, fcb)
    return logits_pad[:B_, :NUM_CLASSES]


# ---------------- pure-JAX reference (for correctness check) --------------------
def _gru_dir_ref(x, h0, wih, whh, bih, bhh):
    H = h0.shape[-1]

    def step(h, xt):
        gi = xt @ wih + bih
        gh = h @ whh + bhh
        r = jax.nn.sigmoid(gi[:, :H] + gh[:, :H])
        z = jax.nn.sigmoid(gi[:, H:2 * H] + gh[:, H:2 * H])
        n = jnp.tanh(gi[:, 2 * H:] + r * gh[:, 2 * H:])
        hn = (1.0 - z) * n + z * h
        return hn, hn

    h_last, hs = jax.lax.scan(step, h0, x)
    return hs, h_last


def _bi_gru_ref(x, h0_pair, p):
    G = p["whh"].shape[-1]                      # 3*H
    hs_f, hl_f = _gru_dir_ref(x, h0_pair[0], p["wih"][:, :G], p["whh"][0],
                              p["bih"][:, :G], p["bhh"][0])
    hs_b, hl_b = _gru_dir_ref(x[::-1], h0_pair[1], p["wih"][:, G:], p["whh"][1],
                              p["bih"][:, G:], p["bhh"][1])
    return (jnp.concatenate([hs_f, hs_b[::-1]], axis=-1),
            jnp.stack([hl_f, hl_b], axis=0))


def _attention_ref(f, w, b, c):
    u = jnp.tanh(jnp.einsum("tbd,de->tbe", f, w) + b)
    s = jnp.tanh(jnp.einsum("tbe,eo->tbo", u, c))[:, :, 0]   # (T, B)
    a = jax.nn.softmax(s, axis=0)                            # softmax over T per batch
    return jnp.sum(a[:, :, None] * f, axis=0)


def hier_att_forward_ref(params, x_idx):
    B_, S_, W_ = x_idx.shape
    x_sbw = jnp.transpose(x_idx, (1, 0, 2))
    word_h = jnp.zeros((2, B_, WORD_H), jnp.float32)
    sent_vecs = []
    for i in range(S_):
        tok = jnp.transpose(x_sbw[i], (1, 0))
        emb = params["embedding"][tok]
        f_out, word_h = _bi_gru_ref(emb, word_h, params["word_gru"])
        sent_vecs.append(_attention_ref(f_out, params["word_w"],
                                        params["word_b"], params["word_c"]))
    sent_seq = jnp.stack(sent_vecs, axis=0)
    sent_h0 = jnp.zeros((2, B_, SENT_H), jnp.float32)
    f_out, _ = _bi_gru_ref(sent_seq, sent_h0, params["sent_gru"])
    v = _attention_ref(f_out, params["sent_w"], params["sent_b"], params["sent_c"])
    return v @ params["fc_w"] + params["fc_b"]


# ---------------- deterministic parameter construction --------------------------
def _normal(key, shape, std=0.05):
    return (jax.random.normal(key, shape) * std).astype(jnp.float32)


def init_gru(key, d_in, h):
    ks = jax.random.split(key, 4)
    return dict(
        wih=_normal(ks[0], (d_in, 6 * h)),     # [fwd r,z,n | bwd r,z,n]
        whh=_normal(ks[1], (2, h, 3 * h)),     # per-direction recurrent weights
        bih=_normal(ks[2], (1, 6 * h)),
        bhh=_normal(ks[3], (2, 1, 3 * h)),
    )


def init_params(key):
    ks = jax.random.split(key, 12)
    dw, ds = 2 * WORD_H, 2 * SENT_H
    return dict(
        embedding=_normal(ks[0], (VOCAB, EMBED), std=1.0),
        word_gru=init_gru(ks[1], EMBED, WORD_H),
        sent_gru=init_gru(ks[2], 2 * WORD_H, SENT_H),
        word_w=_normal(ks[3], (dw, dw)), word_b=_normal(ks[4], (1, dw)),
        word_c=_normal(ks[5], (dw, 1)),
        sent_w=_normal(ks[6], (ds, ds)), sent_b=_normal(ks[7], (1, ds)),
        sent_c=_normal(ks[8], (ds, 1)),
        fc_w=_normal(ks[9], (ds, NUM_CLASSES)), fc_b=_normal(ks[10], (1, NUM_CLASSES)),
    )


# ---------------- main -----------------------------------------------------------
if __name__ == "__main__":
    key = jax.random.PRNGKey(0)
    k_param, k_in = jax.random.split(key)
    params = init_params(k_param)
    x_idx = jax.random.randint(k_in, (BATCH, MAX_SENT, MAX_WORD), 0, VOCAB,
                               dtype=jnp.int32)

    fwd = jax.jit(hier_att_forward)
    logits = fwd(params, x_idx)
    jax.block_until_ready(logits)

    ref = hier_att_forward_ref(params, x_idx)
    jax.block_until_ready(ref)

    assert logits.shape == (BATCH, NUM_CLASSES)
    # tolerance slightly loosened for the approx-reciprocal softmax denominator
    assert jnp.allclose(logits, ref, atol=2e-3, rtol=2e-3), (logits, ref)
    print("KERNEL_OK")
</pallas_src>

<mosaic_0001>
module attributes {stable_mosaic.version = 11 : i64} {
  func.func @han_kernel(%arg0: memref<144x1xi32, #tpu.memory_space<vmem>>, %arg1: memref<30x12xf32, #tpu.memory_space<vmem>>, %arg2: memref<12x48xf32, #tpu.memory_space<vmem>>, %arg3: memref<2x8x24xf32, #tpu.memory_space<vmem>>, %arg4: memref<1x48xf32, #tpu.memory_space<vmem>>, %arg5: memref<2x1x24xf32, #tpu.memory_space<vmem>>, %arg6: memref<16x48xf32, #tpu.memory_space<vmem>>, %arg7: memref<2x8x24xf32, #tpu.memory_space<vmem>>, %arg8: memref<1x48xf32, #tpu.memory_space<vmem>>, %arg9: memref<2x1x24xf32, #tpu.memory_space<vmem>>, %arg10: memref<16x16xf32, #tpu.memory_space<vmem>>, %arg11: memref<1x16xf32, #tpu.memory_space<vmem>>, %arg12: memref<16x1xf32, #tpu.memory_space<vmem>>, %arg13: memref<16x16xf32, #tpu.memory_space<vmem>>, %arg14: memref<1x16xf32, #tpu.memory_space<vmem>>, %arg15: memref<16x1xf32, #tpu.memory_space<vmem>>, %arg16: memref<16x128xf32, #tpu.memory_space<vmem>>, %arg17: memref<1x128xf32, #tpu.memory_space<vmem>>, %arg18: memref<8x128xf32, #tpu.memory_space<vmem>>, %arg19: memref<48x16xf32, #tpu.memory_space<vmem>>, %arg20: memref<24x16xf32, #tpu.memory_space<vmem>>, %arg21: memref<24x16xf32, #tpu.memory_space<vmem>>) attributes {dimension_semantics = [], scalar_prefetch = 0 : i64, scratch_operands = 3 : i64, tpu.core_type = #tpu.core_type<tc>} {
    %c0 = arith.constant 0 : index
    %c0_0 = arith.constant 0 : index
    %0 = vector.load %arg0[%c0, %c0_0] : memref<144x1xi32, #tpu.memory_space<vmem>>, vector<144x1xi32>
    %1 = tpu.iota {dimensions = array<i32: 1>} : vector<144x30xi32>
    %2 = vector.broadcast %0 : vector<144x1xi32> to vector<144x30xi32>
    %3 = arith.cmpi eq, %2, %1 : vector<144x30xi32>
    %cst = arith.constant 1.000000e+00 : f32
    %cst_1 = arith.constant 0.000000e+00 : f32
    %4 = vector.broadcast %cst : f32 to vector<144x30xf32>
    %5 = vector.broadcast %cst_1 : f32 to vector<144x30xf32>
    %6 = arith.select %3, %4, %5 : vector<144x30xi1>, vector<144x30xf32>
    %c0_2 = arith.constant 0 : index
    %c0_3 = arith.constant 0 : index
    %7 = vector.load %arg1[%c0_2, %c0_3] : memref<30x12xf32, #tpu.memory_space<vmem>>, vector<30x12xf32>
    %cst_4 = arith.constant dense<0.000000e+00> : vector<144x12xf32>
    %8 = tpu.matmul %6, %7, %cst_4 {dimension_numbers = #tpu.dot_dimension_numbers<[1], [0], [0], [1], [0, 0, 1, 1], [], []>} : vector<144x30xf32>, vector<30x12xf32>, vector<144x12xf32> -> vector<144x12xf32>
    %c0_5 = arith.constant 0 : index
    %c0_6 = arith.constant 0 : index
    %9 = vector.load %arg2[%c0_5, %c0_6] : memref<12x48xf32, #tpu.memory_space<vmem>>, vector<12x48xf32>
    %cst_7 = arith.constant dense<0.000000e+00> : vector<144x48xf32>
    %10 = tpu.matmul %8, %9, %cst_7 {dimension_numbers = #tpu.dot_dimension_numbers<[1], [0], [0], [1], [0, 0, 1, 1], [], []>} : vector<144x12xf32>, vector<12x48xf32>, vector<144x48xf32> -> vector<144x48xf32>
    %c0_8 = arith.constant 0 : index
    %c0_9 = arith.constant 0 : index
    %11 = vector.load %arg4[%c0_8, %c0_9] : memref<1x48xf32, #tpu.memory_space<vmem>>, vector<1x48xf32>
    %12 = vector.broadcast %11 : vector<1x48xf32> to vector<144x48xf32>
    %13 = arith.addf %10, %12 : vector<144x48xf32>
    %c0_10 = arith.constant 0 : index
    %c0_11 = arith.constant 0 : index
    %c0_12 = arith.constant 0 : index
    %14 = vector.load %arg3[%c0_10, %c0_11, %c0_12] : memref<2x8x24xf32, #tpu.memory_space<vmem>>, vector<1x8x24xf32>
    %15 = vector.shape_cast %14 : vector<1x8x24xf32> to vector<8x24xf32>
    %c1 = arith.constant 1 : index
    %c0_13 = arith.constant 0 : index
    %c0_14 = arith.constant 0 : index
    %16 = vector.load %arg3[%c1, %c0_13, %c0_14] : memref<2x8x24xf32, #tpu.memory_space<vmem>>, vector<1x8x24xf32>
    %17 = vector.shape_cast %16 : vector<1x8x24xf32> to vector<8x24xf32>
    %c0_15 = arith.constant 0 : index
    %c0_16 = arith.constant 0 : index
    %c0_17 = arith.constant 0 : index
    %18 = vector.load %arg5[%c0_15, %c0_16, %c0_17] : memref<2x1x24xf32, #tpu.memory_space<vmem>>, vector<1x1x24xf32>
    %19 = vector.shape_cast %18 : vector<1x1x24xf32> to vector<1x24xf32>
    %c1_18 = arith.constant 1 : index
    %c0_19 = arith.constant 0 : index
    %c0_20 = arith.constant 0 : index
    %20 = vector.load %arg5[%c1_18, %c0_19, %c0_20] : memref<2x1x24xf32, #tpu.memory_space<vmem>>, vector<1x1x24xf32>
    %21 = vector.shape_cast %20 : vector<1x1x24xf32> to vector<1x24xf32>
    %cst_21 = arith.constant 0.000000e+00 : f32
    %22 = vector.broadcast %cst_21 : f32 to vector<8x8xf32>
    %cst_22 = arith.constant 0.000000e+00 : f32
    %23 = vector.broadcast %cst_22 : f32 to vector<8x8xf32>
    %24 = vector.extract_strided_slice %13 {offsets = [0, 0], sizes = [8, 24], strides = [1, 1]} : vector<144x48xf32> to vector<8x24xf32>
    %cst_23 = arith.constant dense<0.000000e+00> : vector<8x24xf32>
    %25 = tpu.matmul %22, %15, %cst_23 {dimension_numbers = #tpu.dot_dimension_numbers<[1], [0], [0], [1], [0, 0, 1, 1], [], []>} : vector<8x8xf32>, vector<8x24xf32>, vector<8x24xf32> -> vector<8x24xf32>
    %26 = vector.broadcast %19 : vector<1x24xf32> to vector<8x24xf32>
    %27 = arith.addf %25, %26 : vector<8x24xf32>
    %28 = vector.extract_strided_slice %24 {offsets = [0, 0], sizes = [8, 8], strides = [1, 1]} : vector<8x24xf32> to vector<8x8xf32>
    %29 = vector.extract_strided_slice %27 {offsets = [0, 0], sizes = [8, 8], strides = [1, 1]} : vector<8x24xf32> to vector<8x8xf32>
    %30 = arith.addf %28, %29 : vector<8x8xf32>
    %31 = arith.negf %30 : vector<8x8xf32>
    %32 = math.exp %31 : vector<8x8xf32>
    %cst_24 = arith.constant 1.000000e+00 : f32
    %33 = vector.broadcast %cst_24 : f32 to vector<8x8xf32>
    %34 = arith.addf %33, %32 : vector<8x8xf32>
    %35 = arith.divf %33, %34 : vector<8x8xf32>
    %36 = vector.extract_strided_slice %24 {offsets = [0, 8], sizes = [8, 8], strides = [1, 1]} : vector<8x24xf32> to vector<8x8xf32>
    %37 = vector.extract_strided_slice %27 {offsets = [0, 8], sizes = [8, 8], strides = [1, 1]} : vector<8x24xf32> to vector<8x8xf32>
    %38 = arith.addf %36, %37 : vector<8x8xf32>
    %39 = arith.negf %38 : vector<8x8xf32>
    %40 = math.exp %39 : vector<8x8xf32>
    %cst_25 = arith.constant 1.000000e+00 : f32
    %41 = vector.broadcast %cst_25 : f32 to vector<8x8xf32>
    %42 = arith.addf %41, %40 : vector<8x8xf32>
    %43 = arith.divf %41, %42 : vector<8x8xf32>
    %44 = vector.extract_strided_slice %24 {offsets = [0, 16], sizes = [8, 8], strides = [1, 1]} : vector<8x24xf32> to vector<8x8xf32>
    %45 = vector.extract_strided_slice %27 {offsets = [0, 16], sizes = [8, 8], strides = [1, 1]} : vector<8x24xf32> to vector<8x8xf32>
    %46 = arith.mulf %35, %45 : vector<8x8xf32>
    %47 = arith.addf %44, %46 : vector<8x8xf32>
    %48 = math.tanh %47 : vector<8x8xf32>
    %cst_26 = arith.constant 1.000000e+00 : f32
    %49 = vector.broadcast %cst_26 : f32 to vector<8x8xf32>
    %50 = arith.subf %49, %43 : vector<8x8xf32>
    %51 = arith.mulf %50, %48 : vector<8x8xf32>
    %52 = arith.mulf %43, %22 : vector<8x8xf32>
    %53 = arith.addf %51, %52 : vector<8x8xf32>
    %c0_27 = arith.constant 0 : index
    %c0_28 = arith.constant 0 : index
    %54 = vector.load %arg19[%c0_27, %c0_28] : memref<48x16xf32, #tpu.memory_space<vmem>>, vector<8x8xf32>
    tpu.vector_store %arg19[%c0_27, %c0_28], %53 {strides = array<i32>} : memref<48x16xf32, #tpu.memory_space<vmem>>, vector<8x8xf32>,
    %55 = vector.extract_strided_slice %13 {offsets = [8, 0], sizes = [8, 24], strides = [1, 1]} : vector<144x48xf32> to vector<8x24xf32>
    %cst_29 = arith.constant dense<0.000000e+00> : vector<8x24xf32>
    %56 = tpu.matmul %53, %15, %cst_29 {dimension_numbers = #tpu.dot_dimension_numbers<[1], [0], [0], [1], [0, 0, 1, 1], [], []>} : vector<8x8xf32>, vector<8x24xf32>, vector<8x24xf32> -> vector<8x24xf32>
    %57 = vector.broadcast %19 : vector<1x24xf32> to vector<8x24xf32>
    %58 = arith.addf %56, %57 : vector<8x24xf32>
    %59 = vector.extract_strided_slice %55 {offsets = [0, 0], sizes = [8, 8], strides = [1, 1]} : vector<8x24xf32> to vector<8x8xf32>
    %60 = vector.extract_strided_slice %58 {offsets = [0, 0], sizes = [8, 8], strides = [1, 1]} : vector<8x24xf32> to vector<8x8xf32>
    %61 = arith.addf %59, %60 : vector<8x8xf32>
    %62 = arith.negf %61 : vector<8x8xf32>
    %63 = math.exp %62 : vector<8x8xf32>
    %cst_30 = arith.constant 1.000000e+00 : f32
    %64 = vector.broadcast %cst_30 : f32 to vector<8x8xf32>
    %65 = arith.addf %64, %63 : vector<8x8xf32>
    %66 = arith.divf %64, %65 : vector<8x8xf32>
    %67 = vector.extract_strided_slice %55 {offsets = [0, 8], sizes = [8, 8], strides = [1, 1]} : vector<8x24xf32> to vector<8x8xf32>
    %68 = vector.extract_strided_slice %58 {offsets = [0, 8], sizes = [8, 8], strides = [1, 1]} : vector<8x24xf32> to vector<8x8xf32>
    %69 = arith.addf %67, %68 : vector<8x8xf32>
    %70 = arith.negf %69 : vector<8x8xf32>
    %71 = math.exp %70 : vector<8x8xf32>
    %cst_31 = arith.constant 1.000000e+00 : f32
    %72 = vector.broadcast %cst_31 : f32 to vector<8x8xf32>
    %73 = arith.addf %72, %71 : vector<8x8xf32>
    %74 = arith.divf %72, %73 : vector<8x8xf32>
    %75 = vector.extract_strided_slice %55 {offsets = [0, 16], sizes = [8, 8], strides = [1, 1]} : vector<8x24xf32> to vector<8x8xf32>
    %76 = vector.extract_strided_slice %58 {offsets = [0, 16], sizes = [8, 8], strides = [1, 1]} : vector<8x24xf32> to vector<8x8xf32>
    %77 = arith.mulf %66, %76 : vector<8x8xf32>
    %78 = arith.addf %75, %77 : vector<8x8xf32>
    %79 = math.tanh %78 : vector<8x8xf32>
    %cst_32 = arith.constant 1.000000e+00 : f32
    %80 = vector.broadcast %cst_32 : f32 to vector<8x8xf32>
    %81 = arith.subf %80, %74 : vector<8x8xf32>
    %82 = arith.mulf %81, %79 : vector<8x8xf32>
    %83 = arith.mulf %74, %53 : vector<8x8xf32>
    %84 = arith.addf %82, %83 : vector<8x8xf32>
    %c8 = arith.constant 8 : index
    %c0_33 = arith.constant 0 : index
    %85 = vector.load %arg19[%c8, %c0_33] : memref<48x16xf32, #tpu.memory_space<vmem>>, vector<8x8xf32>
    tpu.vector_store %arg19[%c8, %c0_33], %84 {strides = array<i32>} : memref<48x16xf32, #tpu.memory_space<vmem>>, vector<8x8xf32>,
    %86 = vector.extract_strided_slice %13 {offsets = [16, 0], sizes = [8, 24], strides = [1, 1]} : vector<144x48xf32> to vector<8x24xf32>
    %cst_34 = arith.constant dense<0.000000e+00> : vector<8x24xf32>
    %87 = tpu.matmul %84, %15, %cst_34 {dimension_numbers = #tpu.dot_dimension_numbers<[1], [0], [0], [1], [0, 0, 1, 1], [], []>} : vector<8x8xf32>, vector<8x24xf32>, vector<8x24xf32> -> vector<8x24xf32>
    %88 = vector.broadcast %19 : vector<1x24xf32> to vector<8x24xf32>
    %89 = arith.addf %87, %88 : vector<8x24xf32>
    %90 = vector.extract_strided_slice %86 {offsets = [0, 0], sizes = [8, 8], strides = [1, 1]} : vector<8x24xf32> to vector<8x8xf32>
    %91 = vector.extract_strided_slice %89 {offsets = [0, 0], sizes = [8, 8], strides = [1, 1]} : vector<8x24xf32> to vector<8x8xf32>
    %92 = arith.addf %90, %91 : vector<8x8xf32>
    %93 = arith.negf %92 : vector<8x8xf32>
    %94 = math.exp %93 : vector<8x8xf32>
    %cst_35 = arith.constant 1.000000e+00 : f32
    %95 = vector.broadcast %cst_35 : f32 to vector<8x8xf32>
    %96 = arith.addf %95, %94 : vector<8x8xf32>
    %97 = arith.divf %95, %96 : vector<8x8xf32>
    %98 = vector.extract_strided_slice %86 {offsets = [0, 8], sizes = [8, 8], strides = [1, 1]} : vector<8x24xf32> to vector<8x8xf32>
    %99 = vector.extract_strided_slice %89 {offsets = [0, 8], sizes = [8, 8], strides = [1, 1]} : vector<8x24xf32> to vector<8x8xf32>
    %100 = arith.addf %98, %99 : vector<8x8xf32>
    %101 = arith.negf %100 : vector<8x8xf32>
    %102 = math.exp %101 : vector<8x8xf32>
    %cst_36 = arith.constant 1.000000e+00 : f32
    %103 = vector.broadcast %cst_36 : f32 to vector<8x8xf32>
    %104 = arith.addf %103, %102 : vector<8x8xf32>
    %105 = arith.divf %103, %104 : vector<8x8xf32>
    %106 = vector.extract_strided_slice %86 {offsets = [0, 16], sizes = [8, 8], strides = [1, 1]} : vector<8x24xf32> to vector<8x8xf32>
    %107 = vector.extract_strided_slice %89 {offsets = [0, 16], sizes = [8, 8], strides = [1, 1]} : vector<8x24xf32> to vector<8x8xf32>
    %108 = arith.mulf %97, %107 : vector<8x8xf32>
    %109 = arith.addf %106, %108 : vector<8x8xf32>
    %110 = math.tanh %109 : vector<8x8xf32>
    %cst_37 = arith.constant 1.000000e+00 : f32
    %111 = vector.broadcast %cst_37 : f32 to vector<8x8xf32>
    %112 = arith.subf %111, %105 : vector<8x8xf32>
    %113 = arith.mulf %112, %110 : vector<8x8xf32>
    %114 = arith.mulf %105, %84 : vector<8x8xf32>
    %115 = arith.addf %113, %114 : vector<8x8xf32>
    %c16 = arith.constant 16 : index
    %c0_38 = arith.constant 0 : index
    %116 = vector.load %arg19[%c16, %c0_38] : memref<48x16xf32, #tpu.memory_space<vmem>>, vector<8x8xf32>
    tpu.vector_store %arg19[%c16, %c0_38], %115 {strides = array<i32>} : memref<48x16xf32, #tpu.memory_space<vmem>>, vector<8x8xf32>,
    %117 = vector.extract_strided_slice %13 {offsets = [24, 0], sizes = [8, 24], strides = [1, 1]} : vector<144x48xf32> to vector<8x24xf32>
    %cst_39 = arith.constant dense<0.000000e+00> : vector<8x24xf32>
    %118 = tpu.matmul %115, %15, %cst_39 {dimension_numbers = #tpu.dot_dimension_numbers<[1], [0], [0], [1], [0, 0, 1, 1], [], []>} : vector<8x8xf32>, vector<8x24xf32>, vector<8x24xf32> -> vector<8x24xf32>
    %119 = vector.broadcast %19 : vector<1x24xf32> to vector<8x24xf32>
    %120 = arith.addf %118, %119 : vector<8x24xf32>
    %121 = vector.extract_strided_slice %117 {offsets = [0, 0], sizes = [8, 8], strides = [1, 1]} : vector<8x24xf32> to vector<8x8xf32>
    %122 = vector.extract_strided_slice %120 {offsets = [0, 0], sizes = [8, 8], strides = [1, 1]} : vector<8x24xf32> to vector<8x8xf32>
    %123 = arith.addf %121, %122 : vector<8x8xf32>
    %124 = arith.negf %123 : vector<8x8xf32>
    %125 = math.exp %124 : vector<8x8xf32>
    %cst_40 = arith.constant 1.000000e+00 : f32
    %126 = vector.broadcast %cst_40 : f32 to vector<8x8xf32>
    %127 = arith.addf %126, %125 : vector<8x8xf32>
    %128 = arith.divf %126, %127 : vector<8x8xf32>
    %129 = vector.extract_strided_slice %117 {offsets = [0, 8], sizes = [8, 8], strides = [1, 1]} : vector<8x24xf32> to vector<8x8xf32>
    %130 = vector.extract_strided_slice %120 {offsets = [0, 8], sizes = [8, 8], strides = [1, 1]} : vector<8x24xf32> to vector<8x8xf32>
    %131 = arith.addf %129, %130 : vector<8x8xf32>
    %132 = arith.negf %131 : vector<8x8xf32>
    %133 = math.exp %132 : vector<8x8xf32>
    %cst_41 = arith.constant 1.000000e+00 : f32
    %134 = vector.broadcast %cst_41 : f32 to vector<8x8xf32>
    %135 = arith.addf %134, %133 : vector<8x8xf32>
    %136 = arith.divf %134, %135 : vector<8x8xf32>
    %137 = vector.extract_strided_slice %117 {offsets = [0, 16], sizes = [8, 8], strides = [1, 1]} : vector<8x24xf32> to vector<8x8xf32>
    %138 = vector.extract_strided_slice %120 {offsets = [0, 16], sizes = [8, 8], strides = [1, 1]} : vector<8x24xf32> to vector<8x8xf32>
    %139 = arith.mulf %128, %138 : vector<8x8xf32>
    %140 = arith.addf %137, %139 : vector<8x8xf32>
    %141 = math.tanh %140 : vector<8x8xf32>
    %cst_42 = arith.constant 1.000000e+00 : f32
    %142 = vector.broadcast %cst_42 : f32 to vector<8x8xf32>
    %143 = arith.subf %142, %136 : vector<8x8xf32>
    %144 = arith.mulf %143, %141 : vector<8x8xf32>
    %145 = arith.mulf %136, %115 : vector<8x8xf32>
    %146 = arith.addf %144, %145 : vector<8x8xf32>
    %c24 = arith.constant 24 : index
    %c0_43 = arith.constant 0 : index
    %147 = vector.load %arg19[%c24, %c0_43] : memref<48x16xf32, #tpu.memory_space<vmem>>, vector<8x8xf32>
    tpu.vector_store %arg19[%c24, %c0_43], %146 {strides = array<i32>} : memref<48x16xf32, #tpu.memory_space<vmem>>, vector<8x8xf32>,
    %148 = vector.extract_strided_slice %13 {offsets = [32, 0], sizes = [8, 24], strides = [1, 1]} : vector<144x48xf32> to vector<8x24xf32>
    %cst_44 = arith.constant dense<0.000000e+00> : vector<8x24xf32>
    %149 = tpu.matmul %146, %15, %cst_44 {dimension_numbers = #tpu.dot_dimension_numbers<[1], [0], [0], [1], [0, 0, 1, 1], [], []>} : vector<8x8xf32>, vector<8x24xf32>, vector<8x24xf32> -> vector<8x24xf32>
    %150 = vector.broadcast %19 : vector<1x24xf32> to vector<8x24xf32>
    %151 = arith.addf %149, %150 : vector<8x24xf32>
    %152 = vector.extract_strided_slice %148 {offsets = [0, 0], sizes = [8, 8], strides = [1, 1]} : vector<8x24xf32> to vector<8x8xf32>
    %153 = vector.extract_strided_slice %151 {offsets = [0, 0], sizes = [8, 8], strides = [1, 1]} : vector<8x24xf32> to vector<8x8xf32>
    %154 = arith.addf %152, %153 : vector<8x8xf32>
    %155 = arith.negf %154 : vector<8x8xf32>
    %156 = math.exp %155 : vector<8x8xf32>
    %cst_45 = arith.constant 1.000000e+00 : f32
    %157 = vector.broadcast %cst_45 : f32 to vector<8x8xf32>
    %158 = arith.addf %157, %156 : vector<8x8xf32>
    %159 = arith.divf %157, %158 : vector<8x8xf32>
    %160 = vector.extract_strided_slice %148 {offsets = [0, 8], sizes = [8, 8], strides = [1, 1]} : vector<8x24xf32> to vector<8x8xf32>
    %161 = vector.extract_strided_slice %151 {offsets = [0, 8], sizes = [8, 8], strides = [1, 1]} : vector<8x24xf32> to vector<8x8xf32>
    %162 = arith.addf %160, %161 : vector<8x8xf32>
    %163 = arith.negf %162 : vector<8x8xf32>
    %164 = math.exp %163 : vector<8x8xf32>
    %cst_46 = arith.constant 1.000000e+00 : f32
    %165 = vector.broadcast %cst_46 : f32 to vector<8x8xf32>
    %166 = arith.addf %165, %164 : vector<8x8xf32>
    %167 = arith.divf %165, %166 : vector<8x8xf32>
    %168 = vector.extract_strided_slice %148 {offsets = [0, 16], sizes = [8, 8], strides = [1, 1]} : vector<8x24xf32> to vector<8x8xf32>
    %169 = vector.extract_strided_slice %151 {offsets = [0, 16], sizes = [8, 8], strides = [1, 1]} : vector<8x24xf32> to vector<8x8xf32>
    %170 = arith.mulf %159, %169 : vector<8x8xf32>
    %171 = arith.addf %168, %170 : vector<8x8xf32>
    %172 = math.tanh %171 : vector<8x8xf32>
    %cst_47 = arith.constant 1.000000e+00 : f32
    %173 = vector.broadcast %cst_47 : f32 to vector<8x8xf32>
    %174 = arith.subf %173, %167 : vector<8x8xf32>
    %175 = arith.mulf %174, %172 : vector<8x8xf32>
    %176 = arith.mulf %167, %146 : vector<8x8xf32>
    %177 = arith.addf %175, %176 : vector<8x8xf32>
    %c32 = arith.constant 32 : index
    %c0_48 = arith.constant 0 : index
    %178 = vector.load %arg19[%c32, %c0_48] : memref<48x16xf32, #tpu.memory_space<vmem>>, vector<8x8xf32>
    tpu.vector_store %arg19[%c32, %c0_48], %177 {strides = array<i32>} : memref<48x16xf32, #tpu.memory_space<vmem>>, vector<8x8xf32>,
    %179 = vector.extract_strided_slice %13 {offsets = [40, 0], sizes = [8, 24], strides = [1, 1]} : vector<144x48xf32> to vector<8x24xf32>
    %cst_49 = arith.constant dense<0.000000e+00> : vector<8x24xf32>
    %180 = tpu.matmul %177, %15, %cst_49 {dimension_numbers = #tpu.dot_dimension_numbers<[1], [0], [0], [1], [0, 0, 1, 1], [], []>} : vector<8x8xf32>, vector<8x24xf32>, vector<8x24xf32> -> vector<8x24xf32>
    %181 = vector.broadcast %19 : vector<1x24xf32> to vector<8x24xf32>
    %182 = arith.addf %180, %181 : vector<8x24xf32>
    %183 = vector.extract_strided_slice %179 {offsets = [0, 0], sizes = [8, 8], strides = [1, 1]} : vector<8x24xf32> to vector<8x8xf32>
    %184 = vector.extract_strided_slice %182 {offsets = [0, 0], sizes = [8, 8], strides = [1, 1]} : vector<8x24xf32> to vector<8x8xf32>
    %185 = arith.addf %183, %184 : vector<8x8xf32>
    %186 = arith.negf %185 : vector<8x8xf32>
    %187 = math.exp %186 : vector<8x8xf32>
    %cst_50 = arith.constant 1.000000e+00 : f32
    %188 = vector.broadcast %cst_50 : f32 to vector<8x8xf32>
    %189 = arith.addf %188, %187 : vector<8x8xf32>
    %190 = arith.divf %188, %189 : vector<8x8xf32>
    %191 = vector.extract_strided_slice %179 {offsets = [0, 8], sizes = [8, 8], strides = [1, 1]} : vector<8x24xf32> to vector<8x8xf32>
    %192 = vector.extract_strided_slice %182 {offsets = [0, 8], sizes = [8, 8], strides = [1, 1]} : vector<8x24xf32> to vector<8x8xf32>
    %193 = arith.addf %191, %192 : vector<8x8xf32>
    %194 = arith.negf %193 : vector<8x8xf32>
    %195 = math.exp %194 : vector<8x8xf32>
    %cst_51 = arith.constant 1.000000e+00 : f32
    %196 = vector.broadcast %cst_51 : f32 to vector<8x8xf32>
    %197 = arith.addf %196, %195 : vector<8x8xf32>
    %198 = arith.divf %196, %197 : vector<8x8xf32>
    %199 = vector.extract_strided_slice %179 {offsets = [0, 16], sizes = [8, 8], strides = [1, 1]} : vector<8x24xf32> to vector<8x8xf32>
    %200 = vector.extract_strided_slice %182 {offsets = [0, 16], sizes = [8, 8], strides = [1, 1]} : vector<8x24xf32> to vector<8x8xf32>
    %201 = arith.mulf %190, %200 : vector<8x8xf32>
    %202 = arith.addf %199, %201 : vector<8x8xf32>
    %203 = math.tanh %202 : vector<8x8xf32>
    %cst_52 = arith.constant 1.000000e+00 : f32
    %204 = vector.broadcast %cst_52 : f32 to vector<8x8xf32>
    %205 = arith.subf %204, %198 : vector<8x8xf32>
    %206 = arith.mulf %205, %203 : vector<8x8xf32>
    %207 = arith.mulf %198, %177 : vector<8x8xf32>
    %208 = arith.addf %206, %207 : vector<8x8xf32>
    %c40 = arith.constant 40 : index
    %c0_53 = arith.constant 0 : index
    %209 = vector.load %arg19[%c40, %c0_53] : memref<48x16xf32, #tpu.memory_space<vmem>>, vector<8x8xf32>
    tpu.vector_store %arg19[%c40, %c0_53], %208 {strides = array<i32>} : memref<48x16xf32, #tpu.memory_space<vmem>>, vector<8x8xf32>,
    %210 = vector.extract_strided_slice %13 {offsets = [40, 24], sizes = [8, 24], strides = [1, 1]} : vector<144x48xf32> to vector<8x24xf32>
    %cst_54 = arith.constant dense<0.000000e+00> : vector<8x24xf32>
    %211 = tpu.matmul %23, %17, %cst_54 {dimension_numbers = #tpu.dot_dimension_numbers<[1], [0], [0], [1], [0, 0, 1, 1], [], []>} : vector<8x8xf32>, vector<8x24xf32>, vector<8x24xf32> -> vector<8x24xf32>
    %212 = vector.broadcast %21 : vector<1x24xf32> to vector<8x24xf32>
    %213 = arith.addf %211, %212 : vector<8x24xf32>
    %214 = vector.extract_strided_slice %210 {offsets = [0, 0], sizes = [8, 8], strides = [1, 1]} : vector<8x24xf32> to vector<8x8xf32>
    %215 = vector.extract_strided_slice %213 {offsets = [0, 0], sizes = [8, 8], strides = [1, 1]} : vector<8x24xf32> to vector<8x8xf32>
    %216 = arith.addf %214, %215 : vector<8x8xf32>
    %217 = arith.negf %216 : vector<8x8xf32>
    %218 = math.exp %217 : vector<8x8xf32>
    %cst_55 = arith.constant 1.000000e+00 : f32
    %219 = vector.broadcast %cst_55 : f32 to vector<8x8xf32>
    %220 = arith.addf %219, %218 : vector<8x8xf32>
    %221 = arith.divf %219, %220 : vector<8x8xf32>
    %222 = vector.extract_strided_slice %210 {offsets = [0, 8], sizes = [8, 8], strides = [1, 1]} : vector<8x24xf32> to vector<8x8xf32>
    %223 = vector.extract_strided_slice %213 {offsets = [0, 8], sizes = [8, 8], strides = [1, 1]} : vector<8x24xf32> to vector<8x8xf32>
    %224 = arith.addf %222, %223 : vector<8x8xf32>
    %225 = arith.negf %224 : vector<8x8xf32>
    %226 = math.exp %225 : vector<8x8xf32>
    %cst_56 = arith.constant 1.000000e+00 : f32
    %227 = vector.broadcast %cst_56 : f32 to vector<8x8xf32>
    %228 = arith.addf %227, %226 : vector<8x8xf32>
    %229 = arith.divf %227, %228 : vector<8x8xf32>
    %230 = vector.extract_strided_slice %210 {offsets = [0, 16], sizes = [8, 8], strides = [1, 1]} : vector<8x24xf32> to vector<8x8xf32>
    %231 = vector.extract_strided_slice %213 {offsets = [0, 16], sizes = [8, 8], strides = [1, 1]} : vector<8x24xf32> to vector<8x8xf32>
    %232 = arith.mulf %221, %231 : vector<8x8xf32>
    %233 = arith.addf %230, %232 : vector<8x8xf32>
    %234 = math.tanh %233 : vector<8x8xf32>
    %cst_57 = arith.constant 1.000000e+00 : f32
    %235 = vector.broadcast %cst_57 : f32 to vector<8x8xf32>
    %236 = arith.subf %235, %229 : vector<8x8xf32>
    %237 = arith.mulf %236, %234 : vector<8x8xf32>
    %238 = arith.mulf %229, %23 : vector<8x8xf32>
    %239 = arith.addf %237, %238 : vector<8x8xf32>
    %c40_58 = arith.constant 40 : index
    %c8_59 = arith.constant 8 : index
    %240 = vector.load %arg19[%c40_58, %c8_59] : memref<48x16xf32, #tpu.memory_space<vmem>>, vector<8x8xf32>
    tpu.vector_store %arg19[%c40_58, %c8_59], %239 {strides = array<i32>} : memref<48x16xf32, #tpu.memory_space<vmem>>, vector<8x8xf32>,
    %241 = vector.extract_strided_slice %13 {offsets = [32, 24], sizes = [8, 24], strides = [1, 1]} : vector<144x48xf32> to vector<8x24xf32>
    %cst_60 = arith.constant dense<0.000000e+00> : vector<8x24xf32>
    %242 = tpu.matmul %239, %17, %cst_60 {dimension_numbers = #tpu.dot_dimension_numbers<[1], [0], [0], [1], [0, 0, 1, 1], [], []>} : vector<8x8xf32>, vector<8x24xf32>, vector<8x24xf32> -> vector<8x24xf32>
    %243 = vector.broadcast %21 : vector<1x24xf32> to vector<8x24xf32>
    %244 = arith.addf %242, %243 : vector<8x24xf32>
    %245 = vector.extract_strided_slice %241 {offsets = [0, 0], sizes = [8, 8], strides = [1, 1]} : vector<8x24xf32> to vector<8x8xf32>
    %246 = vector.extract_strided_slice %244 {offsets = [0, 0], sizes = [8, 8], strides = [1, 1]} : vector<8x24xf32> to vector<8x8xf32>
    %247 = arith.addf %245, %246 : vector<8x8xf32>
    %248 = arith.negf %247 : vector<8x8xf32>
    %249 = math.exp %248 : vector<8x8xf32>
    %cst_61 = arith.constant 1.000000e+00 : f32
    %250 = vector.broadcast %cst_61 : f32 to vector<8x8xf32>
    %251 = arith.addf %250, %249 : vector<8x8xf32>
    %252 = arith.divf %250, %251 : vector<8x8xf32>
    %253 = vector.extract_strided_slice %241 {offsets = [0, 8], sizes = [8, 8], strides = [1, 1]} : vector<8x24xf32> to vector<8x8xf32>
    %254 = vector.extract_strided_slice %244 {offsets = [0, 8], sizes = [8, 8], strides = [1, 1]} : vector<8x24xf32> to vector<8x8xf32>
    %255 = arith.addf %253, %254 : vector<8x8xf32>
    %256 = arith.negf %255 : vector<8x8xf32>
    %257 = math.exp %256 : vector<8x8xf32>
    %cst_62 = arith.constant 1.000000e+00 : f32
    %258 = vector.broadcast %cst_62 : f32 to vector<8x8xf32>
    %259 = arith.addf %258, %257 : vector<8x8xf32>
    %260 = arith.divf %258, %259 : vector<8x8xf32>
    %261 = vector.extract_strided_slice %241 {offsets = [0, 16], sizes = [8, 8], strides = [1, 1]} : vector<8x24xf32> to vector<8x8xf32>
    %262 = vector.extract_strided_slice %244 {offsets = [0, 16], sizes = [8, 8], strides = [1, 1]} : vector<8x24xf32> to vector<8x8xf32>
    %263 = arith.mulf %252, %262 : vector<8x8xf32>
    %264 = arith.addf %261, %263 : vector<8x8xf32>
    %265 = math.tanh %264 : vector<8x8xf32>
    %cst_63 = arith.constant 1.000000e+00 : f32
    %266 = vector.broadcast %cst_63 : f32 to vector<8x8xf32>
    %267 = arith.subf %266, %260 : vector<8x8xf32>
    %268 = arith.mulf %267, %265 : vector<8x8xf32>
    %269 = arith.mulf %260, %239 : vector<8x8xf32>
    %270 = arith.addf %268, %269 : vector<8x8xf32>
    %c32_64 = arith.constant 32 : index
    %c8_65 = arith.constant 8 : index
    %271 = vector.load %arg19[%c32_64, %c8_65] : memref<48x16xf32, #tpu.memory_space<vmem>>, vector<8x8xf32>
    tpu.vector_store %arg19[%c32_64, %c8_65], %270 {strides = array<i32>} : memref<48x16xf32, #tpu.memory_space<vmem>>, vector<8x8xf32>,
    %272 = vector.extract_strided_slice %13 {offsets = [24, 24], sizes = [8, 24], strides = [1, 1]} : vector<144x48xf32> to vector<8x24xf32>
    %cst_66 = arith.constant dense<0.000000e+00> : vector<8x24xf32>
    %273 = tpu.matmul %270, %17, %cst_66 {dimension_numbers = #tpu.dot_dimension_numbers<[1], [0], [0], [1], [0, 0, 1, 1], [], []>} : vector<8x8xf32>, vector<8x24xf32>, vector<8x24xf32> -> vector<8x24xf32>
    %274 = vector.broadcast %21 : vector<1x24xf32> to vector<8x24xf32>
    %275 = arith.addf %273, %274 : vector<8x24xf32>
    %276 = vector.extract_strided_slice %272 {offsets = [0, 0], sizes = [8, 8], strides = [1, 1]} : vector<8x24xf32> to vector<8x8xf32>
    %277 = vector.extract_strided_slice %275 {offsets = [0, 0], sizes = [8, 8], strides = [1, 1]} : vector<8x24xf32> to vector<8x8xf32>
    %278 = arith.addf %276, %277 : vector<8x8xf32>
    %279 = arith.negf %278 : vector<8x8xf32>
    %280 = math.exp %279 : vector<8x8xf32>
    %cst_67 = arith.constant 1.000000e+00 : f32
    %281 = vector.broadcast %cst_67 : f32 to vector<8x8xf32>
    %282 = arith.addf %281, %280 : vector<8x8xf32>
    %283 = arith.divf %281, %282 : vector<8x8xf32>
    %284 = vector.extract_strided_slice %272 {offsets = [0, 8], sizes = [8, 8], strides = [1, 1]} : vector<8x24xf32> to vector<8x8xf32>
    %285 = vector.extract_strided_slice %275 {offsets = [0, 8], sizes = [8, 8], strides = [1, 1]} : vector<8x24xf32> to vector<8x8xf32>
    %286 = arith.addf %284, %285 : vector<8x8xf32>
    %287 = arith.negf %286 : vector<8x8xf32>
    %288 = math.exp %287 : vector<8x8xf32>
    %cst_68 = arith.constant 1.000000e+00 : f32
    %289 = vector.broadcast %cst_68 : f32 to vector<8x8xf32>
    %290 = arith.addf %289, %288 : vector<8x8xf32>
    %291 = arith.divf %289, %290 : vector<8x8xf32>
    %292 = vector.extract_strided_slice %272 {offsets = [0, 16], sizes = [8, 8], strides = [1, 1]} : vector<8x24xf32> to vector<8x8xf32>
    %293 = vector.extract_strided_slice %275 {offsets = [0, 16], sizes = [8, 8], strides = [1, 1]} : vector<8x24xf32> to vector<8x8xf32>
    %294 = arith.mulf %283, %293 : vector<8x8xf32>
    %295 = arith.addf %292, %294 : vector<8x8xf32>
    %296 = math.tanh %295 : vector<8x8xf32>
    %cst_69 = arith.constant 1.000000e+00 : f32
    %297 = vector.broadcast %cst_69 : f32 to vector<8x8xf32>
    %298 = arith.subf %297, %291 : vector<8x8xf32>
    %299 = arith.mulf %298, %296 : vector<8x8xf32>
    %300 = arith.mulf %291, %270 : vector<8x8xf32>
    %301 = arith.addf %299, %300 : vector<8x8xf32>
    %c24_70 = arith.constant 24 : index
    %c8_71 = arith.constant 8 : index
    %302 = vector.load %arg19[%c24_70, %c8_71] : memref<48x16xf32, #tpu.memory_space<vmem>>, vector<8x8xf32>
    tpu.vector_store %arg19[%c24_70, %c8_71], %301 {strides = array<i32>} : memref<48x16xf32, #tpu.memory_space<vmem>>, vector<8x8xf32>,
    %303 = vector.extract_strided_slice %13 {offsets = [16, 24], sizes = [8, 24], strides = [1, 1]} : vector<144x48xf32> to vector<8x24xf32>
    %cst_72 = arith.constant dense<0.000000e+00> : vector<8x24xf32>
    %304 = tpu.matmul %301, %17, %cst_72 {dimension_numbers = #tpu.dot_dimension_numbers<[1], [0], [0], [1], [0, 0, 1, 1], [], []>} : vector<8x8xf32>, vector<8x24xf32>, vector<8x24xf32> -> vector<8x24xf32>
    %305 = vector.broadcast %21 : vector<1x24xf32> to vector<8x24xf32>
    %306 = arith.addf %304, %305 : vector<8x24xf32>
    %307 = vector.extract_strided_slice %303 {offsets = [0, 0], sizes = [8, 8], strides = [1, 1]} : vector<8x24xf32> to vector<8x8xf32>
    %308 = vector.extract_strided_slice %306 {offsets = [0, 0], sizes = [8, 8], strides = [1, 1]} : vector<8x24xf32> to vector<8x8xf32>
    %309 = arith.addf %307, %308 : vector<8x8xf32>
    %310 = arith.negf %309 : vector<8x8xf32>
    %311 = math.exp %310 : vector<8x8xf32>
    %cst_73 = arith.constant 1.000000e+00 : f32
    %312 = vector.broadcast %cst_73 : f32 to vector<8x8xf32>
    %313 = arith.addf %312, %311 : vector<8x8xf32>
    %314 = arith.divf %312, %313 : vector<8x8xf32>
    %315 = vector.extract_strided_slice %303 {offsets = [0, 8], sizes = [8, 8], strides = [1, 1]} : vector<8x24xf32> to vector<8x8xf32>
    %316 = vector.extract_strided_slice %306 {offsets = [0, 8], sizes = [8, 8], strides = [1, 1]} : vector<8x24xf32> to vector<8x8xf32>
    %317 = arith.addf %315, %316 : vector<8x8xf32>
    %318 = arith.negf %317 : vector<8x8xf32>
    %319 = math.exp %318 : vector<8x8xf32>
    %cst_74 = arith.constant 1.000000e+00 : f32
    %320 = vector.broadcast %cst_74 : f32 to vector<8x8xf32>
    %321 = arith.addf %320, %319 : vector<8x8xf32>
    %322 = arith.divf %320, %321 : vector<8x8xf32>
    %323 = vector.extract_strided_slice %303 {offsets = [0, 16], sizes = [8, 8], strides = [1, 1]} : vector<8x24xf32> to vector<8x8xf32>
    %324 = vector.extract_strided_slice %306 {offsets = [0, 16], sizes = [8, 8], strides = [1, 1]} : vector<8x24xf32> to vector<8x8xf32>
    %325 = arith.mulf %314, %324 : vector<8x8xf32>
    %326 = arith.addf %323, %325 : vector<8x8xf32>
    %327 = math.tanh %326 : vector<8x8xf32>
    %cst_75 = arith.constant 1.000000e+00 : f32
    %328 = vector.broadcast %cst_75 : f32 to vector<8x8xf32>
    %329 = arith.subf %328, %322 : vector<8x8xf32>
    %330 = arith.mulf %329, %327 : vector<8x8xf32>
    %331 = arith.mulf %322, %301 : vector<8x8xf32>
    %332 = arith.addf %330, %331 : vector<8x8xf32>
    %c16_76 = arith.constant 16 : index
    %c8_77 = arith.constant 8 : index
    %333 = vector.load %arg19[%c16_76, %c8_77] : memref<48x16xf32, #tpu.memory_space<vmem>>, vector<8x8xf32>
    tpu.vector_store %arg19[%c16_76, %c8_77], %332 {strides = array<i32>} : memref<48x16xf32, #tpu.memory_space<vmem>>, vector<8x8xf32>,
    %334 = vector.extract_strided_slice %13 {offsets = [8, 24], sizes = [8, 24], strides = [1, 1]} : vector<144x48xf32> to vector<8x24xf32>
    %cst_78 = arith.constant dense<0.000000e+00> : vector<8x24xf32>
    %335 = tpu.matmul %332, %17, %cst_78 {dimension_numbers = #tpu.dot_dimension_numbers<[1], [0], [0], [1], [0, 0, 1, 1], [], []>} : vector<8x8xf32>, vector<8x24xf32>, vector<8x24xf32> -> vector<8x24xf32>
    %336 = vector.broadcast %21 : vector<1x24xf32> to vector<8x24xf32>
    %337 = arith.addf %335, %336 : vector<8x24xf32>
    %338 = vector.extract_strided_slice %334 {offsets = [0, 0], sizes = [8, 8], strides = [1, 1]} : vector<8x24xf32> to vector<8x8xf32>
    %339 = vector.extract_strided_slice %337 {offsets = [0, 0], sizes = [8, 8], strides = [1, 1]} : vector<8x24xf32> to vector<8x8xf32>
    %340 = arith.addf %338, %339 : vector<8x8xf32>
    %341 = arith.negf %340 : vector<8x8xf32>
    %342 = math.exp %341 : vector<8x8xf32>
    %cst_79 = arith.constant 1.000000e+00 : f32
    %343 = vector.broadcast %cst_79 : f32 to vector<8x8xf32>
    %344 = arith.addf %343, %342 : vector<8x8xf32>
    %345 = arith.divf %343, %344 : vector<8x8xf32>
    %346 = vector.extract_strided_slice %334 {offsets = [0, 8], sizes = [8, 8], strides = [1, 1]} : vector<8x24xf32> to vector<8x8xf32>
    %347 = vector.extract_strided_slice %337 {offsets = [0, 8], sizes = [8, 8], strides = [1, 1]} : vector<8x24xf32> to vector<8x8xf32>
    %348 = arith.addf %346, %347 : vector<8x8xf32>
    %349 = arith.negf %348 : vector<8x8xf32>
    %350 = math.exp %349 : vector<8x8xf32>
    %cst_80 = arith.constant 1.000000e+00 : f32
    %351 = vector.broadcast %cst_80 : f32 to vector<8x8xf32>
    %352 = arith.addf %351, %350 : vector<8x8xf32>
    %353 = arith.divf %351, %352 : vector<8x8xf32>
    %354 = vector.extract_strided_slice %334 {offsets = [0, 16], sizes = [8, 8], strides = [1, 1]} : vector<8x24xf32> to vector<8x8xf32>
    %355 = vector.extract_strided_slice %337 {offsets = [0, 16], sizes = [8, 8], strides = [1, 1]} : vector<8x24xf32> to vector<8x8xf32>
    %356 = arith.mulf %345, %355 : vector<8x8xf32>
    %357 = arith.addf %354, %356 : vector<8x8xf32>
    %358 = math.tanh %357 : vector<8x8xf32>
    %cst_81 = arith.constant 1.000000e+00 : f32
    %359 = vector.broadcast %cst_81 : f32 to vector<8x8xf32>
    %360 = arith.subf %359, %353 : vector<8x8xf32>
    %361 = arith.mulf %360, %358 : vector<8x8xf32>
    %362 = arith.mulf %353, %332 : vector<8x8xf32>
    %363 = arith.addf %361, %362 : vector<8x8xf32>
    %c8_82 = arith.constant 8 : index
    %c8_83 = arith.constant 8 : index
    %364 = vector.load %arg19[%c8_82, %c8_83] : memref<48x16xf32, #tpu.memory_space<vmem>>, vector<8x8xf32>
    tpu.vector_store %arg19[%c8_82, %c8_83], %363 {strides = array<i32>} : memref<48x16xf32, #tpu.memory_space<vmem>>, vector<8x8xf32>,
    %365 = vector.extract_strided_slice %13 {offsets = [0, 24], sizes = [8, 24], strides = [1, 1]} : vector<144x48xf32> to vector<8x24xf32>
    %cst_84 = arith.constant dense<0.000000e+00> : vector<8x24xf32>
    %366 = tpu.matmul %363, %17, %cst_84 {dimension_numbers = #tpu.dot_dimension_numbers<[1], [0], [0], [1], [0, 0, 1, 1], [], []>} : vector<8x8xf32>, vector<8x24xf32>, vector<8x24xf32> -> vector<8x24xf32>
    %367 = vector.broadcast %21 : vector<1x24xf32> to vector<8x24xf32>
    %368 = arith.addf %366, %367 : vector<8x24xf32>
    %369 = vector.extract_strided_slice %365 {offsets = [0, 0], sizes = [8, 8], strides = [1, 1]} : vector<8x24xf32> to vector<8x8xf32>
    %370 = vector.extract_strided_slice %368 {offsets = [0, 0], sizes = [8, 8], strides = [1, 1]} : vector<8x24xf32> to vector<8x8xf32>
    %371 = arith.addf %369, %370 : vector<8x8xf32>
    %372 = arith.negf %371 : vector<8x8xf32>
    %373 = math.exp %372 : vector<8x8xf32>
    %cst_85 = arith.constant 1.000000e+00 : f32
    %374 = vector.broadcast %cst_85 : f32 to vector<8x8xf32>
    %375 = arith.addf %374, %373 : vector<8x8xf32>
    %376 = arith.divf %374, %375 : vector<8x8xf32>
    %377 = vector.extract_strided_slice %365 {offsets = [0, 8], sizes = [8, 8], strides = [1, 1]} : vector<8x24xf32> to vector<8x8xf32>
    %378 = vector.extract_strided_slice %368 {offsets = [0, 8], sizes = [8, 8], strides = [1, 1]} : vector<8x24xf32> to vector<8x8xf32>
    %379 = arith.addf %377, %378 : vector<8x8xf32>
    %380 = arith.negf %379 : vector<8x8xf32>
    %381 = math.exp %380 : vector<8x8xf32>
    %cst_86 = arith.constant 1.000000e+00 : f32
    %382 = vector.broadcast %cst_86 : f32 to vector<8x8xf32>
    %383 = arith.addf %382, %381 : vector<8x8xf32>
    %384 = arith.divf %382, %383 : vector<8x8xf32>
    %385 = vector.extract_strided_slice %365 {offsets = [0, 16], sizes = [8, 8], strides = [1, 1]} : vector<8x24xf32> to vector<8x8xf32>
    %386 = vector.extract_strided_slice %368 {offsets = [0, 16], sizes = [8, 8], strides = [1, 1]} : vector<8x24xf32> to vector<8x8xf32>
    %387 = arith.mulf %376, %386 : vector<8x8xf32>
    %388 = arith.addf %385, %387 : vector<8x8xf32>
    %389 = math.tanh %388 : vector<8x8xf32>
    %cst_87 = arith.constant 1.000000e+00 : f32
    %390 = vector.broadcast %cst_87 : f32 to vector<8x8xf32>
    %391 = arith.subf %390, %384 : vector<8x8xf32>
    %392 = arith.mulf %391, %389 : vector<8x8xf32>
    %393 = arith.mulf %384, %363 : vector<8x8xf32>
    %394 = arith.addf %392, %393 : vector<8x8xf32>
    %c0_88 = arith.constant 0 : index
    %c8_89 = arith.constant 8 : index
    %395 = vector.load %arg19[%c0_88, %c8_89] : memref<48x16xf32, #tpu.memory_space<vmem>>, vector<8x8xf32>
    tpu.vector_store %arg19[%c0_88, %c8_89], %394 {strides = array<i32>} : memref<48x16xf32, #tpu.memory_space<vmem>>, vector<8x8xf32>,
    %c0_90 = arith.constant 0 : index
    %c0_91 = arith.constant 0 : index
    %396 = vector.load %arg19[%c0_90, %c0_91] : memref<48x16xf32, #tpu.memory_space<vmem>>, vector<48x16xf32>
    %c0_92 = arith.constant 0 : index
    %c0_93 = arith.constant 0 : index
    %397 = vector.load %arg10[%c0_92, %c0_93] : memref<16x16xf32, #tpu.memory_space<vmem>>, vector<16x16xf32>
    %c0_94 = arith.constant 0 : index
    %c0_95 = arith.constant 0 : index
    %398 = vector.load %arg11[%c0_94, %c0_95] : memref<1x16xf32, #tpu.memory_space<vmem>>, vector<1x16xf32>
    %c0_96 = arith.constant 0 : index
    %c0_97 = arith.constant 0 : index
    %399 = vector.load %arg12[%c0_96, %c0_97] : memref<16x1xf32, #tpu.memory_space<vmem>>, vector<16x1xf32>
    %cst_98 = arith.constant dense<0.000000e+00> : vector<48x16xf32>
    %400 = tpu.matmul %396, %397, %cst_98 {dimension_numbers = #tpu.dot_dimension_numbers<[1], [0], [0], [1], [0, 0, 1, 1], [], []>} : vector<48x16xf32>, vector<16x16xf32>, vector<48x16xf32> -> vector<48x16xf32>
    %401 = vector.broadcast %398 : vector<1x16xf32> to vector<48x16xf32>
    %402 = arith.addf %400, %401 : vector<48x16xf32>
    %403 = math.tanh %402 : vector<48x16xf32>
    %cst_99 = arith.constant dense<0.000000e+00> : vector<48x1xf32>
    %404 = tpu.matmul %403, %399, %cst_99 {dimension_numbers = #tpu.dot_dimension_numbers<[1], [0], [0], [1], [0, 0, 1, 1], [], []>} : vector<48x16xf32>, vector<16x1xf32>, vector<48x1xf32> -> vector<48x1xf32>
    %405 = math.tanh %404 : vector<48x1xf32>
    %406 = vector.extract_strided_slice %405 {offsets = [0, 0], sizes = [8, 1], strides = [1, 1]} : vector<48x1xf32> to vector<8x1xf32>
    %407 = vector.extract_strided_slice %405 {offsets = [8, 0], sizes = [8, 1], strides = [1, 1]} : vector<48x1xf32> to vector<8x1xf32>
    %408 = vector.extract_strided_slice %405 {offsets = [16, 0], sizes = [8, 1], strides = [1, 1]} : vector<48x1xf32> to vector<8x1xf32>
    %409 = vector.extract_strided_slice %405 {offsets = [24, 0], sizes = [8, 1], strides = [1, 1]} : vector<48x1xf32> to vector<8x1xf32>
    %410 = vector.extract_strided_slice %405 {offsets = [32, 0], sizes = [8, 1], strides = [1, 1]} : vector<48x1xf32> to vector<8x1xf32>
    %411 = vector.extract_strided_slice %405 {offsets = [40, 0], sizes = [8, 1], strides = [1, 1]} : vector<48x1xf32> to vector<8x1xf32>
    %412 = arith.maximumf %406, %407 : vector<8x1xf32>
    %413 = arith.maximumf %412, %408 : vector<8x1xf32>
    %414 = arith.maximumf %413, %409 : vector<8x1xf32>
    %415 = arith.maximumf %414, %410 : vector<8x1xf32>
    %416 = arith.maximumf %415, %411 : vector<8x1xf32>
    %417 = arith.subf %406, %416 : vector<8x1xf32>
    %418 = math.exp %417 : vector<8x1xf32>
    %419 = arith.subf %407, %416 : vector<8x1xf32>
    %420 = math.exp %419 : vector<8x1xf32>
    %421 = arith.subf %408, %416 : vector<8x1xf32>
    %422 = math.exp %421 : vector<8x1xf32>
    %423 = arith.subf %409, %416 : vector<8x1xf32>
    %424 = math.exp %423 : vector<8x1xf32>
    %425 = arith.subf %410, %416 : vector<8x1xf32>
    %426 = math.exp %425 : vector<8x1xf32>
    %427 = arith.subf %411, %416 : vector<8x1xf32>
    %428 = math.exp %427 : vector<8x1xf32>
    %429 = arith.addf %418, %420 : vector<8x1xf32>
    %430 = arith.addf %429, %422 : vector<8x1xf32>
    %431 = arith.addf %430, %424 : vector<8x1xf32>
    %432 = arith.addf %431, %426 : vector<8x1xf32>
    %433 = arith.addf %432, %428 : vector<8x1xf32>
    %434 = tpu.reciprocal %433 {approx = true} : vector<8x1xf32> -> vector<8x1xf32>
    %435 = arith.mulf %418, %434 : vector<8x1xf32>
    %436 = vector.extract_strided_slice %396 {offsets = [0, 0], sizes = [8, 16], strides = [1, 1]} : vector<48x16xf32> to vector<8x16xf32>
    %437 = vector.broadcast %435 : vector<8x1xf32> to vector<8x16xf32>
    %438 = arith.mulf %437, %436 : vector<8x16xf32>
    %439 = arith.mulf %420, %434 : vector<8x1xf32>
    %440 = vector.extract_strided_slice %396 {offsets = [8, 0], sizes = [8, 16], strides = [1, 1]} : vector<48x16xf32> to vector<8x16xf32>
    %441 = vector.broadcast %439 : vector<8x1xf32> to vector<8x16xf32>
    %442 = arith.mulf %441, %440 : vector<8x16xf32>
    %443 = arith.addf %438, %442 : vector<8x16xf32>
    %444 = arith.mulf %422, %434 : vector<8x1xf32>
    %445 = vector.extract_strided_slice %396 {offsets = [16, 0], sizes = [8, 16], strides = [1, 1]} : vector<48x16xf32> to vector<8x16xf32>
    %446 = vector.broadcast %444 : vector<8x1xf32> to vector<8x16xf32>
    %447 = arith.mulf %446, %445 : vector<8x16xf32>
    %448 = arith.addf %443, %447 : vector<8x16xf32>
    %449 = arith.mulf %424, %434 : vector<8x1xf32>
    %450 = vector.extract_strided_slice %396 {offsets = [24, 0], sizes = [8, 16], strides = [1, 1]} : vector<48x16xf32> to vector<8x16xf32>
    %451 = vector.broadcast %449 : vector<8x1xf32> to vector<8x16xf32>
    %452 = arith.mulf %451, %450 : vector<8x16xf32>
    %453 = arith.addf %448, %452 : vector<8x16xf32>
    %454 = arith.mulf %426, %434 : vector<8x1xf32>
    %455 = vector.extract_strided_slice %396 {offsets = [32, 0], sizes = [8, 16], strides = [1, 1]} : vector<48x16xf32> to vector<8x16xf32>
    %456 = vector.broadcast %454 : vector<8x1xf32> to vector<8x16xf32>
    %457 = arith.mulf %456, %455 : vector<8x16xf32>
    %458 = arith.addf %453, %457 : vector<8x16xf32>
    %459 = arith.mulf %428, %434 : vector<8x1xf32>
    %460 = vector.extract_strided_slice %396 {offsets = [40, 0], sizes = [8, 16], strides = [1, 1]} : vector<48x16xf32> to vector<8x16xf32>
    %461 = vector.broadcast %459 : vector<8x1xf32> to vector<8x16xf32>
    %462 = arith.mulf %461, %460 : vector<8x16xf32>
    %463 = arith.addf %458, %462 : vector<8x16xf32>
    %c0_100 = arith.constant 0 : index
    %c0_101 = arith.constant 0 : index
    %464 = vector.load %arg20[%c0_100, %c0_101] : memref<24x16xf32, #tpu.memory_space<vmem>>, vector<8x16xf32>
    tpu.vector_store %arg20[%c0_100, %c0_101], %463 {strides = array<i32>} : memref<24x16xf32, #tpu.memory_space<vmem>>, vector<8x16xf32>,
    %465 = vector.extract_strided_slice %13 {offsets = [48, 0], sizes = [8, 24], strides = [1, 1]} : vector<144x48xf32> to vector<8x24xf32>
    %cst_102 = arith.constant dense<0.000000e+00> : vector<8x24xf32>
    %466 = tpu.matmul %208, %15, %cst_102 {dimension_numbers = #tpu.dot_dimension_numbers<[1], [0], [0], [1], [0, 0, 1, 1], [], []>} : vector<8x8xf32>, vector<8x24xf32>, vector<8x24xf32> -> vector<8x24xf32>
    %467 = vector.broadcast %19 : vector<1x24xf32> to vector<8x24xf32>
    %468 = arith.addf %466, %467 : vector<8x24xf32>
    %469 = vector.extract_strided_slice %465 {offsets = [0, 0], sizes = [8, 8], strides = [1, 1]} : vector<8x24xf32> to vector<8x8xf32>
    %470 = vector.extract_strided_slice %468 {offsets = [0, 0], sizes = [8, 8], strides = [1, 1]} : vector<8x24xf32> to vector<8x8xf32>
    %471 = arith.addf %469, %470 : vector<8x8xf32>
    %472 = arith.negf %471 : vector<8x8xf32>
    %473 = math.exp %472 : vector<8x8xf32>
    %cst_103 = arith.constant 1.000000e+00 : f32
    %474 = vector.broadcast %cst_103 : f32 to vector<8x8xf32>
    %475 = arith.addf %474, %473 : vector<8x8xf32>
    %476 = arith.divf %474, %475 : vector<8x8xf32>
    %477 = vector.extract_strided_slice %465 {offsets = [0, 8], sizes = [8, 8], strides = [1, 1]} : vector<8x24xf32> to vector<8x8xf32>
    %478 = vector.extract_strided_slice %468 {offsets = [0, 8], sizes = [8, 8], strides = [1, 1]} : vector<8x24xf32> to vector<8x8xf32>
    %479 = arith.addf %477, %478 : vector<8x8xf32>
    %480 = arith.negf %479 : vector<8x8xf32>
    %481 = math.exp %480 : vector<8x8xf32>
    %cst_104 = arith.constant 1.000000e+00 : f32
    %482 = vector.broadcast %cst_104 : f32 to vector<8x8xf32>
    %483 = arith.addf %482, %481 : vector<8x8xf32>
    %484 = arith.divf %482, %483 : vector<8x8xf32>
    %485 = vector.extract_strided_slice %465 {offsets = [0, 16], sizes = [8, 8], strides = [1, 1]} : vector<8x24xf32> to vector<8x8xf32>
    %486 = vector.extract_strided_slice %468 {offsets = [0, 16], sizes = [8, 8], strides = [1, 1]} : vector<8x24xf32> to vector<8x8xf32>
    %487 = arith.mulf %476, %486 : vector<8x8xf32>
    %488 = arith.addf %485, %487 : vector<8x8xf32>
    %489 = math.tanh %488 : vector<8x8xf32>
    %cst_105 = arith.constant 1.000000e+00 : f32
    %490 = vector.broadcast %cst_105 : f32 to vector<8x8xf32>
    %491 = arith.subf %490, %484 : vector<8x8xf32>
    %492 = arith.mulf %491, %489 : vector<8x8xf32>
    %493 = arith.mulf %484, %208 : vector<8x8xf32>
    %494 = arith.addf %492, %493 : vector<8x8xf32>
    %c0_106 = arith.constant 0 : index
    %c0_107 = arith.constant 0 : index
    %495 = vector.load %arg19[%c0_106, %c0_107] : memref<48x16xf32, #tpu.memory_space<vmem>>, vector<8x8xf32>
    tpu.vector_store %arg19[%c0_106, %c0_107], %494 {strides = array<i32>} : memref<48x16xf32, #tpu.memory_space<vmem>>, vector<8x8xf32>,
    %496 = vector.extract_strided_slice %13 {offsets = [56, 0], sizes = [8, 24], strides = [1, 1]} : vector<144x48xf32> to vector<8x24xf32>
    %cst_108 = arith.constant dense<0.000000e+00> : vector<8x24xf32>
    %497 = tpu.matmul %494, %15, %cst_108 {dimension_numbers = #tpu.dot_dimension_numbers<[1], [0], [0], [1], [0, 0, 1, 1], [], []>} : vector<8x8xf32>, vector<8x24xf32>, vector<8x24xf32> -> vector<8x24xf32>
    %498 = vector.broadcast %19 : vector<1x24xf32> to vector<8x24xf32>
    %499 = arith.addf %497, %498 : vector<8x24xf32>
    %500 = vector.extract_strided_slice %496 {offsets = [0, 0], sizes = [8, 8], strides = [1, 1]} : vector<8x24xf32> to vector<8x8xf32>
    %501 = vector.extract_strided_slice %499 {offsets = [0, 0], sizes = [8, 8], strides = [1, 1]} : vector<8x24xf32> to vector<8x8xf32>
    %502 = arith.addf %500, %501 : vector<8x8xf32>
    %503 = arith.negf %502 : vector<8x8xf32>
    %504 = math.exp %503 : vector<8x8xf32>
    %cst_109 = arith.constant 1.000000e+00 : f32
    %505 = vector.broadcast %cst_109 : f32 to vector<8x8xf32>
    %506 = arith.addf %505, %504 : vector<8x8xf32>
    %507 = arith.divf %505, %506 : vector<8x8xf32>
    %508 = vector.extract_strided_slice %496 {offsets = [0, 8], sizes = [8, 8], strides = [1, 1]} : vector<8x24xf32> to vector<8x8xf32>
    %509 = vector.extract_strided_slice %499 {offsets = [0, 8], sizes = [8, 8], strides = [1, 1]} : vector<8x24xf32> to vector<8x8xf32>
    %510 = arith.addf %508, %509 : vector<8x8xf32>
    %511 = arith.negf %510 : vector<8x8xf32>
    %512 = math.exp %511 : vector<8x8xf32>
    %cst_110 = arith.constant 1.000000e+00 : f32
    %513 = vector.broadcast %cst_110 : f32 to vector<8x8xf32>
    %514 = arith.addf %513, %512 : vector<8x8xf32>
    %515 = arith.divf %513, %514 : vector<8x8xf32>
    %516 = vector.extract_strided_slice %496 {offsets = [0, 16], sizes = [8, 8], strides = [1, 1]} : vector<8x24xf32> to vector<8x8xf32>
    %517 = vector.extract_strided_slice %499 {offsets = [0, 16], sizes = [8, 8], strides = [1, 1]} : vector<8x24xf32> to vector<8x8xf32>
    %518 = arith.mulf %507, %517 : vector<8x8xf32>
    %519 = arith.addf %516, %518 : vector<8x8xf32>
    %520 = math.tanh %519 : vector<8x8xf32>
    %cst_111 = arith.constant 1.000000e+00 : f32
    %521 = vector.broadcast %cst_111 : f32 to vector<8x8xf32>
    %522 = arith.subf %521, %515 : vector<8x8xf32>
    %523 = arith.mulf %522, %520 : vector<8x8xf32>
    %524 = arith.mulf %515, %494 : vector<8x8xf32>
    %525 = arith.addf %523, %524 : vector<8x8xf32>
    %c8_112 = arith.constant 8 : index
    %c0_113 = arith.constant 0 : index
    %526 = vector.load %arg19[%c8_112, %c0_113] : memref<48x16xf32, #tpu.memory_space<vmem>>, vector<8x8xf32>
    tpu.vector_store %arg19[%c8_112, %c0_113], %525 {strides = array<i32>} : memref<48x16xf32, #tpu.memory_space<vmem>>, vector<8x8xf32>,
    %527 = vector.extract_strided_slice %13 {offsets = [64, 0], sizes = [8, 24], strides = [1, 1]} : vector<144x48xf32> to vector<8x24xf32>
    %cst_114 = arith.constant dense<0.000000e+00> : vector<8x24xf32>
    %528 = tpu.matmul %525, %15, %cst_114 {dimension_numbers = #tpu.dot_dimension_numbers<[1], [0], [0], [1], [0, 0, 1, 1], [], []>} : vector<8x8xf32>, vector<8x24xf32>, vector<8x24xf32> -> vector<8x24xf32>
    %529 = vector.broadcast %19 : vector<1x24xf32> to vector<8x24xf32>
    %530 = arith.addf %528, %529 : vector<8x24xf32>
    %531 = vector.extract_strided_slice %527 {offsets = [0, 0], sizes = [8, 8], strides = [1, 1]} : vector<8x24xf32> to vector<8x8xf32>
    %532 = vector.extract_strided_slice %530 {offsets = [0, 0], sizes = [8, 8], strides = [1, 1]} : vector<8x24xf32> to vector<8x8xf32>
    %533 = arith.addf %531, %532 : vector<8x8xf32>
    %534 = arith.negf %533 : vector<8x8xf32>
    %535 = math.exp %534 : vector<8x8xf32>
    %cst_115 = arith.constant 1.000000e+00 : f32
    %536 = vector.broadcast %cst_115 : f32 to vector<8x8xf32>
    %537 = arith.addf %536, %535 : vector<8x8xf32>
    %538 = arith.divf %536, %537 : vector<8x8xf32>
    %539 = vector.extract_strided_slice %527 {offsets = [0, 8], sizes = [8, 8], strides = [1, 1]} : vector<8x24xf32> to vector<8x8xf32>
    %540 = vector.extract_strided_slice %530 {offsets = [0, 8], sizes = [8, 8], strides = [1, 1]} : vector<8x24xf32> to vector<8x8xf32>
    %541 = arith.addf %539, %540 : vector<8x8xf32>
    %542 = arith.negf %541 : vector<8x8xf32>
    %543 = math.exp %542 : vector<8x8xf32>
    %cst_116 = arith.constant 1.000000e+00 : f32
    %544 = vector.broadcast %cst_116 : f32 to vector<8x8xf32>
    %545 = arith.addf %544, %543 : vector<8x8xf32>
    %546 = arith.divf %544, %545 : vector<8x8xf32>
    %547 = vector.extract_strided_slice %527 {offsets = [0, 16], sizes = [8, 8], strides = [1, 1]} : vector<8x24xf32> to vector<8x8xf32>
    %548 = vector.extract_strided_slice %530 {offsets = [0, 16], sizes = [8, 8], strides = [1, 1]} : vector<8x24xf32> to vector<8x8xf32>
    %549 = arith.mulf %538, %548 : vector<8x8xf32>
    %550 = arith.addf %547, %549 : vector<8x8xf32>
    %551 = math.tanh %550 : vector<8x8xf32>
    %cst_117 = arith.constant 1.000000e+00 : f32
    %552 = vector.broadcast %cst_117 : f32 to vector<8x8xf32>
    %553 = arith.subf %552, %546 : vector<8x8xf32>
    %554 = arith.mulf %553, %551 : vector<8x8xf32>
    %555 = arith.mulf %546, %525 : vector<8x8xf32>
    %556 = arith.addf %554, %555 : vector<8x8xf32>
    %c16_118 = arith.constant 16 : index
    %c0_119 = arith.constant 0 : index
    %557 = vector.load %arg19[%c16_118, %c0_119] : memref<48x16xf32, #tpu.memory_space<vmem>>, vector<8x8xf32>
    tpu.vector_store %arg19[%c16_118, %c0_119], %556 {strides = array<i32>} : memref<48x16xf32, #tpu.memory_space<vmem>>, vector<8x8xf32>,
    %558 = vector.extract_strided_slice %13 {offsets = [72, 0], sizes = [8, 24], strides = [1, 1]} : vector<144x48xf32> to vector<8x24xf32>
    %cst_120 = arith.constant dense<0.000000e+00> : vector<8x24xf32>
    %559 = tpu.matmul %556, %15, %cst_120 {dimension_numbers = #tpu.dot_dimension_numbers<[1], [0], [0], [1], [0, 0, 1, 1], [], []>} : vector<8x8xf32>, vector<8x24xf32>, vector<8x24xf32> -> vector<8x24xf32>
    %560 = vector.broadcast %19 : vector<1x24xf32> to vector<8x24xf32>
    %561 = arith.addf %559, %560 : vector<8x24xf32>
    %562 = vector.extract_strided_slice %558 {offsets = [0, 0], sizes = [8, 8], strides = [1, 1]} : vector<8x24xf32> to vector<8x8xf32>
    %563 = vector.extract_strided_slice %561 {offsets = [0, 0], sizes = [8, 8], strides = [1, 1]} : vector<8x24xf32> to vector<8x8xf32>
    %564 = arith.addf %562, %563 : vector<8x8xf32>
    %565 = arith.negf %564 : vector<8x8xf32>
    %566 = math.exp %565 : vector<8x8xf32>
    %cst_121 = arith.constant 1.000000e+00 : f32
    %567 = vector.broadcast %cst_121 : f32 to vector<8x8xf32>
    %568 = arith.addf %567, %566 : vector<8x8xf32>
    %569 = arith.divf %567, %568 : vector<8x8xf32>
    %570 = vector.extract_strided_slice %558 {offsets = [0, 8], sizes = [8, 8], strides = [1, 1]} : vector<8x24xf32> to vector<8x8xf32>
    %571 = vector.extract_strided_slice %561 {offsets = [0, 8], sizes = [8, 8], strides = [1, 1]} : vector<8x24xf32> to vector<8x8xf32>
    %572 = arith.addf %570, %571 : vector<8x8xf32>
    %573 = arith.negf %572 : vector<8x8xf32>
    %574 = math.exp %573 : vector<8x8xf32>
    %cst_122 = arith.constant 1.000000e+00 : f32
    %575 = vector.broadcast %cst_122 : f32 to vector<8x8xf32>
    %576 = arith.addf %575, %574 : vector<8x8xf32>
    %577 = arith.divf %575, %576 : vector<8x8xf32>
    %578 = vector.extract_strided_slice %558 {offsets = [0, 16], sizes = [8, 8], strides = [1, 1]} : vector<8x24xf32> to vector<8x8xf32>
    %579 = vector.extract_strided_slice %561 {offsets = [0, 16], sizes = [8, 8], strides = [1, 1]} : vector<8x24xf32> to vector<8x8xf32>
    %580 = arith.mulf %569, %579 : vector<8x8xf32>
    %581 = arith.addf %578, %580 : vector<8x8xf32>
    %582 = math.tanh %581 : vector<8x8xf32>
    %cst_123 = arith.constant 1.000000e+00 : f32
    %583 = vector.broadcast %cst_123 : f32 to vector<8x8xf32>
    %584 = arith.subf %583, %577 : vector<8x8xf32>
    %585 = arith.mulf %584, %582 : vector<8x8xf32>
    %586 = arith.mulf %577, %556 : vector<8x8xf32>
    %587 = arith.addf %585, %586 : vector<8x8xf32>
    %c24_124 = arith.constant 24 : index
    %c0_125 = arith.constant 0 : index
    %588 = vector.load %arg19[%c24_124, %c0_125] : memref<48x16xf32, #tpu.memory_space<vmem>>, vector<8x8xf32>
    tpu.vector_store %arg19[%c24_124, %c0_125], %587 {strides = array<i32>} : memref<48x16xf32, #tpu.memory_space<vmem>>, vector<8x8xf32>,
    %589 = vector.extract_strided_slice %13 {offsets = [80, 0], sizes = [8, 24], strides = [1, 1]} : vector<144x48xf32> to vector<8x24xf32>
    %cst_126 = arith.constant dense<0.000000e+00> : vector<8x24xf32>
    %590 = tpu.matmul %587, %15, %cst_126 {dimension_numbers = #tpu.dot_dimension_numbers<[1], [0], [0], [1], [0, 0, 1, 1], [], []>} : vector<8x8xf32>, vector<8x24xf32>, vector<8x24xf32> -> vector<8x24xf32>
    %591 = vector.broadcast %19 : vector<1x24xf32> to vector<8x24xf32>
    %592 = arith.addf %590, %591 : vector<8x24xf32>
    %593 = vector.extract_strided_slice %589 {offsets = [0, 0], sizes = [8, 8], strides = [1, 1]} : vector<8x24xf32> to vector<8x8xf32>
    %594 = vector.extract_strided_slice %592 {offsets = [0, 0], sizes = [8, 8], strides = [1, 1]} : vector<8x24xf32> to vector<8x8xf32>
    %595 = arith.addf %593, %594 : vector<8x8xf32>
    %596 = arith.negf %595 : vector<8x8xf32>
    %597 = math.exp %596 : vector<8x8xf32>
    %cst_127 = arith.constant 1.000000e+00 : f32
    %598 = vector.broadcast %cst_127 : f32 to vector<8x8xf32>
    %599 = arith.addf %598, %597 : vector<8x8xf32>
    %600 = arith.divf %598, %599 : vector<8x8xf32>
    %601 = vector.extract_strided_slice %589 {offsets = [0, 8], sizes = [8, 8], strides = [1, 1]} : vector<8x24xf32> to vector<8x8xf32>
    %602 = vector.extract_strided_slice %592 {offsets = [0, 8], sizes = [8, 8], strides = [1, 1]} : vector<8x24xf32> to vector<8x8xf32>
    %603 = arith.addf %601, %602 : vector<8x8xf32>
    %604 = arith.negf %603 : vector<8x8xf32>
    %605 = math.exp %604 : vector<8x8xf32>
    %cst_128 = arith.constant 1.000000e+00 : f32
    %606 = vector.broadcast %cst_128 : f32 to vector<8x8xf32>
    %607 = arith.addf %606, %605 : vector<8x8xf32>
    %608 = arith.divf %606, %607 : vector<8x8xf32>
    %609 = vector.extract_strided_slice %589 {offsets = [0, 16], sizes = [8, 8], strides = [1, 1]} : vector<8x24xf32> to vector<8x8xf32>
    %610 = vector.extract_strided_slice %592 {offsets = [0, 16], sizes = [8, 8], strides = [1, 1]} : vector<8x24xf32> to vector<8x8xf32>
    %611 = arith.mulf %600, %610 : vector<8x8xf32>
    %612 = arith.addf %609, %611 : vector<8x8xf32>
    %613 = math.tanh %612 : vector<8x8xf32>
    %cst_129 = arith.constant 1.000000e+00 : f32
    %614 = vector.broadcast %cst_129 : f32 to vector<8x8xf32>
    %615 = arith.subf %614, %608 : vector<8x8xf32>
    %616 = arith.mulf %615, %613 : vector<8x8xf32>
    %617 = arith.mulf %608, %587 : vector<8x8xf32>
    %618 = arith.addf %616, %617 : vector<8x8xf32>
    %c32_130 = arith.constant 32 : index
    %c0_131 = arith.constant 0 : index
    %619 = vector.load %arg19[%c32_130, %c0_131] : memref<48x16xf32, #tpu.memory_space<vmem>>, vector<8x8xf32>
    tpu.vector_store %arg19[%c32_130, %c0_131], %618 {strides = array<i32>} : memref<48x16xf32, #tpu.memory_space<vmem>>, vector<8x8xf32>,
    %620 = vector.extract_strided_slice %13 {offsets = [88, 0], sizes = [8, 24], strides = [1, 1]} : vector<144x48xf32> to vector<8x24xf32>
    %cst_132 = arith.constant dense<0.000000e+00> : vector<8x24xf32>
    %621 = tpu.matmul %618, %15, %cst_132 {dimension_numbers = #tpu.dot_dimension_numbers<[1], [0], [0], [1], [0, 0, 1, 1], [], []>} : vector<8x8xf32>, vector<8x24xf32>, vector<8x24xf32> -> vector<8x24xf32>
    %622 = vector.broadcast %19 : vector<1x24xf32> to vector<8x24xf32>
    %623 = arith.addf %621, %622 : vector<8x24xf32>
    %624 = vector.extract_strided_slice %620 {offsets = [0, 0], sizes = [8, 8], strides = [1, 1]} : vector<8x24xf32> to vector<8x8xf32>
    %625 = vector.extract_strided_slice %623 {offsets = [0, 0], sizes = [8, 8], strides = [1, 1]} : vector<8x24xf32> to vector<8x8xf32>
    %626 = arith.addf %624, %625 : vector<8x8xf32>
    %627 = arith.negf %626 : vector<8x8xf32>
    %628 = math.exp %627 : vector<8x8xf32>
    %cst_133 = arith.constant 1.000000e+00 : f32
    %629 = vector.broadcast %cst_133 : f32 to vector<8x8xf32>
    %630 = arith.addf %629, %628 : vector<8x8xf32>
    %631 = arith.divf %629, %630 : vector<8x8xf32>
    %632 = vector.extract_strided_slice %620 {offsets = [0, 8], sizes = [8, 8], strides = [1, 1]} : vector<8x24xf32> to vector<8x8xf32>
    %633 = vector.extract_strided_slice %623 {offsets = [0, 8], sizes = [8, 8], strides = [1, 1]} : vector<8x24xf32> to vector<8x8xf32>
    %634 = arith.addf %632, %633 : vector<8x8xf32>
    %635 = arith.negf %634 : vector<8x8xf32>
    %636 = math.exp %635 : vector<8x8xf32>
    %cst_134 = arith.constant 1.000000e+00 : f32
    %637 = vector.broadcast %cst_134 : f32 to vector<8x8xf32>
    %638 = arith.addf %637, %636 : vector<8x8xf32>
    %639 = arith.divf %637, %638 : vector<8x8xf32>
    %640 = vector.extract_strided_slice %620 {offsets = [0, 16], sizes = [8, 8], strides = [1, 1]} : vector<8x24xf32> to vector<8x8xf32>
    %641 = vector.extract_strided_slice %623 {offsets = [0, 16], sizes = [8, 8], strides = [1, 1]} : vector<8x24xf32> to vector<8x8xf32>
    %642 = arith.mulf %631, %641 : vector<8x8xf32>
    %643 = arith.addf %640, %642 : vector<8x8xf32>
    %644 = math.tanh %643 : vector<8x8xf32>
    %cst_135 = arith.constant 1.000000e+00 : f32
    %645 = vector.broadcast %cst_135 : f32 to vector<8x8xf32>
    %646 = arith.subf %645, %639 : vector<8x8xf32>
    %647 = arith.mulf %646, %644 : vector<8x8xf32>
    %648 = arith.mulf %639, %618 : vector<8x8xf32>
    %649 = arith.addf %647, %648 : vector<8x8xf32>
    %c40_136 = arith.constant 40 : index
    %c0_137 = arith.constant 0 : index
    %650 = vector.load %arg19[%c40_136, %c0_137] : memref<48x16xf32, #tpu.memory_space<vmem>>, vector<8x8xf32>
    tpu.vector_store %arg19[%c40_136, %c0_137], %649 {strides = array<i32>} : memref<48x16xf32, #tpu.memory_space<vmem>>, vector<8x8xf32>,
    %651 = vector.extract_strided_slice %13 {offsets = [88, 24], sizes = [8, 24], strides = [1, 1]} : vector<144x48xf32> to vector<8x24xf32>
    %cst_138 = arith.constant dense<0.000000e+00> : vector<8x24xf32>
    %652 = tpu.matmul %394, %17, %cst_138 {dimension_numbers = #tpu.dot_dimension_numbers<[1], [0], [0], [1], [0, 0, 1, 1], [], []>} : vector<8x8xf32>, vector<8x24xf32>, vector<8x24xf32> -> vector<8x24xf32>
    %653 = vector.broadcast %21 : vector<1x24xf32> to vector<8x24xf32>
    %654 = arith.addf %652, %653 : vector<8x24xf32>
    %655 = vector.extract_strided_slice %651 {offsets = [0, 0], sizes = [8, 8], strides = [1, 1]} : vector<8x24xf32> to vector<8x8xf32>
    %656 = vector.extract_strided_slice %654 {offsets = [0, 0], sizes = [8, 8], strides = [1, 1]} : vector<8x24xf32> to vector<8x8xf32>
    %657 = arith.addf %655, %656 : vector<8x8xf32>
    %658 = arith.negf %657 : vector<8x8xf32>
    %659 = math.exp %658 : vector<8x8xf32>
    %cst_139 = arith.constant 1.000000e+00 : f32
    %660 = vector.broadcast %cst_139 : f32 to vector<8x8xf32>
    %661 = arith.addf %660, %659 : vector<8x8xf32>
    %662 = arith.divf %660, %661 : vector<8x8xf32>
    %663 = vector.extract_strided_slice %651 {offsets = [0, 8], sizes = [8, 8], strides = [1, 1]} : vector<8x24xf32> to vector<8x8xf32>
    %664 = vector.extract_strided_slice %654 {offsets = [0, 8], sizes = [8, 8], strides = [1, 1]} : vector<8x24xf32> to vector<8x8xf32>
    %665 = arith.addf %663, %664 : vector<8x8xf32>
    %666 = arith.negf %665 : vector<8x8xf32>
    %667 = math.exp %666 : vector<8x8xf32>
    %cst_140 = arith.constant 1.000000e+00 : f32
    %668 = vector.broadcast %cst_140 : f32 to vector<8x8xf32>
    %669 = arith.addf %668, %667 : vector<8x8xf32>
    %670 = arith.divf %668, %669 : vector<8x8xf32>
    %671 = vector.extract_strided_slice %651 {offsets = [0, 16], sizes = [8, 8], strides = [1, 1]} : vector<8x24xf32> to vector<8x8xf32>
    %672 = vector.extract_strided_slice %654 {offsets = [0, 16], sizes = [8, 8], strides = [1, 1]} : vector<8x24xf32> to vector<8x8xf32>
    %673 = arith.mulf %662, %672 : vector<8x8xf32>
    %674 = arith.addf %671, %673 : vector<8x8xf32>
    %675 = math.tanh %674 : vector<8x8xf32>
    %cst_141 = arith.constant 1.000000e+00 : f32
    %676 = vector.broadcast %cst_141 : f32 to vector<8x8xf32>
    %677 = arith.subf %676, %670 : vector<8x8xf32>
    %678 = arith.mulf %677, %675 : vector<8x8xf32>
    %679 = arith.mulf %670, %394 : vector<8x8xf32>
    %680 = arith.addf %678, %679 : vector<8x8xf32>
    %c40_142 = arith.constant 40 : index
    %c8_143 = arith.constant 8 : index
    %681 = vector.load %arg19[%c40_142, %c8_143] : memref<48x16xf32, #tpu.memory_space<vmem>>, vector<8x8xf32>
    tpu.vector_store %arg19[%c40_142, %c8_143], %680 {strides = array<i32>} : memref<48x16xf32, #tpu.memory_space<vmem>>, vector<8x8xf32>,
    %682 = vector.extract_strided_slice %13 {offsets = [80, 24], sizes = [8, 24], strides = [1, 1]} : vector<144x48xf32> to vector<8x24xf32>
    %cst_144 = arith.constant dense<0.000000e+00> : vector<8x24xf32>
    %683 = tpu.matmul %680, %17, %cst_144 {dimension_numbers = #tpu.dot_dimension_numbers<[1], [0], [0], [1], [0, 0, 1, 1], [], []>} : vector<8x8xf32>, vector<8x24xf32>, vector<8x24xf32> -> vector<8x24xf32>
    %684 = vector.broadcast %21 : vector<1x24xf32> to vector<8x24xf32>
    %685 = arith.addf %683, %684 : vector<8x24xf32>
    %686 = vector.extract_strided_slice %682 {offsets = [0, 0], sizes = [8, 8], strides = [1, 1]} : vector<8x24xf32> to vector<8x8xf32>
    %687 = vector.extract_strided_slice %685 {offsets = [0, 0], sizes = [8, 8], strides = [1, 1]} : vector<8x24xf32> to vector<8x8xf32>
    %688 = arith.addf %686, %687 : vector<8x8xf32>
    %689 = arith.negf %688 : vector<8x8xf32>
    %690 = math.exp %689 : vector<8x8xf32>
    %cst_145 = arith.constant 1.000000e+00 : f32
    %691 = vector.broadcast %cst_145 : f32 to vector<8x8xf32>
    %692 = arith.addf %691, %690 : vector<8x8xf32>
    %693 = arith.divf %691, %692 : vector<8x8xf32>
    %694 = vector.extract_strided_slice %682 {offsets = [0, 8], sizes = [8, 8], strides = [1, 1]} : vector<8x24xf32> to vector<8x8xf32>
    %695 = vector.extract_strided_slice %685 {offsets = [0, 8], sizes = [8, 8], strides = [1, 1]} : vector<8x24xf32> to vector<8x8xf32>
    %696 = arith.addf %694, %695 : vector<8x8xf32>
    %697 = arith.negf %696 : vector<8x8xf32>
    %698 = math.exp %697 : vector<8x8xf32>
    %cst_146 = arith.constant 1.000000e+00 : f32
    %699 = vector.broadcast %cst_146 : f32 to vector<8x8xf32>
    %700 = arith.addf %699, %698 : vector<8x8xf32>
    %701 = arith.divf %699, %700 : vector<8x8xf32>
    %702 = vector.extract_strided_slice %682 {offsets = [0, 16], sizes = [8, 8], strides = [1, 1]} : vector<8x24xf32> to vector<8x8xf32>
    %703 = vector.extract_strided_slice %685 {offsets = [0, 16], sizes = [8, 8], strides = [1, 1]} : vector<8x24xf32> to vector<8x8xf32>
    %704 = arith.mulf %693, %703 : vector<8x8xf32>
    %705 = arith.addf %702, %704 : vector<8x8xf32>
    %706 = math.tanh %705 : vector<8x8xf32>
    %cst_147 = arith.constant 1.000000e+00 : f32
    %707 = vector.broadcast %cst_147 : f32 to vector<8x8xf32>
    %708 = arith.subf %707, %701 : vector<8x8xf32>
    %709 = arith.mulf %708, %706 : vector<8x8xf32>
    %710 = arith.mulf %701, %680 : vector<8x8xf32>
    %711 = arith.addf %709, %710 : vector<8x8xf32>
    %c32_148 = arith.constant 32 : index
    %c8_149 = arith.constant 8 : index
    %712 = vector.load %arg19[%c32_148, %c8_149] : memref<48x16xf32, #tpu.memory_space<vmem>>, vector<8x8xf32>
    tpu.vector_store %arg19[%c32_148, %c8_149], %711 {strides = array<i32>} : memref<48x16xf32, #tpu.memory_space<vmem>>, vector<8x8xf32>,
    %713 = vector.extract_strided_slice %13 {offsets = [72, 24], sizes = [8, 24], strides = [1, 1]} : vector<144x48xf32> to vector<8x24xf32>
    %cst_150 = arith.constant dense<0.000000e+00> : vector<8x24xf32>
    %714 = tpu.matmul %711, %17, %cst_150 {dimension_numbers = #tpu.dot_dimension_numbers<[1], [0], [0], [1], [0, 0, 1, 1], [], []>} : vector<8x8xf32>, vector<8x24xf32>, vector<8x24xf32> -> vector<8x24xf32>
    %715 = vector.broadcast %21 : vector<1x24xf32> to vector<8x24xf32>
    %716 = arith.addf %714, %715 : vector<8x24xf32>
    %717 = vector.extract_strided_slice %713 {offsets = [0, 0], sizes = [8, 8], strides = [1, 1]} : vector<8x24xf32> to vector<8x8xf32>
    %718 = vector.extract_strided_slice %716 {offsets = [0, 0], sizes = [8, 8], strides = [1, 1]} : vector<8x24xf32> to vector<8x8xf32>
    %719 = arith.addf %717, %718 : vector<8x8xf32>
    %720 = arith.negf %719 : vector<8x8xf32>
    %721 = math.exp %720 : vector<8x8xf32>
    %cst_151 = arith.constant 1.000000e+00 : f32
    %722 = vector.broadcast %cst_151 : f32 to vector<8x8xf32>
    %723 = arith.addf %722, %721 : vector<8x8xf32>
    %724 = arith.divf %722, %723 : vector<8x8xf32>
    %725 = vector.extract_strided_slice %713 {offsets = [0, 8], sizes = [8, 8], strides = [1, 1]} : vector<8x24xf32> to vector<8x8xf32>
    %726 = vector.extract_strided_slice %716 {offsets = [0, 8], sizes = [8, 8], strides = [1, 1]} : vector<8x24xf32> to vector<8x8xf32>
    %727 = arith.addf %725, %726 : vector<8x8xf32>
    %728 = arith.negf %727 : vector<8x8xf32>
    %729 = math.exp %728 : vector<8x8xf32>
    %cst_152 = arith.constant 1.000000e+00 : f32
    %730 = vector.broadcast %cst_152 : f32 to vector<8x8xf32>
    %731 = arith.addf %730, %729 : vector<8x8xf32>
    %732 = arith.divf %730, %731 : vector<8x8xf32>
    %733 = vector.extract_strided_slice %713 {offsets = [0, 16], sizes = [8, 8], strides = [1, 1]} : vector<8x24xf32> to vector<8x8xf32>
    %734 = vector.extract_strided_slice %716 {offsets = [0, 16], sizes = [8, 8], strides = [1, 1]} : vector<8x24xf32> to vector<8x8xf32>
    %735 = arith.mulf %724, %734 : vector<8x8xf32>
    %736 = arith.addf %733, %735 : vector<8x8xf32>
    %737 = math.tanh %736 : vector<8x8xf32>
    %cst_153 = arith.constant 1.000000e+00 : f32
    %738 = vector.broadcast %cst_153 : f32 to vector<8x8xf32>
    %739 = arith.subf %738, %732 : vector<8x8xf32>
    %740 = arith.mulf %739, %737 : vector<8x8xf32>
    %741 = arith.mulf %732, %711 : vector<8x8xf32>
    %742 = arith.addf %740, %741 : vector<8x8xf32>
    %c24_154 = arith.constant 24 : index
    %c8_155 = arith.constant 8 : index
    %743 = vector.load %arg19[%c24_154, %c8_155] : memref<48x16xf32, #tpu.memory_space<vmem>>, vector<8x8xf32>
    tpu.vector_store %arg19[%c24_154, %c8_155], %742 {strides = array<i32>} : memref<48x16xf32, #tpu.memory_space<vmem>>, vector<8x8xf32>,
    %744 = vector.extract_strided_slice %13 {offsets = [64, 24], sizes = [8, 24], strides = [1, 1]} : vector<144x48xf32> to vector<8x24xf32>
    %cst_156 = arith.constant dense<0.000000e+00> : vector<8x24xf32>
    %745 = tpu.matmul %742, %17, %cst_156 {dimension_numbers = #tpu.dot_dimension_numbers<[1], [0], [0], [1], [0, 0, 1, 1], [], []>} : vector<8x8xf32>, vector<8x24xf32>, vector<8x24xf32> -> vector<8x24xf32>
    %746 = vector.broadcast %21 : vector<1x24xf32> to vector<8x24xf32>
    %747 = arith.addf %745, %746 : vector<8x24xf32>
    %748 = vector.extract_strided_slice %744 {offsets = [0, 0], sizes = [8, 8], strides = [1, 1]} : vector<8x24xf32> to vector<8x8xf32>
    %749 = vector.extract_strided_slice %747 {offsets = [0, 0], sizes = [8, 8], strides = [1, 1]} : vector<8x24xf32> to vector<8x8xf32>
    %750 = arith.addf %748, %749 : vector<8x8xf32>
    %751 = arith.negf %750 : vector<8x8xf32>
    %752 = math.exp %751 : vector<8x8xf32>
    %cst_157 = arith.constant 1.000000e+00 : f32
    %753 = vector.broadcast %cst_157 : f32 to vector<8x8xf32>
    %754 = arith.addf %753, %752 : vector<8x8xf32>
    %755 = arith.divf %753, %754 : vector<8x8xf32>
    %756 = vector.extract_strided_slice %744 {offsets = [0, 8], sizes = [8, 8], strides = [1, 1]} : vector<8x24xf32> to vector<8x8xf32>
    %757 = vector.extract_strided_slice %747 {offsets = [0, 8], sizes = [8, 8], strides = [1, 1]} : vector<8x24xf32> to vector<8x8xf32>
    %758 = arith.addf %756, %757 : vector<8x8xf32>
    %759 = arith.negf %758 : vector<8x8xf32>
    %760 = math.exp %759 : vector<8x8xf32>
    %cst_158 = arith.constant 1.000000e+00 : f32
    %761 = vector.broadcast %cst_158 : f32 to vector<8x8xf32>
    %762 = arith.addf %761, %760 : vector<8x8xf32>
    %763 = arith.divf %761, %762 : vector<8x8xf32>
    %764 = vector.extract_strided_slice %744 {offsets = [0, 16], sizes = [8, 8], strides = [1, 1]} : vector<8x24xf32> to vector<8x8xf32>
    %765 = vector.extract_strided_slice %747 {offsets = [0, 16], sizes = [8, 8], strides = [1, 1]} : vector<8x24xf32> to vector<8x8xf32>
    %766 = arith.mulf %755, %765 : vector<8x8xf32>
    %767 = arith.addf %764, %766 : vector<8x8xf32>
    %768 = math.tanh %767 : vector<8x8xf32>
    %cst_159 = arith.constant 1.000000e+00 : f32
    %769 = vector.broadcast %cst_159 : f32 to vector<8x8xf32>
    %770 = arith.subf %769, %763 : vector<8x8xf32>
    %771 = arith.mulf %770, %768 : vector<8x8xf32>
    %772 = arith.mulf %763, %742 : vector<8x8xf32>
    %773 = arith.addf %771, %772 : vector<8x8xf32>
    %c16_160 = arith.constant 16 : index
    %c8_161 = arith.constant 8 : index
    %774 = vector.load %arg19[%c16_160, %c8_161] : memref<48x16xf32, #tpu.memory_space<vmem>>, vector<8x8xf32>
    tpu.vector_store %arg19[%c16_160, %c8_161], %773 {strides = array<i32>} : memref<48x16xf32, #tpu.memory_space<vmem>>, vector<8x8xf32>,
    %775 = vector.extract_strided_slice %13 {offsets = [56, 24], sizes = [8, 24], strides = [1, 1]} : vector<144x48xf32> to vector<8x24xf32>
    %cst_162 = arith.constant dense<0.000000e+00> : vector<8x24xf32>
    %776 = tpu.matmul %773, %17, %cst_162 {dimension_numbers = #tpu.dot_dimension_numbers<[1], [0], [0], [1], [0, 0, 1, 1], [], []>} : vector<8x8xf32>, vector<8x24xf32>, vector<8x24xf32> -> vector<8x24xf32>
    %777 = vector.broadcast %21 : vector<1x24xf32> to vector<8x24xf32>
    %778 = arith.addf %776, %777 : vector<8x24xf32>
    %779 = vector.extract_strided_slice %775 {offsets = [0, 0], sizes = [8, 8], strides = [1, 1]} : vector<8x24xf32> to vector<8x8xf32>
    %780 = vector.extract_strided_slice %778 {offsets = [0, 0], sizes = [8, 8], strides = [1, 1]} : vector<8x24xf32> to vector<8x8xf32>
    %781 = arith.addf %779, %780 : vector<8x8xf32>
    %782 = arith.negf %781 : vector<8x8xf32>
    %783 = math.exp %782 : vector<8x8xf32>
    %cst_163 = arith.constant 1.000000e+00 : f32
    %784 = vector.broadcast %cst_163 : f32 to vector<8x8xf32>
    %785 = arith.addf %784, %783 : vector<8x8xf32>
    %786 = arith.divf %784, %785 : vector<8x8xf32>
    %787 = vector.extract_strided_slice %775 {offsets = [0, 8], sizes = [8, 8], strides = [1, 1]} : vector<8x24xf32> to vector<8x8xf32>
    %788 = vector.extract_strided_slice %778 {offsets = [0, 8], sizes = [8, 8], strides = [1, 1]} : vector<8x24xf32> to vector<8x8xf32>
    %789 = arith.addf %787, %788 : vector<8x8xf32>
    %790 = arith.negf %789 : vector<8x8xf32>
    %791 = math.exp %790 : vector<8x8xf32>
    %cst_164 = arith.constant 1.000000e+00 : f32
    %792 = vector.broadcast %cst_164 : f32 to vector<8x8xf32>
    %793 = arith.addf %792, %791 : vector<8x8xf32>
    %794 = arith.divf %792, %793 : vector<8x8xf32>
    %795 = vector.extract_strided_slice %775 {offsets = [0, 16], sizes = [8, 8], strides = [1, 1]} : vector<8x24xf32> to vector<8x8xf32>
    %796 = vector.extract_strided_slice %778 {offsets = [0, 16], sizes = [8, 8], strides = [1, 1]} : vector<8x24xf32> to vector<8x8xf32>
    %797 = arith.mulf %786, %796 : vector<8x8xf32>
    %798 = arith.addf %795, %797 : vector<8x8xf32>
    %799 = math.tanh %798 : vector<8x8xf32>
    %cst_165 = arith.constant 1.000000e+00 : f32
    %800 = vector.broadcast %cst_165 : f32 to vector<8x8xf32>
    %801 = arith.subf %800, %794 : vector<8x8xf32>
    %802 = arith.mulf %801, %799 : vector<8x8xf32>
    %803 = arith.mulf %794, %773 : vector<8x8xf32>
    %804 = arith.addf %802, %803 : vector<8x8xf32>
    %c8_166 = arith.constant 8 : index
    %c8_167 = arith.constant 8 : index
    %805 = vector.load %arg19[%c8_166, %c8_167] : memref<48x16xf32, #tpu.memory_space<vmem>>, vector<8x8xf32>
    tpu.vector_store %arg19[%c8_166, %c8_167], %804 {strides = array<i32>} : memref<48x16xf32, #tpu.memory_space<vmem>>, vector<8x8xf32>,
    %806 = vector.extract_strided_slice %13 {offsets = [48, 24], sizes = [8, 24], strides = [1, 1]} : vector<144x48xf32> to vector<8x24xf32>
    %cst_168 = arith.constant dense<0.000000e+00> : vector<8x24xf32>
    %807 = tpu.matmul %804, %17, %cst_168 {dimension_numbers = #tpu.dot_dimension_numbers<[1], [0], [0], [1], [0, 0, 1, 1], [], []>} : vector<8x8xf32>, vector<8x24xf32>, vector<8x24xf32> -> vector<8x24xf32>
    %808 = vector.broadcast %21 : vector<1x24xf32> to vector<8x24xf32>
    %809 = arith.addf %807, %808 : vector<8x24xf32>
    %810 = vector.extract_strided_slice %806 {offsets = [0, 0], sizes = [8, 8], strides = [1, 1]} : vector<8x24xf32> to vector<8x8xf32>
    %811 = vector.extract_strided_slice %809 {offsets = [0, 0], sizes = [8, 8], strides = [1, 1]} : vector<8x24xf32> to vector<8x8xf32>
    %812 = arith.addf %810, %811 : vector<8x8xf32>
    %813 = arith.negf %812 : vector<8x8xf32>
    %814 = math.exp %813 : vector<8x8xf32>
    %cst_169 = arith.constant 1.000000e+00 : f32
    %815 = vector.broadcast %cst_169 : f32 to vector<8x8xf32>
    %816 = arith.addf %815, %814 : vector<8x8xf32>
    %817 = arith.divf %815, %816 : vector<8x8xf32>
    %818 = vector.extract_strided_slice %806 {offsets = [0, 8], sizes = [8, 8], strides = [1, 1]} : vector<8x24xf32> to vector<8x8xf32>
    %819 = vector.extract_strided_slice %809 {offsets = [0, 8], sizes = [8, 8], strides = [1, 1]} : vector<8x24xf32> to vector<8x8xf32>
    %820 = arith.addf %818, %819 : vector<8x8xf32>
    %821 = arith.negf %820 : vector<8x8xf32>
    %822 = math.exp %821 : vector<8x8xf32>
    %cst_170 = arith.constant 1.000000e+00 : f32
    %823 = vector.broadcast %cst_170 : f32 to vector<8x8xf32>
    %824 = arith.addf %823, %822 : vector<8x8xf32>
    %825 = arith.divf %823, %824 : vector<8x8xf32>
    %826 = vector.extract_strided_slice %806 {offsets = [0, 16], sizes = [8, 8], strides = [1, 1]} : vector<8x24xf32> to vector<8x8xf32>
    %827 = vector.extract_strided_slice %809 {offsets = [0, 16], sizes = [8, 8], strides = [1, 1]} : vector<8x24xf32> to vector<8x8xf32>
    %828 = arith.mulf %817, %827 : vector<8x8xf32>
    %829 = arith.addf %826, %828 : vector<8x8xf32>
    %830 = math.tanh %829 : vector<8x8xf32>
    %cst_171 = arith.constant 1.000000e+00 : f32
    %831 = vector.broadcast %cst_171 : f32 to vector<8x8xf32>
    %832 = arith.subf %831, %825 : vector<8x8xf32>
    %833 = arith.mulf %832, %830 : vector<8x8xf32>
    %834 = arith.mulf %825, %804 : vector<8x8xf32>
    %835 = arith.addf %833, %834 : vector<8x8xf32>
    %c0_172 = arith.constant 0 : index
    %c8_173 = arith.constant 8 : index
    %836 = vector.load %arg19[%c0_172, %c8_173] : memref<48x16xf32, #tpu.memory_space<vmem>>, vector<8x8xf32>
    tpu.vector_store %arg19[%c0_172, %c8_173], %835 {strides = array<i32>} : memref<48x16xf32, #tpu.memory_space<vmem>>, vector<8x8xf32>,
    %c0_174 = arith.constant 0 : index
    %c0_175 = arith.constant 0 : index
    %837 = vector.load %arg19[%c0_174, %c0_175] : memref<48x16xf32, #tpu.memory_space<vmem>>, vector<48x16xf32>
    %c0_176 = arith.constant 0 : index
    %c0_177 = arith.constant 0 : index
    %838 = vector.load %arg10[%c0_176, %c0_177] : memref<16x16xf32, #tpu.memory_space<vmem>>, vector<16x16xf32>
    %c0_178 = arith.constant 0 : index
    %c0_179 = arith.constant 0 : index
    %839 = vector.load %arg11[%c0_178, %c0_179] : memref<1x16xf32, #tpu.memory_space<vmem>>, vector<1x16xf32>
    %c0_180 = arith.constant 0 : index
    %c0_181 = arith.constant 0 : index
    %840 = vector.load %arg12[%c0_180, %c0_181] : memref<16x1xf32, #tpu.memory_space<vmem>>, vector<16x1xf32>
    %cst_182 = arith.constant dense<0.000000e+00> : vector<48x16xf32>
    %841 = tpu.matmul %837, %838, %cst_182 {dimension_numbers = #tpu.dot_dimension_numbers<[1], [0], [0], [1], [0, 0, 1, 1], [], []>} : vector<48x16xf32>, vector<16x16xf32>, vector<48x16xf32> -> vector<48x16xf32>
    %842 = vector.broadcast %839 : vector<1x16xf32> to vector<48x16xf32>
    %843 = arith.addf %841, %842 : vector<48x16xf32>
    %844 = math.tanh %843 : vector<48x16xf32>
    %cst_183 = arith.constant dense<0.000000e+00> : vector<48x1xf32>
    %845 = tpu.matmul %844, %840, %cst_183 {dimension_numbers = #tpu.dot_dimension_numbers<[1], [0], [0], [1], [0, 0, 1, 1], [], []>} : vector<48x16xf32>, vector<16x1xf32>, vector<48x1xf32> -> vector<48x1xf32>
    %846 = math.tanh %845 : vector<48x1xf32>
    %847 = vector.extract_strided_slice %846 {offsets = [0, 0], sizes = [8, 1], strides = [1, 1]} : vector<48x1xf32> to vector<8x1xf32>
    %848 = vector.extract_strided_slice %846 {offsets = [8, 0], sizes = [8, 1], strides = [1, 1]} : vector<48x1xf32> to vector<8x1xf32>
    %849 = vector.extract_strided_slice %846 {offsets = [16, 0], sizes = [8, 1], strides = [1, 1]} : vector<48x1xf32> to vector<8x1xf32>
    %850 = vector.extract_strided_slice %846 {offsets = [24, 0], sizes = [8, 1], strides = [1, 1]} : vector<48x1xf32> to vector<8x1xf32>
    %851 = vector.extract_strided_slice %846 {offsets = [32, 0], sizes = [8, 1], strides = [1, 1]} : vector<48x1xf32> to vector<8x1xf32>
    %852 = vector.extract_strided_slice %846 {offsets = [40, 0], sizes = [8, 1], strides = [1, 1]} : vector<48x1xf32> to vector<8x1xf32>
    %853 = arith.maximumf %847, %848 : vector<8x1xf32>
    %854 = arith.maximumf %853, %849 : vector<8x1xf32>
    %855 = arith.maximumf %854, %850 : vector<8x1xf32>
    %856 = arith.maximumf %855, %851 : vector<8x1xf32>
    %857 = arith.maximumf %856, %852 : vector<8x1xf32>
    %858 = arith.subf %847, %857 : vector<8x1xf32>
    %859 = math.exp %858 : vector<8x1xf32>
    %860 = arith.subf %848, %857 : vector<8x1xf32>
    %861 = math.exp %860 : vector<8x1xf32>
    %862 = arith.subf %849, %857 : vector<8x1xf32>
    %863 = math.exp %862 : vector<8x1xf32>
    %864 = arith.subf %850, %857 : vector<8x1xf32>
    %865 = math.exp %864 : vector<8x1xf32>
    %866 = arith.subf %851, %857 : vector<8x1xf32>
    %867 = math.exp %866 : vector<8x1xf32>
    %868 = arith.subf %852, %857 : vector<8x1xf32>
    %869 = math.exp %868 : vector<8x1xf32>
    %870 = arith.addf %859, %861 : vector<8x1xf32>
    %871 = arith.addf %870, %863 : vector<8x1xf32>
    %872 = arith.addf %871, %865 : vector<8x1xf32>
    %873 = arith.addf %872, %867 : vector<8x1xf32>
    %874 = arith.addf %873, %869 : vector<8x1xf32>
    %875 = tpu.reciprocal %874 {approx = true} : vector<8x1xf32> -> vector<8x1xf32>
    %876 = arith.mulf %859, %875 : vector<8x1xf32>
    %877 = vector.extract_strided_slice %837 {offsets = [0, 0], sizes = [8, 16], strides = [1, 1]} : vector<48x16xf32> to vector<8x16xf32>
    %878 = vector.broadcast %876 : vector<8x1xf32> to vector<8x16xf32>
    %879 = arith.mulf %878, %877 : vector<8x16xf32>
    %880 = arith.mulf %861, %875 : vector<8x1xf32>
    %881 = vector.extract_strided_slice %837 {offsets = [8, 0], sizes = [8, 16], strides = [1, 1]} : vector<48x16xf32> to vector<8x16xf32>
    %882 = vector.broadcast %880 : vector<8x1xf32> to vector<8x16xf32>
    %883 = arith.mulf %882, %881 : vector<8x16xf32>
    %884 = arith.addf %879, %883 : vector<8x16xf32>
    %885 = arith.mulf %863, %875 : vector<8x1xf32>
    %886 = vector.extract_strided_slice %837 {offsets = [16, 0], sizes = [8, 16], strides = [1, 1]} : vector<48x16xf32> to vector<8x16xf32>
    %887 = vector.broadcast %885 : vector<8x1xf32> to vector<8x16xf32>
    %888 = arith.mulf %887, %886 : vector<8x16xf32>
    %889 = arith.addf %884, %888 : vector<8x16xf32>
    %890 = arith.mulf %865, %875 : vector<8x1xf32>
    %891 = vector.extract_strided_slice %837 {offsets = [24, 0], sizes = [8, 16], strides = [1, 1]} : vector<48x16xf32> to vector<8x16xf32>
    %892 = vector.broadcast %890 : vector<8x1xf32> to vector<8x16xf32>
    %893 = arith.mulf %892, %891 : vector<8x16xf32>
    %894 = arith.addf %889, %893 : vector<8x16xf32>
    %895 = arith.mulf %867, %875 : vector<8x1xf32>
    %896 = vector.extract_strided_slice %837 {offsets = [32, 0], sizes = [8, 16], strides = [1, 1]} : vector<48x16xf32> to vector<8x16xf32>
    %897 = vector.broadcast %895 : vector<8x1xf32> to vector<8x16xf32>
    %898 = arith.mulf %897, %896 : vector<8x16xf32>
    %899 = arith.addf %894, %898 : vector<8x16xf32>
    %900 = arith.mulf %869, %875 : vector<8x1xf32>
    %901 = vector.extract_strided_slice %837 {offsets = [40, 0], sizes = [8, 16], strides = [1, 1]} : vector<48x16xf32> to vector<8x16xf32>
    %902 = vector.broadcast %900 : vector<8x1xf32> to vector<8x16xf32>
    %903 = arith.mulf %902, %901 : vector<8x16xf32>
    %904 = arith.addf %899, %903 : vector<8x16xf32>
    %c8_184 = arith.constant 8 : index
    %c0_185 = arith.constant 0 : index
    %905 = vector.load %arg20[%c8_184, %c0_185] : memref<24x16xf32, #tpu.memory_space<vmem>>, vector<8x16xf32>
    tpu.vector_store %arg20[%c8_184, %c0_185], %904 {strides = array<i32>} : memref<24x16xf32, #tpu.memory_space<vmem>>, vector<8x16xf32>,
    %906 = vector.extract_strided_slice %13 {offsets = [96, 0], sizes = [8, 24], strides = [1, 1]} : vector<144x48xf32> to vector<8x24xf32>
    %cst_186 = arith.constant dense<0.000000e+00> : vector<8x24xf32>
    %907 = tpu.matmul %649, %15, %cst_186 {dimension_numbers = #tpu.dot_dimension_numbers<[1], [0], [0], [1], [0, 0, 1, 1], [], []>} : vector<8x8xf32>, vector<8x24xf32>, vector<8x24xf32> -> vector<8x24xf32>
    %908 = vector.broadcast %19 : vector<1x24xf32> to vector<8x24xf32>
    %909 = arith.addf %907, %908 : vector<8x24xf32>
    %910 = vector.extract_strided_slice %906 {offsets = [0, 0], sizes = [8, 8], strides = [1, 1]} : vector<8x24xf32> to vector<8x8xf32>
    %911 = vector.extract_strided_slice %909 {offsets = [0, 0], sizes = [8, 8], strides = [1, 1]} : vector<8x24xf32> to vector<8x8xf32>
    %912 = arith.addf %910, %911 : vector<8x8xf32>
    %913 = arith.negf %912 : vector<8x8xf32>
    %914 = math.exp %913 : vector<8x8xf32>
    %cst_187 = arith.constant 1.000000e+00 : f32
    %915 = vector.broadcast %cst_187 : f32 to vector<8x8xf32>
    %916 = arith.addf %915, %914 : vector<8x8xf32>
    %917 = arith.divf %915, %916 : vector<8x8xf32>
    %918 = vector.extract_strided_slice %906 {offsets = [0, 8], sizes = [8, 8], strides = [1, 1]} : vector<8x24xf32> to vector<8x8xf32>
    %919 = vector.extract_strided_slice %909 {offsets = [0, 8], sizes = [8, 8], strides = [1, 1]} : vector<8x24xf32> to vector<8x8xf32>
    %920 = arith.addf %918, %919 : vector<8x8xf32>
    %921 = arith.negf %920 : vector<8x8xf32>
    %922 = math.exp %921 : vector<8x8xf32>
    %cst_188 = arith.constant 1.000000e+00 : f32
    %923 = vector.broadcast %cst_188 : f32 to vector<8x8xf32>
    %924 = arith.addf %923, %922 : vector<8x8xf32>
    %925 = arith.divf %923, %924 : vector<8x8xf32>
    %926 = vector.extract_strided_slice %906 {offsets = [0, 16], sizes = [8, 8], strides = [1, 1]} : vector<8x24xf32> to vector<8x8xf32>
    %927 = vector.extract_strided_slice %909 {offsets = [0, 16], sizes = [8, 8], strides = [1, 1]} : vector<8x24xf32> to vector<8x8xf32>
    %928 = arith.mulf %917, %927 : vector<8x8xf32>
    %929 = arith.addf %926, %928 : vector<8x8xf32>
    %930 = math.tanh %929 : vector<8x8xf32>
    %cst_189 = arith.constant 1.000000e+00 : f32
    %931 = vector.broadcast %cst_189 : f32 to vector<8x8xf32>
    %932 = arith.subf %931, %925 : vector<8x8xf32>
    %933 = arith.mulf %932, %930 : vector<8x8xf32>
    %934 = arith.mulf %925, %649 : vector<8x8xf32>
    %935 = arith.addf %933, %934 : vector<8x8xf32>
    %c0_190 = arith.constant 0 : index
    %c0_191 = arith.constant 0 : index
    %936 = vector.load %arg19[%c0_190, %c0_191] : memref<48x16xf32, #tpu.memory_space<vmem>>, vector<8x8xf32>
    tpu.vector_store %arg19[%c0_190, %c0_191], %935 {strides = array<i32>} : memref<48x16xf32, #tpu.memory_space<vmem>>, vector<8x8xf32>,
    %937 = vector.extract_strided_slice %13 {offsets = [104, 0], sizes = [8, 24], strides = [1, 1]} : vector<144x48xf32> to vector<8x24xf32>
    %cst_192 = arith.constant dense<0.000000e+00> : vector<8x24xf32>
    %938 = tpu.matmul %935, %15, %cst_192 {dimension_numbers = #tpu.dot_dimension_numbers<[1], [0], [0], [1], [0, 0, 1, 1], [], []>} : vector<8x8xf32>, vector<8x24xf32>, vector<8x24xf32> -> vector<8x24xf32>
    %939 = vector.broadcast %19 : vector<1x24xf32> to vector<8x24xf32>
    %940 = arith.addf %938, %939 : vector<8x24xf32>
    %941 = vector.extract_strided_slice %937 {offsets = [0, 0], sizes = [8, 8], strides = [1, 1]} : vector<8x24xf32> to vector<8x8xf32>
    %942 = vector.extract_strided_slice %940 {offsets = [0, 0], sizes = [8, 8], strides = [1, 1]} : vector<8x24xf32> to vector<8x8xf32>
    %943 = arith.addf %941, %942 : vector<8x8xf32>
    %944 = arith.negf %943 : vector<8x8xf32>
    %945 = math.exp %944 : vector<8x8xf32>
    %cst_193 = arith.constant 1.000000e+00 : f32
    %946 = vector.broadcast %cst_193 : f32 to vector<8x8xf32>
    %947 = arith.addf %946, %945 : vector<8x8xf32>
    %948 = arith.divf %946, %947 : vector<8x8xf32>
    %949 = vector.extract_strided_slice %937 {offsets = [0, 8], sizes = [8, 8], strides = [1, 1]} : vector<8x24xf32> to vector<8x8xf32>
    %950 = vector.extract_strided_slice %940 {offsets = [0, 8], sizes = [8, 8], strides = [1, 1]} : vector<8x24xf32> to vector<8x8xf32>
    %951 = arith.addf %949, %950 : vector<8x8xf32>
    %952 = arith.negf %951 : vector<8x8xf32>
    %953 = math.exp %952 : vector<8x8xf32>
    %cst_194 = arith.constant 1.000000e+00 : f32
    %954 = vector.broadcast %cst_194 : f32 to vector<8x8xf32>
    %955 = arith.addf %954, %953 : vector<8x8xf32>
    %956 = arith.divf %954, %955 : vector<8x8xf32>
    %957 = vector.extract_strided_slice %937 {offsets = [0, 16], sizes = [8, 8], strides = [1, 1]} : vector<8x24xf32> to vector<8x8xf32>
    %958 = vector.extract_strided_slice %940 {offsets = [0, 16], sizes = [8, 8], strides = [1, 1]} : vector<8x24xf32> to vector<8x8xf32>
    %959 = arith.mulf %948, %958 : vector<8x8xf32>
    %960 = arith.addf %957, %959 : vector<8x8xf32>
    %961 = math.tanh %960 : vector<8x8xf32>
    %cst_195 = arith.constant 1.000000e+00 : f32
    %962 = vector.broadcast %cst_195 : f32 to vector<8x8xf32>
    %963 = arith.subf %962, %956 : vector<8x8xf32>
    %964 = arith.mulf %963, %961 : vector<8x8xf32>
    %965 = arith.mulf %956, %935 : vector<8x8xf32>
    %966 = arith.addf %964, %965 : vector<8x8xf32>
    %c8_196 = arith.constant 8 : index
    %c0_197 = arith.constant 0 : index
    %967 = vector.load %arg19[%c8_196, %c0_197] : memref<48x16xf32, #tpu.memory_space<vmem>>, vector<8x8xf32>
    tpu.vector_store %arg19[%c8_196, %c0_197], %966 {strides = array<i32>} : memref<48x16xf32, #tpu.memory_space<vmem>>, vector<8x8xf32>,
    %968 = vector.extract_strided_slice %13 {offsets = [112, 0], sizes = [8, 24], strides = [1, 1]} : vector<144x48xf32> to vector<8x24xf32>
    %cst_198 = arith.constant dense<0.000000e+00> : vector<8x24xf32>
    %969 = tpu.matmul %966, %15, %cst_198 {dimension_numbers = #tpu.dot_dimension_numbers<[1], [0], [0], [1], [0, 0, 1, 1], [], []>} : vector<8x8xf32>, vector<8x24xf32>, vector<8x24xf32> -> vector<8x24xf32>
    %970 = vector.broadcast %19 : vector<1x24xf32> to vector<8x24xf32>
    %971 = arith.addf %969, %970 : vector<8x24xf32>
    %972 = vector.extract_strided_slice %968 {offsets = [0, 0], sizes = [8, 8], strides = [1, 1]} : vector<8x24xf32> to vector<8x8xf32>
    %973 = vector.extract_strided_slice %971 {offsets = [0, 0], sizes = [8, 8], strides = [1, 1]} : vector<8x24xf32> to vector<8x8xf32>
    %974 = arith.addf %972, %973 : vector<8x8xf32>
    %975 = arith.negf %974 : vector<8x8xf32>
    %976 = math.exp %975 : vector<8x8xf32>
    %cst_199 = arith.constant 1.000000e+00 : f32
    %977 = vector.broadcast %cst_199 : f32 to vector<8x8xf32>
    %978 = arith.addf %977, %976 : vector<8x8xf32>
    %979 = arith.divf %977, %978 : vector<8x8xf32>
    %980 = vector.extract_strided_slice %968 {offsets = [0, 8], sizes = [8, 8], strides = [1, 1]} : vector<8x24xf32> to vector<8x8xf32>
    %981 = vector.extract_strided_slice %971 {offsets = [0, 8], sizes = [8, 8], strides = [1, 1]} : vector<8x24xf32> to vector<8x8xf32>
    %982 = arith.addf %980, %981 : vector<8x8xf32>
    %983 = arith.negf %982 : vector<8x8xf32>
    %984 = math.exp %983 : vector<8x8xf32>
    %cst_200 = arith.constant 1.000000e+00 : f32
    %985 = vector.broadcast %cst_200 : f32 to vector<8x8xf32>
    %986 = arith.addf %985, %984 : vector<8x8xf32>
    %987 = arith.divf %985, %986 : vector<8x8xf32>
    %988 = vector.extract_strided_slice %968 {offsets = [0, 16], sizes = [8, 8], strides = [1, 1]} : vector<8x24xf32> to vector<8x8xf32>
    %989 = vector.extract_strided_slice %971 {offsets = [0, 16], sizes = [8, 8], strides = [1, 1]} : vector<8x24xf32> to vector<8x8xf32>
    %990 = arith.mulf %979, %989 : vector<8x8xf32>
    %991 = arith.addf %988, %990 : vector<8x8xf32>
    %992 = math.tanh %991 : vector<8x8xf32>
    %cst_201 = arith.constant 1.000000e+00 : f32
    %993 = vector.broadcast %cst_201 : f32 to vector<8x8xf32>
    %994 = arith.subf %993, %987 : vector<8x8xf32>
    %995 = arith.mulf %994, %992 : vector<8x8xf32>
    %996 = arith.mulf %987, %966 : vector<8x8xf32>
    %997 = arith.addf %995, %996 : vector<8x8xf32>
    %c16_202 = arith.constant 16 : index
    %c0_203 = arith.constant 0 : index
    %998 = vector.load %arg19[%c16_202, %c0_203] : memref<48x16xf32, #tpu.memory_space<vmem>>, vector<8x8xf32>
    tpu.vector_store %arg19[%c16_202, %c0_203], %997 {strides = array<i32>} : memref<48x16xf32, #tpu.memory_space<vmem>>, vector<8x8xf32>,
    %999 = vector.extract_strided_slice %13 {offsets = [120, 0], sizes = [8, 24], strides = [1, 1]} : vector<144x48xf32> to vector<8x24xf32>
    %cst_204 = arith.constant dense<0.000000e+00> : vector<8x24xf32>
    %1000 = tpu.matmul %997, %15, %cst_204 {dimension_numbers = #tpu.dot_dimension_numbers<[1], [0], [0], [1], [0, 0, 1, 1], [], []>} : vector<8x8xf32>, vector<8x24xf32>, vector<8x24xf32> -> vector<8x24xf32>
    %1001 = vector.broadcast %19 : vector<1x24xf32> to vector<8x24xf32>
    %1002 = arith.addf %1000, %1001 : vector<8x24xf32>
    %1003 = vector.extract_strided_slice %999 {offsets = [0, 0], sizes = [8, 8], strides = [1, 1]} : vector<8x24xf32> to vector<8x8xf32>
    %1004 = vector.extract_strided_slice %1002 {offsets = [0, 0], sizes = [8, 8], strides = [1, 1]} : vector<8x24xf32> to vector<8x8xf32>
    %1005 = arith.addf %1003, %1004 : vector<8x8xf32>
    %1006 = arith.negf %1005 : vector<8x8xf32>
    %1007 = math.exp %1006 : vector<8x8xf32>
    %cst_205 = arith.constant 1.000000e+00 : f32
    %1008 = vector.broadcast %cst_205 : f32 to vector<8x8xf32>
    %1009 = arith.addf %1008, %1007 : vector<8x8xf32>
    %1010 = arith.divf %1008, %1009 : vector<8x8xf32>
    %1011 = vector.extract_strided_slice %999 {offsets = [0, 8], sizes = [8, 8], strides = [1, 1]} : vector<8x24xf32> to vector<8x8xf32>
    %1012 = vector.extract_strided_slice %1002 {offsets = [0, 8], sizes = [8, 8], strides = [1, 1]} : vector<8x24xf32> to vector<8x8xf32>
    %1013 = arith.addf %1011, %1012 : vector<8x8xf32>
    %1014 = arith.negf %1013 : vector<8x8xf32>
    %1015 = math.exp %1014 : vector<8x8xf32>
    %cst_206 = arith.constant 1.000000e+00 : f32
    %1016 = vector.broadcast %cst_206 : f32 to vector<8x8xf32>
    %1017 = arith.addf %1016, %1015 : vector<8x8xf32>
    %1018 = arith.divf %1016, %1017 : vector<8x8xf32>
    %1019 = vector.extract_strided_slice %999 {offsets = [0, 16], sizes = [8, 8], strides = [1, 1]} : vector<8x24xf32> to vector<8x8xf32>
    %1020 = vector.extract_strided_slice %1002 {offsets = [0, 16], sizes = [8, 8], strides = [1, 1]} : vector<8x24xf32> to vector<8x8xf32>
    %1021 = arith.mulf %1010, %1020 : vector<8x8xf32>
    %1022 = arith.addf %1019, %1021 : vector<8x8xf32>
    %1023 = math.tanh %1022 : vector<8x8xf32>
    %cst_207 = arith.constant 1.000000e+00 : f32
    %1024 = vector.broadcast %cst_207 : f32 to vector<8x8xf32>
    %1025 = arith.subf %1024, %1018 : vector<8x8xf32>
    %1026 = arith.mulf %1025, %1023 : vector<8x8xf32>
    %1027 = arith.mulf %1018, %997 : vector<8x8xf32>
    %1028 = arith.addf %1026, %1027 : vector<8x8xf32>
    %c24_208 = arith.constant 24 : index
    %c0_209 = arith.constant 0 : index
    %1029 = vector.load %arg19[%c24_208, %c0_209] : memref<48x16xf32, #tpu.memory_space<vmem>>, vector<8x8xf32>
    tpu.vector_store %arg19[%c24_208, %c0_209], %1028 {strides = array<i32>} : memref<48x16xf32, #tpu.memory_space<vmem>>, vector<8x8xf32>,
    %1030 = vector.extract_strided_slice %13 {offsets = [128, 0], sizes = [8, 24], strides = [1, 1]} : vector<144x48xf32> to vector<8x24xf32>
    %cst_210 = arith.constant dense<0.000000e+00> : vector<8x24xf32>
    %1031 = tpu.matmul %1028, %15, %cst_210 {dimension_numbers = #tpu.dot_dimension_numbers<[1], [0], [0], [1], [0, 0, 1, 1], [], []>} : vector<8x8xf32>, vector<8x24xf32>, vector<8x24xf32> -> vector<8x24xf32>
    %1032 = vector.broadcast %19 : vector<1x24xf32> to vector<8x24xf32>
    %1033 = arith.addf %1031, %1032 : vector<8x24xf32>
    %1034 = vector.extract_strided_slice %1030 {offsets = [0, 0], sizes = [8, 8], strides = [1, 1]} : vector<8x24xf32> to vector<8x8xf32>
    %1035 = vector.extract_strided_slice %1033 {offsets = [0, 0], sizes = [8, 8], strides = [1, 1]} : vector<8x24xf32> to vector<8x8xf32>
    %1036 = arith.addf %1034, %1035 : vector<8x8xf32>
    %1037 = arith.negf %1036 : vector<8x8xf32>
    %1038 = math.exp %1037 : vector<8x8xf32>
    %cst_211 = arith.constant 1.000000e+00 : f32
    %1039 = vector.broadcast %cst_211 : f32 to vector<8x8xf32>
    %1040 = arith.addf %1039, %1038 : vector<8x8xf32>
    %1041 = arith.divf %1039, %1040 : vector<8x8xf32>
    %1042 = vector.extract_strided_slice %1030 {offsets = [0, 8], sizes = [8, 8], strides = [1, 1]} : vector<8x24xf32> to vector<8x8xf32>
    %1043 = vector.extract_strided_slice %1033 {offsets = [0, 8], sizes = [8, 8], strides = [1, 1]} : vector<8x24xf32> to vector<8x8xf32>
    %1044 = arith.addf %1042, %1043 : vector<8x8xf32>
    %1045 = arith.negf %1044 : vector<8x8xf32>
    %1046 = math.exp %1045 : vector<8x8xf32>
    %cst_212 = arith.constant 1.000000e+00 : f32
    %1047 = vector.broadcast %cst_212 : f32 to vector<8x8xf32>
    %1048 = arith.addf %1047, %1046 : vector<8x8xf32>
    %1049 = arith.divf %1047, %1048 : vector<8x8xf32>
    %1050 = vector.extract_strided_slice %1030 {offsets = [0, 16], sizes = [8, 8], strides = [1, 1]} : vector<8x24xf32> to vector<8x8xf32>
    %1051 = vector.extract_strided_slice %1033 {offsets = [0, 16], sizes = [8, 8], strides = [1, 1]} : vector<8x24xf32> to vector<8x8xf32>
    %1052 = arith.mulf %1041, %1051 : vector<8x8xf32>
    %1053 = arith.addf %1050, %1052 : vector<8x8xf32>
    %1054 = math.tanh %1053 : vector<8x8xf32>
    %cst_213 = arith.constant 1.000000e+00 : f32
    %1055 = vector.broadcast %cst_213 : f32 to vector<8x8xf32>
    %1056 = arith.subf %1055, %1049 : vector<8x8xf32>
    %1057 = arith.mulf %1056, %1054 : vector<8x8xf32>
    %1058 = arith.mulf %1049, %1028 : vector<8x8xf32>
    %1059 = arith.addf %1057, %1058 : vector<8x8xf32>
    %c32_214 = arith.constant 32 : index
    %c0_215 = arith.constant 0 : index
    %1060 = vector.load %arg19[%c32_214, %c0_215] : memref<48x16xf32, #tpu.memory_space<vmem>>, vector<8x8xf32>
    tpu.vector_store %arg19[%c32_214, %c0_215], %1059 {strides = array<i32>} : memref<48x16xf32, #tpu.memory_space<vmem>>, vector<8x8xf32>,
    %1061 = vector.extract_strided_slice %13 {offsets = [136, 0], sizes = [8, 24], strides = [1, 1]} : vector<144x48xf32> to vector<8x24xf32>
    %cst_216 = arith.constant dense<0.000000e+00> : vector<8x24xf32>
    %1062 = tpu.matmul %1059, %15, %cst_216 {dimension_numbers = #tpu.dot_dimension_numbers<[1], [0], [0], [1], [0, 0, 1, 1], [], []>} : vector<8x8xf32>, vector<8x24xf32>, vector<8x24xf32> -> vector<8x24xf32>
    %1063 = vector.broadcast %19 : vector<1x24xf32> to vector<8x24xf32>
    %1064 = arith.addf %1062, %1063 : vector<8x24xf32>
    %1065 = vector.extract_strided_slice %1061 {offsets = [0, 0], sizes = [8, 8], strides = [1, 1]} : vector<8x24xf32> to vector<8x8xf32>
    %1066 = vector.extract_strided_slice %1064 {offsets = [0, 0], sizes = [8, 8], strides = [1, 1]} : vector<8x24xf32> to vector<8x8xf32>
    %1067 = arith.addf %1065, %1066 : vector<8x8xf32>
    %1068 = arith.negf %1067 : vector<8x8xf32>
    %1069 = math.exp %1068 : vector<8x8xf32>
    %cst_217 = arith.constant 1.000000e+00 : f32
    %1070 = vector.broadcast %cst_217 : f32 to vector<8x8xf32>
    %1071 = arith.addf %1070, %1069 : vector<8x8xf32>
    %1072 = arith.divf %1070, %1071 : vector<8x8xf32>
    %1073 = vector.extract_strided_slice %1061 {offsets = [0, 8], sizes = [8, 8], strides = [1, 1]} : vector<8x24xf32> to vector<8x8xf32>
    %1074 = vector.extract_strided_slice %1064 {offsets = [0, 8], sizes = [8, 8], strides = [1, 1]} : vector<8x24xf32> to vector<8x8xf32>
    %1075 = arith.addf %1073, %1074 : vector<8x8xf32>
    %1076 = arith.negf %1075 : vector<8x8xf32>
    %1077 = math.exp %1076 : vector<8x8xf32>
    %cst_218 = arith.constant 1.000000e+00 : f32
    %1078 = vector.broadcast %cst_218 : f32 to vector<8x8xf32>
    %1079 = arith.addf %1078, %1077 : vector<8x8xf32>
    %1080 = arith.divf %1078, %1079 : vector<8x8xf32>
    %1081 = vector.extract_strided_slice %1061 {offsets = [0, 16], sizes = [8, 8], strides = [1, 1]} : vector<8x24xf32> to vector<8x8xf32>
    %1082 = vector.extract_strided_slice %1064 {offsets = [0, 16], sizes = [8, 8], strides = [1, 1]} : vector<8x24xf32> to vector<8x8xf32>
    %1083 = arith.mulf %1072, %1082 : vector<8x8xf32>
    %1084 = arith.addf %1081, %1083 : vector<8x8xf32>
    %1085 = math.tanh %1084 : vector<8x8xf32>
    %cst_219 = arith.constant 1.000000e+00 : f32
    %1086 = vector.broadcast %cst_219 : f32 to vector<8x8xf32>
    %1087 = arith.subf %1086, %1080 : vector<8x8xf32>
    %1088 = arith.mulf %1087, %1085 : vector<8x8xf32>
    %1089 = arith.mulf %1080, %1059 : vector<8x8xf32>
    %1090 = arith.addf %1088, %1089 : vector<8x8xf32>
    %c40_220 = arith.constant 40 : index
    %c0_221 = arith.constant 0 : index
    %1091 = vector.load %arg19[%c40_220, %c0_221] : memref<48x16xf32, #tpu.memory_space<vmem>>, vector<8x8xf32>
    tpu.vector_store %arg19[%c40_220, %c0_221], %1090 {strides = array<i32>} : memref<48x16xf32, #tpu.memory_space<vmem>>, vector<8x8xf32>,
    %1092 = vector.extract_strided_slice %13 {offsets = [136, 24], sizes = [8, 24], strides = [1, 1]} : vector<144x48xf32> to vector<8x24xf32>
    %cst_222 = arith.constant dense<0.000000e+00> : vector<8x24xf32>
    %1093 = tpu.matmul %835, %17, %cst_222 {dimension_numbers = #tpu.dot_dimension_numbers<[1], [0], [0], [1], [0, 0, 1, 1], [], []>} : vector<8x8xf32>, vector<8x24xf32>, vector<8x24xf32> -> vector<8x24xf32>
    %1094 = vector.broadcast %21 : vector<1x24xf32> to vector<8x24xf32>
    %1095 = arith.addf %1093, %1094 : vector<8x24xf32>
    %1096 = vector.extract_strided_slice %1092 {offsets = [0, 0], sizes = [8, 8], strides = [1, 1]} : vector<8x24xf32> to vector<8x8xf32>
    %1097 = vector.extract_strided_slice %1095 {offsets = [0, 0], sizes = [8, 8], strides = [1, 1]} : vector<8x24xf32> to vector<8x8xf32>
    %1098 = arith.addf %1096, %1097 : vector<8x8xf32>
    %1099 = arith.negf %1098 : vector<8x8xf32>
    %1100 = math.exp %1099 : vector<8x8xf32>
    %cst_223 = arith.constant 1.000000e+00 : f32
    %1101 = vector.broadcast %cst_223 : f32 to vector<8x8xf32>
    %1102 = arith.addf %1101, %1100 : vector<8x8xf32>
    %1103 = arith.divf %1101, %1102 : vector<8x8xf32>
    %1104 = vector.extract_strided_slice %1092 {offsets = [0, 8], sizes = [8, 8], strides = [1, 1]} : vector<8x24xf32> to vector<8x8xf32>
    %1105 = vector.extract_strided_slice %1095 {offsets = [0, 8], sizes = [8, 8], strides = [1, 1]} : vector<8x24xf32> to vector<8x8xf32>
    %1106 = arith.addf %1104, %1105 : vector<8x8xf32>
    %1107 = arith.negf %1106 : vector<8x8xf32>
    %1108 = math.exp %1107 : vector<8x8xf32>
    %cst_224 = arith.constant 1.000000e+00 : f32
    %1109 = vector.broadcast %cst_224 : f32 to vector<8x8xf32>
    %1110 = arith.addf %1109, %1108 : vector<8x8xf32>
    %1111 = arith.divf %1109, %1110 : vector<8x8xf32>
    %1112 = vector.extract_strided_slice %1092 {offsets = [0, 16], sizes = [8, 8], strides = [1, 1]} : vector<8x24xf32> to vector<8x8xf32>
    %1113 = vector.extract_strided_slice %1095 {offsets = [0, 16], sizes = [8, 8], strides = [1, 1]} : vector<8x24xf32> to vector<8x8xf32>
    %1114 = arith.mulf %1103, %1113 : vector<8x8xf32>
    %1115 = arith.addf %1112, %1114 : vector<8x8xf32>
    %1116 = math.tanh %1115 : vector<8x8xf32>
    %cst_225 = arith.constant 1.000000e+00 : f32
    %1117 = vector.broadcast %cst_225 : f32 to vector<8x8xf32>
    %1118 = arith.subf %1117, %1111 : vector<8x8xf32>
    %1119 = arith.mulf %1118, %1116 : vector<8x8xf32>
    %1120 = arith.mulf %1111, %835 : vector<8x8xf32>
    %1121 = arith.addf %1119, %1120 : vector<8x8xf32>
    %c40_226 = arith.constant 40 : index
    %c8_227 = arith.constant 8 : index
    %1122 = vector.load %arg19[%c40_226, %c8_227] : memref<48x16xf32, #tpu.memory_space<vmem>>, vector<8x8xf32>
    tpu.vector_store %arg19[%c40_226, %c8_227], %1121 {strides = array<i32>} : memref<48x16xf32, #tpu.memory_space<vmem>>, vector<8x8xf32>,
    %1123 = vector.extract_strided_slice %13 {offsets = [128, 24], sizes = [8, 24], strides = [1, 1]} : vector<144x48xf32> to vector<8x24xf32>
    %cst_228 = arith.constant dense<0.000000e+00> : vector<8x24xf32>
    %1124 = tpu.matmul %1121, %17, %cst_228 {dimension_numbers = #tpu.dot_dimension_numbers<[1], [0], [0], [1], [0, 0, 1, 1], [], []>} : vector<8x8xf32>, vector<8x24xf32>, vector<8x24xf32> -> vector<8x24xf32>
    %1125 = vector.broadcast %21 : vector<1x24xf32> to vector<8x24xf32>
    %1126 = arith.addf %1124, %1125 : vector<8x24xf32>
    %1127 = vector.extract_strided_slice %1123 {offsets = [0, 0], sizes = [8, 8], strides = [1, 1]} : vector<8x24xf32> to vector<8x8xf32>
    %1128 = vector.extract_strided_slice %1126 {offsets = [0, 0], sizes = [8, 8], strides = [1, 1]} : vector<8x24xf32> to vector<8x8xf32>
    %1129 = arith.addf %1127, %1128 : vector<8x8xf32>
    %1130 = arith.negf %1129 : vector<8x8xf32>
    %1131 = math.exp %1130 : vector<8x8xf32>
    %cst_229 = arith.constant 1.000000e+00 : f32
    %1132 = vector.broadcast %cst_229 : f32 to vector<8x8xf32>
    %1133 = arith.addf %1132, %1131 : vector<8x8xf32>
    %1134 = arith.divf %1132, %1133 : vector<8x8xf32>
    %1135 = vector.extract_strided_slice %1123 {offsets = [0, 8], sizes = [8, 8], strides = [1, 1]} : vector<8x24xf32> to vector<8x8xf32>
    %1136 = vector.extract_strided_slice %1126 {offsets = [0, 8], sizes = [8, 8], strides = [1, 1]} : vector<8x24xf32> to vector<8x8xf32>
    %1137 = arith.addf %1135, %1136 : vector<8x8xf32>
    %1138 = arith.negf %1137 : vector<8x8xf32>
    %1139 = math.exp %1138 : vector<8x8xf32>
    %cst_230 = arith.constant 1.000000e+00 : f32
    %1140 = vector.broadcast %cst_230 : f32 to vector<8x8xf32>
    %1141 = arith.addf %1140, %1139 : vector<8x8xf32>
    %1142 = arith.divf %1140, %1141 : vector<8x8xf32>
    %1143 = vector.extract_strided_slice %1123 {offsets = [0, 16], sizes = [8, 8], strides = [1, 1]} : vector<8x24xf32> to vector<8x8xf32>
    %1144 = vector.extract_strided_slice %1126 {offsets = [0, 16], sizes = [8, 8], strides = [1, 1]} : vector<8x24xf32> to vector<8x8xf32>
    %1145 = arith.mulf %1134, %1144 : vector<8x8xf32>
    %1146 = arith.addf %1143, %1145 : vector<8x8xf32>
    %1147 = math.tanh %1146 : vector<8x8xf32>
    %cst_231 = arith.constant 1.000000e+00 : f32
    %1148 = vector.broadcast %cst_231 : f32 to vector<8x8xf32>
    %1149 = arith.subf %1148, %1142 : vector<8x8xf32>
    %1150 = arith.mulf %1149, %1147 : vector<8x8xf32>
    %1151 = arith.mulf %1142, %1121 : vector<8x8xf32>
    %1152 = arith.addf %1150, %1151 : vector<8x8xf32>
    %c32_232 = arith.constant 32 : index
    %c8_233 = arith.constant 8 : index
    %1153 = vector.load %arg19[%c32_232, %c8_233] : memref<48x16xf32, #tpu.memory_space<vmem>>, vector<8x8xf32>
    tpu.vector_store %arg19[%c32_232, %c8_233], %1152 {strides = array<i32>} : memref<48x16xf32, #tpu.memory_space<vmem>>, vector<8x8xf32>,
    %1154 = vector.extract_strided_slice %13 {offsets = [120, 24], sizes = [8, 24], strides = [1, 1]} : vector<144x48xf32> to vector<8x24xf32>
    %cst_234 = arith.constant dense<0.000000e+00> : vector<8x24xf32>
    %1155 = tpu.matmul %1152, %17, %cst_234 {dimension_numbers = #tpu.dot_dimension_numbers<[1], [0], [0], [1], [0, 0, 1, 1], [], []>} : vector<8x8xf32>, vector<8x24xf32>, vector<8x24xf32> -> vector<8x24xf32>
    %1156 = vector.broadcast %21 : vector<1x24xf32> to vector<8x24xf32>
    %1157 = arith.addf %1155, %1156 : vector<8x24xf32>
    %1158 = vector.extract_strided_slice %1154 {offsets = [0, 0], sizes = [8, 8], strides = [1, 1]} : vector<8x24xf32> to vector<8x8xf32>
    %1159 = vector.extract_strided_slice %1157 {offsets = [0, 0], sizes = [8, 8], strides = [1, 1]} : vector<8x24xf32> to vector<8x8xf32>
    %1160 = arith.addf %1158, %1159 : vector<8x8xf32>
    %1161 = arith.negf %1160 : vector<8x8xf32>
    %1162 = math.exp %1161 : vector<8x8xf32>
    %cst_235 = arith.constant 1.000000e+00 : f32
    %1163 = vector.broadcast %cst_235 : f32 to vector<8x8xf32>
    %1164 = arith.addf %1163, %1162 : vector<8x8xf32>
    %1165 = arith.divf %1163, %1164 : vector<8x8xf32>
    %1166 = vector.extract_strided_slice %1154 {offsets = [0, 8], sizes = [8, 8], strides = [1, 1]} : vector<8x24xf32> to vector<8x8xf32>
    %1167 = vector.extract_strided_slice %1157 {offsets = [0, 8], sizes = [8, 8], strides = [1, 1]} : vector<8x24xf32> to vector<8x8xf32>
    %1168 = arith.addf %1166, %1167 : vector<8x8xf32>
    %1169 = arith.negf %1168 : vector<8x8xf32>
    %1170 = math.exp %1169 : vector<8x8xf32>
    %cst_236 = arith.constant 1.000000e+00 : f32
    %1171 = vector.broadcast %cst_236 : f32 to vector<8x8xf32>
    %1172 = arith.addf %1171, %1170 : vector<8x8xf32>
    %1173 = arith.divf %1171, %1172 : vector<8x8xf32>
    %1174 = vector.extract_strided_slice %1154 {offsets = [0, 16], sizes = [8, 8], strides = [1, 1]} : vector<8x24xf32> to vector<8x8xf32>
    %1175 = vector.extract_strided_slice %1157 {offsets = [0, 16], sizes = [8, 8], strides = [1, 1]} : vector<8x24xf32> to vector<8x8xf32>
    %1176 = arith.mulf %1165, %1175 : vector<8x8xf32>
    %1177 = arith.addf %1174, %1176 : vector<8x8xf32>
    %1178 = math.tanh %1177 : vector<8x8xf32>
    %cst_237 = arith.constant 1.000000e+00 : f32
    %1179 = vector.broadcast %cst_237 : f32 to vector<8x8xf32>
    %1180 = arith.subf %1179, %1173 : vector<8x8xf32>
    %1181 = arith.mulf %1180, %1178 : vector<8x8xf32>
    %1182 = arith.mulf %1173, %1152 : vector<8x8xf32>
    %1183 = arith.addf %1181, %1182 : vector<8x8xf32>
    %c24_238 = arith.constant 24 : index
    %c8_239 = arith.constant 8 : index
    %1184 = vector.load %arg19[%c24_238, %c8_239] : memref<48x16xf32, #tpu.memory_space<vmem>>, vector<8x8xf32>
    tpu.vector_store %arg19[%c24_238, %c8_239], %1183 {strides = array<i32>} : memref<48x16xf32, #tpu.memory_space<vmem>>, vector<8x8xf32>,
    %1185 = vector.extract_strided_slice %13 {offsets = [112, 24], sizes = [8, 24], strides = [1, 1]} : vector<144x48xf32> to vector<8x24xf32>
    %cst_240 = arith.constant dense<0.000000e+00> : vector<8x24xf32>
    %1186 = tpu.matmul %1183, %17, %cst_240 {dimension_numbers = #tpu.dot_dimension_numbers<[1], [0], [0], [1], [0, 0, 1, 1], [], []>} : vector<8x8xf32>, vector<8x24xf32>, vector<8x24xf32> -> vector<8x24xf32>
    %1187 = vector.broadcast %21 : vector<1x24xf32> to vector<8x24xf32>
    %1188 = arith.addf %1186, %1187 : vector<8x24xf32>
    %1189 = vector.extract_strided_slice %1185 {offsets = [0, 0], sizes = [8, 8], strides = [1, 1]} : vector<8x24xf32> to vector<8x8xf32>
    %1190 = vector.extract_strided_slice %1188 {offsets = [0, 0], sizes = [8, 8], strides = [1, 1]} : vector<8x24xf32> to vector<8x8xf32>
    %1191 = arith.addf %1189, %1190 : vector<8x8xf32>
    %1192 = arith.negf %1191 : vector<8x8xf32>
    %1193 = math.exp %1192 : vector<8x8xf32>
    %cst_241 = arith.constant 1.000000e+00 : f32
    %1194 = vector.broadcast %cst_241 : f32 to vector<8x8xf32>
    %1195 = arith.addf %1194, %1193 : vector<8x8xf32>
    %1196 = arith.divf %1194, %1195 : vector<8x8xf32>
    %1197 = vector.extract_strided_slice %1185 {offsets = [0, 8], sizes = [8, 8], strides = [1, 1]} : vector<8x24xf32> to vector<8x8xf32>
    %1198 = vector.extract_strided_slice %1188 {offsets = [0, 8], sizes = [8, 8], strides = [1, 1]} : vector<8x24xf32> to vector<8x8xf32>
    %1199 = arith.addf %1197, %1198 : vector<8x8xf32>
    %1200 = arith.negf %1199 : vector<8x8xf32>
    %1201 = math.exp %1200 : vector<8x8xf32>
    %cst_242 = arith.constant 1.000000e+00 : f32
    %1202 = vector.broadcast %cst_242 : f32 to vector<8x8xf32>
    %1203 = arith.addf %1202, %1201 : vector<8x8xf32>
    %1204 = arith.divf %1202, %1203 : vector<8x8xf32>
    %1205 = vector.extract_strided_slice %1185 {offsets = [0, 16], sizes = [8, 8], strides = [1, 1]} : vector<8x24xf32> to vector<8x8xf32>
    %1206 = vector.extract_strided_slice %1188 {offsets = [0, 16], sizes = [8, 8], strides = [1, 1]} : vector<8x24xf32> to vector<8x8xf32>
    %1207 = arith.mulf %1196, %1206 : vector<8x8xf32>
    %1208 = arith.addf %1205, %1207 : vector<8x8xf32>
    %1209 = math.tanh %1208 : vector<8x8xf32>
    %cst_243 = arith.constant 1.000000e+00 : f32
    %1210 = vector.broadcast %cst_243 : f32 to vector<8x8xf32>
    %1211 = arith.subf %1210, %1204 : vector<8x8xf32>
    %1212 = arith.mulf %1211, %1209 : vector<8x8xf32>
    %1213 = arith.mulf %1204, %1183 : vector<8x8xf32>
    %1214 = arith.addf %1212, %1213 : vector<8x8xf32>
    %c16_244 = arith.constant 16 : index
    %c8_245 = arith.constant 8 : index
    %1215 = vector.load %arg19[%c16_244, %c8_245] : memref<48x16xf32, #tpu.memory_space<vmem>>, vector<8x8xf32>
    tpu.vector_store %arg19[%c16_244, %c8_245], %1214 {strides = array<i32>} : memref<48x16xf32, #tpu.memory_space<vmem>>, vector<8x8xf32>,
    %1216 = vector.extract_strided_slice %13 {offsets = [104, 24], sizes = [8, 24], strides = [1, 1]} : vector<144x48xf32> to vector<8x24xf32>
    %cst_246 = arith.constant dense<0.000000e+00> : vector<8x24xf32>
    %1217 = tpu.matmul %1214, %17, %cst_246 {dimension_numbers = #tpu.dot_dimension_numbers<[1], [0], [0], [1], [0, 0, 1, 1], [], []>} : vector<8x8xf32>, vector<8x24xf32>, vector<8x24xf32> -> vector<8x24xf32>
    %1218 = vector.broadcast %21 : vector<1x24xf32> to vector<8x24xf32>
    %1219 = arith.addf %1217, %1218 : vector<8x24xf32>
    %1220 = vector.extract_strided_slice %1216 {offsets = [0, 0], sizes = [8, 8], strides = [1, 1]} : vector<8x24xf32> to vector<8x8xf32>
    %1221 = vector.extract_strided_slice %1219 {offsets = [0, 0], sizes = [8, 8], strides = [1, 1]} : vector<8x24xf32> to vector<8x8xf32>
    %1222 = arith.addf %1220, %1221 : vector<8x8xf32>
    %1223 = arith.negf %1222 : vector<8x8xf32>
    %1224 = math.exp %1223 : vector<8x8xf32>
    %cst_247 = arith.constant 1.000000e+00 : f32
    %1225 = vector.broadcast %cst_247 : f32 to vector<8x8xf32>
    %1226 = arith.addf %1225, %1224 : vector<8x8xf32>
    %1227 = arith.divf %1225, %1226 : vector<8x8xf32>
    %1228 = vector.extract_strided_slice %1216 {offsets = [0, 8], sizes = [8, 8], strides = [1, 1]} : vector<8x24xf32> to vector<8x8xf32>
    %1229 = vector.extract_strided_slice %1219 {offsets = [0, 8], sizes = [8, 8], strides = [1, 1]} : vector<8x24xf32> to vector<8x8xf32>
    %1230 = arith.addf %1228, %1229 : vector<8x8xf32>
    %1231 = arith.negf %1230 : vector<8x8xf32>
    %1232 = math.exp %1231 : vector<8x8xf32>
    %cst_248 = arith.constant 1.000000e+00 : f32
    %1233 = vector.broadcast %cst_248 : f32 to vector<8x8xf32>
    %1234 = arith.addf %1233, %1232 : vector<8x8xf32>
    %1235 = arith.divf %1233, %1234 : vector<8x8xf32>
    %1236 = vector.extract_strided_slice %1216 {offsets = [0, 16], sizes = [8, 8], strides = [1, 1]} : vector<8x24xf32> to vector<8x8xf32>
    %1237 = vector.extract_strided_slice %1219 {offsets = [0, 16], sizes = [8, 8], strides = [1, 1]} : vector<8x24xf32> to vector<8x8xf32>
    %1238 = arith.mulf %1227, %1237 : vector<8x8xf32>
    %1239 = arith.addf %1236, %1238 : vector<8x8xf32>
    %1240 = math.tanh %1239 : vector<8x8xf32>
    %cst_249 = arith.constant 1.000000e+00 : f32
    %1241 = vector.broadcast %cst_249 : f32 to vector<8x8xf32>
    %1242 = arith.subf %1241, %1235 : vector<8x8xf32>
    %1243 = arith.mulf %1242, %1240 : vector<8x8xf32>
    %1244 = arith.mulf %1235, %1214 : vector<8x8xf32>
    %1245 = arith.addf %1243, %1244 : vector<8x8xf32>
    %c8_250 = arith.constant 8 : index
    %c8_251 = arith.constant 8 : index
    %1246 = vector.load %arg19[%c8_250, %c8_251] : memref<48x16xf32, #tpu.memory_space<vmem>>, vector<8x8xf32>
    tpu.vector_store %arg19[%c8_250, %c8_251], %1245 {strides = array<i32>} : memref<48x16xf32, #tpu.memory_space<vmem>>, vector<8x8xf32>,
    %1247 = vector.extract_strided_slice %13 {offsets = [96, 24], sizes = [8, 24], strides = [1, 1]} : vector<144x48xf32> to vector<8x24xf32>
    %cst_252 = arith.constant dense<0.000000e+00> : vector<8x24xf32>
    %1248 = tpu.matmul %1245, %17, %cst_252 {dimension_numbers = #tpu.dot_dimension_numbers<[1], [0], [0], [1], [0, 0, 1, 1], [], []>} : vector<8x8xf32>, vector<8x24xf32>, vector<8x24xf32> -> vector<8x24xf32>
    %1249 = vector.broadcast %21 : vector<1x24xf32> to vector<8x24xf32>
    %1250 = arith.addf %1248, %1249 : vector<8x24xf32>
    %1251 = vector.extract_strided_slice %1247 {offsets = [0, 0], sizes = [8, 8], strides = [1, 1]} : vector<8x24xf32> to vector<8x8xf32>
    %1252 = vector.extract_strided_slice %1250 {offsets = [0, 0], sizes = [8, 8], strides = [1, 1]} : vector<8x24xf32> to vector<8x8xf32>
    %1253 = arith.addf %1251, %1252 : vector<8x8xf32>
    %1254 = arith.negf %1253 : vector<8x8xf32>
    %1255 = math.exp %1254 : vector<8x8xf32>
    %cst_253 = arith.constant 1.000000e+00 : f32
    %1256 = vector.broadcast %cst_253 : f32 to vector<8x8xf32>
    %1257 = arith.addf %1256, %1255 : vector<8x8xf32>
    %1258 = arith.divf %1256, %1257 : vector<8x8xf32>
    %1259 = vector.extract_strided_slice %1247 {offsets = [0, 8], sizes = [8, 8], strides = [1, 1]} : vector<8x24xf32> to vector<8x8xf32>
    %1260 = vector.extract_strided_slice %1250 {offsets = [0, 8], sizes = [8, 8], strides = [1, 1]} : vector<8x24xf32> to vector<8x8xf32>
    %1261 = arith.addf %1259, %1260 : vector<8x8xf32>
    %1262 = arith.negf %1261 : vector<8x8xf32>
    %1263 = math.exp %1262 : vector<8x8xf32>
    %cst_254 = arith.constant 1.000000e+00 : f32
    %1264 = vector.broadcast %cst_254 : f32 to vector<8x8xf32>
    %1265 = arith.addf %1264, %1263 : vector<8x8xf32>
    %1266 = arith.divf %1264, %1265 : vector<8x8xf32>
    %1267 = vector.extract_strided_slice %1247 {offsets = [0, 16], sizes = [8, 8], strides = [1, 1]} : vector<8x24xf32> to vector<8x8xf32>
    %1268 = vector.extract_strided_slice %1250 {offsets = [0, 16], sizes = [8, 8], strides = [1, 1]} : vector<8x24xf32> to vector<8x8xf32>
    %1269 = arith.mulf %1258, %1268 : vector<8x8xf32>
    %1270 = arith.addf %1267, %1269 : vector<8x8xf32>
    %1271 = math.tanh %1270 : vector<8x8xf32>
    %cst_255 = arith.constant 1.000000e+00 : f32
    %1272 = vector.broadcast %cst_255 : f32 to vector<8x8xf32>
    %1273 = arith.subf %1272, %1266 : vector<8x8xf32>
    %1274 = arith.mulf %1273, %1271 : vector<8x8xf32>
    %1275 = arith.mulf %1266, %1245 : vector<8x8xf32>
    %1276 = arith.addf %1274, %1275 : vector<8x8xf32>
    %c0_256 = arith.constant 0 : index
    %c8_257 = arith.constant 8 : index
    %1277 = vector.load %arg19[%c0_256, %c8_257] : memref<48x16xf32, #tpu.memory_space<vmem>>, vector<8x8xf32>
    tpu.vector_store %arg19[%c0_256, %c8_257], %1276 {strides = array<i32>} : memref<48x16xf32, #tpu.memory_space<vmem>>, vector<8x8xf32>,
    %c0_258 = arith.constant 0 : index
    %c0_259 = arith.constant 0 : index
    %1278 = vector.load %arg19[%c0_258, %c0_259] : memref<48x16xf32, #tpu.memory_space<vmem>>, vector<48x16xf32>
    %c0_260 = arith.constant 0 : index
    %c0_261 = arith.constant 0 : index
    %1279 = vector.load %arg10[%c0_260, %c0_261] : memref<16x16xf32, #tpu.memory_space<vmem>>, vector<16x16xf32>
    %c0_262 = arith.constant 0 : index
    %c0_263 = arith.constant 0 : index
    %1280 = vector.load %arg11[%c0_262, %c0_263] : memref<1x16xf32, #tpu.memory_space<vmem>>, vector<1x16xf32>
    %c0_264 = arith.constant 0 : index
    %c0_265 = arith.constant 0 : index
    %1281 = vector.load %arg12[%c0_264, %c0_265] : memref<16x1xf32, #tpu.memory_space<vmem>>, vector<16x1xf32>
    %cst_266 = arith.constant dense<0.000000e+00> : vector<48x16xf32>
    %1282 = tpu.matmul %1278, %1279, %cst_266 {dimension_numbers = #tpu.dot_dimension_numbers<[1], [0], [0], [1], [0, 0, 1, 1], [], []>} : vector<48x16xf32>, vector<16x16xf32>, vector<48x16xf32> -> vector<48x16xf32>
    %1283 = vector.broadcast %1280 : vector<1x16xf32> to vector<48x16xf32>
    %1284 = arith.addf %1282, %1283 : vector<48x16xf32>
    %1285 = math.tanh %1284 : vector<48x16xf32>
    %cst_267 = arith.constant dense<0.000000e+00> : vector<48x1xf32>
    %1286 = tpu.matmul %1285, %1281, %cst_267 {dimension_numbers = #tpu.dot_dimension_numbers<[1], [0], [0], [1], [0, 0, 1, 1], [], []>} : vector<48x16xf32>, vector<16x1xf32>, vector<48x1xf32> -> vector<48x1xf32>
    %1287 = math.tanh %1286 : vector<48x1xf32>
    %1288 = vector.extract_strided_slice %1287 {offsets = [0, 0], sizes = [8, 1], strides = [1, 1]} : vector<48x1xf32> to vector<8x1xf32>
    %1289 = vector.extract_strided_slice %1287 {offsets = [8, 0], sizes = [8, 1], strides = [1, 1]} : vector<48x1xf32> to vector<8x1xf32>
    %1290 = vector.extract_strided_slice %1287 {offsets = [16, 0], sizes = [8, 1], strides = [1, 1]} : vector<48x1xf32> to vector<8x1xf32>
    %1291 = vector.extract_strided_slice %1287 {offsets = [24, 0], sizes = [8, 1], strides = [1, 1]} : vector<48x1xf32> to vector<8x1xf32>
    %1292 = vector.extract_strided_slice %1287 {offsets = [32, 0], sizes = [8, 1], strides = [1, 1]} : vector<48x1xf32> to vector<8x1xf32>
    %1293 = vector.extract_strided_slice %1287 {offsets = [40, 0], sizes = [8, 1], strides = [1, 1]} : vector<48x1xf32> to vector<8x1xf32>
    %1294 = arith.maximumf %1288, %1289 : vector<8x1xf32>
    %1295 = arith.maximumf %1294, %1290 : vector<8x1xf32>
    %1296 = arith.maximumf %1295, %1291 : vector<8x1xf32>
    %1297 = arith.maximumf %1296, %1292 : vector<8x1xf32>
    %1298 = arith.maximumf %1297, %1293 : vector<8x1xf32>
    %1299 = arith.subf %1288, %1298 : vector<8x1xf32>
    %1300 = math.exp %1299 : vector<8x1xf32>
    %1301 = arith.subf %1289, %1298 : vector<8x1xf32>
    %1302 = math.exp %1301 : vector<8x1xf32>
    %1303 = arith.subf %1290, %1298 : vector<8x1xf32>
    %1304 = math.exp %1303 : vector<8x1xf32>
    %1305 = arith.subf %1291, %1298 : vector<8x1xf32>
    %1306 = math.exp %1305 : vector<8x1xf32>
    %1307 = arith.subf %1292, %1298 : vector<8x1xf32>
    %1308 = math.exp %1307 : vector<8x1xf32>
    %1309 = arith.subf %1293, %1298 : vector<8x1xf32>
    %1310 = math.exp %1309 : vector<8x1xf32>
    %1311 = arith.addf %1300, %1302 : vector<8x1xf32>
    %1312 = arith.addf %1311, %1304 : vector<8x1xf32>
    %1313 = arith.addf %1312, %1306 : vector<8x1xf32>
    %1314 = arith.addf %1313, %1308 : vector<8x1xf32>
    %1315 = arith.addf %1314, %1310 : vector<8x1xf32>
    %1316 = tpu.reciprocal %1315 {approx = true} : vector<8x1xf32> -> vector<8x1xf32>
    %1317 = arith.mulf %1300, %1316 : vector<8x1xf32>
    %1318 = vector.extract_strided_slice %1278 {offsets = [0, 0], sizes = [8, 16], strides = [1, 1]} : vector<48x16xf32> to vector<8x16xf32>
    %1319 = vector.broadcast %1317 : vector<8x1xf32> to vector<8x16xf32>
    %1320 = arith.mulf %1319, %1318 : vector<8x16xf32>
    %1321 = arith.mulf %1302, %1316 : vector<8x1xf32>
    %1322 = vector.extract_strided_slice %1278 {offsets = [8, 0], sizes = [8, 16], strides = [1, 1]} : vector<48x16xf32> to vector<8x16xf32>
    %1323 = vector.broadcast %1321 : vector<8x1xf32> to vector<8x16xf32>
    %1324 = arith.mulf %1323, %1322 : vector<8x16xf32>
    %1325 = arith.addf %1320, %1324 : vector<8x16xf32>
    %1326 = arith.mulf %1304, %1316 : vector<8x1xf32>
    %1327 = vector.extract_strided_slice %1278 {offsets = [16, 0], sizes = [8, 16], strides = [1, 1]} : vector<48x16xf32> to vector<8x16xf32>
    %1328 = vector.broadcast %1326 : vector<8x1xf32> to vector<8x16xf32>
    %1329 = arith.mulf %1328, %1327 : vector<8x16xf32>
    %1330 = arith.addf %1325, %1329 : vector<8x16xf32>
    %1331 = arith.mulf %1306, %1316 : vector<8x1xf32>
    %1332 = vector.extract_strided_slice %1278 {offsets = [24, 0], sizes = [8, 16], strides = [1, 1]} : vector<48x16xf32> to vector<8x16xf32>
    %1333 = vector.broadcast %1331 : vector<8x1xf32> to vector<8x16xf32>
    %1334 = arith.mulf %1333, %1332 : vector<8x16xf32>
    %1335 = arith.addf %1330, %1334 : vector<8x16xf32>
    %1336 = arith.mulf %1308, %1316 : vector<8x1xf32>
    %1337 = vector.extract_strided_slice %1278 {offsets = [32, 0], sizes = [8, 16], strides = [1, 1]} : vector<48x16xf32> to vector<8x16xf32>
    %1338 = vector.broadcast %1336 : vector<8x1xf32> to vector<8x16xf32>
    %1339 = arith.mulf %1338, %1337 : vector<8x16xf32>
    %1340 = arith.addf %1335, %1339 : vector<8x16xf32>
    %1341 = arith.mulf %1310, %1316 : vector<8x1xf32>
    %1342 = vector.extract_strided_slice %1278 {offsets = [40, 0], sizes = [8, 16], strides = [1, 1]} : vector<48x16xf32> to vector<8x16xf32>
    %1343 = vector.broadcast %1341 : vector<8x1xf32> to vector<8x16xf32>
    %1344 = arith.mulf %1343, %1342 : vector<8x16xf32>
    %1345 = arith.addf %1340, %1344 : vector<8x16xf32>
    %c16_268 = arith.constant 16 : index
    %c0_269 = arith.constant 0 : index
    %1346 = vector.load %arg20[%c16_268, %c0_269] : memref<24x16xf32, #tpu.memory_space<vmem>>, vector<8x16xf32>
    tpu.vector_store %arg20[%c16_268, %c0_269], %1345 {strides = array<i32>} : memref<24x16xf32, #tpu.memory_space<vmem>>, vector<8x16xf32>,
    %c0_270 = arith.constant 0 : index
    %c0_271 = arith.constant 0 : index
    %1347 = vector.load %arg20[%c0_270, %c0_271] : memref<24x16xf32, #tpu.memory_space<vmem>>, vector<24x16xf32>
    %c0_272 = arith.constant 0 : index
    %c0_273 = arith.constant 0 : index
    %1348 = vector.load %arg6[%c0_272, %c0_273] : memref<16x48xf32, #tpu.memory_space<vmem>>, vector<16x48xf32>
    %cst_274 = arith.constant dense<0.000000e+00> : vector<24x48xf32>
    %1349 = tpu.matmul %1347, %1348, %cst_274 {dimension_numbers = #tpu.dot_dimension_numbers<[1], [0], [0], [1], [0, 0, 1, 1], [], []>} : vector<24x16xf32>, vector<16x48xf32>, vector<24x48xf32> -> vector<24x48xf32>
    %c0_275 = arith.constant 0 : index
    %c0_276 = arith.constant 0 : index
    %1350 = vector.load %arg8[%c0_275, %c0_276] : memref<1x48xf32, #tpu.memory_space<vmem>>, vector<1x48xf32>
    %1351 = vector.broadcast %1350 : vector<1x48xf32> to vector<24x48xf32>
    %1352 = arith.addf %1349, %1351 : vector<24x48xf32>
    %c0_277 = arith.constant 0 : index
    %c0_278 = arith.constant 0 : index
    %c0_279 = arith.constant 0 : index
    %1353 = vector.load %arg7[%c0_277, %c0_278, %c0_279] : memref<2x8x24xf32, #tpu.memory_space<vmem>>, vector<1x8x24xf32>
    %1354 = vector.shape_cast %1353 : vector<1x8x24xf32> to vector<8x24xf32>
    %c1_280 = arith.constant 1 : index
    %c0_281 = arith.constant 0 : index
    %c0_282 = arith.constant 0 : index
    %1355 = vector.load %arg7[%c1_280, %c0_281, %c0_282] : memref<2x8x24xf32, #tpu.memory_space<vmem>>, vector<1x8x24xf32>
    %1356 = vector.shape_cast %1355 : vector<1x8x24xf32> to vector<8x24xf32>
    %c0_283 = arith.constant 0 : index
    %c0_284 = arith.constant 0 : index
    %c0_285 = arith.constant 0 : index
    %1357 = vector.load %arg9[%c0_283, %c0_284, %c0_285] : memref<2x1x24xf32, #tpu.memory_space<vmem>>, vector<1x1x24xf32>
    %1358 = vector.shape_cast %1357 : vector<1x1x24xf32> to vector<1x24xf32>
    %c1_286 = arith.constant 1 : index
    %c0_287 = arith.constant 0 : index
    %c0_288 = arith.constant 0 : index
    %1359 = vector.load %arg9[%c1_286, %c0_287, %c0_288] : memref<2x1x24xf32, #tpu.memory_space<vmem>>, vector<1x1x24xf32>
    %1360 = vector.shape_cast %1359 : vector<1x1x24xf32> to vector<1x24xf32>
    %cst_289 = arith.constant 0.000000e+00 : f32
    %1361 = vector.broadcast %cst_289 : f32 to vector<8x8xf32>
    %cst_290 = arith.constant 0.000000e+00 : f32
    %1362 = vector.broadcast %cst_290 : f32 to vector<8x8xf32>
    %1363 = vector.extract_strided_slice %1352 {offsets = [0, 0], sizes = [8, 24], strides = [1, 1]} : vector<24x48xf32> to vector<8x24xf32>
    %cst_291 = arith.constant dense<0.000000e+00> : vector<8x24xf32>
    %1364 = tpu.matmul %1361, %1354, %cst_291 {dimension_numbers = #tpu.dot_dimension_numbers<[1], [0], [0], [1], [0, 0, 1, 1], [], []>} : vector<8x8xf32>, vector<8x24xf32>, vector<8x24xf32> -> vector<8x24xf32>
    %1365 = vector.broadcast %1358 : vector<1x24xf32> to vector<8x24xf32>
    %1366 = arith.addf %1364, %1365 : vector<8x24xf32>
    %1367 = vector.extract_strided_slice %1363 {offsets = [0, 0], sizes = [8, 8], strides = [1, 1]} : vector<8x24xf32> to vector<8x8xf32>
    %1368 = vector.extract_strided_slice %1366 {offsets = [0, 0], sizes = [8, 8], strides = [1, 1]} : vector<8x24xf32> to vector<8x8xf32>
    %1369 = arith.addf %1367, %1368 : vector<8x8xf32>
    %1370 = arith.negf %1369 : vector<8x8xf32>
    %1371 = math.exp %1370 : vector<8x8xf32>
    %cst_292 = arith.constant 1.000000e+00 : f32
    %1372 = vector.broadcast %cst_292 : f32 to vector<8x8xf32>
    %1373 = arith.addf %1372, %1371 : vector<8x8xf32>
    %1374 = arith.divf %1372, %1373 : vector<8x8xf32>
    %1375 = vector.extract_strided_slice %1363 {offsets = [0, 8], sizes = [8, 8], strides = [1, 1]} : vector<8x24xf32> to vector<8x8xf32>
    %1376 = vector.extract_strided_slice %1366 {offsets = [0, 8], sizes = [8, 8], strides = [1, 1]} : vector<8x24xf32> to vector<8x8xf32>
    %1377 = arith.addf %1375, %1376 : vector<8x8xf32>
    %1378 = arith.negf %1377 : vector<8x8xf32>
    %1379 = math.exp %1378 : vector<8x8xf32>
    %cst_293 = arith.constant 1.000000e+00 : f32
    %1380 = vector.broadcast %cst_293 : f32 to vector<8x8xf32>
    %1381 = arith.addf %1380, %1379 : vector<8x8xf32>
    %1382 = arith.divf %1380, %1381 : vector<8x8xf32>
    %1383 = vector.extract_strided_slice %1363 {offsets = [0, 16], sizes = [8, 8], strides = [1, 1]} : vector<8x24xf32> to vector<8x8xf32>
    %1384 = vector.extract_strided_slice %1366 {offsets = [0, 16], sizes = [8, 8], strides = [1, 1]} : vector<8x24xf32> to vector<8x8xf32>
    %1385 = arith.mulf %1374, %1384 : vector<8x8xf32>
    %1386 = arith.addf %1383, %1385 : vector<8x8xf32>
    %1387 = math.tanh %1386 : vector<8x8xf32>
    %cst_294 = arith.constant 1.000000e+00 : f32
    %1388 = vector.broadcast %cst_294 : f32 to vector<8x8xf32>
    %1389 = arith.subf %1388, %1382 : vector<8x8xf32>
    %1390 = arith.mulf %1389, %1387 : vector<8x8xf32>
    %1391 = arith.mulf %1382, %1361 : vector<8x8xf32>
    %1392 = arith.addf %1390, %1391 : vector<8x8xf32>
    %c0_295 = arith.constant 0 : index
    %c0_296 = arith.constant 0 : index
    %1393 = vector.load %arg21[%c0_295, %c0_296] : memref<24x16xf32, #tpu.memory_space<vmem>>, vector<8x8xf32>
    tpu.vector_store %arg21[%c0_295, %c0_296], %1392 {strides = array<i32>} : memref<24x16xf32, #tpu.memory_space<vmem>>, vector<8x8xf32>,
    %1394 = vector.extract_strided_slice %1352 {offsets = [8, 0], sizes = [8, 24], strides = [1, 1]} : vector<24x48xf32> to vector<8x24xf32>
    %cst_297 = arith.constant dense<0.000000e+00> : vector<8x24xf32>
    %1395 = tpu.matmul %1392, %1354, %cst_297 {dimension_numbers = #tpu.dot_dimension_numbers<[1], [0], [0], [1], [0, 0, 1, 1], [], []>} : vector<8x8xf32>, vector<8x24xf32>, vector<8x24xf32> -> vector<8x24xf32>
    %1396 = vector.broadcast %1358 : vector<1x24xf32> to vector<8x24xf32>
    %1397 = arith.addf %1395, %1396 : vector<8x24xf32>
    %1398 = vector.extract_strided_slice %1394 {offsets = [0, 0], sizes = [8, 8], strides = [1, 1]} : vector<8x24xf32> to vector<8x8xf32>
    %1399 = vector.extract_strided_slice %1397 {offsets = [0, 0], sizes = [8, 8], strides = [1, 1]} : vector<8x24xf32> to vector<8x8xf32>
    %1400 = arith.addf %1398, %1399 : vector<8x8xf32>
    %1401 = arith.negf %1400 : vector<8x8xf32>
    %1402 = math.exp %1401 : vector<8x8xf32>
    %cst_298 = arith.constant 1.000000e+00 : f32
    %1403 = vector.broadcast %cst_298 : f32 to vector<8x8xf32>
    %1404 = arith.addf %1403, %1402 : vector<8x8xf32>
    %1405 = arith.divf %1403, %1404 : vector<8x8xf32>
    %1406 = vector.extract_strided_slice %1394 {offsets = [0, 8], sizes = [8, 8], strides = [1, 1]} : vector<8x24xf32> to vector<8x8xf32>
    %1407 = vector.extract_strided_slice %1397 {offsets = [0, 8], sizes = [8, 8], strides = [1, 1]} : vector<8x24xf32> to vector<8x8xf32>
    %1408 = arith.addf %1406, %1407 : vector<8x8xf32>
    %1409 = arith.negf %1408 : vector<8x8xf32>
    %1410 = math.exp %1409 : vector<8x8xf32>
    %cst_299 = arith.constant 1.000000e+00 : f32
    %1411 = vector.broadcast %cst_299 : f32 to vector<8x8xf32>
    %1412 = arith.addf %1411, %1410 : vector<8x8xf32>
    %1413 = arith.divf %1411, %1412 : vector<8x8xf32>
    %1414 = vector.extract_strided_slice %1394 {offsets = [0, 16], sizes = [8, 8], strides = [1, 1]} : vector<8x24xf32> to vector<8x8xf32>
    %1415 = vector.extract_strided_slice %1397 {offsets = [0, 16], sizes = [8, 8], strides = [1, 1]} : vector<8x24xf32> to vector<8x8xf32>
    %1416 = arith.mulf %1405, %1415 : vector<8x8xf32>
    %1417 = arith.addf %1414, %1416 : vector<8x8xf32>
    %1418 = math.tanh %1417 : vector<8x8xf32>
    %cst_300 = arith.constant 1.000000e+00 : f32
    %1419 = vector.broadcast %cst_300 : f32 to vector<8x8xf32>
    %1420 = arith.subf %1419, %1413 : vector<8x8xf32>
    %1421 = arith.mulf %1420, %1418 : vector<8x8xf32>
    %1422 = arith.mulf %1413, %1392 : vector<8x8xf32>
    %1423 = arith.addf %1421, %1422 : vector<8x8xf32>
    %c8_301 = arith.constant 8 : index
    %c0_302 = arith.constant 0 : index
    %1424 = vector.load %arg21[%c8_301, %c0_302] : memref<24x16xf32, #tpu.memory_space<vmem>>, vector<8x8xf32>
    tpu.vector_store %arg21[%c8_301, %c0_302], %1423 {strides = array<i32>} : memref<24x16xf32, #tpu.memory_space<vmem>>, vector<8x8xf32>,
    %1425 = vector.extract_strided_slice %1352 {offsets = [16, 0], sizes = [8, 24], strides = [1, 1]} : vector<24x48xf32> to vector<8x24xf32>
    %cst_303 = arith.constant dense<0.000000e+00> : vector<8x24xf32>
    %1426 = tpu.matmul %1423, %1354, %cst_303 {dimension_numbers = #tpu.dot_dimension_numbers<[1], [0], [0], [1], [0, 0, 1, 1], [], []>} : vector<8x8xf32>, vector<8x24xf32>, vector<8x24xf32> -> vector<8x24xf32>
    %1427 = vector.broadcast %1358 : vector<1x24xf32> to vector<8x24xf32>
    %1428 = arith.addf %1426, %1427 : vector<8x24xf32>
    %1429 = vector.extract_strided_slice %1425 {offsets = [0, 0], sizes = [8, 8], strides = [1, 1]} : vector<8x24xf32> to vector<8x8xf32>
    %1430 = vector.extract_strided_slice %1428 {offsets = [0, 0], sizes = [8, 8], strides = [1, 1]} : vector<8x24xf32> to vector<8x8xf32>
    %1431 = arith.addf %1429, %1430 : vector<8x8xf32>
    %1432 = arith.negf %1431 : vector<8x8xf32>
    %1433 = math.exp %1432 : vector<8x8xf32>
    %cst_304 = arith.constant 1.000000e+00 : f32
    %1434 = vector.broadcast %cst_304 : f32 to vector<8x8xf32>
    %1435 = arith.addf %1434, %1433 : vector<8x8xf32>
    %1436 = arith.divf %1434, %1435 : vector<8x8xf32>
    %1437 = vector.extract_strided_slice %1425 {offsets = [0, 8], sizes = [8, 8], strides = [1, 1]} : vector<8x24xf32> to vector<8x8xf32>
    %1438 = vector.extract_strided_slice %1428 {offsets = [0, 8], sizes = [8, 8], strides = [1, 1]} : vector<8x24xf32> to vector<8x8xf32>
    %1439 = arith.addf %1437, %1438 : vector<8x8xf32>
    %1440 = arith.negf %1439 : vector<8x8xf32>
    %1441 = math.exp %1440 : vector<8x8xf32>
    %cst_305 = arith.constant 1.000000e+00 : f32
    %1442 = vector.broadcast %cst_305 : f32 to vector<8x8xf32>
    %1443 = arith.addf %1442, %1441 : vector<8x8xf32>
    %1444 = arith.divf %1442, %1443 : vector<8x8xf32>
    %1445 = vector.extract_strided_slice %1425 {offsets = [0, 16], sizes = [8, 8], strides = [1, 1]} : vector<8x24xf32> to vector<8x8xf32>
    %1446 = vector.extract_strided_slice %1428 {offsets = [0, 16], sizes = [8, 8], strides = [1, 1]} : vector<8x24xf32> to vector<8x8xf32>
    %1447 = arith.mulf %1436, %1446 : vector<8x8xf32>
    %1448 = arith.addf %1445, %1447 : vector<8x8xf32>
    %1449 = math.tanh %1448 : vector<8x8xf32>
    %cst_306 = arith.constant 1.000000e+00 : f32
    %1450 = vector.broadcast %cst_306 : f32 to vector<8x8xf32>
    %1451 = arith.subf %1450, %1444 : vector<8x8xf32>
    %1452 = arith.mulf %1451, %1449 : vector<8x8xf32>
    %1453 = arith.mulf %1444, %1423 : vector<8x8xf32>
    %1454 = arith.addf %1452, %1453 : vector<8x8xf32>
    %c16_307 = arith.constant 16 : index
    %c0_308 = arith.constant 0 : index
    %1455 = vector.load %arg21[%c16_307, %c0_308] : memref<24x16xf32, #tpu.memory_space<vmem>>, vector<8x8xf32>
    tpu.vector_store %arg21[%c16_307, %c0_308], %1454 {strides = array<i32>} : memref<24x16xf32, #tpu.memory_space<vmem>>, vector<8x8xf32>,
    %1456 = vector.extract_strided_slice %1352 {offsets = [16, 24], sizes = [8, 24], strides = [1, 1]} : vector<24x48xf32> to vector<8x24xf32>
    %cst_309 = arith.constant dense<0.000000e+00> : vector<8x24xf32>
    %1457 = tpu.matmul %1362, %1356, %cst_309 {dimension_numbers = #tpu.dot_dimension_numbers<[1], [0], [0], [1], [0, 0, 1, 1], [], []>} : vector<8x8xf32>, vector<8x24xf32>, vector<8x24xf32> -> vector<8x24xf32>
    %1458 = vector.broadcast %1360 : vector<1x24xf32> to vector<8x24xf32>
    %1459 = arith.addf %1457, %1458 : vector<8x24xf32>
    %1460 = vector.extract_strided_slice %1456 {offsets = [0, 0], sizes = [8, 8], strides = [1, 1]} : vector<8x24xf32> to vector<8x8xf32>
    %1461 = vector.extract_strided_slice %1459 {offsets = [0, 0], sizes = [8, 8], strides = [1, 1]} : vector<8x24xf32> to vector<8x8xf32>
    %1462 = arith.addf %1460, %1461 : vector<8x8xf32>
    %1463 = arith.negf %1462 : vector<8x8xf32>
    %1464 = math.exp %1463 : vector<8x8xf32>
    %cst_310 = arith.constant 1.000000e+00 : f32
    %1465 = vector.broadcast %cst_310 : f32 to vector<8x8xf32>
    %1466 = arith.addf %1465, %1464 : vector<8x8xf32>
    %1467 = arith.divf %1465, %1466 : vector<8x8xf32>
    %1468 = vector.extract_strided_slice %1456 {offsets = [0, 8], sizes = [8, 8], strides = [1, 1]} : vector<8x24xf32> to vector<8x8xf32>
    %1469 = vector.extract_strided_slice %1459 {offsets = [0, 8], sizes = [8, 8], strides = [1, 1]} : vector<8x24xf32> to vector<8x8xf32>
    %1470 = arith.addf %1468, %1469 : vector<8x8xf32>
    %1471 = arith.negf %1470 : vector<8x8xf32>
    %1472 = math.exp %1471 : vector<8x8xf32>
    %cst_311 = arith.constant 1.000000e+00 : f32
    %1473 = vector.broadcast %cst_311 : f32 to vector<8x8xf32>
    %1474 = arith.addf %1473, %1472 : vector<8x8xf32>
    %1475 = arith.divf %1473, %1474 : vector<8x8xf32>
    %1476 = vector.extract_strided_slice %1456 {offsets = [0, 16], sizes = [8, 8], strides = [1, 1]} : vector<8x24xf32> to vector<8x8xf32>
    %1477 = vector.extract_strided_slice %1459 {offsets = [0, 16], sizes = [8, 8], strides = [1, 1]} : vector<8x24xf32> to vector<8x8xf32>
    %1478 = arith.mulf %1467, %1477 : vector<8x8xf32>
    %1479 = arith.addf %1476, %1478 : vector<8x8xf32>
    %1480 = math.tanh %1479 : vector<8x8xf32>
    %cst_312 = arith.constant 1.000000e+00 : f32
    %1481 = vector.broadcast %cst_312 : f32 to vector<8x8xf32>
    %1482 = arith.subf %1481, %1475 : vector<8x8xf32>
    %1483 = arith.mulf %1482, %1480 : vector<8x8xf32>
    %1484 = arith.mulf %1475, %1362 : vector<8x8xf32>
    %1485 = arith.addf %1483, %1484 : vector<8x8xf32>
    %c16_313 = arith.constant 16 : index
    %c8_314 = arith.constant 8 : index
    %1486 = vector.load %arg21[%c16_313, %c8_314] : memref<24x16xf32, #tpu.memory_space<vmem>>, vector<8x8xf32>
    tpu.vector_store %arg21[%c16_313, %c8_314], %1485 {strides = array<i32>} : memref<24x16xf32, #tpu.memory_space<vmem>>, vector<8x8xf32>,
    %1487 = vector.extract_strided_slice %1352 {offsets = [8, 24], sizes = [8, 24], strides = [1, 1]} : vector<24x48xf32> to vector<8x24xf32>
    %cst_315 = arith.constant dense<0.000000e+00> : vector<8x24xf32>
    %1488 = tpu.matmul %1485, %1356, %cst_315 {dimension_numbers = #tpu.dot_dimension_numbers<[1], [0], [0], [1], [0, 0, 1, 1], [], []>} : vector<8x8xf32>, vector<8x24xf32>, vector<8x24xf32> -> vector<8x24xf32>
    %1489 = vector.broadcast %1360 : vector<1x24xf32> to vector<8x24xf32>
    %1490 = arith.addf %1488, %1489 : vector<8x24xf32>
    %1491 = vector.extract_strided_slice %1487 {offsets = [0, 0], sizes = [8, 8], strides = [1, 1]} : vector<8x24xf32> to vector<8x8xf32>
    %1492 = vector.extract_strided_slice %1490 {offsets = [0, 0], sizes = [8, 8], strides = [1, 1]} : vector<8x24xf32> to vector<8x8xf32>
    %1493 = arith.addf %1491, %1492 : vector<8x8xf32>
    %1494 = arith.negf %1493 : vector<8x8xf32>
    %1495 = math.exp %1494 : vector<8x8xf32>
    %cst_316 = arith.constant 1.000000e+00 : f32
    %1496 = vector.broadcast %cst_316 : f32 to vector<8x8xf32>
    %1497 = arith.addf %1496, %1495 : vector<8x8xf32>
    %1498 = arith.divf %1496, %1497 : vector<8x8xf32>
    %1499 = vector.extract_strided_slice %1487 {offsets = [0, 8], sizes = [8, 8], strides = [1, 1]} : vector<8x24xf32> to vector<8x8xf32>
    %1500 = vector.extract_strided_slice %1490 {offsets = [0, 8], sizes = [8, 8], strides = [1, 1]} : vector<8x24xf32> to vector<8x8xf32>
    %1501 = arith.addf %1499, %1500 : vector<8x8xf32>
    %1502 = arith.negf %1501 : vector<8x8xf32>
    %1503 = math.exp %1502 : vector<8x8xf32>
    %cst_317 = arith.constant 1.000000e+00 : f32
    %1504 = vector.broadcast %cst_317 : f32 to vector<8x8xf32>
    %1505 = arith.addf %1504, %1503 : vector<8x8xf32>
    %1506 = arith.divf %1504, %1505 : vector<8x8xf32>
    %1507 = vector.extract_strided_slice %1487 {offsets = [0, 16], sizes = [8, 8], strides = [1, 1]} : vector<8x24xf32> to vector<8x8xf32>
    %1508 = vector.extract_strided_slice %1490 {offsets = [0, 16], sizes = [8, 8], strides = [1, 1]} : vector<8x24xf32> to vector<8x8xf32>
    %1509 = arith.mulf %1498, %1508 : vector<8x8xf32>
    %1510 = arith.addf %1507, %1509 : vector<8x8xf32>
    %1511 = math.tanh %1510 : vector<8x8xf32>
    %cst_318 = arith.constant 1.000000e+00 : f32
    %1512 = vector.broadcast %cst_318 : f32 to vector<8x8xf32>
    %1513 = arith.subf %1512, %1506 : vector<8x8xf32>
    %1514 = arith.mulf %1513, %1511 : vector<8x8xf32>
    %1515 = arith.mulf %1506, %1485 : vector<8x8xf32>
    %1516 = arith.addf %1514, %1515 : vector<8x8xf32>
    %c8_319 = arith.constant 8 : index
    %c8_320 = arith.constant 8 : index
    %1517 = vector.load %arg21[%c8_319, %c8_320] : memref<24x16xf32, #tpu.memory_space<vmem>>, vector<8x8xf32>
    tpu.vector_store %arg21[%c8_319, %c8_320], %1516 {strides = array<i32>} : memref<24x16xf32, #tpu.memory_space<vmem>>, vector<8x8xf32>,
    %1518 = vector.extract_strided_slice %1352 {offsets = [0, 24], sizes = [8, 24], strides = [1, 1]} : vector<24x48xf32> to vector<8x24xf32>
    %cst_321 = arith.constant dense<0.000000e+00> : vector<8x24xf32>
    %1519 = tpu.matmul %1516, %1356, %cst_321 {dimension_numbers = #tpu.dot_dimension_numbers<[1], [0], [0], [1], [0, 0, 1, 1], [], []>} : vector<8x8xf32>, vector<8x24xf32>, vector<8x24xf32> -> vector<8x24xf32>
    %1520 = vector.broadcast %1360 : vector<1x24xf32> to vector<8x24xf32>
    %1521 = arith.addf %1519, %1520 : vector<8x24xf32>
    %1522 = vector.extract_strided_slice %1518 {offsets = [0, 0], sizes = [8, 8], strides = [1, 1]} : vector<8x24xf32> to vector<8x8xf32>
    %1523 = vector.extract_strided_slice %1521 {offsets = [0, 0], sizes = [8, 8], strides = [1, 1]} : vector<8x24xf32> to vector<8x8xf32>
    %1524 = arith.addf %1522, %1523 : vector<8x8xf32>
    %1525 = arith.negf %1524 : vector<8x8xf32>
    %1526 = math.exp %1525 : vector<8x8xf32>
    %cst_322 = arith.constant 1.000000e+00 : f32
    %1527 = vector.broadcast %cst_322 : f32 to vector<8x8xf32>
    %1528 = arith.addf %1527, %1526 : vector<8x8xf32>
    %1529 = arith.divf %1527, %1528 : vector<8x8xf32>
    %1530 = vector.extract_strided_slice %1518 {offsets = [0, 8], sizes = [8, 8], strides = [1, 1]} : vector<8x24xf32> to vector<8x8xf32>
    %1531 = vector.extract_strided_slice %1521 {offsets = [0, 8], sizes = [8, 8], strides = [1, 1]} : vector<8x24xf32> to vector<8x8xf32>
    %1532 = arith.addf %1530, %1531 : vector<8x8xf32>
    %1533 = arith.negf %1532 : vector<8x8xf32>
    %1534 = math.exp %1533 : vector<8x8xf32>
    %cst_323 = arith.constant 1.000000e+00 : f32
    %1535 = vector.broadcast %cst_323 : f32 to vector<8x8xf32>
    %1536 = arith.addf %1535, %1534 : vector<8x8xf32>
    %1537 = arith.divf %1535, %1536 : vector<8x8xf32>
    %1538 = vector.extract_strided_slice %1518 {offsets = [0, 16], sizes = [8, 8], strides = [1, 1]} : vector<8x24xf32> to vector<8x8xf32>
    %1539 = vector.extract_strided_slice %1521 {offsets = [0, 16], sizes = [8, 8], strides = [1, 1]} : vector<8x24xf32> to vector<8x8xf32>
    %1540 = arith.mulf %1529, %1539 : vector<8x8xf32>
    %1541 = arith.addf %1538, %1540 : vector<8x8xf32>
    %1542 = math.tanh %1541 : vector<8x8xf32>
    %cst_324 = arith.constant 1.000000e+00 : f32
    %1543 = vector.broadcast %cst_324 : f32 to vector<8x8xf32>
    %1544 = arith.subf %1543, %1537 : vector<8x8xf32>
    %1545 = arith.mulf %1544, %1542 : vector<8x8xf32>
    %1546 = arith.mulf %1537, %1516 : vector<8x8xf32>
    %1547 = arith.addf %1545, %1546 : vector<8x8xf32>
    %c0_325 = arith.constant 0 : index
    %c8_326 = arith.constant 8 : index
    %1548 = vector.load %arg21[%c0_325, %c8_326] : memref<24x16xf32, #tpu.memory_space<vmem>>, vector<8x8xf32>
    tpu.vector_store %arg21[%c0_325, %c8_326], %1547 {strides = array<i32>} : memref<24x16xf32, #tpu.memory_space<vmem>>, vector<8x8xf32>,
    %c0_327 = arith.constant 0 : index
    %c0_328 = arith.constant 0 : index
    %1549 = vector.load %arg21[%c0_327, %c0_328] : memref<24x16xf32, #tpu.memory_space<vmem>>, vector<24x16xf32>
    %c0_329 = arith.constant 0 : index
    %c0_330 = arith.constant 0 : index
    %1550 = vector.load %arg13[%c0_329, %c0_330] : memref<16x16xf32, #tpu.memory_space<vmem>>, vector<16x16xf32>
    %c0_331 = arith.constant 0 : index
    %c0_332 = arith.constant 0 : index
    %1551 = vector.load %arg14[%c0_331, %c0_332] : memref<1x16xf32, #tpu.memory_space<vmem>>, vector<1x16xf32>
    %c0_333 = arith.constant 0 : index
    %c0_334 = arith.constant 0 : index
    %1552 = vector.load %arg15[%c0_333, %c0_334] : memref<16x1xf32, #tpu.memory_space<vmem>>, vector<16x1xf32>
    %cst_335 = arith.constant dense<0.000000e+00> : vector<24x16xf32>
    %1553 = tpu.matmul %1549, %1550, %cst_335 {dimension_numbers = #tpu.dot_dimension_numbers<[1], [0], [0], [1], [0, 0, 1, 1], [], []>} : vector<24x16xf32>, vector<16x16xf32>, vector<24x16xf32> -> vector<24x16xf32>
    %1554 = vector.broadcast %1551 : vector<1x16xf32> to vector<24x16xf32>
    %1555 = arith.addf %1553, %1554 : vector<24x16xf32>
    %1556 = math.tanh %1555 : vector<24x16xf32>
    %cst_336 = arith.constant dense<0.000000e+00> : vector<24x1xf32>
    %1557 = tpu.matmul %1556, %1552, %cst_336 {dimension_numbers = #tpu.dot_dimension_numbers<[1], [0], [0], [1], [0, 0, 1, 1], [], []>} : vector<24x16xf32>, vector<16x1xf32>, vector<24x1xf32> -> vector<24x1xf32>
    %1558 = math.tanh %1557 : vector<24x1xf32>
    %1559 = vector.extract_strided_slice %1558 {offsets = [0, 0], sizes = [8, 1], strides = [1, 1]} : vector<24x1xf32> to vector<8x1xf32>
    %1560 = vector.extract_strided_slice %1558 {offsets = [8, 0], sizes = [8, 1], strides = [1, 1]} : vector<24x1xf32> to vector<8x1xf32>
    %1561 = vector.extract_strided_slice %1558 {offsets = [16, 0], sizes = [8, 1], strides = [1, 1]} : vector<24x1xf32> to vector<8x1xf32>
    %1562 = arith.maximumf %1559, %1560 : vector<8x1xf32>
    %1563 = arith.maximumf %1562, %1561 : vector<8x1xf32>
    %1564 = arith.subf %1559, %1563 : vector<8x1xf32>
    %1565 = math.exp %1564 : vector<8x1xf32>
    %1566 = arith.subf %1560, %1563 : vector<8x1xf32>
    %1567 = math.exp %1566 : vector<8x1xf32>
    %1568 = arith.subf %1561, %1563 : vector<8x1xf32>
    %1569 = math.exp %1568 : vector<8x1xf32>
    %1570 = arith.addf %1565, %1567 : vector<8x1xf32>
    %1571 = arith.addf %1570, %1569 : vector<8x1xf32>
    %1572 = tpu.reciprocal %1571 {approx = true} : vector<8x1xf32> -> vector<8x1xf32>
    %1573 = arith.mulf %1565, %1572 : vector<8x1xf32>
    %1574 = vector.extract_strided_slice %1549 {offsets = [0, 0], sizes = [8, 16], strides = [1, 1]} : vector<24x16xf32> to vector<8x16xf32>
    %1575 = vector.broadcast %1573 : vector<8x1xf32> to vector<8x16xf32>
    %1576 = arith.mulf %1575, %1574 : vector<8x16xf32>
    %1577 = arith.mulf %1567, %1572 : vector<8x1xf32>
    %1578 = vector.extract_strided_slice %1549 {offsets = [8, 0], sizes = [8, 16], strides = [1, 1]} : vector<24x16xf32> to vector<8x16xf32>
    %1579 = vector.broadcast %1577 : vector<8x1xf32> to vector<8x16xf32>
    %1580 = arith.mulf %1579, %1578 : vector<8x16xf32>
    %1581 = arith.addf %1576, %1580 : vector<8x16xf32>
    %1582 = arith.mulf %1569, %1572 : vector<8x1xf32>
    %1583 = vector.extract_strided_slice %1549 {offsets = [16, 0], sizes = [8, 16], strides = [1, 1]} : vector<24x16xf32> to vector<8x16xf32>
    %1584 = vector.broadcast %1582 : vector<8x1xf32> to vector<8x16xf32>
    %1585 = arith.mulf %1584, %1583 : vector<8x16xf32>
    %1586 = arith.addf %1581, %1585 : vector<8x16xf32>
    %c0_337 = arith.constant 0 : index
    %c0_338 = arith.constant 0 : index
    %1587 = vector.load %arg16[%c0_337, %c0_338] : memref<16x128xf32, #tpu.memory_space<vmem>>, vector<16x128xf32>
    %cst_339 = arith.constant dense<0.000000e+00> : vector<8x128xf32>
    %1588 = tpu.matmul %1586, %1587, %cst_339 {dimension_numbers = #tpu.dot_dimension_numbers<[1], [0], [0], [1], [0, 0, 1, 1], [], []>} : vector<8x16xf32>, vector<16x128xf32>, vector<8x128xf32> -> vector<8x128xf32>
    %c0_340 = arith.constant 0 : index
    %c0_341 = arith.constant 0 : index
    %1589 = vector.load %arg17[%c0_340, %c0_341] : memref<1x128xf32, #tpu.memory_space<vmem>>, vector<1x128xf32>
    %1590 = vector.broadcast %1589 : vector<1x128xf32> to vector<8x128xf32>
    %1591 = arith.addf %1588, %1590 : vector<8x128xf32>
    %c0_342 = arith.constant 0 : index
    %c0_343 = arith.constant 0 : index
    %1592 = vector.load %arg18[%c0_342, %c0_343] : memref<8x128xf32, #tpu.memory_space<vmem>>, vector<8x128xf32>
    tpu.vector_store %arg18[%c0_342, %c0_343], %1591 {strides = array<i32>} : memref<8x128xf32, #tpu.memory_space<vmem>>, vector<8x128xf32>,
    return
  }
}

</mosaic_0001>

<llo_original>
// kernel: hier_att_forward.1
$region0: #{hier_att_forward.1}
  #allocation0 [shape = 'u32[]', space=smem, size = 0x4, offset = 0x4, fixed_abs, tag = 'smem constant byte address 0x4 - core index']
  #allocation1 [shape = 'u32[144,128]{1,0:T(1,128)}', space=vmem, size = 0x12000, scoped, tag = 'internal scratch']
  #allocation2 [shape = 'f32[48,16]{1,0:T(8,128)}', space=vmem, size = 0x6000, scoped, tag = 'scratch operand']
  #allocation3 [shape = 'f32[24,16]{1,0:T(8,128)}', space=vmem, size = 0x3000, scoped, tag = 'scratch operand']
  #allocation4 [shape = 'f32[24,16]{1,0:T(8,128)}', space=vmem, size = 0x3000, scoped, tag = 'scratch operand']
  %s0 = inlined_call_operand.vmem [shape: s32[144,1], index: 0, kind: input, shape index: {}]
  %s1 = inlined_call_operand.vmem [shape: f32[30,12], index: 1, kind: input, shape index: {}]
  %s2 = inlined_call_operand.vmem [shape: f32[12,48], index: 2, kind: input, shape index: {}]
  %s3 = inlined_call_operand.vmem [shape: f32[2,8,24], index: 3, kind: input, shape index: {}]
  %s4 = inlined_call_operand.vmem [shape: f32[1,48], index: 4, kind: input, shape index: {}]
  %s5 = inlined_call_operand.vmem [shape: f32[2,1,24], index: 5, kind: input, shape index: {}]
  %s6 = inlined_call_operand.vmem [shape: f32[16,48], index: 6, kind: input, shape index: {}]
  %s7 = inlined_call_operand.vmem [shape: f32[2,8,24], index: 7, kind: input, shape index: {}]
  %s8 = inlined_call_operand.vmem [shape: f32[1,48], index: 8, kind: input, shape index: {}]
  %s9 = inlined_call_operand.vmem [shape: f32[2,1,24], index: 9, kind: input, shape index: {}]
  %s10 = inlined_call_operand.vmem [shape: f32[16,16], index: 10, kind: input, shape index: {}]
  %s11 = inlined_call_operand.vmem [shape: f32[1,16], index: 11, kind: input, shape index: {}]
  %s12 = inlined_call_operand.vmem [shape: f32[16,1], index: 12, kind: input, shape index: {}]
  %s13 = inlined_call_operand.vmem [shape: f32[16,16], index: 13, kind: input, shape index: {}]
  %s14 = inlined_call_operand.vmem [shape: f32[1,16], index: 14, kind: input, shape index: {}]
  %s15 = inlined_call_operand.vmem [shape: f32[16,1], index: 15, kind: input, shape index: {}]
  %s16 = inlined_call_operand.vmem [shape: f32[16,128], index: 16, kind: input, shape index: {}]
  %s17 = inlined_call_operand.vmem [shape: f32[1,128], index: 17, kind: input, shape index: {}]
  %s18 = inlined_call_operand.vmem [shape: f32[8,128], index: 18, kind: output, shape index: {}]
  %s19 = sld [smem:[#allocation0]]
  $region82: #{hier_att_forward.1} parent=0
    _
  %s21 = ssub.s32 1, %s19
  %s22 = scalar_select 0, %s21, %s19
  // Predicated region
  $region2: #{hier_att_forward.1} parent=0 // pred_check
    _
  $region3: #{hier_att_forward.1} parent=0 // pred_check_branch
    %24 = sbr.rel (0) target = $region5
  $region4: #{hier_att_forward.1} parent=0 // pred_region
    _
  $region5: #{hier_att_forward.1} parent=0 // pred_fallthru
    _
  // Predicated region
  $region6: #{hier_att_forward.1} parent=0 // pred_check
    _
  $region7: #{hier_att_forward.1} parent=0 // pred_check_branch
    %26 = sbr.rel (0) target = $region9
  $region8: #{hier_att_forward.1} parent=0 // pred_region
    _
  $region9: #{hier_att_forward.1} parent=0 // pred_fallthru
    _
  // Predicated region
  $region10: #{hier_att_forward.1} parent=0 // pred_check
    _
  $region11: #{hier_att_forward.1} parent=0 // pred_check_branch
    %28 = sbr.rel (0) target = $region13
  $region12: #{hier_att_forward.1} parent=0 // pred_region
    _
  $region13: #{hier_att_forward.1} parent=0 // pred_fallthru
    _
  // Predicated region
  $region14: #{hier_att_forward.1} parent=0 // pred_check
    _
  $region15: #{hier_att_forward.1} parent=0 // pred_check_branch
    %30 = sbr.rel (0) target = $region17
  $region16: #{hier_att_forward.1} parent=0 // pred_region
    _
  $region17: #{hier_att_forward.1} parent=0 // pred_fallthru
    _
  // Predicated region
  $region18: #{hier_att_forward.1} parent=0 // pred_check
    _
  $region19: #{hier_att_forward.1} parent=0 // pred_check_branch
    %32 = sbr.rel (0) target = $region21
  $region20: #{hier_att_forward.1} parent=0 // pred_region
    _
  $region21: #{hier_att_forward.1} parent=0 // pred_fallthru
    _
  // Predicated region
  $region22: #{hier_att_forward.1} parent=0 // pred_check
    _
  $region23: #{hier_att_forward.1} parent=0 // pred_check_branch
    %34 = sbr.rel (0) target = $region25
  $region24: #{hier_att_forward.1} parent=0 // pred_region
    _
  $region25: #{hier_att_forward.1} parent=0 // pred_fallthru
    _
  // Predicated region
  $region26: #{hier_att_forward.1} parent=0 // pred_check
    _
  $region27: #{hier_att_forward.1} parent=0 // pred_check_branch
    %36 = sbr.rel (0) target = $region29
  $region28: #{hier_att_forward.1} parent=0 // pred_region
    _
  $region29: #{hier_att_forward.1} parent=0 // pred_fallthru
    _
  // Predicated region
  $region30: #{hier_att_forward.1} parent=0 // pred_check
    _
  $region31: #{hier_att_forward.1} parent=0 // pred_check_branch
    %38 = sbr.rel (0) target = $region33
  $region32: #{hier_att_forward.1} parent=0 // pred_region
    _
  $region33: #{hier_att_forward.1} parent=0 // pred_fallthru
    _
  // Predicated region
  $region34: #{hier_att_forward.1} parent=0 // pred_check
    _
  $region35: #{hier_att_forward.1} parent=0 // pred_check_branch
    %40 = sbr.rel (0) target = $region37
  $region36: #{hier_att_forward.1} parent=0 // pred_region
    _
  $region37: #{hier_att_forward.1} parent=0 // pred_fallthru
    _
  // Predicated region
  $region38: #{hier_att_forward.1} parent=0 // pred_check
    _
  $region39: #{hier_att_forward.1} parent=0 // pred_check_branch
    %42 = sbr.rel (0) target = $region41
  $region40: #{hier_att_forward.1} parent=0 // pred_region
    _
  $region41: #{hier_att_forward.1} parent=0 // pred_fallthru
    _
  // Predicated region
  $region42: #{hier_att_forward.1} parent=0 // pred_check
    _
  $region43: #{hier_att_forward.1} parent=0 // pred_check_branch
    %44 = sbr.rel (0) target = $region45
  $region44: #{hier_att_forward.1} parent=0 // pred_region
    _
  $region45: #{hier_att_forward.1} parent=0 // pred_fallthru
    _
  // Predicated region
  $region46: #{hier_att_forward.1} parent=0 // pred_check
    _
  $region47: #{hier_att_forward.1} parent=0 // pred_check_branch
    %46 = sbr.rel (0) target = $region49
  $region48: #{hier_att_forward.1} parent=0 // pred_region
    _
  $region49: #{hier_att_forward.1} parent=0 // pred_fallthru
    _
  // Predicated region
  $region50: #{hier_att_forward.1} parent=0 // pred_check
    _
  $region51: #{hier_att_forward.1} parent=0 // pred_check_branch
    %48 = sbr.rel (0) target = $region53
  $region52: #{hier_att_forward.1} parent=0 // pred_region
    _
  $region53: #{hier_att_forward.1} parent=0 // pred_fallthru
    _
  // Predicated region
  $region54: #{hier_att_forward.1} parent=0 // pred_check
    _
  $region55: #{hier_att_forward.1} parent=0 // pred_check_branch
    %50 = sbr.rel (0) target = $region57
  $region56: #{hier_att_forward.1} parent=0 // pred_region
    _
  $region57: #{hier_att_forward.1} parent=0 // pred_fallthru
    _
  // Predicated region
  $region58: #{hier_att_forward.1} parent=0 // pred_check
    _
  $region59: #{hier_att_forward.1} parent=0 // pred_check_branch
    %52 = sbr.rel (0) target = $region61
  $region60: #{hier_att_forward.1} parent=0 // pred_region
    _
  $region61: #{hier_att_forward.1} parent=0 // pred_fallthru
    _
  // Predicated region
  $region62: #{hier_att_forward.1} parent=0 // pred_check
    _
  $region63: #{hier_att_forward.1} parent=0 // pred_check_branch
    %54 = sbr.rel (0) target = $region65
  $region64: #{hier_att_forward.1} parent=0 // pred_region
    _
  $region65: #{hier_att_forward.1} parent=0 // pred_fallthru
    _
  // Predicated region
  $region66: #{hier_att_forward.1} parent=0 // pred_check
    _
  $region67: #{hier_att_forward.1} parent=0 // pred_check_branch
    %56 = sbr.rel (0) target = $region69
  $region68: #{hier_att_forward.1} parent=0 // pred_region
    _
  $region69: #{hier_att_forward.1} parent=0 // pred_fallthru
    _
  // Predicated region
  $region70: #{hier_att_forward.1} parent=0 // pred_check
    _
  $region71: #{hier_att_forward.1} parent=0 // pred_check_branch
    %58 = sbr.rel (0) target = $region73
  $region72: #{hier_att_forward.1} parent=0 // pred_region
    _
  $region73: #{hier_att_forward.1} parent=0 // pred_fallthru
    _
  %v59 = vld [vmem:[%s0] sm:$0xff]
  %v60 = vld [vmem:[%s0 + $0x8] sm:$0xff]
  %v61 = vld [vmem:[%s0 + $0x10] sm:$0xff]
  %v62 = vld [vmem:[%s0 + $0x18] sm:$0xff]
  %v63 = vld [vmem:[%s0 + $0x20] sm:$0xff]
  %v64 = vld [vmem:[%s0 + $0x28] sm:$0xff]
  %v65 = vld [vmem:[%s0 + $0x30] sm:$0xff]
  %v66 = vld [vmem:[%s0 + $0x38] sm:$0xff]
  %v67 = vld [vmem:[%s0 + $0x40] sm:$0xff]
  %v68 = vld [vmem:[%s0 + $0x48] sm:$0xff]
  %v69 = vld [vmem:[%s0 + $0x50] sm:$0xff]
  %v70 = vld [vmem:[%s0 + $0x58] sm:$0xff]
  %v71 = vld [vmem:[%s0 + $0x60] sm:$0xff]
  %v72 = vld [vmem:[%s0 + $0x68] sm:$0xff]
  %v73 = vld [vmem:[%s0 + $0x70] sm:$0xff]
  %v74 = vld [vmem:[%s0 + $0x78] sm:$0xff]
  %v75 = vld [vmem:[%s0 + $0x80] sm:$0xff]
  %v76 = vld [vmem:[%s0 + $0x88] sm:$0xff]
  %v77 = vlaneseq
  %v78 = vand.u32 %v77, 127
  %79 = vset.pattern.permute.xlu0 0
  %80 = vperm.xlu0 %79, %v59
  %v81 = vpop.permute.xlu0 %80
  %82 = vset.pattern.permute.xlu0 0
  %83 = vperm.xlu0 %82, %v60
  %v84 = vpop.permute.xlu0 %83
  %85 = vset.pattern.permute.xlu0 0
  %86 = vperm.xlu0 %85, %v61
  %v87 = vpop.permute.xlu0 %86
  %88 = vset.pattern.permute.xlu0 0
  %89 = vperm.xlu0 %88, %v62
  %v90 = vpop.permute.xlu0 %89
  %91 = vset.pattern.permute.xlu0 0
  %92 = vperm.xlu0 %91, %v63
  %v93 = vpop.permute.xlu0 %92
  %94 = vset.pattern.permute.xlu0 0
  %95 = vperm.xlu0 %94, %v64
  %v96 = vpop.permute.xlu0 %95
  %97 = vset.pattern.permute.xlu0 0
  %98 = vperm.xlu0 %97, %v65
  %v99 = vpop.permute.xlu0 %98
  %100 = vset.pattern.permute.xlu0 0
  %101 = vperm.xlu0 %100, %v66
  %v102 = vpop.permute.xlu0 %101
  %103 = vset.pattern.permute.xlu0 0
  %104 = vperm.xlu0 %103, %v67
  %v105 = vpop.permute.xlu0 %104
  %106 = vset.pattern.permute.xlu0 0
  %107 = vperm.xlu0 %106, %v68
  %v108 = vpop.permute.xlu0 %107
  %109 = vset.pattern.permute.xlu0 0
  %110 = vperm.xlu0 %109, %v69
  %v111 = vpop.permute.xlu0 %110
  %112 = vset.pattern.permute.xlu0 0
  %113 = vperm.xlu0 %112, %v70
  %v114 = vpop.permute.xlu0 %113
  %115 = vset.pattern.permute.xlu0 0
  %116 = vperm.xlu0 %115, %v71
  %v117 = vpop.permute.xlu0 %116
  %118 = vset.pattern.permute.xlu0 0
  %119 = vperm.xlu0 %118, %v72
  %v120 = vpop.permute.xlu0 %119
  %121 = vset.pattern.permute.xlu0 0
  %122 = vperm.xlu0 %121, %v73
  %v123 = vpop.permute.xlu0 %122
  %124 = vset.pattern.permute.xlu0 0
  %125 = vperm.xlu0 %124, %v74
  %v126 = vpop.permute.xlu0 %125
  %127 = vset.pattern.permute.xlu0 0
  %128 = vperm.xlu0 %127, %v75
  %v129 = vpop.permute.xlu0 %128
  %130 = vset.pattern.permute.xlu0 0
  %131 = vperm.xlu0 %130, %v76
  %v132 = vpop.permute.xlu0 %131
  %vm133 = vcmp.eq.s32.totalorder %v81, %v78
  %vm134 = vcmp.eq.s32.totalorder %v84, %v78
  %vm135 = vcmp.eq.s32.totalorder %v87, %v78
  %vm136 = vcmp.eq.s32.totalorder %v90, %v78
  %vm137 = vcmp.eq.s32.totalorder %v93, %v78
  %vm138 = vcmp.eq.s32.totalorder %v96, %v78
  %vm139 = vcmp.eq.s32.totalorder %v99, %v78
  %vm140 = vcmp.eq.s32.totalorder %v102, %v78
  %vm141 = vcmp.eq.s32.totalorder %v105, %v78
  %vm142 = vcmp.eq.s32.totalorder %v108, %v78
  %vm143 = vcmp.eq.s32.totalorder %v111, %v78
  %vm144 = vcmp.eq.s32.totalorder %v114, %v78
  %vm145 = vcmp.eq.s32.totalorder %v117, %v78
  %vm146 = vcmp.eq.s32.totalorder %v120, %v78
  %vm147 = vcmp.eq.s32.totalorder %v123, %v78
  %vm148 = vcmp.eq.s32.totalorder %v126, %v78
  %vm149 = vcmp.eq.s32.totalorder %v129, %v78
  %vm150 = vcmp.eq.s32.totalorder %v132, %v78
  %v151 = vsel %vm133, 1.0, 0.0
  %v152 = vsel %vm134, 1.0, 0.0
  %v153 = vsel %vm135, 1.0, 0.0
  %v154 = vsel %vm136, 1.0, 0.0
  %v155 = vsel %vm137, 1.0, 0.0
  %v156 = vsel %vm138, 1.0, 0.0
  %v157 = vsel %vm139, 1.0, 0.0
  %v158 = vsel %vm140, 1.0, 0.0
  %v159 = vsel %vm141, 1.0, 0.0
  %v160 = vsel %vm142, 1.0, 0.0
  %v161 = vsel %vm143, 1.0, 0.0
  %v162 = vsel %vm144, 1.0, 0.0
  %v163 = vsel %vm145, 1.0, 0.0
  %v164 = vsel %vm146, 1.0, 0.0
  %v165 = vsel %vm147, 1.0, 0.0
  %v166 = vsel %vm148, 1.0, 0.0
  %v167 = vsel %vm149, 1.0, 0.0
  %v168 = vsel %vm150, 1.0, 0.0
  %v169 = vld [vmem:[%s1] sm:$0xff]
  %v170 = vld [vmem:[%s1 + $0x8] sm:$0xff]
  %v171 = vld [vmem:[%s1 + $0x10] sm:$0xff]
  %v172 = vld [vmem:[%s1 + $0x18] sm:$0x3f]
  %vm173 = vcmask 244736
  %v175 = vsel %vm173, %v151, 0
  %v178 = vsel %vm173, %v152, 0
  %v181 = vsel %vm173, %v153, 0
  %v184 = vsel %vm173, %v154, 0
  %v187 = vsel %vm173, %v155, 0
  %v190 = vsel %vm173, %v156, 0
  %v193 = vsel %vm173, %v157, 0
  %v196 = vsel %vm173, %v158, 0
  %v199 = vsel %vm173, %v159, 0
  %v202 = vsel %vm173, %v160, 0
  %v205 = vsel %vm173, %v161, 0
  %v208 = vsel %vm173, %v162, 0
  %v211 = vsel %vm173, %v163, 0
  %v214 = vsel %vm173, %v164, 0
  %v217 = vsel %vm173, %v165, 0
  %v220 = vsel %vm173, %v166, 0
  %v223 = vsel %vm173, %v167, 0
  %v226 = vsel %vm173, %v168, 0
  %vm228 = vcmask 1045504
  %v230 = vsel %vm228, %v172, 0
  %232 = vmatprep.subr.mxu0 0.0
  %233 = vmatpush1.msra.mxu0 0.0
  %234 = vmatprep.subr.mxu0 0.0
  %235 = vmatpush1.msra.mxu0 0.0
  %236 = vmatprep.subr.mxu0 0.0
  %237 = vmatpush1.msra.mxu0 0.0
  %238 = vmatprep.subr.mxu0 0.0
  %239 = vmatpush1.msra.mxu0 0.0
  %240 = vmatprep.subr.mxu0 0.0
  %241 = vmatpush1.msra.mxu0 0.0
  %242 = vmatprep.subr.mxu0 0.0
  %243 = vmatpush1.msra.mxu0 0.0
  %244 = vmatprep.subr.mxu0 0.0
  %245 = vmatpush1.msra.mxu0 0.0
  %246 = vmatprep.subr.mxu0 0.0
  %247 = vmatpush1.msra.mxu0 0.0
  %248 = vmatprep.subr.mxu0 0.0
  %249 = vmatpush1.msra.mxu0 0.0
  %250 = vmatprep.subr.mxu0 0.0
  %251 = vmatpush1.msra.mxu0 0.0
  %252 = vmatprep.subr.mxu0 0.0
  %253 = vmatpush1.msra.mxu0 0.0
  %254 = vmatprep.subr.mxu0 0.0
  %255 = vmatpush1.msra.mxu0 0.0
  %256 = vmatprep.subr.mxu0 0.0
  %257 = vmatpush1.msra.mxu0 %v230
  %258 = vmatprep.subr.mxu0 0.0
  %259 = vmatpush1.msra.mxu0 %v171
  %260 = vmatprep.subr.mxu0 0.0
  %261 = vmatpush1.msra.mxu0 %v170
  %262 = vmatprep.subr.mxu0 0.0
  %263 = vmatpush1.msra.mxu0 %v169
  %264 = vmatprep.subr.mxu0 0.0
  %265 = vmatpush2.msra.mxu0 0.0
  %266 = vmatprep.subr.mxu0 0.0
  %267 = vmatpush2.msra.mxu0 0.0
  %268 = vmatprep.subr.mxu0 0.0
  %269 = vmatpush2.msra.mxu0 0.0
  %270 = vmatprep.subr.mxu0 0.0
  %271 = vmatpush2.msra.mxu0 0.0
  %272 = vmatprep.subr.mxu0 0.0
  %273 = vmatpush2.msra.mxu0 0.0
  %274 = vmatprep.subr.mxu0 0.0
  %275 = vmatpush2.msra.mxu0 0.0
  %276 = vmatprep.subr.mxu0 0.0
  %277 = vmatpush2.msra.mxu0 0.0
  %278 = vmatprep.subr.mxu0 0.0
  %279 = vmatpush2.msra.mxu0 0.0
  %280 = vmatprep.subr.mxu0 0.0
  %281 = vmatpush2.msra.mxu0 0.0
  %282 = vmatprep.subr.mxu0 0.0
  %283 = vmatpush2.msra.mxu0 0.0
  %284 = vmatprep.subr.mxu0 0.0
  %285 = vmatpush2.msra.mxu0 0.0
  %286 = vmatprep.subr.mxu0 0.0
  %287 = vmatpush2.msra.mxu0 0.0
  %288 = vmatprep.subr.mxu0 0.0
  %289 = vmatpush2.msra.mxu0 0.0
  %290 = vmatprep.subr.mxu0 0.0
  %291 = vmatpush2.msra.mxu0 0.0
  %292 = vmatprep.subr.mxu0 0.0
  %293 = vmatpush2.msra.mxu0 0.0
  %294 = vmatprep.subr.mxu0 0.0
  %295 = vmatpush2.msra.mxu0 0.0
  %296 = vmatprep.mubr.f32.mxu0 0.0
  %297 = vmatmul.mubr.f32.gmra.mxu0 %v175
  %v298 = vpop.f32.mrf.mxu0
  %v299 = vadd.f32 0.0, %v298
  %v300 = vpop.f32.mrf.mxu0
  %301 = vmatprep.mubr.f32.mxu0 0.0
  %302 = vmatmul.mubr.f32.gmra.mxu0 %v178
  %v303 = vpop.f32.mrf.mxu0
  %v304 = vadd.f32 0.0, %v303
  %v305 = vpop.f32.mrf.mxu0
  %306 = vmatprep.mubr.f32.mxu0 0.0
  %307 = vmatmul.mubr.f32.gmra.mxu0 %v181
  %v308 = vpop.f32.mrf.mxu0
  %v309 = vadd.f32 0.0, %v308
  %v310 = vpop.f32.mrf.mxu0
  %311 = vmatprep.mubr.f32.mxu0 0.0
  %312 = vmatmul.mubr.f32.gmra.mxu0 %v184
  %v313 = vpop.f32.mrf.mxu0
  %v314 = vadd.f32 0.0, %v313
  %v315 = vpop.f32.mrf.mxu0
  %316 = vmatprep.mubr.f32.mxu0 0.0
  %317 = vmatmul.mubr.f32.gmra.mxu0 %v187
  %v318 = vpop.f32.mrf.mxu0
  %v319 = vadd.f32 0.0, %v318
  %v320 = vpop.f32.mrf.mxu0
  %321 = vmatprep.mubr.f32.mxu0 0.0
  %322 = vmatmul.mubr.f32.gmra.mxu0 %v190
  %v323 = vpop.f32.mrf.mxu0
  %v324 = vadd.f32 0.0, %v323
  %v325 = vpop.f32.mrf.mxu0
  %326 = vmatprep.mubr.f32.mxu0 0.0
  %327 = vmatmul.mubr.f32.gmra.mxu0 %v193
  %v328 = vpop.f32.mrf.mxu0
  %v329 = vadd.f32 0.0, %v328
  %v330 = vpop.f32.mrf.mxu0
  %331 = vmatprep.mubr.f32.mxu0 0.0
  %332 = vmatmul.mubr.f32.gmra.mxu0 %v196
  %v333 = vpop.f32.mrf.mxu0
  %v334 = vadd.f32 0.0, %v333
  %v335 = vpop.f32.mrf.mxu0
  %336 = vmatprep.mubr.f32.mxu0 0.0
  %337 = vmatmul.mubr.f32.gmra.mxu0 %v199
  %v338 = vpop.f32.mrf.mxu0
  %v339 = vadd.f32 0.0, %v338
  %v340 = vpop.f32.mrf.mxu0
  %341 = vmatprep.mubr.f32.mxu0 0.0
  %342 = vmatmul.mubr.f32.gmra.mxu0 %v202
  %v343 = vpop.f32.mrf.mxu0
  %v344 = vadd.f32 0.0, %v343
  %v345 = vpop.f32.mrf.mxu0
  %346 = vmatprep.mubr.f32.mxu0 0.0
  %347 = vmatmul.mubr.f32.gmra.mxu0 %v205
  %v348 = vpop.f32.mrf.mxu0
  %v349 = vadd.f32 0.0, %v348
  %v350 = vpop.f32.mrf.mxu0
  %351 = vmatprep.mubr.f32.mxu0 0.0
  %352 = vmatmul.mubr.f32.gmra.mxu0 %v208
  %v353 = vpop.f32.mrf.mxu0
  %v354 = vadd.f32 0.0, %v353
  %v355 = vpop.f32.mrf.mxu0
  %356 = vmatprep.mubr.f32.mxu0 0.0
  %357 = vmatmul.mubr.f32.gmra.mxu0 %v211
  %v358 = vpop.f32.mrf.mxu0
  %v359 = vadd.f32 0.0, %v358
  %v360 = vpop.f32.mrf.mxu0
  %361 = vmatprep.mubr.f32.mxu0 0.0
  %362 = vmatmul.mubr.f32.gmra.mxu0 %v214
  %v363 = vpop.f32.mrf.mxu0
  %v364 = vadd.f32 0.0, %v363
  %v365 = vpop.f32.mrf.mxu0
  %366 = vmatprep.mubr.f32.mxu0 0.0
  %367 = vmatmul.mubr.f32.gmra.mxu0 %v217
  %v368 = vpop.f32.mrf.mxu0
  %v369 = vadd.f32 0.0, %v368
  %v370 = vpop.f32.mrf.mxu0
  %371 = vmatprep.mubr.f32.mxu0 0.0
  %372 = vmatmul.mubr.f32.gmra.mxu0 %v220
  %v373 = vpop.f32.mrf.mxu0
  %v374 = vadd.f32 0.0, %v373
  %v375 = vpop.f32.mrf.mxu0
  %376 = vmatprep.mubr.f32.mxu0 0.0
  %377 = vmatmul.mubr.f32.gmra.mxu0 %v223
  %v378 = vpop.f32.mrf.mxu0
  %v379 = vadd.f32 0.0, %v378
  %v380 = vpop.f32.mrf.mxu0
  %381 = vmatprep.mubr.f32.mxu0 0.0
  %382 = vmatmul.mubr.f32.gmra.mxu0 %v226
  %v383 = vpop.f32.mrf.mxu0
  %v384 = vadd.f32 0.0, %v383
  %v385 = vpop.f32.mrf.mxu0
  %386 = vdwg.mxu0
  %v387 = vld [vmem:[%s2] sm:$0xff]
  %v388 = vld [vmem:[%s2 + $0x8] sm:$0xf]
  %v389 = vld [vmem:[%s4] sm:$0x1]
  %v391 = vlaneseq
  %v392 = vshrl.u32 %v391, 7
  %v393 = vsub.s32 0, %v392
  %v394 = vrot.slane %v389, %v393
  %vm396 = vcmask 97280
  %v398 = vsel %vm396, %v299, 0
  %v401 = vsel %vm396, %v304, 0
  %v404 = vsel %vm396, %v309, 0
  %v407 = vsel %vm396, %v314, 0
  %v410 = vsel %vm396, %v319, 0
  %v413 = vsel %vm396, %v324, 0
  %v416 = vsel %vm396, %v329, 0
  %v419 = vsel %vm396, %v334, 0
  %v422 = vsel %vm396, %v339, 0
  %v425 = vsel %vm396, %v344, 0
  %v428 = vsel %vm396, %v349, 0
  %v431 = vsel %vm396, %v354, 0
  %v434 = vsel %vm396, %v359, 0
  %v437 = vsel %vm396, %v364, 0
  %v440 = vsel %vm396, %v369, 0
  %v443 = vsel %vm396, %v374, 0
  %v446 = vsel %vm396, %v379, 0
  %v449 = vsel %vm396, %v384, 0
  %vm451 = vcmask 1043456
  %v453 = vsel %vm451, %v388, 0
  %455 = vmatprep.subr.mxu0 0.0
  %456 = vmatpush1.msra.mxu0 0.0
  %457 = vmatprep.subr.mxu0 0.0
  %458 = vmatpush1.msra.mxu0 0.0
  %459 = vmatprep.subr.mxu0 0.0
  %460 = vmatpush1.msra.mxu0 0.0
  %461 = vmatprep.subr.mxu0 0.0
  %462 = vmatpush1.msra.mxu0 0.0
  %463 = vmatprep.subr.mxu0 0.0
  %464 = vmatpush1.msra.mxu0 0.0
  %465 = vmatprep.subr.mxu0 0.0
  %466 = vmatpush1.msra.mxu0 0.0
  %467 = vmatprep.subr.mxu0 0.0
  %468 = vmatpush1.msra.mxu0 0.0
  %469 = vmatprep.subr.mxu0 0.0
  %470 = vmatpush1.msra.mxu0 0.0
  %471 = vmatprep.subr.mxu0 0.0
  %472 = vmatpush1.msra.mxu0 0.0
  %473 = vmatprep.subr.mxu0 0.0
  %474 = vmatpush1.msra.mxu0 0.0
  %475 = vmatprep.subr.mxu0 0.0
  %476 = vmatpush1.msra.mxu0 0.0
  %477 = vmatprep.subr.mxu0 0.0
  %478 = vmatpush1.msra.mxu0 0.0
  %479 = vmatprep.subr.mxu0 0.0
  %480 = vmatpush1.msra.mxu0 0.0
  %481 = vmatprep.subr.mxu0 0.0
  %482 = vmatpush1.msra.mxu0 0.0
  %483 = vmatprep.subr.mxu0 0.0
  %484 = vmatpush1.msra.mxu0 %v453
  %485 = vmatprep.subr.mxu0 0.0
  %486 = vmatpush1.msra.mxu0 %v387
  %487 = vmatprep.subr.mxu0 0.0
  %488 = vmatpush2.msra.mxu0 0.0
  %489 = vmatprep.subr.mxu0 0.0
  %490 = vmatpush2.msra.mxu0 0.0
  %491 = vmatprep.subr.mxu0 0.0
  %492 = vmatpush2.msra.mxu0 0.0
  %493 = vmatprep.subr.mxu0 0.0
  %494 = vmatpush2.msra.mxu0 0.0
  %495 = vmatprep.subr.mxu0 0.0
  %496 = vmatpush2.msra.mxu0 0.0
  %497 = vmatprep.subr.mxu0 0.0
  %498 = vmatpush2.msra.mxu0 0.0
  %499 = vmatprep.subr.mxu0 0.0
  %500 = vmatpush2.msra.mxu0 0.0
  %501 = vmatprep.subr.mxu0 0.0
  %502 = vmatpush2.msra.mxu0 0.0
  %503 = vmatprep.subr.mxu0 0.0
  %504 = vmatpush2.msra.mxu0 0.0
  %505 = vmatprep.subr.mxu0 0.0
  %506 = vmatpush2.msra.mxu0 0.0
  %507 = vmatprep.subr.mxu0 0.0
  %508 = vmatpush2.msra.mxu0 0.0
  %509 = vmatprep.subr.mxu0 0.0
  %510 = vmatpush2.msra.mxu0 0.0
  %511 = vmatprep.subr.mxu0 0.0
  %512 = vmatpush2.msra.mxu0 0.0
  %513 = vmatprep.subr.mxu0 0.0
  %514 = vmatpush2.msra.mxu0 0.0
  %515 = vmatprep.subr.mxu0 0.0
  %516 = vmatpush2.msra.mxu0 0.0
  %517 = vmatprep.subr.mxu0 0.0
  %518 = vmatpush2.msra.mxu0 0.0
  %519 = vmatprep.mubr.f32.mxu0 0.0
  %520 = vmatmul.mubr.f32.gmra.mxu0 %v398
  %v521 = vpop.f32.mrf.mxu0
  %v522 = vadd.f32 %v394, %v521
  %v523 = vpop.f32.mrf.mxu0
  %524 = vmatprep.mubr.f32.mxu0 0.0
  %525 = vmatmul.mubr.f32.gmra.mxu0 %v401
  %v526 = vpop.f32.mrf.mxu0
  %v527 = vadd.f32 %v394, %v526
  %v528 = vpop.f32.mrf.mxu0
  %529 = vmatprep.mubr.f32.mxu0 0.0
  %530 = vmatmul.mubr.f32.gmra.mxu0 %v404
  %v531 = vpop.f32.mrf.mxu0
  %v532 = vadd.f32 %v394, %v531
  %v533 = vpop.f32.mrf.mxu0
  %534 = vmatprep.mubr.f32.mxu0 0.0
  %535 = vmatmul.mubr.f32.gmra.mxu0 %v407
  %v536 = vpop.f32.mrf.mxu0
  %v537 = vadd.f32 %v394, %v536
  %v538 = vpop.f32.mrf.mxu0
  %539 = vmatprep.mubr.f32.mxu0 0.0
  %540 = vmatmul.mubr.f32.gmra.mxu0 %v410
  %v541 = vpop.f32.mrf.mxu0
  %v542 = vadd.f32 %v394, %v541
  %v543 = vpop.f32.mrf.mxu0
  %544 = vmatprep.mubr.f32.mxu0 0.0
  %545 = vmatmul.mubr.f32.gmra.mxu0 %v413
  %v546 = vpop.f32.mrf.mxu0
  %v547 = vadd.f32 %v394, %v546
  %v548 = vpop.f32.mrf.mxu0
  %549 = vmatprep.mubr.f32.mxu0 0.0
  %550 = vmatmul.mubr.f32.gmra.mxu0 %v416
  %v551 = vpop.f32.mrf.mxu0
  %v552 = vadd.f32 %v394, %v551
  %v553 = vpop.f32.mrf.mxu0
  %554 = vmatprep.mubr.f32.mxu0 0.0
  %555 = vmatmul.mubr.f32.gmra.mxu0 %v419
  %v556 = vpop.f32.mrf.mxu0
  %v557 = vadd.f32 %v394, %v556
  %v558 = vpop.f32.mrf.mxu0
  %559 = vmatprep.mubr.f32.mxu0 0.0
  %560 = vmatmul.mubr.f32.gmra.mxu0 %v422
  %v561 = vpop.f32.mrf.mxu0
  %v562 = vadd.f32 %v394, %v561
  %v563 = vpop.f32.mrf.mxu0
  %564 = vmatprep.mubr.f32.mxu0 0.0
  %565 = vmatmul.mubr.f32.gmra.mxu0 %v425
  %v566 = vpop.f32.mrf.mxu0
  %v567 = vadd.f32 %v394, %v566
  %v568 = vpop.f32.mrf.mxu0
  %569 = vmatprep.mubr.f32.mxu0 0.0
  %570 = vmatmul.mubr.f32.gmra.mxu0 %v428
  %v571 = vpop.f32.mrf.mxu0
  %v572 = vadd.f32 %v394, %v571
  %v573 = vpop.f32.mrf.mxu0
  %574 = vmatprep.mubr.f32.mxu0 0.0
  %575 = vmatmul.mubr.f32.gmra.mxu0 %v431
  %v576 = vpop.f32.mrf.mxu0
  %v577 = vadd.f32 %v394, %v576
  %v578 = vpop.f32.mrf.mxu0
  %579 = vmatprep.mubr.f32.mxu0 0.0
  %580 = vmatmul.mubr.f32.gmra.mxu0 %v434
  %v581 = vpop.f32.mrf.mxu0
  %v582 = vadd.f32 %v394, %v581
  %v583 = vpop.f32.mrf.mxu0
  %584 = vmatprep.mubr.f32.mxu0 0.0
  %585 = vmatmul.mubr.f32.gmra.mxu0 %v437
  %v586 = vpop.f32.mrf.mxu0
  %v587 = vadd.f32 %v394, %v586
  %v588 = vpop.f32.mrf.mxu0
  %589 = vmatprep.mubr.f32.mxu0 0.0
  %590 = vmatmul.mubr.f32.gmra.mxu0 %v440
  %v591 = vpop.f32.mrf.mxu0
  %v592 = vadd.f32 %v394, %v591
  %v593 = vpop.f32.mrf.mxu0
  %594 = vmatprep.mubr.f32.mxu0 0.0
  %595 = vmatmul.mubr.f32.gmra.mxu0 %v443
  %v596 = vpop.f32.mrf.mxu0
  %v597 = vadd.f32 %v394, %v596
  %v598 = vpop.f32.mrf.mxu0
  %599 = vmatprep.mubr.f32.mxu0 0.0
  %600 = vmatmul.mubr.f32.gmra.mxu0 %v446
  %v601 = vpop.f32.mrf.mxu0
  %v602 = vadd.f32 %v394, %v601
  %v603 = vpop.f32.mrf.mxu0
  %604 = vmatprep.mubr.f32.mxu0 0.0
  %605 = vmatmul.mubr.f32.gmra.mxu0 %v449
  %v606 = vpop.f32.mrf.mxu0
  %v607 = vadd.f32 %v394, %v606
  %v608 = vpop.f32.mrf.mxu0
  %609 = vdwg.mxu0
  %v610 = vld [vmem:[%s3] sm:$0xff]
  %s611 = scalar_lea.vmem %s3, 8
  %v612 = vld [vmem:[%s611] sm:$0xff]
  %v613 = vld [vmem:[%s5] sm:$0x1]
  %s614 = scalar_lea.vmem %s5, 1
  %v615 = vld [vmem:[%s614] sm:$0x1]
  %v617 = vlaneseq
  %v618 = vshrl.u32 %v617, 7
  %v619 = vsub.s32 0, %v618
  %v620 = vrot.slane %v613, %v619
  %vm622 = vcmask 64512
  %v624 = vsel %vm622, 0.0, 0
  %626 = vmatprep.subr.mxu0 0.0
  %627 = vmatpush1.msra.mxu0 0.0
  %628 = vmatprep.subr.mxu0 0.0
  %629 = vmatpush1.msra.mxu0 0.0
  %630 = vmatprep.subr.mxu0 0.0
  %631 = vmatpush1.msra.mxu0 0.0
  %632 = vmatprep.subr.mxu0 0.0
  %633 = vmatpush1.msra.mxu0 0.0
  %634 = vmatprep.subr.mxu0 0.0
  %635 = vmatpush1.msra.mxu0 0.0
  %636 = vmatprep.subr.mxu0 0.0
  %637 = vmatpush1.msra.mxu0 0.0
  %638 = vmatprep.subr.mxu0 0.0
  %639 = vmatpush1.msra.mxu0 0.0
  %640 = vmatprep.subr.mxu0 0.0
  %641 = vmatpush1.msra.mxu0 0.0
  %642 = vmatprep.subr.mxu0 0.0
  %643 = vmatpush1.msra.mxu0 0.0
  %644 = vmatprep.subr.mxu0 0.0
  %645 = vmatpush1.msra.mxu0 0.0
  %646 = vmatprep.subr.mxu0 0.0
  %647 = vmatpush1.msra.mxu0 0.0
  %648 = vmatprep.subr.mxu0 0.0
  %649 = vmatpush1.msra.mxu0 0.0
  %650 = vmatprep.subr.mxu0 0.0
  %651 = vmatpush1.msra.mxu0 0.0
  %652 = vmatprep.subr.mxu0 0.0
  %653 = vmatpush1.msra.mxu0 0.0
  %654 = vmatprep.subr.mxu0 0.0
  %655 = vmatpush1.msra.mxu0 0.0
  %656 = vmatprep.subr.mxu0 0.0
  %657 = vmatpush1.msra.mxu0 %v610
  %658 = vmatprep.subr.mxu0 0.0
  %659 = vmatpush2.msra.mxu0 0.0
  %660 = vmatprep.subr.mxu0 0.0
  %661 = vmatpush2.msra.mxu0 0.0
  %662 = vmatprep.subr.mxu0 0.0
  %663 = vmatpush2.msra.mxu0 0.0
  %664 = vmatprep.subr.mxu0 0.0
  %665 = vmatpush2.msra.mxu0 0.0
  %666 = vmatprep.subr.mxu0 0.0
  %667 = vmatpush2.msra.mxu0 0.0
  %668 = vmatprep.subr.mxu0 0.0
  %669 = vmatpush2.msra.mxu0 0.0
  %670 = vmatprep.subr.mxu0 0.0
  %671 = vmatpush2.msra.mxu0 0.0
  %672 = vmatprep.subr.mxu0 0.0
  %673 = vmatpush2.msra.mxu0 0.0
  %674 = vmatprep.subr.mxu0 0.0
  %675 = vmatpush2.msra.mxu0 0.0
  %676 = vmatprep.subr.mxu0 0.0
  %677 = vmatpush2.msra.mxu0 0.0
  %678 = vmatprep.subr.mxu0 0.0
  %679 = vmatpush2.msra.mxu0 0.0
  %680 = vmatprep.subr.mxu0 0.0
  %681 = vmatpush2.msra.mxu0 0.0
  %682 = vmatprep.subr.mxu0 0.0
  %683 = vmatpush2.msra.mxu0 0.0
  %684 = vmatprep.subr.mxu0 0.0
  %685 = vmatpush2.msra.mxu0 0.0
  %686 = vmatprep.subr.mxu0 0.0
  %687 = vmatpush2.msra.mxu0 0.0
  %688 = vmatprep.subr.mxu0 0.0
  %689 = vmatpush2.msra.mxu0 0.0
  %690 = vmatprep.mubr.f32.mxu0 0.0
  %691 = vmatmul.mubr.f32.gmra.mxu0 %v624
  %v692 = vpop.f32.mrf.mxu0
  %v693 = vadd.f32 %v620, %v692
  %v694 = vpop.f32.mrf.mxu0
  %695 = vdwg.mxu0
  %v696 = vadd.f32 %v522, %v693
  %v697 = vxor.u32 %v696, 2147483648
  %v698 = vmul.f32 %v697, 1.442695
  %v699 = vpow.pop %v698
  %v700 = vadd.f32 %v699, 1.0
  %v701 = vrcp.pop %v700
  %v702 = vmul.f32 1.0, %v701
  %704 = vrot.lane.b32.xlu0 %v693, 112
  %v705 = vpop.permute.xlu0 %704
  %v707 = vmul.f32 %v702, %v705
  %709 = vrot.lane.b32.xlu0 %v707, 16
  %v710 = vpop.permute.xlu0 %709
  %v712 = vadd.f32 %v522, %v710
  %v713 = vtanh.pop %v712
  %v714 = vsub.f32 1.0, %v702
  %716 = vrot.lane.b32.xlu0 %v713, 120
  %v717 = vpop.permute.xlu0 %716
  %v719 = vmul.f32 %v714, %v717
  %v720 = vmul.f32 %v702, 0.0
  %v721 = vadd.f32 %v719, %v720
  %723 = vrot.lane.b32.xlu0 %v721, 120
  %v724 = vpop.permute.xlu0 %723
  %726 = vst.msk [vmem:[#allocation2] sm:$0xff] %vm622, %v724
  %v727 = vsel %vm622, %v724, 0
  %729 = vmatprep.subr.mxu0 0.0
  %730 = vmatpush1.msra.mxu0 0.0
  %731 = vmatprep.subr.mxu0 0.0
  %732 = vmatpush1.msra.mxu0 0.0
  %733 = vmatprep.subr.mxu0 0.0
  %734 = vmatpush1.msra.mxu0 0.0
  %735 = vmatprep.subr.mxu0 0.0
  %736 = vmatpush1.msra.mxu0 0.0
  %737 = vmatprep.subr.mxu0 0.0
  %738 = vmatpush1.msra.mxu0 0.0
  %739 = vmatprep.subr.mxu0 0.0
  %740 = vmatpush1.msra.mxu0 0.0
  %741 = vmatprep.subr.mxu0 0.0
  %742 = vmatpush1.msra.mxu0 0.0
  %743 = vmatprep.subr.mxu0 0.0
  %744 = vmatpush1.msra.mxu0 0.0
  %745 = vmatprep.subr.mxu0 0.0
  %746 = vmatpush1.msra.mxu0 0.0
  %747 = vmatprep.subr.mxu0 0.0
  %748 = vmatpush1.msra.mxu0 0.0
  %749 = vmatprep.subr.mxu0 0.0
  %750 = vmatpush1.msra.mxu0 0.0
  %751 = vmatprep.subr.mxu0 0.0
  %752 = vmatpush1.msra.mxu0 0.0
  %753 = vmatprep.subr.mxu0 0.0
  %754 = vmatpush1.msra.mxu0 0.0
  %755 = vmatprep.subr.mxu0 0.0
  %756 = vmatpush1.msra.mxu0 0.0
  %757 = vmatprep.subr.mxu0 0.0
  %758 = vmatpush1.msra.mxu0 0.0
  %759 = vmatprep.subr.mxu0 0.0
  %760 = vmatpush1.msra.mxu0 %v610
  %761 = vmatprep.subr.mxu0 0.0
  %762 = vmatpush2.msra.mxu0 0.0
  %763 = vmatprep.subr.mxu0 0.0
  %764 = vmatpush2.msra.mxu0 0.0
  %765 = vmatprep.subr.mxu0 0.0
  %766 = vmatpush2.msra.mxu0 0.0
  %767 = vmatprep.subr.mxu0 0.0
  %768 = vmatpush2.msra.mxu0 0.0
  %769 = vmatprep.subr.mxu0 0.0
  %770 = vmatpush2.msra.mxu0 0.0
  %771 = vmatprep.subr.mxu0 0.0
  %772 = vmatpush2.msra.mxu0 0.0
  %773 = vmatprep.subr.mxu0 0.0
  %774 = vmatpush2.msra.mxu0 0.0
  %775 = vmatprep.subr.mxu0 0.0
  %776 = vmatpush2.msra.mxu0 0.0
  %777 = vmatprep.subr.mxu0 0.0
  %778 = vmatpush2.msra.mxu0 0.0
  %779 = vmatprep.subr.mxu0 0.0
  %780 = vmatpush2.msra.mxu0 0.0
  %781 = vmatprep.subr.mxu0 0.0
  %782 = vmatpush2.msra.mxu0 0.0
  %783 = vmatprep.subr.mxu0 0.0
  %784 = vmatpush2.msra.mxu0 0.0
  %785 = vmatprep.subr.mxu0 0.0
  %786 = vmatpush2.msra.mxu0 0.0
  %787 = vmatprep.subr.mxu0 0.0
  %788 = vmatpush2.msra.mxu0 0.0
  %789 = vmatprep.subr.mxu0 0.0
  %790 = vmatpush2.msra.mxu0 0.0
  %791 = vmatprep.subr.mxu0 0.0
  %792 = vmatpush2.msra.mxu0 0.0
  %793 = vmatprep.mubr.f32.mxu0 0.0
  %794 = vmatmul.mubr.f32.gmra.mxu0 %v727
  %v795 = vpop.f32.mrf.mxu0
  %v796 = vadd.f32 %v620, %v795
  %v797 = vpop.f32.mrf.mxu0
  %798 = vdwg.mxu0
  %v799 = vadd.f32 %v527, %v796
  %v800 = vxor.u32 %v799, 2147483648
  %v801 = vmul.f32 %v800, 1.442695
  %v802 = vpow.pop %v801
  %v803 = vadd.f32 %v802, 1.0
  %v804 = vrcp.pop %v803
  %v805 = vmul.f32 1.0, %v804
  %807 = vrot.lane.b32.xlu0 %v796, 112
  %v808 = vpop.permute.xlu0 %807
  %v810 = vmul.f32 %v805, %v808
  %812 = vrot.lane.b32.xlu0 %v810, 16
  %v813 = vpop.permute.xlu0 %812
  %v815 = vadd.f32 %v527, %v813
  %v816 = vtanh.pop %v815
  %v817 = vsub.f32 1.0, %v805
  %819 = vrot.lane.b32.xlu0 %v816, 120
  %v820 = vpop.permute.xlu0 %819
  %v822 = vmul.f32 %v817, %v820
  %v823 = vmul.f32 %v805, %v721
  %v824 = vadd.f32 %v822, %v823
  %826 = vrot.lane.b32.xlu0 %v824, 120
  %v827 = vpop.permute.xlu0 %826
  %829 = vst.msk [vmem:[#allocation2 + $0x8] sm:$0xff] %vm622, %v827
  %v830 = vsel %vm622, %v827, 0
  %832 = vmatprep.subr.mxu0 0.0
  %833 = vmatpush1.msra.mxu0 0.0
  %834 = vmatprep.subr.mxu0 0.0
  %835 = vmatpush1.msra.mxu0 0.0
  %836 = vmatprep.subr.mxu0 0.0
  %837 = vmatpush1.msra.mxu0 0.0
  %838 = vmatprep.subr.mxu0 0.0
  %839 = vmatpush1.msra.mxu0 0.0
  %840 = vmatprep.subr.mxu0 0.0
  %841 = vmatpush1.msra.mxu0 0.0
  %842 = vmatprep.subr.mxu0 0.0
  %843 = vmatpush1.msra.mxu0 0.0
  %844 = vmatprep.subr.mxu0 0.0
  %845 = vmatpush1.msra.mxu0 0.0
  %846 = vmatprep.subr.mxu0 0.0
  %847 = vmatpush1.msra.mxu0 0.0
  %848 = vmatprep.subr.mxu0 0.0
  %849 = vmatpush1.msra.mxu0 0.0
  %850 = vmatprep.subr.mxu0 0.0
  %851 = vmatpush1.msra.mxu0 0.0
  %852 = vmatprep.subr.mxu0 0.0
  %853 = vmatpush1.msra.mxu0 0.0
  %854 = vmatprep.subr.mxu0 0.0
  %855 = vmatpush1.msra.mxu0 0.0
  %856 = vmatprep.subr.mxu0 0.0
  %857 = vmatpush1.msra.mxu0 0.0
  %858 = vmatprep.subr.mxu0 0.0
  %859 = vmatpush1.msra.mxu0 0.0
  %860 = vmatprep.subr.mxu0 0.0
  %861 = vmatpush1.msra.mxu0 0.0
  %862 = vmatprep.subr.mxu0 0.0
  %863 = vmatpush1.msra.mxu0 %v610
  %864 = vmatprep.subr.mxu0 0.0
  %865 = vmatpush2.msra.mxu0 0.0
  %866 = vmatprep.subr.mxu0 0.0
  %867 = vmatpush2.msra.mxu0 0.0
  %868 = vmatprep.subr.mxu0 0.0
  %869 = vmatpush2.msra.mxu0 0.0
  %870 = vmatprep.subr.mxu0 0.0
  %871 = vmatpush2.msra.mxu0 0.0
  %872 = vmatprep.subr.mxu0 0.0
  %873 = vmatpush2.msra.mxu0 0.0
  %874 = vmatprep.subr.mxu0 0.0
  %875 = vmatpush2.msra.mxu0 0.0
  %876 = vmatprep.subr.mxu0 0.0
  %877 = vmatpush2.msra.mxu0 0.0
  %878 = vmatprep.subr.mxu0 0.0
  %879 = vmatpush2.msra.mxu0 0.0
  %880 = vmatprep.subr.mxu0 0.0
  %881 = vmatpush2.msra.mxu0 0.0
  %882 = vmatprep.subr.mxu0 0.0
  %883 = vmatpush2.msra.mxu0 0.0
  %884 = vmatprep.subr.mxu0 0.0
  %885 = vmatpush2.msra.mxu0 0.0
  %886 = vmatprep.subr.mxu0 0.0
  %887 = vmatpush2.msra.mxu0 0.0
  %888 = vmatprep.subr.mxu0 0.0
  %889 = vmatpush2.msra.mxu0 0.0
  %890 = vmatprep.subr.mxu0 0.0
  %891 = vmatpush2.msra.mxu0 0.0
  %892 = vmatprep.subr.mxu0 0.0
  %893 = vmatpush2.msra.mxu0 0.0
  %894 = vmatprep.subr.mxu0 0.0
  %895 = vmatpush2.msra.mxu0 0.0
  %896 = vmatprep.mubr.f32.mxu0 0.0
  %897 = vmatmul.mubr.f32.gmra.mxu0 %v830
  %v898 = vpop.f32.mrf.mxu0
  %v899 = vadd.f32 %v620, %v898
  %v900 = vpop.f32.mrf.mxu0
  %901 = vdwg.mxu0
  %v902 = vadd.f32 %v532, %v899
  %v903 = vxor.u32 %v902, 2147483648
  %v904 = vmul.f32 %v903, 1.442695
  %v905 = vpow.pop %v904
  %v906 = vadd.f32 %v905, 1.0
  %v907 = vrcp.pop %v906
  %v908 = vmul.f32 1.0, %v907
  %910 = vrot.lane.b32.xlu0 %v899, 112
  %v911 = vpop.permute.xlu0 %910
  %v913 = vmul.f32 %v908, %v911
  %915 = vrot.lane.b32.xlu0 %v913, 16
  %v916 = vpop.permute.xlu0 %915
  %v918 = vadd.f32 %v532, %v916
  %v919 = vtanh.pop %v918
  %v920 = vsub.f32 1.0, %v908
  %922 = vrot.lane.b32.xlu0 %v919, 120
  %v923 = vpop.permute.xlu0 %922
  %v925 = vmul.f32 %v920, %v923
  %v926 = vmul.f32 %v908, %v824
  %v927 = vadd.f32 %v925, %v926
  %929 = vrot.lane.b32.xlu0 %v927, 120
  %v930 = vpop.permute.xlu0 %929
  %932 = vst.msk [vmem:[#allocation2 + $0x10] sm:$0xff] %vm622, %v930
  %v933 = vsel %vm622, %v930, 0
  %935 = vmatprep.subr.mxu0 0.0
  %936 = vmatpush1.msra.mxu0 0.0
  %937 = vmatprep.subr.mxu0 0.0
  %938 = vmatpush1.msra.mxu0 0.0
  %939 = vmatprep.subr.mxu0 0.0
  %940 = vmatpush1.msra.mxu0 0.0
  %941 = vmatprep.subr.mxu0 0.0
  %942 = vmatpush1.msra.mxu0 0.0
  %943 = vmatprep.subr.mxu0 0.0
  %944 = vmatpush1.msra.mxu0 0.0
  %945 = vmatprep.subr.mxu0 0.0
  %946 = vmatpush1.msra.mxu0 0.0
  %947 = vmatprep.subr.mxu0 0.0
  %948 = vmatpush1.msra.mxu0 0.0
  %949 = vmatprep.subr.mxu0 0.0
  %950 = vmatpush1.msra.mxu0 0.0
  %951 = vmatprep.subr.mxu0 0.0
  %952 = vmatpush1.msra.mxu0 0.0
  %953 = vmatprep.subr.mxu0 0.0
  %954 = vmatpush1.msra.mxu0 0.0
  %955 = vmatprep.subr.mxu0 0.0
  %956 = vmatpush1.msra.mxu0 0.0
  %957 = vmatprep.subr.mxu0 0.0
  %958 = vmatpush1.msra.mxu0 0.0
  %959 = vmatprep.subr.mxu0 0.0
  %960 = vmatpush1.msra.mxu0 0.0
  %961 = vmatprep.subr.mxu0 0.0
  %962 = vmatpush1.msra.mxu0 0.0
  %963 = vmatprep.subr.mxu0 0.0
  %964 = vmatpush1.msra.mxu0 0.0
  %965 = vmatprep.subr.mxu0 0.0
  %966 = vmatpush1.msra.mxu0 %v610
  %967 = vmatprep.subr.mxu0 0.0
  %968 = vmatpush2.msra.mxu0 0.0
  %969 = vmatprep.subr.mxu0 0.0
  %970 = vmatpush2.msra.mxu0 0.0
  %971 = vmatprep.subr.mxu0 0.0
  %972 = vmatpush2.msra.mxu0 0.0
  %973 = vmatprep.subr.mxu0 0.0
  %974 = vmatpush2.msra.mxu0 0.0
  %975 = vmatprep.subr.mxu0 0.0
  %976 = vmatpush2.msra.mxu0 0.0
  %977 = vmatprep.subr.mxu0 0.0
  %978 = vmatpush2.msra.mxu0 0.0
  %979 = vmatprep.subr.mxu0 0.0
  %980 = vmatpush2.msra.mxu0 0.0
  %981 = vmatprep.subr.mxu0 0.0
  %982 = vmatpush2.msra.mxu0 0.0
  %983 = vmatprep.subr.mxu0 0.0
  %984 = vmatpush2.msra.mxu0 0.0
  %985 = vmatprep.subr.mxu0 0.0
  %986 = vmatpush2.msra.mxu0 0.0
  %987 = vmatprep.subr.mxu0 0.0
  %988 = vmatpush2.msra.mxu0 0.0
  %989 = vmatprep.subr.mxu0 0.0
  %990 = vmatpush2.msra.mxu0 0.0
  %991 = vmatprep.subr.mxu0 0.0
  %992 = vmatpush2.msra.mxu0 0.0
  %993 = vmatprep.subr.mxu0 0.0
  %994 = vmatpush2.msra.mxu0 0.0
  %995 = vmatprep.subr.mxu0 0.0
  %996 = vmatpush2.msra.mxu0 0.0
  %997 = vmatprep.subr.mxu0 0.0
  %998 = vmatpush2.msra.mxu0 0.0
  %999 = vmatprep.mubr.f32.mxu0 0.0
  %1000 = vmatmul.mubr.f32.gmra.mxu0 %v933
  %v1001 = vpop.f32.mrf.mxu0
  %v1002 = vadd.f32 %v620, %v1001
  %v1003 = vpop.f32.mrf.mxu0
  %1004 = vdwg.mxu0
  %v1005 = vadd.f32 %v537, %v1002
  %v1006 = vxor.u32 %v1005, 2147483648
  %v1007 = vmul.f32 %v1006, 1.442695
  %v1008 = vpow.pop %v1007
  %v1009 = vadd.f32 %v1008, 1.0
  %v1010 = vrcp.pop %v1009
  %v1011 = vmul.f32 1.0, %v1010
  %1013 = vrot.lane.b32.xlu0 %v1002, 112
  %v1014 = vpop.permute.xlu0 %1013
  %v1016 = vmul.f32 %v1011, %v1014
  %1018 = vrot.lane.b32.xlu0 %v1016, 16
  %v1019 = vpop.permute.xlu0 %1018
  %v1021 = vadd.f32 %v537, %v1019
  %v1022 = vtanh.pop %v1021
  %v1023 = vsub.f32 1.0, %v1011
  %1025 = vrot.lane.b32.xlu0 %v1022, 120
  %v1026 = vpop.permute.xlu0 %1025
  %v1028 = vmul.f32 %v1023, %v1026
  %v1029 = vmul.f32 %v1011, %v927
  %v1030 = vadd.f32 %v1028, %v1029
  %1032 = vrot.lane.b32.xlu0 %v1030, 120
  %v1033 = vpop.permute.xlu0 %1032
  %1035 = vst.msk [vmem:[#allocation2 + $0x18] sm:$0xff] %vm622, %v1033
  %v1036 = vsel %vm622, %v1033, 0
  %1038 = vmatprep.subr.mxu0 0.0
  %1039 = vmatpush1.msra.mxu0 0.0
  %1040 = vmatprep.subr.mxu0 0.0
  %1041 = vmatpush1.msra.mxu0 0.0
  %1042 = vmatprep.subr.mxu0 0.0
  %1043 = vmatpush1.msra.mxu0 0.0
  %1044 = vmatprep.subr.mxu0 0.0
  %1045 = vmatpush1.msra.mxu0 0.0
  %1046 = vmatprep.subr.mxu0 0.0
  %1047 = vmatpush1.msra.mxu0 0.0
  %1048 = vmatprep.subr.mxu0 0.0
  %1049 = vmatpush1.msra.mxu0 0.0
  %1050 = vmatprep.subr.mxu0 0.0
  %1051 = vmatpush1.msra.mxu0 0.0
  %1052 = vmatprep.subr.mxu0 0.0
  %1053 = vmatpush1.msra.mxu0 0.0
  %1054 = vmatprep.subr.mxu0 0.0
  %1055 = vmatpush1.msra.mxu0 0.0
  %1056 = vmatprep.subr.mxu0 0.0
  %1057 = vmatpush1.msra.mxu0 0.0
  %1058 = vmatprep.subr.mxu0 0.0
  %1059 = vmatpush1.msra.mxu0 0.0
  %1060 = vmatprep.subr.mxu0 0.0
  %1061 = vmatpush1.msra.mxu0 0.0
  %1062 = vmatprep.subr.mxu0 0.0
  %1063 = vmatpush1.msra.mxu0 0.0
  %1064 = vmatprep.subr.mxu0 0.0
  %1065 = vmatpush1.msra.mxu0 0.0
  %1066 = vmatprep.subr.mxu0 0.0
  %1067 = vmatpush1.msra.mxu0 0.0
  %1068 = vmatprep.subr.mxu0 0.0
  %1069 = vmatpush1.msra.mxu0 %v610
  %1070 = vmatprep.subr.mxu0 0.0
  %1071 = vmatpush2.msra.mxu0 0.0
  %1072 = vmatprep.subr.mxu0 0.0
  %1073 = vmatpush2.msra.mxu0 0.0
  %1074 = vmatprep.subr.mxu0 0.0
  %1075 = vmatpush2.msra.mxu0 0.0
  %1076 = vmatprep.subr.mxu0 0.0
  %1077 = vmatpush2.msra.mxu0 0.0
  %1078 = vmatprep.subr.mxu0 0.0
  %1079 = vmatpush2.msra.mxu0 0.0
  %1080 = vmatprep.subr.mxu0 0.0
  %1081 = vmatpush2.msra.mxu0 0.0
  %1082 = vmatprep.subr.mxu0 0.0
  %1083 = vmatpush2.msra.mxu0 0.0
  %1084 = vmatprep.subr.mxu0 0.0
  %1085 = vmatpush2.msra.mxu0 0.0
  %1086 = vmatprep.subr.mxu0 0.0
  %1087 = vmatpush2.msra.mxu0 0.0
  %1088 = vmatprep.subr.mxu0 0.0
  %1089 = vmatpush2.msra.mxu0 0.0
  %1090 = vmatprep.subr.mxu0 0.0
  %1091 = vmatpush2.msra.mxu0 0.0
  %1092 = vmatprep.subr.mxu0 0.0
  %1093 = vmatpush2.msra.mxu0 0.0
  %1094 = vmatprep.subr.mxu0 0.0
  %1095 = vmatpush2.msra.mxu0 0.0
  %1096 = vmatprep.subr.mxu0 0.0
  %1097 = vmatpush2.msra.mxu0 0.0
  %1098 = vmatprep.subr.mxu0 0.0
  %1099 = vmatpush2.msra.mxu0 0.0
  %1100 = vmatprep.subr.mxu0 0.0
  %1101 = vmatpush2.msra.mxu0 0.0
  %1102 = vmatprep.mubr.f32.mxu0 0.0
  %1103 = vmatmul.mubr.f32.gmra.mxu0 %v1036
  %v1104 = vpop.f32.mrf.mxu0
  %v1105 = vadd.f32 %v620, %v1104
  %v1106 = vpop.f32.mrf.mxu0
  %1107 = vdwg.mxu0
  %v1108 = vadd.f32 %v542, %v1105
  %v1109 = vxor.u32 %v1108, 2147483648
  %v1110 = vmul.f32 %v1109, 1.442695
  %v1111 = vpow.pop %v1110
  %v1112 = vadd.f32 %v1111, 1.0
  %v1113 = vrcp.pop %v1112
  %v1114 = vmul.f32 1.0, %v1113
  %1116 = vrot.lane.b32.xlu0 %v1105, 112
  %v1117 = vpop.permute.xlu0 %1116
  %v1119 = vmul.f32 %v1114, %v1117
  %1121 = vrot.lane.b32.xlu0 %v1119, 16
  %v1122 = vpop.permute.xlu0 %1121
  %v1124 = vadd.f32 %v542, %v1122
  %v1125 = vtanh.pop %v1124
  %v1126 = vsub.f32 1.0, %v1114
  %1128 = vrot.lane.b32.xlu0 %v1125, 120
  %v1129 = vpop.permute.xlu0 %1128
  %v1131 = vmul.f32 %v1126, %v1129
  %v1132 = vmul.f32 %v1114, %v1030
  %v1133 = vadd.f32 %v1131, %v1132
  %1135 = vrot.lane.b32.xlu0 %v1133, 120
  %v1136 = vpop.permute.xlu0 %1135
  %1138 = vst.msk [vmem:[#allocation2 + $0x20] sm:$0xff] %vm622, %v1136
  %v1139 = vsel %vm622, %v1136, 0
  %1141 = vmatprep.subr.mxu0 0.0
  %1142 = vmatpush1.msra.mxu0 0.0
  %1143 = vmatprep.subr.mxu0 0.0
  %1144 = vmatpush1.msra.mxu0 0.0
  %1145 = vmatprep.subr.mxu0 0.0
  %1146 = vmatpush1.msra.mxu0 0.0
  %1147 = vmatprep.subr.mxu0 0.0
  %1148 = vmatpush1.msra.mxu0 0.0
  %1149 = vmatprep.subr.mxu0 0.0
  %1150 = vmatpush1.msra.mxu0 0.0
  %1151 = vmatprep.subr.mxu0 0.0
  %1152 = vmatpush1.msra.mxu0 0.0
  %1153 = vmatprep.subr.mxu0 0.0
  %1154 = vmatpush1.msra.mxu0 0.0
  %1155 = vmatprep.subr.mxu0 0.0
  %1156 = vmatpush1.msra.mxu0 0.0
  %1157 = vmatprep.subr.mxu0 0.0
  %1158 = vmatpush1.msra.mxu0 0.0
  %1159 = vmatprep.subr.mxu0 0.0
  %1160 = vmatpush1.msra.mxu0 0.0
  %1161 = vmatprep.subr.mxu0 0.0
  %1162 = vmatpush1.msra.mxu0 0.0
  %1163 = vmatprep.subr.mxu0 0.0
  %1164 = vmatpush1.msra.mxu0 0.0
  %1165 = vmatprep.subr.mxu0 0.0
  %1166 = vmatpush1.msra.mxu0 0.0
  %1167 = vmatprep.subr.mxu0 0.0
  %1168 = vmatpush1.msra.mxu0 0.0
  %1169 = vmatprep.subr.mxu0 0.0
  %1170 = vmatpush1.msra.mxu0 0.0
  %1171 = vmatprep.subr.mxu0 0.0
  %1172 = vmatpush1.msra.mxu0 %v610
  %1173 = vmatprep.subr.mxu0 0.0
  %1174 = vmatpush2.msra.mxu0 0.0
  %1175 = vmatprep.subr.mxu0 0.0
  %1176 = vmatpush2.msra.mxu0 0.0
  %1177 = vmatprep.subr.mxu0 0.0
  %1178 = vmatpush2.msra.mxu0 0.0
  %1179 = vmatprep.subr.mxu0 0.0
  %1180 = vmatpush2.msra.mxu0 0.0
  %1181 = vmatprep.subr.mxu0 0.0
  %1182 = vmatpush2.msra.mxu0 0.0
  %1183 = vmatprep.subr.mxu0 0.0
  %1184 = vmatpush2.msra.mxu0 0.0
  %1185 = vmatprep.subr.mxu0 0.0
  %1186 = vmatpush2.msra.mxu0 0.0
  %1187 = vmatprep.subr.mxu0 0.0
  %1188 = vmatpush2.msra.mxu0 0.0
  %1189 = vmatprep.subr.mxu0 0.0
  %1190 = vmatpush2.msra.mxu0 0.0
  %1191 = vmatprep.subr.mxu0 0.0
  %1192 = vmatpush2.msra.mxu0 0.0
  %1193 = vmatprep.subr.mxu0 0.0
  %1194 = vmatpush2.msra.mxu0 0.0
  %1195 = vmatprep.subr.mxu0 0.0
  %1196 = vmatpush2.msra.mxu0 0.0
  %1197 = vmatprep.subr.mxu0 0.0
  %1198 = vmatpush2.msra.mxu0 0.0
  %1199 = vmatprep.subr.mxu0 0.0
  %1200 = vmatpush2.msra.mxu0 0.0
  %1201 = vmatprep.subr.mxu0 0.0
  %1202 = vmatpush2.msra.mxu0 0.0
  %1203 = vmatprep.subr.mxu0 0.0
  %1204 = vmatpush2.msra.mxu0 0.0
  %1205 = vmatprep.mubr.f32.mxu0 0.0
  %1206 = vmatmul.mubr.f32.gmra.mxu0 %v1139
  %v1207 = vpop.f32.mrf.mxu0
  %v1208 = vadd.f32 %v620, %v1207
  %v1209 = vpop.f32.mrf.mxu0
  %1210 = vdwg.mxu0
  %v1211 = vadd.f32 %v547, %v1208
  %v1212 = vxor.u32 %v1211, 2147483648
  %v1213 = vmul.f32 %v1212, 1.442695
  %v1214 = vpow.pop %v1213
  %v1215 = vadd.f32 %v1214, 1.0
  %v1216 = vrcp.pop %v1215
  %v1217 = vmul.f32 1.0, %v1216
  %1219 = vrot.lane.b32.xlu0 %v1208, 112
  %v1220 = vpop.permute.xlu0 %1219
  %v1222 = vmul.f32 %v1217, %v1220
  %1224 = vrot.lane.b32.xlu0 %v1222, 16
  %v1225 = vpop.permute.xlu0 %1224
  %v1227 = vadd.f32 %v547, %v1225
  %v1228 = vtanh.pop %v1227
  %v1229 = vsub.f32 1.0, %v1217
  %1231 = vrot.lane.b32.xlu0 %v1228, 120
  %v1232 = vpop.permute.xlu0 %1231
  %v1234 = vmul.f32 %v1229, %v1232
  %v1235 = vmul.f32 %v1217, %v1133
  %v1236 = vadd.f32 %v1234, %v1235
  %1238 = vrot.lane.b32.xlu0 %v1236, 120
  %v1239 = vpop.permute.xlu0 %1238
  %1241 = vst.msk [vmem:[#allocation2 + $0x28] sm:$0xff] %vm622, %v1239
  %v1243 = vlaneseq
  %v1244 = vshrl.u32 %v1243, 7
  %v1245 = vsub.s32 0, %v1244
  %v1246 = vrot.slane %v615, %v1245
  %1248 = vmatprep.subr.mxu0 0.0
  %1249 = vmatpush1.msra.mxu0 0.0
  %1250 = vmatprep.subr.mxu0 0.0
  %1251 = vmatpush1.msra.mxu0 0.0
  %1252 = vmatprep.subr.mxu0 0.0
  %1253 = vmatpush1.msra.mxu0 0.0
  %1254 = vmatprep.subr.mxu0 0.0
  %1255 = vmatpush1.msra.mxu0 0.0
  %1256 = vmatprep.subr.mxu0 0.0
  %1257 = vmatpush1.msra.mxu0 0.0
  %1258 = vmatprep.subr.mxu0 0.0
  %1259 = vmatpush1.msra.mxu0 0.0
  %1260 = vmatprep.subr.mxu0 0.0
  %1261 = vmatpush1.msra.mxu0 0.0
  %1262 = vmatprep.subr.mxu0 0.0
  %1263 = vmatpush1.msra.mxu0 0.0
  %1264 = vmatprep.subr.mxu0 0.0
  %1265 = vmatpush1.msra.mxu0 0.0
  %1266 = vmatprep.subr.mxu0 0.0
  %1267 = vmatpush1.msra.mxu0 0.0
  %1268 = vmatprep.subr.mxu0 0.0
  %1269 = vmatpush1.msra.mxu0 0.0
  %1270 = vmatprep.subr.mxu0 0.0
  %1271 = vmatpush1.msra.mxu0 0.0
  %1272 = vmatprep.subr.mxu0 0.0
  %1273 = vmatpush1.msra.mxu0 0.0
  %1274 = vmatprep.subr.mxu0 0.0
  %1275 = vmatpush1.msra.mxu0 0.0
  %1276 = vmatprep.subr.mxu0 0.0
  %1277 = vmatpush1.msra.mxu0 0.0
  %1278 = vmatprep.subr.mxu0 0.0
  %1279 = vmatpush1.msra.mxu0 %v612
  %1280 = vmatprep.subr.mxu0 0.0
  %1281 = vmatpush2.msra.mxu0 0.0
  %1282 = vmatprep.subr.mxu0 0.0
  %1283 = vmatpush2.msra.mxu0 0.0
  %1284 = vmatprep.subr.mxu0 0.0
  %1285 = vmatpush2.msra.mxu0 0.0
  %1286 = vmatprep.subr.mxu0 0.0
  %1287 = vmatpush2.msra.mxu0 0.0
  %1288 = vmatprep.subr.mxu0 0.0
  %1289 = vmatpush2.msra.mxu0 0.0
  %1290 = vmatprep.subr.mxu0 0.0
  %1291 = vmatpush2.msra.mxu0 0.0
  %1292 = vmatprep.subr.mxu0 0.0
  %1293 = vmatpush2.msra.mxu0 0.0
  %1294 = vmatprep.subr.mxu0 0.0
  %1295 = vmatpush2.msra.mxu0 0.0
  %1296 = vmatprep.subr.mxu0 0.0
  %1297 = vmatpush2.msra.mxu0 0.0
  %1298 = vmatprep.subr.mxu0 0.0
  %1299 = vmatpush2.msra.mxu0 0.0
  %1300 = vmatprep.subr.mxu0 0.0
  %1301 = vmatpush2.msra.mxu0 0.0
  %1302 = vmatprep.subr.mxu0 0.0
  %1303 = vmatpush2.msra.mxu0 0.0
  %1304 = vmatprep.subr.mxu0 0.0
  %1305 = vmatpush2.msra.mxu0 0.0
  %1306 = vmatprep.subr.mxu0 0.0
  %1307 = vmatpush2.msra.mxu0 0.0
  %1308 = vmatprep.subr.mxu0 0.0
  %1309 = vmatpush2.msra.mxu0 0.0
  %1310 = vmatprep.subr.mxu0 0.0
  %1311 = vmatpush2.msra.mxu0 0.0
  %1312 = vmatprep.mubr.f32.mxu0 0.0
  %1313 = vmatmul.mubr.f32.gmra.mxu0 %v624
  %v1314 = vpop.f32.mrf.mxu0
  %v1315 = vadd.f32 %v1246, %v1314
  %v1316 = vpop.f32.mrf.mxu0
  %1317 = vdwg.mxu0
  %1319 = vrot.lane.b32.xlu0 %v1315, 24
  %v1320 = vpop.permute.xlu0 %1319
  %v1322 = vadd.f32 %v547, %v1320
  %v1323 = vxor.u32 %v1322, 2147483648
  %v1324 = vmul.f32 %v1323, 1.442695
  %v1325 = vpow.pop %v1324
  %v1326 = vadd.f32 %v1325, 1.0
  %v1327 = vrcp.pop %v1326
  %v1328 = vmul.f32 1.0, %v1327
  %1329 = vrot.lane.b32.xlu0 %v1315, 8
  %v1330 = vpop.permute.xlu0 %1329
  %v1332 = vmul.f32 %v1328, %v1330
  %1334 = vrot.lane.b32.xlu0 %v1332, 16
  %v1335 = vpop.permute.xlu0 %1334
  %v1337 = vadd.f32 %v547, %v1335
  %v1338 = vtanh.pop %v1337
  %v1339 = vsub.f32 1.0, %v1328
  %1341 = vrot.lane.b32.xlu0 %v1338, 120
  %v1342 = vpop.permute.xlu0 %1341
  %v1344 = vmul.f32 %v1339, %v1342
  %v1345 = vmul.f32 %v1328, 0.0
  %v1346 = vadd.f32 %v1344, %v1345
  %1348 = vrot.lane.b32.xlu0 %v1346, 104
  %v1349 = vpop.permute.xlu0 %1348
  %vm1351 = vcmask 130112
  %1352 = vst.msk [vmem:[#allocation2 + $0x28] sm:$0xff] %vm1351, %v1349
  %1353 = vrot.lane.b32.xlu0 %v1346, 96
  %v1354 = vpop.permute.xlu0 %1353
  %v1355 = vsel %vm622, %v1354, 0
  %1357 = vmatprep.subr.mxu0 0.0
  %1358 = vmatpush1.msra.mxu0 0.0
  %1359 = vmatprep.subr.mxu0 0.0
  %1360 = vmatpush1.msra.mxu0 0.0
  %1361 = vmatprep.subr.mxu0 0.0
  %1362 = vmatpush1.msra.mxu0 0.0
  %1363 = vmatprep.subr.mxu0 0.0
  %1364 = vmatpush1.msra.mxu0 0.0
  %1365 = vmatprep.subr.mxu0 0.0
  %1366 = vmatpush1.msra.mxu0 0.0
  %1367 = vmatprep.subr.mxu0 0.0
  %1368 = vmatpush1.msra.mxu0 0.0
  %1369 = vmatprep.subr.mxu0 0.0
  %1370 = vmatpush1.msra.mxu0 0.0
  %1371 = vmatprep.subr.mxu0 0.0
  %1372 = vmatpush1.msra.mxu0 0.0
  %1373 = vmatprep.subr.mxu0 0.0
  %1374 = vmatpush1.msra.mxu0 0.0
  %1375 = vmatprep.subr.mxu0 0.0
  %1376 = vmatpush1.msra.mxu0 0.0
  %1377 = vmatprep.subr.mxu0 0.0
  %1378 = vmatpush1.msra.mxu0 0.0
  %1379 = vmatprep.subr.mxu0 0.0
  %1380 = vmatpush1.msra.mxu0 0.0
  %1381 = vmatprep.subr.mxu0 0.0
  %1382 = vmatpush1.msra.mxu0 0.0
  %1383 = vmatprep.subr.mxu0 0.0
  %1384 = vmatpush1.msra.mxu0 0.0
  %1385 = vmatprep.subr.mxu0 0.0
  %1386 = vmatpush1.msra.mxu0 0.0
  %1387 = vmatprep.subr.mxu0 0.0
  %1388 = vmatpush1.msra.mxu0 %v612
  %1389 = vmatprep.subr.mxu0 0.0
  %1390 = vmatpush2.msra.mxu0 0.0
  %1391 = vmatprep.subr.mxu0 0.0
  %1392 = vmatpush2.msra.mxu0 0.0
  %1393 = vmatprep.subr.mxu0 0.0
  %1394 = vmatpush2.msra.mxu0 0.0
  %1395 = vmatprep.subr.mxu0 0.0
  %1396 = vmatpush2.msra.mxu0 0.0
  %1397 = vmatprep.subr.mxu0 0.0
  %1398 = vmatpush2.msra.mxu0 0.0
  %1399 = vmatprep.subr.mxu0 0.0
  %1400 = vmatpush2.msra.mxu0 0.0
  %1401 = vmatprep.subr.mxu0 0.0
  %1402 = vmatpush2.msra.mxu0 0.0
  %1403 = vmatprep.subr.mxu0 0.0
  %1404 = vmatpush2.msra.mxu0 0.0
  %1405 = vmatprep.subr.mxu0 0.0
  %1406 = vmatpush2.msra.mxu0 0.0
  %1407 = vmatprep.subr.mxu0 0.0
  %1408 = vmatpush2.msra.mxu0 0.0
  %1409 = vmatprep.subr.mxu0 0.0
  %1410 = vmatpush2.msra.mxu0 0.0
  %1411 = vmatprep.subr.mxu0 0.0
  %1412 = vmatpush2.msra.mxu0 0.0
  %1413 = vmatprep.subr.mxu0 0.0
  %1414 = vmatpush2.msra.mxu0 0.0
  %1415 = vmatprep.subr.mxu0 0.0
  %1416 = vmatpush2.msra.mxu0 0.0
  %1417 = vmatprep.subr.mxu0 0.0
  %1418 = vmatpush2.msra.mxu0 0.0
  %1419 = vmatprep.subr.mxu0 0.0
  %1420 = vmatpush2.msra.mxu0 0.0
  %1421 = vmatprep.mubr.f32.mxu0 0.0
  %1422 = vmatmul.mubr.f32.gmra.mxu0 %v1355
  %v1423 = vpop.f32.mrf.mxu0
  %v1424 = vadd.f32 %v1246, %v1423
  %v1425 = vpop.f32.mrf.mxu0
  %1426 = vdwg.mxu0
  %1428 = vrot.lane.b32.xlu0 %v1424, 24
  %v1429 = vpop.permute.xlu0 %1428
  %v1431 = vadd.f32 %v542, %v1429
  %v1432 = vxor.u32 %v1431, 2147483648
  %v1433 = vmul.f32 %v1432, 1.442695
  %v1434 = vpow.pop %v1433
  %v1435 = vadd.f32 %v1434, 1.0
  %v1436 = vrcp.pop %v1435
  %v1437 = vmul.f32 1.0, %v1436
  %1438 = vrot.lane.b32.xlu0 %v1424, 8
  %v1439 = vpop.permute.xlu0 %1438
  %v1441 = vmul.f32 %v1437, %v1439
  %1443 = vrot.lane.b32.xlu0 %v1441, 16
  %v1444 = vpop.permute.xlu0 %1443
  %v1446 = vadd.f32 %v542, %v1444
  %v1447 = vtanh.pop %v1446
  %v1448 = vsub.f32 1.0, %v1437
  %1450 = vrot.lane.b32.xlu0 %v1447, 120
  %v1451 = vpop.permute.xlu0 %1450
  %v1453 = vmul.f32 %v1448, %v1451
  %v1454 = vmul.f32 %v1437, %v1346
  %v1455 = vadd.f32 %v1453, %v1454
  %1457 = vrot.lane.b32.xlu0 %v1455, 104
  %v1458 = vpop.permute.xlu0 %1457
  %1460 = vst.msk [vmem:[#allocation2 + $0x20] sm:$0xff] %vm1351, %v1458
  %1461 = vrot.lane.b32.xlu0 %v1455, 96
  %v1462 = vpop.permute.xlu0 %1461
  %v1463 = vsel %vm622, %v1462, 0
  %1465 = vmatprep.subr.mxu0 0.0
  %1466 = vmatpush1.msra.mxu0 0.0
  %1467 = vmatprep.subr.mxu0 0.0
  %1468 = vmatpush1.msra.mxu0 0.0
  %1469 = vmatprep.subr.mxu0 0.0
  %1470 = vmatpush1.msra.mxu0 0.0
  %1471 = vmatprep.subr.mxu0 0.0
  %1472 = vmatpush1.msra.mxu0 0.0
  %1473 = vmatprep.subr.mxu0 0.0
  %1474 = vmatpush1.msra.mxu0 0.0
  %1475 = vmatprep.subr.mxu0 0.0
  %1476 = vmatpush1.msra.mxu0 0.0
  %1477 = vmatprep.subr.mxu0 0.0
  %1478 = vmatpush1.msra.mxu0 0.0
  %1479 = vmatprep.subr.mxu0 0.0
  %1480 = vmatpush1.msra.mxu0 0.0
  %1481 = vmatprep.subr.mxu0 0.0
  %1482 = vmatpush1.msra.mxu0 0.0
  %1483 = vmatprep.subr.mxu0 0.0
  %1484 = vmatpush1.msra.mxu0 0.0
  %1485 = vmatprep.subr.mxu0 0.0
  %1486 = vmatpush1.msra.mxu0 0.0
  %1487 = vmatprep.subr.mxu0 0.0
  %1488 = vmatpush1.msra.mxu0 0.0
  %1489 = vmatprep.subr.mxu0 0.0
  %1490 = vmatpush1.msra.mxu0 0.0
  %1491 = vmatprep.subr.mxu0 0.0
  %1492 = vmatpush1.msra.mxu0 0.0
  %1493 = vmatprep.subr.mxu0 0.0
  %1494 = vmatpush1.msra.mxu0 0.0
  %1495 = vmatprep.subr.mxu0 0.0
  %1496 = vmatpush1.msra.mxu0 %v612
  %1497 = vmatprep.subr.mxu0 0.0
  %1498 = vmatpush2.msra.mxu0 0.0
  %1499 = vmatprep.subr.mxu0 0.0
  %1500 = vmatpush2.msra.mxu0 0.0
  %1501 = vmatprep.subr.mxu0 0.0
  %1502 = vmatpush2.msra.mxu0 0.0
  %1503 = vmatprep.subr.mxu0 0.0
  %1504 = vmatpush2.msra.mxu0 0.0
  %1505 = vmatprep.subr.mxu0 0.0
  %1506 = vmatpush2.msra.mxu0 0.0
  %1507 = vmatprep.subr.mxu0 0.0
  %1508 = vmatpush2.msra.mxu0 0.0
  %1509 = vmatprep.subr.mxu0 0.0
  %1510 = vmatpush2.msra.mxu0 0.0
  %1511 = vmatprep.subr.mxu0 0.0
  %1512 = vmatpush2.msra.mxu0 0.0
  %1513 = vmatprep.subr.mxu0 0.0
  %1514 = vmatpush2.msra.mxu0 0.0
  %1515 = vmatprep.subr.mxu0 0.0
  %1516 = vmatpush2.msra.mxu0 0.0
  %1517 = vmatprep.subr.mxu0 0.0
  %1518 = vmatpush2.msra.mxu0 0.0
  %1519 = vmatprep.subr.mxu0 0.0
  %1520 = vmatpush2.msra.mxu0 0.0
  %1521 = vmatprep.subr.mxu0 0.0
  %1522 = vmatpush2.msra.mxu0 0.0
  %1523 = vmatprep.subr.mxu0 0.0
  %1524 = vmatpush2.msra.mxu0 0.0
  %1525 = vmatprep.subr.mxu0 0.0
  %1526 = vmatpush2.msra.mxu0 0.0
  %1527 = vmatprep.subr.mxu0 0.0
  %1528 = vmatpush2.msra.mxu0 0.0
  %1529 = vmatprep.mubr.f32.mxu0 0.0
  %1530 = vmatmul.mubr.f32.gmra.mxu0 %v1463
  %v1531 = vpop.f32.mrf.mxu0
  %v1532 = vadd.f32 %v1246, %v1531
  %v1533 = vpop.f32.mrf.mxu0
  %1534 = vdwg.mxu0
  %1536 = vrot.lane.b32.xlu0 %v1532, 24
  %v1537 = vpop.permute.xlu0 %1536
  %v1539 = vadd.f32 %v537, %v1537
  %v1540 = vxor.u32 %v1539, 2147483648
  %v1541 = vmul.f32 %v1540, 1.442695
  %v1542 = vpow.pop %v1541
  %v1543 = vadd.f32 %v1542, 1.0
  %v1544 = vrcp.pop %v1543
  %v1545 = vmul.f32 1.0, %v1544
  %1546 = vrot.lane.b32.xlu0 %v1532, 8
  %v1547 = vpop.permute.xlu0 %1546
  %v1549 = vmul.f32 %v1545, %v1547
  %1551 = vrot.lane.b32.xlu0 %v1549, 16
  %v1552 = vpop.permute.xlu0 %1551
  %v1554 = vadd.f32 %v537, %v1552
  %v1555 = vtanh.pop %v1554
  %v1556 = vsub.f32 1.0, %v1545
  %1558 = vrot.lane.b32.xlu0 %v1555, 120
  %v1559 = vpop.permute.xlu0 %1558
  %v1561 = vmul.f32 %v1556, %v1559
  %v1562 = vmul.f32 %v1545, %v1455
  %v1563 = vadd.f32 %v1561, %v1562
  %1565 = vrot.lane.b32.xlu0 %v1563, 104
  %v1566 = vpop.permute.xlu0 %1565
  %1568 = vst.msk [vmem:[#allocation2 + $0x18] sm:$0xff] %vm1351, %v1566
  %1569 = vrot.lane.b32.xlu0 %v1563, 96
  %v1570 = vpop.permute.xlu0 %1569
  %v1571 = vsel %vm622, %v1570, 0
  %1573 = vmatprep.subr.mxu0 0.0
  %1574 = vmatpush1.msra.mxu0 0.0
  %1575 = vmatprep.subr.mxu0 0.0
  %1576 = vmatpush1.msra.mxu0 0.0
  %1577 = vmatprep.subr.mxu0 0.0
  %1578 = vmatpush1.msra.mxu0 0.0
  %1579 = vmatprep.subr.mxu0 0.0
  %1580 = vmatpush1.msra.mxu0 0.0
  %1581 = vmatprep.subr.mxu0 0.0
  %1582 = vmatpush1.msra.mxu0 0.0
  %1583 = vmatprep.subr.mxu0 0.0
  %1584 = vmatpush1.msra.mxu0 0.0
  %1585 = vmatprep.subr.mxu0 0.0
  %1586 = vmatpush1.msra.mxu0 0.0
  %1587 = vmatprep.subr.mxu0 0.0
  %1588 = vmatpush1.msra.mxu0 0.0
  %1589 = vmatprep.subr.mxu0 0.0
  %1590 = vmatpush1.msra.mxu0 0.0
  %1591 = vmatprep.subr.mxu0 0.0
  %1592 = vmatpush1.msra.mxu0 0.0
  %1593 = vmatprep.subr.mxu0 0.0
  %1594 = vmatpush1.msra.mxu0 0.0
  %1595 = vmatprep.subr.mxu0 0.0
  %1596 = vmatpush1.msra.mxu0 0.0
  %1597 = vmatprep.subr.mxu0 0.0
  %1598 = vmatpush1.msra.mxu0 0.0
  %1599 = vmatprep.subr.mxu0 0.0
  %1600 = vmatpush1.msra.mxu0 0.0
  %1601 = vmatprep.subr.mxu0 0.0
  %1602 = vmatpush1.msra.mxu0 0.0
  %1603 = vmatprep.subr.mxu0 0.0
  %1604 = vmatpush1.msra.mxu0 %v612
  %1605 = vmatprep.subr.mxu0 0.0
  %1606 = vmatpush2.msra.mxu0 0.0
  %1607 = vmatprep.subr.mxu0 0.0
  %1608 = vmatpush2.msra.mxu0 0.0
  %1609 = vmatprep.subr.mxu0 0.0
  %1610 = vmatpush2.msra.mxu0 0.0
  %1611 = vmatprep.subr.mxu0 0.0
  %1612 = vmatpush2.msra.mxu0 0.0
  %1613 = vmatprep.subr.mxu0 0.0
  %1614 = vmatpush2.msra.mxu0 0.0
  %1615 = vmatprep.subr.mxu0 0.0
  %1616 = vmatpush2.msra.mxu0 0.0
  %1617 = vmatprep.subr.mxu0 0.0
  %1618 = vmatpush2.msra.mxu0 0.0
  %1619 = vmatprep.subr.mxu0 0.0
  %1620 = vmatpush2.msra.mxu0 0.0
  %1621 = vmatprep.subr.mxu0 0.0
  %1622 = vmatpush2.msra.mxu0 0.0
  %1623 = vmatprep.subr.mxu0 0.0
  %1624 = vmatpush2.msra.mxu0 0.0
  %1625 = vmatprep.subr.mxu0 0.0
  %1626 = vmatpush2.msra.mxu0 0.0
  %1627 = vmatprep.subr.mxu0 0.0
  %1628 = vmatpush2.msra.mxu0 0.0
  %1629 = vmatprep.subr.mxu0 0.0
  %1630 = vmatpush2.msra.mxu0 0.0
  %1631 = vmatprep.subr.mxu0 0.0
  %1632 = vmatpush2.msra.mxu0 0.0
  %1633 = vmatprep.subr.mxu0 0.0
  %1634 = vmatpush2.msra.mxu0 0.0
  %1635 = vmatprep.subr.mxu0 0.0
  %1636 = vmatpush2.msra.mxu0 0.0
  %1637 = vmatprep.mubr.f32.mxu0 0.0
  %1638 = vmatmul.mubr.f32.gmra.mxu0 %v1571
  %v1639 = vpop.f32.mrf.mxu0
  %v1640 = vadd.f32 %v1246, %v1639
  %v1641 = vpop.f32.mrf.mxu0
  %1642 = vdwg.mxu0
  %1644 = vrot.lane.b32.xlu0 %v1640, 24
  %v1645 = vpop.permute.xlu0 %1644
  %v1647 = vadd.f32 %v532, %v1645
  %v1648 = vxor.u32 %v1647, 2147483648
  %v1649 = vmul.f32 %v1648, 1.442695
  %v1650 = vpow.pop %v1649
  %v1651 = vadd.f32 %v1650, 1.0
  %v1652 = vrcp.pop %v1651
  %v1653 = vmul.f32 1.0, %v1652
  %1654 = vrot.lane.b32.xlu0 %v1640, 8
  %v1655 = vpop.permute.xlu0 %1654
  %v1657 = vmul.f32 %v1653, %v1655
  %1659 = vrot.lane.b32.xlu0 %v1657, 16
  %v1660 = vpop.permute.xlu0 %1659
  %v1662 = vadd.f32 %v532, %v1660
  %v1663 = vtanh.pop %v1662
  %v1664 = vsub.f32 1.0, %v1653
  %1666 = vrot.lane.b32.xlu0 %v1663, 120
  %v1667 = vpop.permute.xlu0 %1666
  %v1669 = vmul.f32 %v1664, %v1667
  %v1670 = vmul.f32 %v1653, %v1563
  %v1671 = vadd.f32 %v1669, %v1670
  %1673 = vrot.lane.b32.xlu0 %v1671, 104
  %v1674 = vpop.permute.xlu0 %1673
  %1676 = vst.msk [vmem:[#allocation2 + $0x10] sm:$0xff] %vm1351, %v1674
  %1677 = vrot.lane.b32.xlu0 %v1671, 96
  %v1678 = vpop.permute.xlu0 %1677
  %v1679 = vsel %vm622, %v1678, 0
  %1681 = vmatprep.subr.mxu0 0.0
  %1682 = vmatpush1.msra.mxu0 0.0
  %1683 = vmatprep.subr.mxu0 0.0
  %1684 = vmatpush1.msra.mxu0 0.0
  %1685 = vmatprep.subr.mxu0 0.0
  %1686 = vmatpush1.msra.mxu0 0.0
  %1687 = vmatprep.subr.mxu0 0.0
  %1688 = vmatpush1.msra.mxu0 0.0
  %1689 = vmatprep.subr.mxu0 0.0
  %1690 = vmatpush1.msra.mxu0 0.0
  %1691 = vmatprep.subr.mxu0 0.0
  %1692 = vmatpush1.msra.mxu0 0.0
  %1693 = vmatprep.subr.mxu0 0.0
  %1694 = vmatpush1.msra.mxu0 0.0
  %1695 = vmatprep.subr.mxu0 0.0
  %1696 = vmatpush1.msra.mxu0 0.0
  %1697 = vmatprep.subr.mxu0 0.0
  %1698 = vmatpush1.msra.mxu0 0.0
  %1699 = vmatprep.subr.mxu0 0.0
  %1700 = vmatpush1.msra.mxu0 0.0
  %1701 = vmatprep.subr.mxu0 0.0
  %1702 = vmatpush1.msra.mxu0 0.0
  %1703 = vmatprep.subr.mxu0 0.0
  %1704 = vmatpush1.msra.mxu0 0.0
  %1705 = vmatprep.subr.mxu0 0.0
  %1706 = vmatpush1.msra.mxu0 0.0
  %1707 = vmatprep.subr.mxu0 0.0
  %1708 = vmatpush1.msra.mxu0 0.0
  %1709 = vmatprep.subr.mxu0 0.0
  %1710 = vmatpush1.msra.mxu0 0.0
  %1711 = vmatprep.subr.mxu0 0.0
  %1712 = vmatpush1.msra.mxu0 %v612
  %1713 = vmatprep.subr.mxu0 0.0
  %1714 = vmatpush2.msra.mxu0 0.0
  %1715 = vmatprep.subr.mxu0 0.0
  %1716 = vmatpush2.msra.mxu0 0.0
  %1717 = vmatprep.subr.mxu0 0.0
  %1718 = vmatpush2.msra.mxu0 0.0
  %1719 = vmatprep.subr.mxu0 0.0
  %1720 = vmatpush2.msra.mxu0 0.0
  %1721 = vmatprep.subr.mxu0 0.0
  %1722 = vmatpush2.msra.mxu0 0.0
  %1723 = vmatprep.subr.mxu0 0.0
  %1724 = vmatpush2.msra.mxu0 0.0
  %1725 = vmatprep.subr.mxu0 0.0
  %1726 = vmatpush2.msra.mxu0 0.0
  %1727 = vmatprep.subr.mxu0 0.0
  %1728 = vmatpush2.msra.mxu0 0.0
  %1729 = vmatprep.subr.mxu0 0.0
  %1730 = vmatpush2.msra.mxu0 0.0
  %1731 = vmatprep.subr.mxu0 0.0
  %1732 = vmatpush2.msra.mxu0 0.0
  %1733 = vmatprep.subr.mxu0 0.0
  %1734 = vmatpush2.msra.mxu0 0.0
  %1735 = vmatprep.subr.mxu0 0.0
  %1736 = vmatpush2.msra.mxu0 0.0
  %1737 = vmatprep.subr.mxu0 0.0
  %1738 = vmatpush2.msra.mxu0 0.0
  %1739 = vmatprep.subr.mxu0 0.0
  %1740 = vmatpush2.msra.mxu0 0.0
  %1741 = vmatprep.subr.mxu0 0.0
  %1742 = vmatpush2.msra.mxu0 0.0
  %1743 = vmatprep.subr.mxu0 0.0
  %1744 = vmatpush2.msra.mxu0 0.0
  %1745 = vmatprep.mubr.f32.mxu0 0.0
  %1746 = vmatmul.mubr.f32.gmra.mxu0 %v1679
  %v1747 = vpop.f32.mrf.mxu0
  %v1748 = vadd.f32 %v1246, %v1747
  %v1749 = vpop.f32.mrf.mxu0
  %1750 = vdwg.mxu0
  %1752 = vrot.lane.b32.xlu0 %v1748, 24
  %v1753 = vpop.permute.xlu0 %1752
  %v1755 = vadd.f32 %v527, %v1753
  %v1756 = vxor.u32 %v1755, 2147483648
  %v1757 = vmul.f32 %v1756, 1.442695
  %v1758 = vpow.pop %v1757
  %v1759 = vadd.f32 %v1758, 1.0
  %v1760 = vrcp.pop %v1759
  %v1761 = vmul.f32 1.0, %v1760
  %1762 = vrot.lane.b32.xlu0 %v1748, 8
  %v1763 = vpop.permute.xlu0 %1762
  %v1765 = vmul.f32 %v1761, %v1763
  %1767 = vrot.lane.b32.xlu0 %v1765, 16
  %v1768 = vpop.permute.xlu0 %1767
  %v1770 = vadd.f32 %v527, %v1768
  %v1771 = vtanh.pop %v1770
  %v1772 = vsub.f32 1.0, %v1761
  %1774 = vrot.lane.b32.xlu0 %v1771, 120
  %v1775 = vpop.permute.xlu0 %1774
  %v1777 = vmul.f32 %v1772, %v1775
  %v1778 = vmul.f32 %v1761, %v1671
  %v1779 = vadd.f32 %v1777, %v1778
  %1781 = vrot.lane.b32.xlu0 %v1779, 104
  %v1782 = vpop.permute.xlu0 %1781
  %1784 = vst.msk [vmem:[#allocation2 + $0x8] sm:$0xff] %vm1351, %v1782
  %1785 = vrot.lane.b32.xlu0 %v1779, 96
  %v1786 = vpop.permute.xlu0 %1785
  %v1787 = vsel %vm622, %v1786, 0
  %1789 = vmatprep.subr.mxu0 0.0
  %1790 = vmatpush1.msra.mxu0 0.0
  %1791 = vmatprep.subr.mxu0 0.0
  %1792 = vmatpush1.msra.mxu0 0.0
  %1793 = vmatprep.subr.mxu0 0.0
  %1794 = vmatpush1.msra.mxu0 0.0
  %1795 = vmatprep.subr.mxu0 0.0
  %1796 = vmatpush1.msra.mxu0 0.0
  %1797 = vmatprep.subr.mxu0 0.0
  %1798 = vmatpush1.msra.mxu0 0.0
  %1799 = vmatprep.subr.mxu0 0.0
  %1800 = vmatpush1.msra.mxu0 0.0
  %1801 = vmatprep.subr.mxu0 0.0
  %1802 = vmatpush1.msra.mxu0 0.0
  %1803 = vmatprep.subr.mxu0 0.0
  %1804 = vmatpush1.msra.mxu0 0.0
  %1805 = vmatprep.subr.mxu0 0.0
  %1806 = vmatpush1.msra.mxu0 0.0
  %1807 = vmatprep.subr.mxu0 0.0
  %1808 = vmatpush1.msra.mxu0 0.0
  %1809 = vmatprep.subr.mxu0 0.0
  %1810 = vmatpush1.msra.mxu0 0.0
  %1811 = vmatprep.subr.mxu0 0.0
  %1812 = vmatpush1.msra.mxu0 0.0
  %1813 = vmatprep.subr.mxu0 0.0
  %1814 = vmatpush1.msra.mxu0 0.0
  %1815 = vmatprep.subr.mxu0 0.0
  %1816 = vmatpush1.msra.mxu0 0.0
  %1817 = vmatprep.subr.mxu0 0.0
  %1818 = vmatpush1.msra.mxu0 0.0
  %1819 = vmatprep.subr.mxu0 0.0
  %1820 = vmatpush1.msra.mxu0 %v612
  %1821 = vmatprep.subr.mxu0 0.0
  %1822 = vmatpush2.msra.mxu0 0.0
  %1823 = vmatprep.subr.mxu0 0.0
  %1824 = vmatpush2.msra.mxu0 0.0
  %1825 = vmatprep.subr.mxu0 0.0
  %1826 = vmatpush2.msra.mxu0 0.0
  %1827 = vmatprep.subr.mxu0 0.0
  %1828 = vmatpush2.msra.mxu0 0.0
  %1829 = vmatprep.subr.mxu0 0.0
  %1830 = vmatpush2.msra.mxu0 0.0
  %1831 = vmatprep.subr.mxu0 0.0
  %1832 = vmatpush2.msra.mxu0 0.0
  %1833 = vmatprep.subr.mxu0 0.0
  %1834 = vmatpush2.msra.mxu0 0.0
  %1835 = vmatprep.subr.mxu0 0.0
  %1836 = vmatpush2.msra.mxu0 0.0
  %1837 = vmatprep.subr.mxu0 0.0
  %1838 = vmatpush2.msra.mxu0 0.0
  %1839 = vmatprep.subr.mxu0 0.0
  %1840 = vmatpush2.msra.mxu0 0.0
  %1841 = vmatprep.subr.mxu0 0.0
  %1842 = vmatpush2.msra.mxu0 0.0
  %1843 = vmatprep.subr.mxu0 0.0
  %1844 = vmatpush2.msra.mxu0 0.0
  %1845 = vmatprep.subr.mxu0 0.0
  %1846 = vmatpush2.msra.mxu0 0.0
  %1847 = vmatprep.subr.mxu0 0.0
  %1848 = vmatpush2.msra.mxu0 0.0
  %1849 = vmatprep.subr.mxu0 0.0
  %1850 = vmatpush2.msra.mxu0 0.0
  %1851 = vmatprep.subr.mxu0 0.0
  %1852 = vmatpush2.msra.mxu0 0.0
  %1853 = vmatprep.mubr.f32.mxu0 0.0
  %1854 = vmatmul.mubr.f32.gmra.mxu0 %v1787
  %v1855 = vpop.f32.mrf.mxu0
  %v1856 = vadd.f32 %v1246, %v1855
  %v1857 = vpop.f32.mrf.mxu0
  %1858 = vdwg.mxu0
  %1860 = vrot.lane.b32.xlu0 %v1856, 24
  %v1861 = vpop.permute.xlu0 %1860
  %v1863 = vadd.f32 %v522, %v1861
  %v1864 = vxor.u32 %v1863, 2147483648
  %v1865 = vmul.f32 %v1864, 1.442695
  %v1866 = vpow.pop %v1865
  %v1867 = vadd.f32 %v1866, 1.0
  %v1868 = vrcp.pop %v1867
  %v1869 = vmul.f32 1.0, %v1868
  %1870 = vrot.lane.b32.xlu0 %v1856, 8
  %v1871 = vpop.permute.xlu0 %1870
  %v1873 = vmul.f32 %v1869, %v1871
  %1875 = vrot.lane.b32.xlu0 %v1873, 16
  %v1876 = vpop.permute.xlu0 %1875
  %v1878 = vadd.f32 %v522, %v1876
  %v1879 = vtanh.pop %v1878
  %v1880 = vsub.f32 1.0, %v1869
  %1882 = vrot.lane.b32.xlu0 %v1879, 120
  %v1883 = vpop.permute.xlu0 %1882
  %v1885 = vmul.f32 %v1880, %v1883
  %v1886 = vmul.f32 %v1869, %v1779
  %v1887 = vadd.f32 %v1885, %v1886
  %1889 = vrot.lane.b32.xlu0 %v1887, 104
  %v1890 = vpop.permute.xlu0 %1889
  %1892 = vst.msk [vmem:[#allocation2] sm:$0xff] %vm1351, %v1890
  %v1893 = vld [vmem:[#allocation2] sm:$0xff]
  %v1894 = vld [vmem:[#allocation2 + $0x8] sm:$0xff]
  %v1895 = vld [vmem:[#allocation2 + $0x10] sm:$0xff]
  %v1896 = vld [vmem:[#allocation2 + $0x18] sm:$0xff]
  %v1897 = vld [vmem:[#allocation2 + $0x20] sm:$0xff]
  %v1898 = vld [vmem:[#allocation2 + $0x28] sm:$0xff]
  %v1899 = vld [vmem:[%s10] sm:$0xff]
  %v1900 = vld [vmem:[%s10 + $0x8] sm:$0xff]
  %v1901 = vld [vmem:[%s11] sm:$0x1]
  %v1902 = vld [vmem:[%s12] sm:$0xff]
  %v1903 = vld [vmem:[%s12 + $0x8] sm:$0xff]
  %v1905 = vlaneseq
  %v1906 = vshrl.u32 %v1905, 7
  %v1907 = vsub.s32 0, %v1906
  %v1908 = vrot.slane %v1901, %v1907
  %vm1910 = vcmask 130048
  %v1912 = vsel %vm1910, %v1893, 0
  %v1915 = vsel %vm1910, %v1894, 0
  %v1918 = vsel %vm1910, %v1895, 0
  %v1921 = vsel %vm1910, %v1896, 0
  %v1924 = vsel %vm1910, %v1897, 0
  %v1927 = vsel %vm1910, %v1898, 0
  %1929 = vmatprep.subr.mxu0 0.0
  %1930 = vmatpush1.msra.mxu0 0.0
  %1931 = vmatprep.subr.mxu0 0.0
  %1932 = vmatpush1.msra.mxu0 0.0
  %1933 = vmatprep.subr.mxu0 0.0
  %1934 = vmatpush1.msra.mxu0 0.0
  %1935 = vmatprep.subr.mxu0 0.0
  %1936 = vmatpush1.msra.mxu0 0.0
  %1937 = vmatprep.subr.mxu0 0.0
  %1938 = vmatpush1.msra.mxu0 0.0
  %1939 = vmatprep.subr.mxu0 0.0
  %1940 = vmatpush1.msra.mxu0 0.0
  %1941 = vmatprep.subr.mxu0 0.0
  %1942 = vmatpush1.msra.mxu0 0.0
  %1943 = vmatprep.subr.mxu0 0.0
  %1944 = vmatpush1.msra.mxu0 0.0
  %1945 = vmatprep.subr.mxu0 0.0
  %1946 = vmatpush1.msra.mxu0 0.0
  %1947 = vmatprep.subr.mxu0 0.0
  %1948 = vmatpush1.msra.mxu0 0.0
  %1949 = vmatprep.subr.mxu0 0.0
  %1950 = vmatpush1.msra.mxu0 0.0
  %1951 = vmatprep.subr.mxu0 0.0
  %1952 = vmatpush1.msra.mxu0 0.0
  %1953 = vmatprep.subr.mxu0 0.0
  %1954 = vmatpush1.msra.mxu0 0.0
  %1955 = vmatprep.subr.mxu0 0.0
  %1956 = vmatpush1.msra.mxu0 0.0
  %1957 = vmatprep.subr.mxu0 0.0
  %1958 = vmatpush1.msra.mxu0 %v1900
  %1959 = vmatprep.subr.mxu0 0.0
  %1960 = vmatpush1.msra.mxu0 %v1899
  %1961 = vmatprep.subr.mxu0 0.0
  %1962 = vmatpush2.msra.mxu0 0.0
  %1963 = vmatprep.subr.mxu0 0.0
  %1964 = vmatpush2.msra.mxu0 0.0
  %1965 = vmatprep.subr.mxu0 0.0
  %1966 = vmatpush2.msra.mxu0 0.0
  %1967 = vmatprep.subr.mxu0 0.0
  %1968 = vmatpush2.msra.mxu0 0.0
  %1969 = vmatprep.subr.mxu0 0.0
  %1970 = vmatpush2.msra.mxu0 0.0
  %1971 = vmatprep.subr.mxu0 0.0
  %1972 = vmatpush2.msra.mxu0 0.0
  %1973 = vmatprep.subr.mxu0 0.0
  %1974 = vmatpush2.msra.mxu0 0.0
  %1975 = vmatprep.subr.mxu0 0.0
  %1976 = vmatpush2.msra.mxu0 0.0
  %1977 = vmatprep.subr.mxu0 0.0
  %1978 = vmatpush2.msra.mxu0 0.0
  %1979 = vmatprep.subr.mxu0 0.0
  %1980 = vmatpush2.msra.mxu0 0.0
  %1981 = vmatprep.subr.mxu0 0.0
  %1982 = vmatpush2.msra.mxu0 0.0
  %1983 = vmatprep.subr.mxu0 0.0
  %1984 = vmatpush2.msra.mxu0 0.0
  %1985 = vmatprep.subr.mxu0 0.0
  %1986 = vmatpush2.msra.mxu0 0.0
  %1987 = vmatprep.subr.mxu0 0.0
  %1988 = vmatpush2.msra.mxu0 0.0
  %1989 = vmatprep.subr.mxu0 0.0
  %1990 = vmatpush2.msra.mxu0 0.0
  %1991 = vmatprep.subr.mxu0 0.0
  %1992 = vmatpush2.msra.mxu0 0.0
  %1993 = vmatprep.mubr.f32.mxu0 0.0
  %1994 = vmatmul.mubr.f32.gmra.mxu0 %v1912
  %v1995 = vpop.f32.mrf.mxu0
  %v1996 = vadd.f32 %v1908, %v1995
  %v1997 = vpop.f32.mrf.mxu0
  %1998 = vmatprep.mubr.f32.mxu0 0.0
  %1999 = vmatmul.mubr.f32.gmra.mxu0 %v1915
  %v2000 = vpop.f32.mrf.mxu0
  %v2001 = vadd.f32 %v1908, %v2000
  %v2002 = vpop.f32.mrf.mxu0
  %2003 = vmatprep.mubr.f32.mxu0 0.0
  %2004 = vmatmul.mubr.f32.gmra.mxu0 %v1918
  %v2005 = vpop.f32.mrf.mxu0
  %v2006 = vadd.f32 %v1908, %v2005
  %v2007 = vpop.f32.mrf.mxu0
  %2008 = vmatprep.mubr.f32.mxu0 0.0
  %2009 = vmatmul.mubr.f32.gmra.mxu0 %v1921
  %v2010 = vpop.f32.mrf.mxu0
  %v2011 = vadd.f32 %v1908, %v2010
  %v2012 = vpop.f32.mrf.mxu0
  %2013 = vmatprep.mubr.f32.mxu0 0.0
  %2014 = vmatmul.mubr.f32.gmra.mxu0 %v1924
  %v2015 = vpop.f32.mrf.mxu0
  %v2016 = vadd.f32 %v1908, %v2015
  %v2017 = vpop.f32.mrf.mxu0
  %2018 = vmatprep.mubr.f32.mxu0 0.0
  %2019 = vmatmul.mubr.f32.gmra.mxu0 %v1927
  %v2020 = vpop.f32.mrf.mxu0
  %v2021 = vadd.f32 %v1908, %v2020
  %v2022 = vpop.f32.mrf.mxu0
  %2023 = vdwg.mxu0
  %v2024 = vtanh.pop %v1996
  %v2025 = vtanh.pop %v2001
  %v2026 = vtanh.pop %v2006
  %v2027 = vtanh.pop %v2011
  %v2028 = vtanh.pop %v2016
  %v2029 = vtanh.pop %v2021
  %v2031 = vsel %vm1910, %v2024, 0
  %v2034 = vsel %vm1910, %v2025, 0
  %v2037 = vsel %vm1910, %v2026, 0
  %v2040 = vsel %vm1910, %v2027, 0
  %v2043 = vsel %vm1910, %v2028, 0
  %v2046 = vsel %vm1910, %v2029, 0
  %2048 = vmatprep.subr.mxu0 0.0
  %2049 = vmatpush1.msra.mxu0 0.0
  %2050 = vmatprep.subr.mxu0 0.0
  %2051 = vmatpush1.msra.mxu0 0.0
  %2052 = vmatprep.subr.mxu0 0.0
  %2053 = vmatpush1.msra.mxu0 0.0
  %2054 = vmatprep.subr.mxu0 0.0
  %2055 = vmatpush1.msra.mxu0 0.0
  %2056 = vmatprep.subr.mxu0 0.0
  %2057 = vmatpush1.msra.mxu0 0.0
  %2058 = vmatprep.subr.mxu0 0.0
  %2059 = vmatpush1.msra.mxu0 0.0
  %2060 = vmatprep.subr.mxu0 0.0
  %2061 = vmatpush1.msra.mxu0 0.0
  %2062 = vmatprep.subr.mxu0 0.0
  %2063 = vmatpush1.msra.mxu0 0.0
  %2064 = vmatprep.subr.mxu0 0.0
  %2065 = vmatpush1.msra.mxu0 0.0
  %2066 = vmatprep.subr.mxu0 0.0
  %2067 = vmatpush1.msra.mxu0 0.0
  %2068 = vmatprep.subr.mxu0 0.0
  %2069 = vmatpush1.msra.mxu0 0.0
  %2070 = vmatprep.subr.mxu0 0.0
  %2071 = vmatpush1.msra.mxu0 0.0
  %2072 = vmatprep.subr.mxu0 0.0
  %2073 = vmatpush1.msra.mxu0 0.0
  %2074 = vmatprep.subr.mxu0 0.0
  %2075 = vmatpush1.msra.mxu0 0.0
  %2076 = vmatprep.subr.mxu0 0.0
  %2077 = vmatpush1.msra.mxu0 %v1903
  %2078 = vmatprep.subr.mxu0 0.0
  %2079 = vmatpush1.msra.mxu0 %v1902
  %2080 = vmatprep.subr.mxu0 0.0
  %2081 = vmatpush2.msra.mxu0 0.0
  %2082 = vmatprep.subr.mxu0 0.0
  %2083 = vmatpush2.msra.mxu0 0.0
  %2084 = vmatprep.subr.mxu0 0.0
  %2085 = vmatpush2.msra.mxu0 0.0
  %2086 = vmatprep.subr.mxu0 0.0
  %2087 = vmatpush2.msra.mxu0 0.0
  %2088 = vmatprep.subr.mxu0 0.0
  %2089 = vmatpush2.msra.mxu0 0.0
  %2090 = vmatprep.subr.mxu0 0.0
  %2091 = vmatpush2.msra.mxu0 0.0
  %2092 = vmatprep.subr.mxu0 0.0
  %2093 = vmatpush2.msra.mxu0 0.0
  %2094 = vmatprep.subr.mxu0 0.0
  %2095 = vmatpush2.msra.mxu0 0.0
  %2096 = vmatprep.subr.mxu0 0.0
  %2097 = vmatpush2.msra.mxu0 0.0
  %2098 = vmatprep.subr.mxu0 0.0
  %2099 = vmatpush2.msra.mxu0 0.0
  %2100 = vmatprep.subr.mxu0 0.0
  %2101 = vmatpush2.msra.mxu0 0.0
  %2102 = vmatprep.subr.mxu0 0.0
  %2103 = vmatpush2.msra.mxu0 0.0
  %2104 = vmatprep.subr.mxu0 0.0
  %2105 = vmatpush2.msra.mxu0 0.0
  %2106 = vmatprep.subr.mxu0 0.0
  %2107 = vmatpush2.msra.mxu0 0.0
  %2108 = vmatprep.subr.mxu0 0.0
  %2109 = vmatpush2.msra.mxu0 0.0
  %2110 = vmatprep.subr.mxu0 0.0
  %2111 = vmatpush2.msra.mxu0 0.0
  %2112 = vmatprep.mubr.f32.mxu0 0.0
  %2113 = vmatmul.mubr.f32.gmra.mxu0 %v2031
  %v2114 = vpop.f32.mrf.mxu0
  %v2115 = vadd.f32 0.0, %v2114
  %v2116 = vpop.f32.mrf.mxu0
  %2117 = vmatprep.mubr.f32.mxu0 0.0
  %2118 = vmatmul.mubr.f32.gmra.mxu0 %v2034
  %v2119 = vpop.f32.mrf.mxu0
  %v2120 = vadd.f32 0.0, %v2119
  %v2121 = vpop.f32.mrf.mxu0
  %2122 = vmatprep.mubr.f32.mxu0 0.0
  %2123 = vmatmul.mubr.f32.gmra.mxu0 %v2037
  %v2124 = vpop.f32.mrf.mxu0
  %v2125 = vadd.f32 0.0, %v2124
  %v2126 = vpop.f32.mrf.mxu0
  %2127 = vmatprep.mubr.f32.mxu0 0.0
  %2128 = vmatmul.mubr.f32.gmra.mxu0 %v2040
  %v2129 = vpop.f32.mrf.mxu0
  %v2130 = vadd.f32 0.0, %v2129
  %v2131 = vpop.f32.mrf.mxu0
  %2132 = vmatprep.mubr.f32.mxu0 0.0
  %2133 = vmatmul.mubr.f32.gmra.mxu0 %v2043
  %v2134 = vpop.f32.mrf.mxu0
  %v2135 = vadd.f32 0.0, %v2134
  %v2136 = vpop.f32.mrf.mxu0
  %2137 = vmatprep.mubr.f32.mxu0 0.0
  %2138 = vmatmul.mubr.f32.gmra.mxu0 %v2046
  %v2139 = vpop.f32.mrf.mxu0
  %v2140 = vadd.f32 0.0, %v2139
  %v2141 = vpop.f32.mrf.mxu0
  %2142 = vdwg.mxu0
  %v2143 = vtanh.pop %v2115
  %v2144 = vtanh.pop %v2120
  %v2145 = vtanh.pop %v2125
  %v2146 = vtanh.pop %v2130
  %v2147 = vtanh.pop %v2135
  %v2148 = vtanh.pop %v2140
  %v2149 = vmax.f32 %v2143, %v2144
  %v2150 = vmax.f32 %v2149, %v2145
  %v2151 = vmax.f32 %v2150, %v2146
  %v2152 = vmax.f32 %v2151, %v2147
  %v2153 = vmax.f32 %v2152, %v2148
  %v2154 = vsub.f32 %v2143, %v2153
  %v2155 = vmul.f32 %v2154, 1.442695
  %v2156 = vpow.pop %v2155
  %v2157 = vsub.f32 %v2144, %v2153
  %v2158 = vmul.f32 %v2157, 1.442695
  %v2159 = vpow.pop %v2158
  %v2160 = vsub.f32 %v2145, %v2153
  %v2161 = vmul.f32 %v2160, 1.442695
  %v2162 = vpow.pop %v2161
  %v2163 = vsub.f32 %v2146, %v2153
  %v2164 = vmul.f32 %v2163, 1.442695
  %v2165 = vpow.pop %v2164
  %v2166 = vsub.f32 %v2147, %v2153
  %v2167 = vmul.f32 %v2166, 1.442695
  %v2168 = vpow.pop %v2167
  %v2169 = vsub.f32 %v2148, %v2153
  %v2170 = vmul.f32 %v2169, 1.442695
  %v2171 = vpow.pop %v2170
  %v2172 = vadd.f32 %v2156, %v2159
  %v2173 = vadd.f32 %v2172, %v2162
  %v2174 = vadd.f32 %v2173, %v2165
  %v2175 = vadd.f32 %v2174, %v2168
  %v2176 = vadd.f32 %v2175, %v2171
  %v2177 = vrcp.pop %v2176
  %v2178 = vmul.f32 %v2156, %v2177
  %2180 = vset.pattern.permute.xlu0 0
  %2181 = vperm.xlu0 %2180, %v2178
  %v2182 = vpop.permute.xlu0 %2181
  %v2184 = vmul.f32 %v2182, %v1893
  %v2185 = vmul.f32 %v2159, %v2177
  %2187 = vset.pattern.permute.xlu0 0
  %2188 = vperm.xlu0 %2187, %v2185
  %v2189 = vpop.permute.xlu0 %2188
  %v2191 = vmul.f32 %v2189, %v1894
  %v2192 = vadd.f32 %v2184, %v2191
  %v2193 = vmul.f32 %v2162, %v2177
  %2195 = vset.pattern.permute.xlu0 0
  %2196 = vperm.xlu0 %2195, %v2193
  %v2197 = vpop.permute.xlu0 %2196
  %v2199 = vmul.f32 %v2197, %v1895
  %v2200 = vadd.f32 %v2192, %v2199
  %v2201 = vmul.f32 %v2165, %v2177
  %2203 = vset.pattern.permute.xlu0 0
  %2204 = vperm.xlu0 %2203, %v2201
  %v2205 = vpop.permute.xlu0 %2204
  %v2207 = vmul.f32 %v2205, %v1896
  %v2208 = vadd.f32 %v2200, %v2207
  %v2209 = vmul.f32 %v2168, %v2177
  %2211 = vset.pattern.permute.xlu0 0
  %2212 = vperm.xlu0 %2211, %v2209
  %v2213 = vpop.permute.xlu0 %2212
  %v2215 = vmul.f32 %v2213, %v1897
  %v2216 = vadd.f32 %v2208, %v2215
  %v2217 = vmul.f32 %v2171, %v2177
  %2219 = vset.pattern.permute.xlu0 0
  %2220 = vperm.xlu0 %2219, %v2217
  %v2221 = vpop.permute.xlu0 %2220
  %v2223 = vmul.f32 %v2221, %v1898
  %v2224 = vadd.f32 %v2216, %v2223
  %2225 = vst.msk [vmem:[#allocation3] sm:$0xff] %vm1910, %v2224
  %v2226 = vsel %vm622, %v1239, 0
  %2228 = vmatprep.subr.mxu0 0.0
  %2229 = vmatpush1.msra.mxu0 0.0
  %2230 = vmatprep.subr.mxu0 0.0
  %2231 = vmatpush1.msra.mxu0 0.0
  %2232 = vmatprep.subr.mxu0 0.0
  %2233 = vmatpush1.msra.mxu0 0.0
  %2234 = vmatprep.subr.mxu0 0.0
  %2235 = vmatpush1.msra.mxu0 0.0
  %2236 = vmatprep.subr.mxu0 0.0
  %2237 = vmatpush1.msra.mxu0 0.0
  %2238 = vmatprep.subr.mxu0 0.0
  %2239 = vmatpush1.msra.mxu0 0.0
  %2240 = vmatprep.subr.mxu0 0.0
  %2241 = vmatpush1.msra.mxu0 0.0
  %2242 = vmatprep.subr.mxu0 0.0
  %2243 = vmatpush1.msra.mxu0 0.0
  %2244 = vmatprep.subr.mxu0 0.0
  %2245 = vmatpush1.msra.mxu0 0.0
  %2246 = vmatprep.subr.mxu0 0.0
  %2247 = vmatpush1.msra.mxu0 0.0
  %2248 = vmatprep.subr.mxu0 0.0
  %2249 = vmatpush1.msra.mxu0 0.0
  %2250 = vmatprep.subr.mxu0 0.0
  %2251 = vmatpush1.msra.mxu0 0.0
  %2252 = vmatprep.subr.mxu0 0.0
  %2253 = vmatpush1.msra.mxu0 0.0
  %2254 = vmatprep.subr.mxu0 0.0
  %2255 = vmatpush1.msra.mxu0 0.0
  %2256 = vmatprep.subr.mxu0 0.0
  %2257 = vmatpush1.msra.mxu0 0.0
  %2258 = vmatprep.subr.mxu0 0.0
  %2259 = vmatpush1.msra.mxu0 %v610
  %2260 = vmatprep.subr.mxu0 0.0
  %2261 = vmatpush2.msra.mxu0 0.0
  %2262 = vmatprep.subr.mxu0 0.0
  %2263 = vmatpush2.msra.mxu0 0.0
  %2264 = vmatprep.subr.mxu0 0.0
  %2265 = vmatpush2.msra.mxu0 0.0
  %2266 = vmatprep.subr.mxu0 0.0
  %2267 = vmatpush2.msra.mxu0 0.0
  %2268 = vmatprep.subr.mxu0 0.0
  %2269 = vmatpush2.msra.mxu0 0.0
  %2270 = vmatprep.subr.mxu0 0.0
  %2271 = vmatpush2.msra.mxu0 0.0
  %2272 = vmatprep.subr.mxu0 0.0
  %2273 = vmatpush2.msra.mxu0 0.0
  %2274 = vmatprep.subr.mxu0 0.0
  %2275 = vmatpush2.msra.mxu0 0.0
  %2276 = vmatprep.subr.mxu0 0.0
  %2277 = vmatpush2.msra.mxu0 0.0
  %2278 = vmatprep.subr.mxu0 0.0
  %2279 = vmatpush2.msra.mxu0 0.0
  %2280 = vmatprep.subr.mxu0 0.0
  %2281 = vmatpush2.msra.mxu0 0.0
  %2282 = vmatprep.subr.mxu0 0.0
  %2283 = vmatpush2.msra.mxu0 0.0
  %2284 = vmatprep.subr.mxu0 0.0
  %2285 = vmatpush2.msra.mxu0 0.0
  %2286 = vmatprep.subr.mxu0 0.0
  %2287 = vmatpush2.msra.mxu0 0.0
  %2288 = vmatprep.subr.mxu0 0.0
  %2289 = vmatpush2.msra.mxu0 0.0
  %2290 = vmatprep.subr.mxu0 0.0
  %2291 = vmatpush2.msra.mxu0 0.0
  %2292 = vmatprep.mubr.f32.mxu0 0.0
  %2293 = vmatmul.mubr.f32.gmra.mxu0 %v2226
  %v2294 = vpop.f32.mrf.mxu0
  %v2295 = vadd.f32 %v620, %v2294
  %v2296 = vpop.f32.mrf.mxu0
  %2297 = vdwg.mxu0
  %v2298 = vadd.f32 %v552, %v2295
  %v2299 = vxor.u32 %v2298, 2147483648
  %v2300 = vmul.f32 %v2299, 1.442695
  %v2301 = vpow.pop %v2300
  %v2302 = vadd.f32 %v2301, 1.0
  %v2303 = vrcp.pop %v2302
  %v2304 = vmul.f32 1.0, %v2303
  %2306 = vrot.lane.b32.xlu0 %v2295, 112
  %v2307 = vpop.permute.xlu0 %2306
  %v2309 = vmul.f32 %v2304, %v2307
  %2311 = vrot.lane.b32.xlu0 %v2309, 16
  %v2312 = vpop.permute.xlu0 %2311
  %v2314 = vadd.f32 %v552, %v2312
  %v2315 = vtanh.pop %v2314
  %v2316 = vsub.f32 1.0, %v2304
  %2318 = vrot.lane.b32.xlu0 %v2315, 120
  %v2319 = vpop.permute.xlu0 %2318
  %v2321 = vmul.f32 %v2316, %v2319
  %v2322 = vmul.f32 %v2304, %v1236
  %v2323 = vadd.f32 %v2321, %v2322
  %2325 = vrot.lane.b32.xlu0 %v2323, 120
  %v2326 = vpop.permute.xlu0 %2325
  %2328 = vst.msk [vmem:[#allocation2] sm:$0xff] %vm622, %v2326
  %v2329 = vsel %vm622, %v2326, 0
  %2331 = vmatprep.subr.mxu0 0.0
  %2332 = vmatpush1.msra.mxu0 0.0
  %2333 = vmatprep.subr.mxu0 0.0
  %2334 = vmatpush1.msra.mxu0 0.0
  %2335 = vmatprep.subr.mxu0 0.0
  %2336 = vmatpush1.msra.mxu0 0.0
  %2337 = vmatprep.subr.mxu0 0.0
  %2338 = vmatpush1.msra.mxu0 0.0
  %2339 = vmatprep.subr.mxu0 0.0
  %2340 = vmatpush1.msra.mxu0 0.0
  %2341 = vmatprep.subr.mxu0 0.0
  %2342 = vmatpush1.msra.mxu0 0.0
  %2343 = vmatprep.subr.mxu0 0.0
  %2344 = vmatpush1.msra.mxu0 0.0
  %2345 = vmatprep.subr.mxu0 0.0
  %2346 = vmatpush1.msra.mxu0 0.0
  %2347 = vmatprep.subr.mxu0 0.0
  %2348 = vmatpush1.msra.mxu0 0.0
  %2349 = vmatprep.subr.mxu0 0.0
  %2350 = vmatpush1.msra.mxu0 0.0
  %2351 = vmatprep.subr.mxu0 0.0
  %2352 = vmatpush1.msra.mxu0 0.0
  %2353 = vmatprep.subr.mxu0 0.0
  %2354 = vmatpush1.msra.mxu0 0.0
  %2355 = vmatprep.subr.mxu0 0.0
  %2356 = vmatpush1.msra.mxu0 0.0
  %2357 = vmatprep.subr.mxu0 0.0
  %2358 = vmatpush1.msra.mxu0 0.0
  %2359 = vmatprep.subr.mxu0 0.0
  %2360 = vmatpush1.msra.mxu0 0.0
  %2361 = vmatprep.subr.mxu0 0.0
  %2362 = vmatpush1.msra.mxu0 %v610
  %2363 = vmatprep.subr.mxu0 0.0
  %2364 = vmatpush2.msra.mxu0 0.0
  %2365 = vmatprep.subr.mxu0 0.0
  %2366 = vmatpush2.msra.mxu0 0.0
  %2367 = vmatprep.subr.mxu0 0.0
  %2368 = vmatpush2.msra.mxu0 0.0
  %2369 = vmatprep.subr.mxu0 0.0
  %2370 = vmatpush2.msra.mxu0 0.0
  %2371 = vmatprep.subr.mxu0 0.0
  %2372 = vmatpush2.msra.mxu0 0.0
  %2373 = vmatprep.subr.mxu0 0.0
  %2374 = vmatpush2.msra.mxu0 0.0
  %2375 = vmatprep.subr.mxu0 0.0
  %2376 = vmatpush2.msra.mxu0 0.0
  %2377 = vmatprep.subr.mxu0 0.0
  %2378 = vmatpush2.msra.mxu0 0.0
  %2379 = vmatprep.subr.mxu0 0.0
  %2380 = vmatpush2.msra.mxu0 0.0
  %2381 = vmatprep.subr.mxu0 0.0
  %2382 = vmatpush2.msra.mxu0 0.0
  %2383 = vmatprep.subr.mxu0 0.0
  %2384 = vmatpush2.msra.mxu0 0.0
  %2385 = vmatprep.subr.mxu0 0.0
  %2386 = vmatpush2.msra.mxu0 0.0
  %2387 = vmatprep.subr.mxu0 0.0
  %2388 = vmatpush2.msra.mxu0 0.0
  %2389 = vmatprep.subr.mxu0 0.0
  %2390 = vmatpush2.msra.mxu0 0.0
  %2391 = vmatprep.subr.mxu0 0.0
  %2392 = vmatpush2.msra.mxu0 0.0
  %2393 = vmatprep.subr.mxu0 0.0
  %2394 = vmatpush2.msra.mxu0 0.0
  %2395 = vmatprep.mubr.f32.mxu0 0.0
  %2396 = vmatmul.mubr.f32.gmra.mxu0 %v2329
  %v2397 = vpop.f32.mrf.mxu0
  %v2398 = vadd.f32 %v620, %v2397
  %v2399 = vpop.f32.mrf.mxu0
  %2400 = vdwg.mxu0
  %v2401 = vadd.f32 %v557, %v2398
  %v2402 = vxor.u32 %v2401, 2147483648
  %v2403 = vmul.f32 %v2402, 1.442695
  %v2404 = vpow.pop %v2403
  %v2405 = vadd.f32 %v2404, 1.0
  %v2406 = vrcp.pop %v2405
  %v2407 = vmul.f32 1.0, %v2406
  %2409 = vrot.lane.b32.xlu0 %v2398, 112
  %v2410 = vpop.permute.xlu0 %2409
  %v2412 = vmul.f32 %v2407, %v2410
  %2414 = vrot.lane.b32.xlu0 %v2412, 16
  %v2415 = vpop.permute.xlu0 %2414
  %v2417 = vadd.f32 %v557, %v2415
  %v2418 = vtanh.pop %v2417
  %v2419 = vsub.f32 1.0, %v2407
  %2421 = vrot.lane.b32.xlu0 %v2418, 120
  %v2422 = vpop.permute.xlu0 %2421
  %v2424 = vmul.f32 %v2419, %v2422
  %v2425 = vmul.f32 %v2407, %v2323
  %v2426 = vadd.f32 %v2424, %v2425
  %2428 = vrot.lane.b32.xlu0 %v2426, 120
  %v2429 = vpop.permute.xlu0 %2428
  %2431 = vst.msk [vmem:[#allocation2 + $0x8] sm:$0xff] %vm622, %v2429
  %v2432 = vsel %vm622, %v2429, 0
  %2434 = vmatprep.subr.mxu0 0.0
  %2435 = vmatpush1.msra.mxu0 0.0
  %2436 = vmatprep.subr.mxu0 0.0
  %2437 = vmatpush1.msra.mxu0 0.0
  %2438 = vmatprep.subr.mxu0 0.0
  %2439 = vmatpush1.msra.mxu0 0.0
  %2440 = vmatprep.subr.mxu0 0.0
  %2441 = vmatpush1.msra.mxu0 0.0
  %2442 = vmatprep.subr.mxu0 0.0
  %2443 = vmatpush1.msra.mxu0 0.0
  %2444 = vmatprep.subr.mxu0 0.0
  %2445 = vmatpush1.msra.mxu0 0.0
  %2446 = vmatprep.subr.mxu0 0.0
  %2447 = vmatpush1.msra.mxu0 0.0
  %2448 = vmatprep.subr.mxu0 0.0
  %2449 = vmatpush1.msra.mxu0 0.0
  %2450 = vmatprep.subr.mxu0 0.0
  %2451 = vmatpush1.msra.mxu0 0.0
  %2452 = vmatprep.subr.mxu0 0.0
  %2453 = vmatpush1.msra.mxu0 0.0
  %2454 = vmatprep.subr.mxu0 0.0
  %2455 = vmatpush1.msra.mxu0 0.0
  %2456 = vmatprep.subr.mxu0 0.0
  %2457 = vmatpush1.msra.mxu0 0.0
  %2458 = vmatprep.subr.mxu0 0.0
  %2459 = vmatpush1.msra.mxu0 0.0
  %2460 = vmatprep.subr.mxu0 0.0
  %2461 = vmatpush1.msra.mxu0 0.0
  %2462 = vmatprep.subr.mxu0 0.0
  %2463 = vmatpush1.msra.mxu0 0.0
  %2464 = vmatprep.subr.mxu0 0.0
  %2465 = vmatpush1.msra.mxu0 %v610
  %2466 = vmatprep.subr.mxu0 0.0
  %2467 = vmatpush2.msra.mxu0 0.0
  %2468 = vmatprep.subr.mxu0 0.0
  %2469 = vmatpush2.msra.mxu0 0.0
  %2470 = vmatprep.subr.mxu0 0.0
  %2471 = vmatpush2.msra.mxu0 0.0
  %2472 = vmatprep.subr.mxu0 0.0
  %2473 = vmatpush2.msra.mxu0 0.0
  %2474 = vmatprep.subr.mxu0 0.0
  %2475 = vmatpush2.msra.mxu0 0.0
  %2476 = vmatprep.subr.mxu0 0.0
  %2477 = vmatpush2.msra.mxu0 0.0
  %2478 = vmatprep.subr.mxu0 0.0
  %2479 = vmatpush2.msra.mxu0 0.0
  %2480 = vmatprep.subr.mxu0 0.0
  %2481 = vmatpush2.msra.mxu0 0.0
  %2482 = vmatprep.subr.mxu0 0.0
  %2483 = vmatpush2.msra.mxu0 0.0
  %2484 = vmatprep.subr.mxu0 0.0
  %2485 = vmatpush2.msra.mxu0 0.0
  %2486 = vmatprep.subr.mxu0 0.0
  %2487 = vmatpush2.msra.mxu0 0.0
  %2488 = vmatprep.subr.mxu0 0.0
  %2489 = vmatpush2.msra.mxu0 0.0
  %2490 = vmatprep.subr.mxu0 0.0
  %2491 = vmatpush2.msra.mxu0 0.0
  %2492 = vmatprep.subr.mxu0 0.0
  %2493 = vmatpush2.msra.mxu0 0.0
  %2494 = vmatprep.subr.mxu0 0.0
  %2495 = vmatpush2.msra.mxu0 0.0
  %2496 = vmatprep.subr.mxu0 0.0
  %2497 = vmatpush2.msra.mxu0 0.0
  %2498 = vmatprep.mubr.f32.mxu0 0.0
  %2499 = vmatmul.mubr.f32.gmra.mxu0 %v2432
  %v2500 = vpop.f32.mrf.mxu0
  %v2501 = vadd.f32 %v620, %v2500
  %v2502 = vpop.f32.mrf.mxu0
  %2503 = vdwg.mxu0
  %v2504 = vadd.f32 %v562, %v2501
  %v2505 = vxor.u32 %v2504, 2147483648
  %v2506 = vmul.f32 %v2505, 1.442695
  %v2507 = vpow.pop %v2506
  %v2508 = vadd.f32 %v2507, 1.0
  %v2509 = vrcp.pop %v2508
  %v2510 = vmul.f32 1.0, %v2509
  %2512 = vrot.lane.b32.xlu0 %v2501, 112
  %v2513 = vpop.permute.xlu0 %2512
  %v2515 = vmul.f32 %v2510, %v2513
  %2517 = vrot.lane.b32.xlu0 %v2515, 16
  %v2518 = vpop.permute.xlu0 %2517
  %v2520 = vadd.f32 %v562, %v2518
  %v2521 = vtanh.pop %v2520
  %v2522 = vsub.f32 1.0, %v2510
  %2524 = vrot.lane.b32.xlu0 %v2521, 120
  %v2525 = vpop.permute.xlu0 %2524
  %v2527 = vmul.f32 %v2522, %v2525
  %v2528 = vmul.f32 %v2510, %v2426
  %v2529 = vadd.f32 %v2527, %v2528
  %2531 = vrot.lane.b32.xlu0 %v2529, 120
  %v2532 = vpop.permute.xlu0 %2531
  %2534 = vst.msk [vmem:[#allocation2 + $0x10] sm:$0xff] %vm622, %v2532
  %v2535 = vsel %vm622, %v2532, 0
  %2537 = vmatprep.subr.mxu0 0.0
  %2538 = vmatpush1.msra.mxu0 0.0
  %2539 = vmatprep.subr.mxu0 0.0
  %2540 = vmatpush1.msra.mxu0 0.0
  %2541 = vmatprep.subr.mxu0 0.0
  %2542 = vmatpush1.msra.mxu0 0.0
  %2543 = vmatprep.subr.mxu0 0.0
  %2544 = vmatpush1.msra.mxu0 0.0
  %2545 = vmatprep.subr.mxu0 0.0
  %2546 = vmatpush1.msra.mxu0 0.0
  %2547 = vmatprep.subr.mxu0 0.0
  %2548 = vmatpush1.msra.mxu0 0.0
  %2549 = vmatprep.subr.mxu0 0.0
  %2550 = vmatpush1.msra.mxu0 0.0
  %2551 = vmatprep.subr.mxu0 0.0
  %2552 = vmatpush1.msra.mxu0 0.0
  %2553 = vmatprep.subr.mxu0 0.0
  %2554 = vmatpush1.msra.mxu0 0.0
  %2555 = vmatprep.subr.mxu0 0.0
  %2556 = vmatpush1.msra.mxu0 0.0
  %2557 = vmatprep.subr.mxu0 0.0
  %2558 = vmatpush1.msra.mxu0 0.0
  %2559 = vmatprep.subr.mxu0 0.0
  %2560 = vmatpush1.msra.mxu0 0.0
  %2561 = vmatprep.subr.mxu0 0.0
  %2562 = vmatpush1.msra.mxu0 0.0
  %2563 = vmatprep.subr.mxu0 0.0
  %2564 = vmatpush1.msra.mxu0 0.0
  %2565 = vmatprep.subr.mxu0 0.0
  %2566 = vmatpush1.msra.mxu0 0.0
  %2567 = vmatprep.subr.mxu0 0.0
  %2568 = vmatpush1.msra.mxu0 %v610
  %2569 = vmatprep.subr.mxu0 0.0
  %2570 = vmatpush2.msra.mxu0 0.0
  %2571 = vmatprep.subr.mxu0 0.0
  %2572 = vmatpush2.msra.mxu0 0.0
  %2573 = vmatprep.subr.mxu0 0.0
  %2574 = vmatpush2.msra.mxu0 0.0
  %2575 = vmatprep.subr.mxu0 0.0
  %2576 = vmatpush2.msra.mxu0 0.0
  %2577 = vmatprep.subr.mxu0 0.0
  %2578 = vmatpush2.msra.mxu0 0.0
  %2579 = vmatprep.subr.mxu0 0.0
  %2580 = vmatpush2.msra.mxu0 0.0
  %2581 = vmatprep.subr.mxu0 0.0
  %2582 = vmatpush2.msra.mxu0 0.0
  %2583 = vmatprep.subr.mxu0 0.0
  %2584 = vmatpush2.msra.mxu0 0.0
  %2585 = vmatprep.subr.mxu0 0.0
  %2586 = vmatpush2.msra.mxu0 0.0
  %2587 = vmatprep.subr.mxu0 0.0
  %2588 = vmatpush2.msra.mxu0 0.0
  %2589 = vmatprep.subr.mxu0 0.0
  %2590 = vmatpush2.msra.mxu0 0.0
  %2591 = vmatprep.subr.mxu0 0.0
  %2592 = vmatpush2.msra.mxu0 0.0
  %2593 = vmatprep.subr.mxu0 0.0
  %2594 = vmatpush2.msra.mxu0 0.0
  %2595 = vmatprep.subr.mxu0 0.0
  %2596 = vmatpush2.msra.mxu0 0.0
  %2597 = vmatprep.subr.mxu0 0.0
  %2598 = vmatpush2.msra.mxu0 0.0
  %2599 = vmatprep.subr.mxu0 0.0
  %2600 = vmatpush2.msra.mxu0 0.0
  %2601 = vmatprep.mubr.f32.mxu0 0.0
  %2602 = vmatmul.mubr.f32.gmra.mxu0 %v2535
  %v2603 = vpop.f32.mrf.mxu0
  %v2604 = vadd.f32 %v620, %v2603
  %v2605 = vpop.f32.mrf.mxu0
  %2606 = vdwg.mxu0
  %v2607 = vadd.f32 %v567, %v2604
  %v2608 = vxor.u32 %v2607, 2147483648
  %v2609 = vmul.f32 %v2608, 1.442695
  %v2610 = vpow.pop %v2609
  %v2611 = vadd.f32 %v2610, 1.0
  %v2612 = vrcp.pop %v2611
  %v2613 = vmul.f32 1.0, %v2612
  %2615 = vrot.lane.b32.xlu0 %v2604, 112
  %v2616 = vpop.permute.xlu0 %2615
  %v2618 = vmul.f32 %v2613, %v2616
  %2620 = vrot.lane.b32.xlu0 %v2618, 16
  %v2621 = vpop.permute.xlu0 %2620
  %v2623 = vadd.f32 %v567, %v2621
  %v2624 = vtanh.pop %v2623
  %v2625 = vsub.f32 1.0, %v2613
  %2627 = vrot.lane.b32.xlu0 %v2624, 120
  %v2628 = vpop.permute.xlu0 %2627
  %v2630 = vmul.f32 %v2625, %v2628
  %v2631 = vmul.f32 %v2613, %v2529
  %v2632 = vadd.f32 %v2630, %v2631
  %2634 = vrot.lane.b32.xlu0 %v2632, 120
  %v2635 = vpop.permute.xlu0 %2634
  %2637 = vst.msk [vmem:[#allocation2 + $0x18] sm:$0xff] %vm622, %v2635
  %v2638 = vsel %vm622, %v2635, 0
  %2640 = vmatprep.subr.mxu0 0.0
  %2641 = vmatpush1.msra.mxu0 0.0
  %2642 = vmatprep.subr.mxu0 0.0
  %2643 = vmatpush1.msra.mxu0 0.0
  %2644 = vmatprep.subr.mxu0 0.0
  %2645 = vmatpush1.msra.mxu0 0.0
  %2646 = vmatprep.subr.mxu0 0.0
  %2647 = vmatpush1.msra.mxu0 0.0
  %2648 = vmatprep.subr.mxu0 0.0
  %2649 = vmatpush1.msra.mxu0 0.0
  %2650 = vmatprep.subr.mxu0 0.0
  %2651 = vmatpush1.msra.mxu0 0.0
  %2652 = vmatprep.subr.mxu0 0.0
  %2653 = vmatpush1.msra.mxu0 0.0
  %2654 = vmatprep.subr.mxu0 0.0
  %2655 = vmatpush1.msra.mxu0 0.0
  %2656 = vmatprep.subr.mxu0 0.0
  %2657 = vmatpush1.msra.mxu0 0.0
  %2658 = vmatprep.subr.mxu0 0.0
  %2659 = vmatpush1.msra.mxu0 0.0
  %2660 = vmatprep.subr.mxu0 0.0
  %2661 = vmatpush1.msra.mxu0 0.0
  %2662 = vmatprep.subr.mxu0 0.0
  %2663 = vmatpush1.msra.mxu0 0.0
  %2664 = vmatprep.subr.mxu0 0.0
  %2665 = vmatpush1.msra.mxu0 0.0
  %2666 = vmatprep.subr.mxu0 0.0
  %2667 = vmatpush1.msra.mxu0 0.0
  %2668 = vmatprep.subr.mxu0 0.0
  %2669 = vmatpush1.msra.mxu0 0.0
  %2670 = vmatprep.subr.mxu0 0.0
  %2671 = vmatpush1.msra.mxu0 %v610
  %2672 = vmatprep.subr.mxu0 0.0
  %2673 = vmatpush2.msra.mxu0 0.0
  %2674 = vmatprep.subr.mxu0 0.0
  %2675 = vmatpush2.msra.mxu0 0.0
  %2676 = vmatprep.subr.mxu0 0.0
  %2677 = vmatpush2.msra.mxu0 0.0
  %2678 = vmatprep.subr.mxu0 0.0
  %2679 = vmatpush2.msra.mxu0 0.0
  %2680 = vmatprep.subr.mxu0 0.0
  %2681 = vmatpush2.msra.mxu0 0.0
  %2682 = vmatprep.subr.mxu0 0.0
  %2683 = vmatpush2.msra.mxu0 0.0
  %2684 = vmatprep.subr.mxu0 0.0
  %2685 = vmatpush2.msra.mxu0 0.0
  %2686 = vmatprep.subr.mxu0 0.0
  %2687 = vmatpush2.msra.mxu0 0.0
  %2688 = vmatprep.subr.mxu0 0.0
  %2689 = vmatpush2.msra.mxu0 0.0
  %2690 = vmatprep.subr.mxu0 0.0
  %2691 = vmatpush2.msra.mxu0 0.0
  %2692 = vmatprep.subr.mxu0 0.0
  %2693 = vmatpush2.msra.mxu0 0.0
  %2694 = vmatprep.subr.mxu0 0.0
  %2695 = vmatpush2.msra.mxu0 0.0
  %2696 = vmatprep.subr.mxu0 0.0
  %2697 = vmatpush2.msra.mxu0 0.0
  %2698 = vmatprep.subr.mxu0 0.0
  %2699 = vmatpush2.msra.mxu0 0.0
  %2700 = vmatprep.subr.mxu0 0.0
  %2701 = vmatpush2.msra.mxu0 0.0
  %2702 = vmatprep.subr.mxu0 0.0
  %2703 = vmatpush2.msra.mxu0 0.0
  %2704 = vmatprep.mubr.f32.mxu0 0.0
  %2705 = vmatmul.mubr.f32.gmra.mxu0 %v2638
  %v2706 = vpop.f32.mrf.mxu0
  %v2707 = vadd.f32 %v620, %v2706
  %v2708 = vpop.f32.mrf.mxu0
  %2709 = vdwg.mxu0
  %v2710 = vadd.f32 %v572, %v2707
  %v2711 = vxor.u32 %v2710, 2147483648
  %v2712 = vmul.f32 %v2711, 1.442695
  %v2713 = vpow.pop %v2712
  %v2714 = vadd.f32 %v2713, 1.0
  %v2715 = vrcp.pop %v2714
  %v2716 = vmul.f32 1.0, %v2715
  %2718 = vrot.lane.b32.xlu0 %v2707, 112
  %v2719 = vpop.permute.xlu0 %2718
  %v2721 = vmul.f32 %v2716, %v2719
  %2723 = vrot.lane.b32.xlu0 %v2721, 16
  %v2724 = vpop.permute.xlu0 %2723
  %v2726 = vadd.f32 %v572, %v2724
  %v2727 = vtanh.pop %v2726
  %v2728 = vsub.f32 1.0, %v2716
  %2730 = vrot.lane.b32.xlu0 %v2727, 120
  %v2731 = vpop.permute.xlu0 %2730
  %v2733 = vmul.f32 %v2728, %v2731
  %v2734 = vmul.f32 %v2716, %v2632
  %v2735 = vadd.f32 %v2733, %v2734
  %2737 = vrot.lane.b32.xlu0 %v2735, 120
  %v2738 = vpop.permute.xlu0 %2737
  %2740 = vst.msk [vmem:[#allocation2 + $0x20] sm:$0xff] %vm622, %v2738
  %v2741 = vsel %vm622, %v2738, 0
  %2743 = vmatprep.subr.mxu0 0.0
  %2744 = vmatpush1.msra.mxu0 0.0
  %2745 = vmatprep.subr.mxu0 0.0
  %2746 = vmatpush1.msra.mxu0 0.0
  %2747 = vmatprep.subr.mxu0 0.0
  %2748 = vmatpush1.msra.mxu0 0.0
  %2749 = vmatprep.subr.mxu0 0.0
  %2750 = vmatpush1.msra.mxu0 0.0
  %2751 = vmatprep.subr.mxu0 0.0
  %2752 = vmatpush1.msra.mxu0 0.0
  %2753 = vmatprep.subr.mxu0 0.0
  %2754 = vmatpush1.msra.mxu0 0.0
  %2755 = vmatprep.subr.mxu0 0.0
  %2756 = vmatpush1.msra.mxu0 0.0
  %2757 = vmatprep.subr.mxu0 0.0
  %2758 = vmatpush1.msra.mxu0 0.0
  %2759 = vmatprep.subr.mxu0 0.0
  %2760 = vmatpush1.msra.mxu0 0.0
  %2761 = vmatprep.subr.mxu0 0.0
  %2762 = vmatpush1.msra.mxu0 0.0
  %2763 = vmatprep.subr.mxu0 0.0
  %2764 = vmatpush1.msra.mxu0 0.0
  %2765 = vmatprep.subr.mxu0 0.0
  %2766 = vmatpush1.msra.mxu0 0.0
  %2767 = vmatprep.subr.mxu0 0.0
  %2768 = vmatpush1.msra.mxu0 0.0
  %2769 = vmatprep.subr.mxu0 0.0
  %2770 = vmatpush1.msra.mxu0 0.0
  %2771 = vmatprep.subr.mxu0 0.0
  %2772 = vmatpush1.msra.mxu0 0.0
  %2773 = vmatprep.subr.mxu0 0.0
  %2774 = vmatpush1.msra.mxu0 %v610
  %2775 = vmatprep.subr.mxu0 0.0
  %2776 = vmatpush2.msra.mxu0 0.0
  %2777 = vmatprep.subr.mxu0 0.0
  %2778 = vmatpush2.msra.mxu0 0.0
  %2779 = vmatprep.subr.mxu0 0.0
  %2780 = vmatpush2.msra.mxu0 0.0
  %2781 = vmatprep.subr.mxu0 0.0
  %2782 = vmatpush2.msra.mxu0 0.0
  %2783 = vmatprep.subr.mxu0 0.0
  %2784 = vmatpush2.msra.mxu0 0.0
  %2785 = vmatprep.subr.mxu0 0.0
  %2786 = vmatpush2.msra.mxu0 0.0
  %2787 = vmatprep.subr.mxu0 0.0
  %2788 = vmatpush2.msra.mxu0 0.0
  %2789 = vmatprep.subr.mxu0 0.0
  %2790 = vmatpush2.msra.mxu0 0.0
  %2791 = vmatprep.subr.mxu0 0.0
  %2792 = vmatpush2.msra.mxu0 0.0
  %2793 = vmatprep.subr.mxu0 0.0
  %2794 = vmatpush2.msra.mxu0 0.0
  %2795 = vmatprep.subr.mxu0 0.0
  %2796 = vmatpush2.msra.mxu0 0.0
  %2797 = vmatprep.subr.mxu0 0.0
  %2798 = vmatpush2.msra.mxu0 0.0
  %2799 = vmatprep.subr.mxu0 0.0
  %2800 = vmatpush2.msra.mxu0 0.0
  %2801 = vmatprep.subr.mxu0 0.0
  %2802 = vmatpush2.msra.mxu0 0.0
  %2803 = vmatprep.subr.mxu0 0.0
  %2804 = vmatpush2.msra.mxu0 0.0
  %2805 = vmatprep.subr.mxu0 0.0
  %2806 = vmatpush2.msra.mxu0 0.0
  %2807 = vmatprep.mubr.f32.mxu0 0.0
  %2808 = vmatmul.mubr.f32.gmra.mxu0 %v2741
  %v2809 = vpop.f32.mrf.mxu0
  %v2810 = vadd.f32 %v620, %v2809
  %v2811 = vpop.f32.mrf.mxu0
  %2812 = vdwg.mxu0
  %v2813 = vadd.f32 %v577, %v2810
  %v2814 = vxor.u32 %v2813, 2147483648
  %v2815 = vmul.f32 %v2814, 1.442695
  %v2816 = vpow.pop %v2815
  %v2817 = vadd.f32 %v2816, 1.0
  %v2818 = vrcp.pop %v2817
  %v2819 = vmul.f32 1.0, %v2818
  %2821 = vrot.lane.b32.xlu0 %v2810, 112
  %v2822 = vpop.permute.xlu0 %2821
  %v2824 = vmul.f32 %v2819, %v2822
  %2826 = vrot.lane.b32.xlu0 %v2824, 16
  %v2827 = vpop.permute.xlu0 %2826
  %v2829 = vadd.f32 %v577, %v2827
  %v2830 = vtanh.pop %v2829
  %v2831 = vsub.f32 1.0, %v2819
  %2833 = vrot.lane.b32.xlu0 %v2830, 120
  %v2834 = vpop.permute.xlu0 %2833
  %v2836 = vmul.f32 %v2831, %v2834
  %v2837 = vmul.f32 %v2819, %v2735
  %v2838 = vadd.f32 %v2836, %v2837
  %2840 = vrot.lane.b32.xlu0 %v2838, 120
  %v2841 = vpop.permute.xlu0 %2840
  %2843 = vst.msk [vmem:[#allocation2 + $0x28] sm:$0xff] %vm622, %v2841
  %2844 = vrot.lane.b32.xlu0 %v1887, 96
  %v2845 = vpop.permute.xlu0 %2844
  %v2846 = vsel %vm622, %v2845, 0
  %2848 = vmatprep.subr.mxu0 0.0
  %2849 = vmatpush1.msra.mxu0 0.0
  %2850 = vmatprep.subr.mxu0 0.0
  %2851 = vmatpush1.msra.mxu0 0.0
  %2852 = vmatprep.subr.mxu0 0.0
  %2853 = vmatpush1.msra.mxu0 0.0
  %2854 = vmatprep.subr.mxu0 0.0
  %2855 = vmatpush1.msra.mxu0 0.0
  %2856 = vmatprep.subr.mxu0 0.0
  %2857 = vmatpush1.msra.mxu0 0.0
  %2858 = vmatprep.subr.mxu0 0.0
  %2859 = vmatpush1.msra.mxu0 0.0
  %2860 = vmatprep.subr.mxu0 0.0
  %2861 = vmatpush1.msra.mxu0 0.0
  %2862 = vmatprep.subr.mxu0 0.0
  %2863 = vmatpush1.msra.mxu0 0.0
  %2864 = vmatprep.subr.mxu0 0.0
  %2865 = vmatpush1.msra.mxu0 0.0
  %2866 = vmatprep.subr.mxu0 0.0
  %2867 = vmatpush1.msra.mxu0 0.0
  %2868 = vmatprep.subr.mxu0 0.0
  %2869 = vmatpush1.msra.mxu0 0.0
  %2870 = vmatprep.subr.mxu0 0.0
  %2871 = vmatpush1.msra.mxu0 0.0
  %2872 = vmatprep.subr.mxu0 0.0
  %2873 = vmatpush1.msra.mxu0 0.0
  %2874 = vmatprep.subr.mxu0 0.0
  %2875 = vmatpush1.msra.mxu0 0.0
  %2876 = vmatprep.subr.mxu0 0.0
  %2877 = vmatpush1.msra.mxu0 0.0
  %2878 = vmatprep.subr.mxu0 0.0
  %2879 = vmatpush1.msra.mxu0 %v612
  %2880 = vmatprep.subr.mxu0 0.0
  %2881 = vmatpush2.msra.mxu0 0.0
  %2882 = vmatprep.subr.mxu0 0.0
  %2883 = vmatpush2.msra.mxu0 0.0
  %2884 = vmatprep.subr.mxu0 0.0
  %2885 = vmatpush2.msra.mxu0 0.0
  %2886 = vmatprep.subr.mxu0 0.0
  %2887 = vmatpush2.msra.mxu0 0.0
  %2888 = vmatprep.subr.mxu0 0.0
  %2889 = vmatpush2.msra.mxu0 0.0
  %2890 = vmatprep.subr.mxu0 0.0
  %2891 = vmatpush2.msra.mxu0 0.0
  %2892 = vmatprep.subr.mxu0 0.0
  %2893 = vmatpush2.msra.mxu0 0.0
  %2894 = vmatprep.subr.mxu0 0.0
  %2895 = vmatpush2.msra.mxu0 0.0
  %2896 = vmatprep.subr.mxu0 0.0
  %2897 = vmatpush2.msra.mxu0 0.0
  %2898 = vmatprep.subr.mxu0 0.0
  %2899 = vmatpush2.msra.mxu0 0.0
  %2900 = vmatprep.subr.mxu0 0.0
  %2901 = vmatpush2.msra.mxu0 0.0
  %2902 = vmatprep.subr.mxu0 0.0
  %2903 = vmatpush2.msra.mxu0 0.0
  %2904 = vmatprep.subr.mxu0 0.0
  %2905 = vmatpush2.msra.mxu0 0.0
  %2906 = vmatprep.subr.mxu0 0.0
  %2907 = vmatpush2.msra.mxu0 0.0
  %2908 = vmatprep.subr.mxu0 0.0
  %2909 = vmatpush2.msra.mxu0 0.0
  %2910 = vmatprep.subr.mxu0 0.0
  %2911 = vmatpush2.msra.mxu0 0.0
  %2912 = vmatprep.mubr.f32.mxu0 0.0
  %2913 = vmatmul.mubr.f32.gmra.mxu0 %v2846
  %v2914 = vpop.f32.mrf.mxu0
  %v2915 = vadd.f32 %v1246, %v2914
  %v2916 = vpop.f32.mrf.mxu0
  %2917 = vdwg.mxu0
  %2919 = vrot.lane.b32.xlu0 %v2915, 24
  %v2920 = vpop.permute.xlu0 %2919
  %v2922 = vadd.f32 %v577, %v2920
  %v2923 = vxor.u32 %v2922, 2147483648
  %v2924 = vmul.f32 %v2923, 1.442695
  %v2925 = vpow.pop %v2924
  %v2926 = vadd.f32 %v2925, 1.0
  %v2927 = vrcp.pop %v2926
  %v2928 = vmul.f32 1.0, %v2927
  %2929 = vrot.lane.b32.xlu0 %v2915, 8
  %v2930 = vpop.permute.xlu0 %2929
  %v2932 = vmul.f32 %v2928, %v2930
  %2934 = vrot.lane.b32.xlu0 %v2932, 16
  %v2935 = vpop.permute.xlu0 %2934
  %v2937 = vadd.f32 %v577, %v2935
  %v2938 = vtanh.pop %v2937
  %v2939 = vsub.f32 1.0, %v2928
  %2941 = vrot.lane.b32.xlu0 %v2938, 120
  %v2942 = vpop.permute.xlu0 %2941
  %v2944 = vmul.f32 %v2939, %v2942
  %v2945 = vmul.f32 %v2928, %v1887
  %v2946 = vadd.f32 %v2944, %v2945
  %2948 = vrot.lane.b32.xlu0 %v2946, 104
  %v2949 = vpop.permute.xlu0 %2948
  %2951 = vst.msk [vmem:[#allocation2 + $0x28] sm:$0xff] %vm1351, %v2949
  %2952 = vrot.lane.b32.xlu0 %v2946, 96
  %v2953 = vpop.permute.xlu0 %2952
  %v2954 = vsel %vm622, %v2953, 0
  %2956 = vmatprep.subr.mxu0 0.0
  %2957 = vmatpush1.msra.mxu0 0.0
  %2958 = vmatprep.subr.mxu0 0.0
  %2959 = vmatpush1.msra.mxu0 0.0
  %2960 = vmatprep.subr.mxu0 0.0
  %2961 = vmatpush1.msra.mxu0 0.0
  %2962 = vmatprep.subr.mxu0 0.0
  %2963 = vmatpush1.msra.mxu0 0.0
  %2964 = vmatprep.subr.mxu0 0.0
  %2965 = vmatpush1.msra.mxu0 0.0
  %2966 = vmatprep.subr.mxu0 0.0
  %2967 = vmatpush1.msra.mxu0 0.0
  %2968 = vmatprep.subr.mxu0 0.0
  %2969 = vmatpush1.msra.mxu0 0.0
  %2970 = vmatprep.subr.mxu0 0.0
  %2971 = vmatpush1.msra.mxu0 0.0
  %2972 = vmatprep.subr.mxu0 0.0
  %2973 = vmatpush1.msra.mxu0 0.0
  %2974 = vmatprep.subr.mxu0 0.0
  %2975 = vmatpush1.msra.mxu0 0.0
  %2976 = vmatprep.subr.mxu0 0.0
  %2977 = vmatpush1.msra.mxu0 0.0
  %2978 = vmatprep.subr.mxu0 0.0
  %2979 = vmatpush1.msra.mxu0 0.0
  %2980 = vmatprep.subr.mxu0 0.0
  %2981 = vmatpush1.msra.mxu0 0.0
  %2982 = vmatprep.subr.mxu0 0.0
  %2983 = vmatpush1.msra.mxu0 0.0
  %2984 = vmatprep.subr.mxu0 0.0
  %2985 = vmatpush1.msra.mxu0 0.0
  %2986 = vmatprep.subr.mxu0 0.0
  %2987 = vmatpush1.msra.mxu0 %v612
  %2988 = vmatprep.subr.mxu0 0.0
  %2989 = vmatpush2.msra.mxu0 0.0
  %2990 = vmatprep.subr.mxu0 0.0
  %2991 = vmatpush2.msra.mxu0 0.0
  %2992 = vmatprep.subr.mxu0 0.0
  %2993 = vmatpush2.msra.mxu0 0.0
  %2994 = vmatprep.subr.mxu0 0.0
  %2995 = vmatpush2.msra.mxu0 0.0
  %2996 = vmatprep.subr.mxu0 0.0
  %2997 = vmatpush2.msra.mxu0 0.0
  %2998 = vmatprep.subr.mxu0 0.0
  %2999 = vmatpush2.msra.mxu0 0.0
  %3000 = vmatprep.subr.mxu0 0.0
  %3001 = vmatpush2.msra.mxu0 0.0
  %3002 = vmatprep.subr.mxu0 0.0
  %3003 = vmatpush2.msra.mxu0 0.0
  %3004 = vmatprep.subr.mxu0 0.0
  %3005 = vmatpush2.msra.mxu0 0.0
  %3006 = vmatprep.subr.mxu0 0.0
  %3007 = vmatpush2.msra.mxu0 0.0
  %3008 = vmatprep.subr.mxu0 0.0
  %3009 = vmatpush2.msra.mxu0 0.0
  %3010 = vmatprep.subr.mxu0 0.0
  %3011 = vmatpush2.msra.mxu0 0.0
  %3012 = vmatprep.subr.mxu0 0.0
  %3013 = vmatpush2.msra.mxu0 0.0
  %3014 = vmatprep.subr.mxu0 0.0
  %3015 = vmatpush2.msra.mxu0 0.0
  %3016 = vmatprep.subr.mxu0 0.0
  %3017 = vmatpush2.msra.mxu0 0.0
  %3018 = vmatprep.subr.mxu0 0.0
  %3019 = vmatpush2.msra.mxu0 0.0
  %3020 = vmatprep.mubr.f32.mxu0 0.0
  %3021 = vmatmul.mubr.f32.gmra.mxu0 %v2954
  %v3022 = vpop.f32.mrf.mxu0
  %v3023 = vadd.f32 %v1246, %v3022
  %v3024 = vpop.f32.mrf.mxu0
  %3025 = vdwg.mxu0
  %3027 = vrot.lane.b32.xlu0 %v3023, 24
  %v3028 = vpop.permute.xlu0 %3027
  %v3030 = vadd.f32 %v572, %v3028
  %v3031 = vxor.u32 %v3030, 2147483648
  %v3032 = vmul.f32 %v3031, 1.442695
  %v3033 = vpow.pop %v3032
  %v3034 = vadd.f32 %v3033, 1.0
  %v3035 = vrcp.pop %v3034
  %v3036 = vmul.f32 1.0, %v3035
  %3037 = vrot.lane.b32.xlu0 %v3023, 8
  %v3038 = vpop.permute.xlu0 %3037
  %v3040 = vmul.f32 %v3036, %v3038
  %3042 = vrot.lane.b32.xlu0 %v3040, 16
  %v3043 = vpop.permute.xlu0 %3042
  %v3045 = vadd.f32 %v572, %v3043
  %v3046 = vtanh.pop %v3045
  %v3047 = vsub.f32 1.0, %v3036
  %3049 = vrot.lane.b32.xlu0 %v3046, 120
  %v3050 = vpop.permute.xlu0 %3049
  %v3052 = vmul.f32 %v3047, %v3050
  %v3053 = vmul.f32 %v3036, %v2946
  %v3054 = vadd.f32 %v3052, %v3053
  %3056 = vrot.lane.b32.xlu0 %v3054, 104
  %v3057 = vpop.permute.xlu0 %3056
  %3059 = vst.msk [vmem:[#allocation2 + $0x20] sm:$0xff] %vm1351, %v3057
  %3060 = vrot.lane.b32.xlu0 %v3054, 96
  %v3061 = vpop.permute.xlu0 %3060
  %v3062 = vsel %vm622, %v3061, 0
  %3064 = vmatprep.subr.mxu0 0.0
  %3065 = vmatpush1.msra.mxu0 0.0
  %3066 = vmatprep.subr.mxu0 0.0
  %3067 = vmatpush1.msra.mxu0 0.0
  %3068 = vmatprep.subr.mxu0 0.0
  %3069 = vmatpush1.msra.mxu0 0.0
  %3070 = vmatprep.subr.mxu0 0.0
  %3071 = vmatpush1.msra.mxu0 0.0
  %3072 = vmatprep.subr.mxu0 0.0
  %3073 = vmatpush1.msra.mxu0 0.0
  %3074 = vmatprep.subr.mxu0 0.0
  %3075 = vmatpush1.msra.mxu0 0.0
  %3076 = vmatprep.subr.mxu0 0.0
  %3077 = vmatpush1.msra.mxu0 0.0
  %3078 = vmatprep.subr.mxu0 0.0
  %3079 = vmatpush1.msra.mxu0 0.0
  %3080 = vmatprep.subr.mxu0 0.0
  %3081 = vmatpush1.msra.mxu0 0.0
  %3082 = vmatprep.subr.mxu0 0.0
  %3083 = vmatpush1.msra.mxu0 0.0
  %3084 = vmatprep.subr.mxu0 0.0
  %3085 = vmatpush1.msra.mxu0 0.0
  %3086 = vmatprep.subr.mxu0 0.0
  %3087 = vmatpush1.msra.mxu0 0.0
  %3088 = vmatprep.subr.mxu0 0.0
  %3089 = vmatpush1.msra.mxu0 0.0
  %3090 = vmatprep.subr.mxu0 0.0
  %3091 = vmatpush1.msra.mxu0 0.0
  %3092 = vmatprep.subr.mxu0 0.0
  %3093 = vmatpush1.msra.mxu0 0.0
  %3094 = vmatprep.subr.mxu0 0.0
  %3095 = vmatpush1.msra.mxu0 %v612
  %3096 = vmatprep.subr.mxu0 0.0
  %3097 = vmatpush2.msra.mxu0 0.0
  %3098 = vmatprep.subr.mxu0 0.0
  %3099 = vmatpush2.msra.mxu0 0.0
  %3100 = vmatprep.subr.mxu0 0.0
  %3101 = vmatpush2.msra.mxu0 0.0
  %3102 = vmatprep.subr.mxu0 0.0
  %3103 = vmatpush2.msra.mxu0 0.0
  %3104 = vmatprep.subr.mxu0 0.0
  %3105 = vmatpush2.msra.mxu0 0.0
  %3106 = vmatprep.subr.mxu0 0.0
  %3107 = vmatpush2.msra.mxu0 0.0
  %3108 = vmatprep.subr.mxu0 0.0
  %3109 = vmatpush2.msra.mxu0 0.0
  %3110 = vmatprep.subr.mxu0 0.0
  %3111 = vmatpush2.msra.mxu0 0.0
  %3112 = vmatprep.subr.mxu0 0.0
  %3113 = vmatpush2.msra.mxu0 0.0
  %3114 = vmatprep.subr.mxu0 0.0
  %3115 = vmatpush2.msra.mxu0 0.0
  %3116 = vmatprep.subr.mxu0 0.0
  %3117 = vmatpush2.msra.mxu0 0.0
  %3118 = vmatprep.subr.mxu0 0.0
  %3119 = vmatpush2.msra.mxu0 0.0
  %3120 = vmatprep.subr.mxu0 0.0
  %3121 = vmatpush2.msra.mxu0 0.0
  %3122 = vmatprep.subr.mxu0 0.0
  %3123 = vmatpush2.msra.mxu0 0.0
  %3124 = vmatprep.subr.mxu0 0.0
  %3125 = vmatpush2.msra.mxu0 0.0
  %3126 = vmatprep.subr.mxu0 0.0
  %3127 = vmatpush2.msra.mxu0 0.0
  %3128 = vmatprep.mubr.f32.mxu0 0.0
  %3129 = vmatmul.mubr.f32.gmra.mxu0 %v3062
  %v3130 = vpop.f32.mrf.mxu0
  %v3131 = vadd.f32 %v1246, %v3130
  %v3132 = vpop.f32.mrf.mxu0
  %3133 = vdwg.mxu0
  %3135 = vrot.lane.b32.xlu0 %v3131, 24
  %v3136 = vpop.permute.xlu0 %3135
  %v3138 = vadd.f32 %v567, %v3136
  %v3139 = vxor.u32 %v3138, 2147483648
  %v3140 = vmul.f32 %v3139, 1.442695
  %v3141 = vpow.pop %v3140
  %v3142 = vadd.f32 %v3141, 1.0
  %v3143 = vrcp.pop %v3142
  %v3144 = vmul.f32 1.0, %v3143
  %3145 = vrot.lane.b32.xlu0 %v3131, 8
  %v3146 = vpop.permute.xlu0 %3145
  %v3148 = vmul.f32 %v3144, %v3146
  %3150 = vrot.lane.b32.xlu0 %v3148, 16
  %v3151 = vpop.permute.xlu0 %3150
  %v3153 = vadd.f32 %v567, %v3151
  %v3154 = vtanh.pop %v3153
  %v3155 = vsub.f32 1.0, %v3144
  %3157 = vrot.lane.b32.xlu0 %v3154, 120
  %v3158 = vpop.permute.xlu0 %3157
  %v3160 = vmul.f32 %v3155, %v3158
  %v3161 = vmul.f32 %v3144, %v3054
  %v3162 = vadd.f32 %v3160, %v3161
  %3164 = vrot.lane.b32.xlu0 %v3162, 104
  %v3165 = vpop.permute.xlu0 %3164
  %3167 = vst.msk [vmem:[#allocation2 + $0x18] sm:$0xff] %vm1351, %v3165
  %3168 = vrot.lane.b32.xlu0 %v3162, 96
  %v3169 = vpop.permute.xlu0 %3168
  %v3170 = vsel %vm622, %v3169, 0
  %3172 = vmatprep.subr.mxu0 0.0
  %3173 = vmatpush1.msra.mxu0 0.0
  %3174 = vmatprep.subr.mxu0 0.0
  %3175 = vmatpush1.msra.mxu0 0.0
  %3176 = vmatprep.subr.mxu0 0.0
  %3177 = vmatpush1.msra.mxu0 0.0
  %3178 = vmatprep.subr.mxu0 0.0
  %3179 = vmatpush1.msra.mxu0 0.0
  %3180 = vmatprep.subr.mxu0 0.0
  %3181 = vmatpush1.msra.mxu0 0.0
  %3182 = vmatprep.subr.mxu0 0.0
  %3183 = vmatpush1.msra.mxu0 0.0
  %3184 = vmatprep.subr.mxu0 0.0
  %3185 = vmatpush1.msra.mxu0 0.0
  %3186 = vmatprep.subr.mxu0 0.0
  %3187 = vmatpush1.msra.mxu0 0.0
  %3188 = vmatprep.subr.mxu0 0.0
  %3189 = vmatpush1.msra.mxu0 0.0
  %3190 = vmatprep.subr.mxu0 0.0
  %3191 = vmatpush1.msra.mxu0 0.0
  %3192 = vmatprep.subr.mxu0 0.0
  %3193 = vmatpush1.msra.mxu0 0.0
  %3194 = vmatprep.subr.mxu0 0.0
  %3195 = vmatpush1.msra.mxu0 0.0
  %3196 = vmatprep.subr.mxu0 0.0
  %3197 = vmatpush1.msra.mxu0 0.0
  %3198 = vmatprep.subr.mxu0 0.0
  %3199 = vmatpush1.msra.mxu0 0.0
  %3200 = vmatprep.subr.mxu0 0.0
  %3201 = vmatpush1.msra.mxu0 0.0
  %3202 = vmatprep.subr.mxu0 0.0
  %3203 = vmatpush1.msra.mxu0 %v612
  %3204 = vmatprep.subr.mxu0 0.0
  %3205 = vmatpush2.msra.mxu0 0.0
  %3206 = vmatprep.subr.mxu0 0.0
  %3207 = vmatpush2.msra.mxu0 0.0
  %3208 = vmatprep.subr.mxu0 0.0
  %3209 = vmatpush2.msra.mxu0 0.0
  %3210 = vmatprep.subr.mxu0 0.0
  %3211 = vmatpush2.msra.mxu0 0.0
  %3212 = vmatprep.subr.mxu0 0.0
  %3213 = vmatpush2.msra.mxu0 0.0
  %3214 = vmatprep.subr.mxu0 0.0
  %3215 = vmatpush2.msra.mxu0 0.0
  %3216 = vmatprep.subr.mxu0 0.0
  %3217 = vmatpush2.msra.mxu0 0.0
  %3218 = vmatprep.subr.mxu0 0.0
  %3219 = vmatpush2.msra.mxu0 0.0
  %3220 = vmatprep.subr.mxu0 0.0
  %3221 = vmatpush2.msra.mxu0 0.0
  %3222 = vmatprep.subr.mxu0 0.0
  %3223 = vmatpush2.msra.mxu0 0.0
  %3224 = vmatprep.subr.mxu0 0.0
  %3225 = vmatpush2.msra.mxu0 0.0
  %3226 = vmatprep.subr.mxu0 0.0
  %3227 = vmatpush2.msra.mxu0 0.0
  %3228 = vmatprep.subr.mxu0 0.0
  %3229 = vmatpush2.msra.mxu0 0.0
  %3230 = vmatprep.subr.mxu0 0.0
  %3231 = vmatpush2.msra.mxu0 0.0
  %3232 = vmatprep.subr.mxu0 0.0
  %3233 = vmatpush2.msra.mxu0 0.0
  %3234 = vmatprep.subr.mxu0 0.0
  %3235 = vmatpush2.msra.mxu0 0.0
  %3236 = vmatprep.mubr.f32.mxu0 0.0
  %3237 = vmatmul.mubr.f32.gmra.mxu0 %v3170
  %v3238 = vpop.f32.mrf.mxu0
  %v3239 = vadd.f32 %v1246, %v3238
  %v3240 = vpop.f32.mrf.mxu0
  %3241 = vdwg.mxu0
  %3243 = vrot.lane.b32.xlu0 %v3239, 24
  %v3244 = vpop.permute.xlu0 %3243
  %v3246 = vadd.f32 %v562, %v3244
  %v3247 = vxor.u32 %v3246, 2147483648
  %v3248 = vmul.f32 %v3247, 1.442695
  %v3249 = vpow.pop %v3248
  %v3250 = vadd.f32 %v3249, 1.0
  %v3251 = vrcp.pop %v3250
  %v3252 = vmul.f32 1.0, %v3251
  %3253 = vrot.lane.b32.xlu0 %v3239, 8
  %v3254 = vpop.permute.xlu0 %3253
  %v3256 = vmul.f32 %v3252, %v3254
  %3258 = vrot.lane.b32.xlu0 %v3256, 16
  %v3259 = vpop.permute.xlu0 %3258
  %v3261 = vadd.f32 %v562, %v3259
  %v3262 = vtanh.pop %v3261
  %v3263 = vsub.f32 1.0, %v3252
  %3265 = vrot.lane.b32.xlu0 %v3262, 120
  %v3266 = vpop.permute.xlu0 %3265
  %v3268 = vmul.f32 %v3263, %v3266
  %v3269 = vmul.f32 %v3252, %v3162
  %v3270 = vadd.f32 %v3268, %v3269
  %3272 = vrot.lane.b32.xlu0 %v3270, 104
  %v3273 = vpop.permute.xlu0 %3272
  %3275 = vst.msk [vmem:[#allocation2 + $0x10] sm:$0xff] %vm1351, %v3273
  %3276 = vrot.lane.b32.xlu0 %v3270, 96
  %v3277 = vpop.permute.xlu0 %3276
  %v3278 = vsel %vm622, %v3277, 0
  %3280 = vmatprep.subr.mxu0 0.0
  %3281 = vmatpush1.msra.mxu0 0.0
  %3282 = vmatprep.subr.mxu0 0.0
  %3283 = vmatpush1.msra.mxu0 0.0
  %3284 = vmatprep.subr.mxu0 0.0
  %3285 = vmatpush1.msra.mxu0 0.0
  %3286 = vmatprep.subr.mxu0 0.0
  %3287 = vmatpush1.msra.mxu0 0.0
  %3288 = vmatprep.subr.mxu0 0.0
  %3289 = vmatpush1.msra.mxu0 0.0
  %3290 = vmatprep.subr.mxu0 0.0
  %3291 = vmatpush1.msra.mxu0 0.0
  %3292 = vmatprep.subr.mxu0 0.0
  %3293 = vmatpush1.msra.mxu0 0.0
  %3294 = vmatprep.subr.mxu0 0.0
  %3295 = vmatpush1.msra.mxu0 0.0
  %3296 = vmatprep.subr.mxu0 0.0
  %3297 = vmatpush1.msra.mxu0 0.0
  %3298 = vmatprep.subr.mxu0 0.0
  %3299 = vmatpush1.msra.mxu0 0.0
  %3300 = vmatprep.subr.mxu0 0.0
  %3301 = vmatpush1.msra.mxu0 0.0
  %3302 = vmatprep.subr.mxu0 0.0
  %3303 = vmatpush1.msra.mxu0 0.0
  %3304 = vmatprep.subr.mxu0 0.0
  %3305 = vmatpush1.msra.mxu0 0.0
  %3306 = vmatprep.subr.mxu0 0.0
  %3307 = vmatpush1.msra.mxu0 0.0
  %3308 = vmatprep.subr.mxu0 0.0
  %3309 = vmatpush1.msra.mxu0 0.0
  %3310 = vmatprep.subr.mxu0 0.0
  %3311 = vmatpush1.msra.mxu0 %v612
  %3312 = vmatprep.subr.mxu0 0.0
  %3313 = vmatpush2.msra.mxu0 0.0
  %3314 = vmatprep.subr.mxu0 0.0
  %3315 = vmatpush2.msra.mxu0 0.0
  %3316 = vmatprep.subr.mxu0 0.0
  %3317 = vmatpush2.msra.mxu0 0.0
  %3318 = vmatprep.subr.mxu0 0.0
  %3319 = vmatpush2.msra.mxu0 0.0
  %3320 = vmatprep.subr.mxu0 0.0
  %3321 = vmatpush2.msra.mxu0 0.0
  %3322 = vmatprep.subr.mxu0 0.0
  %3323 = vmatpush2.msra.mxu0 0.0
  %3324 = vmatprep.subr.mxu0 0.0
  %3325 = vmatpush2.msra.mxu0 0.0
  %3326 = vmatprep.subr.mxu0 0.0
  %3327 = vmatpush2.msra.mxu0 0.0
  %3328 = vmatprep.subr.mxu0 0.0
  %3329 = vmatpush2.msra.mxu0 0.0
  %3330 = vmatprep.subr.mxu0 0.0
  %3331 = vmatpush2.msra.mxu0 0.0
  %3332 = vmatprep.subr.mxu0 0.0
  %3333 = vmatpush2.msra.mxu0 0.0
  %3334 = vmatprep.subr.mxu0 0.0
  %3335 = vmatpush2.msra.mxu0 0.0
  %3336 = vmatprep.subr.mxu0 0.0
  %3337 = vmatpush2.msra.mxu0 0.0
  %3338 = vmatprep.subr.mxu0 0.0
  %3339 = vmatpush2.msra.mxu0 0.0
  %3340 = vmatprep.subr.mxu0 0.0
  %3341 = vmatpush2.msra.mxu0 0.0
  %3342 = vmatprep.subr.mxu0 0.0
  %3343 = vmatpush2.msra.mxu0 0.0
  %3344 = vmatprep.mubr.f32.mxu0 0.0
  %3345 = vmatmul.mubr.f32.gmra.mxu0 %v3278
  %v3346 = vpop.f32.mrf.mxu0
  %v3347 = vadd.f32 %v1246, %v3346
  %v3348 = vpop.f32.mrf.mxu0
  %3349 = vdwg.mxu0
  %3351 = vrot.lane.b32.xlu0 %v3347, 24
  %v3352 = vpop.permute.xlu0 %3351
  %v3354 = vadd.f32 %v557, %v3352
  %v3355 = vxor.u32 %v3354, 2147483648
  %v3356 = vmul.f32 %v3355, 1.442695
  %v3357 = vpow.pop %v3356
  %v3358 = vadd.f32 %v3357, 1.0
  %v3359 = vrcp.pop %v3358
  %v3360 = vmul.f32 1.0, %v3359
  %3361 = vrot.lane.b32.xlu0 %v3347, 8
  %v3362 = vpop.permute.xlu0 %3361
  %v3364 = vmul.f32 %v3360, %v3362
  %3366 = vrot.lane.b32.xlu0 %v3364, 16
  %v3367 = vpop.permute.xlu0 %3366
  %v3369 = vadd.f32 %v557, %v3367
  %v3370 = vtanh.pop %v3369
  %v3371 = vsub.f32 1.0, %v3360
  %3373 = vrot.lane.b32.xlu0 %v3370, 120
  %v3374 = vpop.permute.xlu0 %3373
  %v3376 = vmul.f32 %v3371, %v3374
  %v3377 = vmul.f32 %v3360, %v3270
  %v3378 = vadd.f32 %v3376, %v3377
  %3380 = vrot.lane.b32.xlu0 %v3378, 104
  %v3381 = vpop.permute.xlu0 %3380
  %3383 = vst.msk [vmem:[#allocation2 + $0x8] sm:$0xff] %vm1351, %v3381
  %3384 = vrot.lane.b32.xlu0 %v3378, 96
  %v3385 = vpop.permute.xlu0 %3384
  %v3386 = vsel %vm622, %v3385, 0
  %3388 = vmatprep.subr.mxu0 0.0
  %3389 = vmatpush1.msra.mxu0 0.0
  %3390 = vmatprep.subr.mxu0 0.0
  %3391 = vmatpush1.msra.mxu0 0.0
  %3392 = vmatprep.subr.mxu0 0.0
  %3393 = vmatpush1.msra.mxu0 0.0
  %3394 = vmatprep.subr.mxu0 0.0
  %3395 = vmatpush1.msra.mxu0 0.0
  %3396 = vmatprep.subr.mxu0 0.0
  %3397 = vmatpush1.msra.mxu0 0.0
  %3398 = vmatprep.subr.mxu0 0.0
  %3399 = vmatpush1.msra.mxu0 0.0
  %3400 = vmatprep.subr.mxu0 0.0
  %3401 = vmatpush1.msra.mxu0 0.0
  %3402 = vmatprep.subr.mxu0 0.0
  %3403 = vmatpush1.msra.mxu0 0.0
  %3404 = vmatprep.subr.mxu0 0.0
  %3405 = vmatpush1.msra.mxu0 0.0
  %3406 = vmatprep.subr.mxu0 0.0
  %3407 = vmatpush1.msra.mxu0 0.0
  %3408 = vmatprep.subr.mxu0 0.0
  %3409 = vmatpush1.msra.mxu0 0.0
  %3410 = vmatprep.subr.mxu0 0.0
  %3411 = vmatpush1.msra.mxu0 0.0
  %3412 = vmatprep.subr.mxu0 0.0
  %3413 = vmatpush1.msra.mxu0 0.0
  %3414 = vmatprep.subr.mxu0 0.0
  %3415 = vmatpush1.msra.mxu0 0.0
  %3416 = vmatprep.subr.mxu0 0.0
  %3417 = vmatpush1.msra.mxu0 0.0
  %3418 = vmatprep.subr.mxu0 0.0
  %3419 = vmatpush1.msra.mxu0 %v612
  %3420 = vmatprep.subr.mxu0 0.0
  %3421 = vmatpush2.msra.mxu0 0.0
  %3422 = vmatprep.subr.mxu0 0.0
  %3423 = vmatpush2.msra.mxu0 0.0
  %3424 = vmatprep.subr.mxu0 0.0
  %3425 = vmatpush2.msra.mxu0 0.0
  %3426 = vmatprep.subr.mxu0 0.0
  %3427 = vmatpush2.msra.mxu0 0.0
  %3428 = vmatprep.subr.mxu0 0.0
  %3429 = vmatpush2.msra.mxu0 0.0
  %3430 = vmatprep.subr.mxu0 0.0
  %3431 = vmatpush2.msra.mxu0 0.0
  %3432 = vmatprep.subr.mxu0 0.0
  %3433 = vmatpush2.msra.mxu0 0.0
  %3434 = vmatprep.subr.mxu0 0.0
  %3435 = vmatpush2.msra.mxu0 0.0
  %3436 = vmatprep.subr.mxu0 0.0
  %3437 = vmatpush2.msra.mxu0 0.0
  %3438 = vmatprep.subr.mxu0 0.0
  %3439 = vmatpush2.msra.mxu0 0.0
  %3440 = vmatprep.subr.mxu0 0.0
  %3441 = vmatpush2.msra.mxu0 0.0
  %3442 = vmatprep.subr.mxu0 0.0
  %3443 = vmatpush2.msra.mxu0 0.0
  %3444 = vmatprep.subr.mxu0 0.0
  %3445 = vmatpush2.msra.mxu0 0.0
  %3446 = vmatprep.subr.mxu0 0.0
  %3447 = vmatpush2.msra.mxu0 0.0
  %3448 = vmatprep.subr.mxu0 0.0
  %3449 = vmatpush2.msra.mxu0 0.0
  %3450 = vmatprep.subr.mxu0 0.0
  %3451 = vmatpush2.msra.mxu0 0.0
  %3452 = vmatprep.mubr.f32.mxu0 0.0
  %3453 = vmatmul.mubr.f32.gmra.mxu0 %v3386
  %v3454 = vpop.f32.mrf.mxu0
  %v3455 = vadd.f32 %v1246, %v3454
  %v3456 = vpop.f32.mrf.mxu0
  %3457 = vdwg.mxu0
  %3459 = vrot.lane.b32.xlu0 %v3455, 24
  %v3460 = vpop.permute.xlu0 %3459
  %v3462 = vadd.f32 %v552, %v3460
  %v3463 = vxor.u32 %v3462, 2147483648
  %v3464 = vmul.f32 %v3463, 1.442695
  %v3465 = vpow.pop %v3464
  %v3466 = vadd.f32 %v3465, 1.0
  %v3467 = vrcp.pop %v3466
  %v3468 = vmul.f32 1.0, %v3467
  %3469 = vrot.lane.b32.xlu0 %v3455, 8
  %v3470 = vpop.permute.xlu0 %3469
  %v3472 = vmul.f32 %v3468, %v3470
  %3474 = vrot.lane.b32.xlu0 %v3472, 16
  %v3475 = vpop.permute.xlu0 %3474
  %v3477 = vadd.f32 %v552, %v3475
  %v3478 = vtanh.pop %v3477
  %v3479 = vsub.f32 1.0, %v3468
  %3481 = vrot.lane.b32.xlu0 %v3478, 120
  %v3482 = vpop.permute.xlu0 %3481
  %v3484 = vmul.f32 %v3479, %v3482
  %v3485 = vmul.f32 %v3468, %v3378
  %v3486 = vadd.f32 %v3484, %v3485
  %3488 = vrot.lane.b32.xlu0 %v3486, 104
  %v3489 = vpop.permute.xlu0 %3488
  %3491 = vst.msk [vmem:[#allocation2] sm:$0xff] %vm1351, %v3489
  %v3492 = vld [vmem:[#allocation2] sm:$0xff]
  %v3493 = vld [vmem:[#allocation2 + $0x8] sm:$0xff]
  %v3494 = vld [vmem:[#allocation2 + $0x10] sm:$0xff]
  %v3495 = vld [vmem:[#allocation2 + $0x18] sm:$0xff]
  %v3496 = vld [vmem:[#allocation2 + $0x20] sm:$0xff]
  %v3497 = vld [vmem:[#allocation2 + $0x28] sm:$0xff]
  %v3498 = vld [vmem:[%s10] sm:$0xff]
  %v3499 = vld [vmem:[%s10 + $0x8] sm:$0xff]
  %v3500 = vld [vmem:[%s11] sm:$0x1]
  %v3501 = vld [vmem:[%s12] sm:$0xff]
  %v3502 = vld [vmem:[%s12 + $0x8] sm:$0xff]
  %v3504 = vlaneseq
  %v3505 = vshrl.u32 %v3504, 7
  %v3506 = vsub.s32 0, %v3505
  %v3507 = vrot.slane %v3500, %v3506
  %v3510 = vsel %vm1910, %v3492, 0
  %v3513 = vsel %vm1910, %v3493, 0
  %v3516 = vsel %vm1910, %v3494, 0
  %v3519 = vsel %vm1910, %v3495, 0
  %v3522 = vsel %vm1910, %v3496, 0
  %v3525 = vsel %vm1910, %v3497, 0
  %3527 = vmatprep.subr.mxu0 0.0
  %3528 = vmatpush1.msra.mxu0 0.0
  %3529 = vmatprep.subr.mxu0 0.0
  %3530 = vmatpush1.msra.mxu0 0.0
  %3531 = vmatprep.subr.mxu0 0.0
  %3532 = vmatpush1.msra.mxu0 0.0
  %3533 = vmatprep.subr.mxu0 0.0
  %3534 = vmatpush1.msra.mxu0 0.0
  %3535 = vmatprep.subr.mxu0 0.0
  %3536 = vmatpush1.msra.mxu0 0.0
  %3537 = vmatprep.subr.mxu0 0.0
  %3538 = vmatpush1.msra.mxu0 0.0
  %3539 = vmatprep.subr.mxu0 0.0
  %3540 = vmatpush1.msra.mxu0 0.0
  %3541 = vmatprep.subr.mxu0 0.0
  %3542 = vmatpush1.msra.mxu0 0.0
  %3543 = vmatprep.subr.mxu0 0.0
  %3544 = vmatpush1.msra.mxu0 0.0
  %3545 = vmatprep.subr.mxu0 0.0
  %3546 = vmatpush1.msra.mxu0 0.0
  %3547 = vmatprep.subr.mxu0 0.0
  %3548 = vmatpush1.msra.mxu0 0.0
  %3549 = vmatprep.subr.mxu0 0.0
  %3550 = vmatpush1.msra.mxu0 0.0
  %3551 = vmatprep.subr.mxu0 0.0
  %3552 = vmatpush1.msra.mxu0 0.0
  %3553 = vmatprep.subr.mxu0 0.0
  %3554 = vmatpush1.msra.mxu0 0.0
  %3555 = vmatprep.subr.mxu0 0.0
  %3556 = vmatpush1.msra.mxu0 %v3499
  %3557 = vmatprep.subr.mxu0 0.0
  %3558 = vmatpush1.msra.mxu0 %v3498
  %3559 = vmatprep.subr.mxu0 0.0
  %3560 = vmatpush2.msra.mxu0 0.0
  %3561 = vmatprep.subr.mxu0 0.0
  %3562 = vmatpush2.msra.mxu0 0.0
  %3563 = vmatprep.subr.mxu0 0.0
  %3564 = vmatpush2.msra.mxu0 0.0
  %3565 = vmatprep.subr.mxu0 0.0
  %3566 = vmatpush2.msra.mxu0 0.0
  %3567 = vmatprep.subr.mxu0 0.0
  %3568 = vmatpush2.msra.mxu0 0.0
  %3569 = vmatprep.subr.mxu0 0.0
  %3570 = vmatpush2.msra.mxu0 0.0
  %3571 = vmatprep.subr.mxu0 0.0
  %3572 = vmatpush2.msra.mxu0 0.0
  %3573 = vmatprep.subr.mxu0 0.0
  %3574 = vmatpush2.msra.mxu0 0.0
  %3575 = vmatprep.subr.mxu0 0.0
  %3576 = vmatpush2.msra.mxu0 0.0
  %3577 = vmatprep.subr.mxu0 0.0
  %3578 = vmatpush2.msra.mxu0 0.0
  %3579 = vmatprep.subr.mxu0 0.0
  %3580 = vmatpush2.msra.mxu0 0.0
  %3581 = vmatprep.subr.mxu0 0.0
  %3582 = vmatpush2.msra.mxu0 0.0
  %3583 = vmatprep.subr.mxu0 0.0
  %3584 = vmatpush2.msra.mxu0 0.0
  %3585 = vmatprep.subr.mxu0 0.0
  %3586 = vmatpush2.msra.mxu0 0.0
  %3587 = vmatprep.subr.mxu0 0.0
  %3588 = vmatpush2.msra.mxu0 0.0
  %3589 = vmatprep.subr.mxu0 0.0
  %3590 = vmatpush2.msra.mxu0 0.0
  %3591 = vmatprep.mubr.f32.mxu0 0.0
  %3592 = vmatmul.mubr.f32.gmra.mxu0 %v3510
  %v3593 = vpop.f32.mrf.mxu0
  %v3594 = vadd.f32 %v3507, %v3593
  %v3595 = vpop.f32.mrf.mxu0
  %3596 = vmatprep.mubr.f32.mxu0 0.0
  %3597 = vmatmul.mubr.f32.gmra.mxu0 %v3513
  %v3598 = vpop.f32.mrf.mxu0
  %v3599 = vadd.f32 %v3507, %v3598
  %v3600 = vpop.f32.mrf.mxu0
  %3601 = vmatprep.mubr.f32.mxu0 0.0
  %3602 = vmatmul.mubr.f32.gmra.mxu0 %v3516
  %v3603 = vpop.f32.mrf.mxu0
  %v3604 = vadd.f32 %v3507, %v3603
  %v3605 = vpop.f32.mrf.mxu0
  %3606 = vmatprep.mubr.f32.mxu0 0.0
  %3607 = vmatmul.mubr.f32.gmra.mxu0 %v3519
  %v3608 = vpop.f32.mrf.mxu0
  %v3609 = vadd.f32 %v3507, %v3608
  %v3610 = vpop.f32.mrf.mxu0
  %3611 = vmatprep.mubr.f32.mxu0 0.0
  %3612 = vmatmul.mubr.f32.gmra.mxu0 %v3522
  %v3613 = vpop.f32.mrf.mxu0
  %v3614 = vadd.f32 %v3507, %v3613
  %v3615 = vpop.f32.mrf.mxu0
  %3616 = vmatprep.mubr.f32.mxu0 0.0
  %3617 = vmatmul.mubr.f32.gmra.mxu0 %v3525
  %v3618 = vpop.f32.mrf.mxu0
  %v3619 = vadd.f32 %v3507, %v3618
  %v3620 = vpop.f32.mrf.mxu0
  %3621 = vdwg.mxu0
  %v3622 = vtanh.pop %v3594
  %v3623 = vtanh.pop %v3599
  %v3624 = vtanh.pop %v3604
  %v3625 = vtanh.pop %v3609
  %v3626 = vtanh.pop %v3614
  %v3627 = vtanh.pop %v3619
  %v3629 = vsel %vm1910, %v3622, 0
  %v3632 = vsel %vm1910, %v3623, 0
  %v3635 = vsel %vm1910, %v3624, 0
  %v3638 = vsel %vm1910, %v3625, 0
  %v3641 = vsel %vm1910, %v3626, 0
  %v3644 = vsel %vm1910, %v3627, 0
  %3646 = vmatprep.subr.mxu0 0.0
  %3647 = vmatpush1.msra.mxu0 0.0
  %3648 = vmatprep.subr.mxu0 0.0
  %3649 = vmatpush1.msra.mxu0 0.0
  %3650 = vmatprep.subr.mxu0 0.0
  %3651 = vmatpush1.msra.mxu0 0.0
  %3652 = vmatprep.subr.mxu0 0.0
  %3653 = vmatpush1.msra.mxu0 0.0
  %3654 = vmatprep.subr.mxu0 0.0
  %3655 = vmatpush1.msra.mxu0 0.0
  %3656 = vmatprep.subr.mxu0 0.0
  %3657 = vmatpush1.msra.mxu0 0.0
  %3658 = vmatprep.subr.mxu0 0.0
  %3659 = vmatpush1.msra.mxu0 0.0
  %3660 = vmatprep.subr.mxu0 0.0
  %3661 = vmatpush1.msra.mxu0 0.0
  %3662 = vmatprep.subr.mxu0 0.0
  %3663 = vmatpush1.msra.mxu0 0.0
  %3664 = vmatprep.subr.mxu0 0.0
  %3665 = vmatpush1.msra.mxu0 0.0
  %3666 = vmatprep.subr.mxu0 0.0
  %3667 = vmatpush1.msra.mxu0 0.0
  %3668 = vmatprep.subr.mxu0 0.0
  %3669 = vmatpush1.msra.mxu0 0.0
  %3670 = vmatprep.subr.mxu0 0.0
  %3671 = vmatpush1.msra.mxu0 0.0
  %3672 = vmatprep.subr.mxu0 0.0
  %3673 = vmatpush1.msra.mxu0 0.0
  %3674 = vmatprep.subr.mxu0 0.0
  %3675 = vmatpush1.msra.mxu0 %v3502
  %3676 = vmatprep.subr.mxu0 0.0
  %3677 = vmatpush1.msra.mxu0 %v3501
  %3678 = vmatprep.subr.mxu0 0.0
  %3679 = vmatpush2.msra.mxu0 0.0
  %3680 = vmatprep.subr.mxu0 0.0
  %3681 = vmatpush2.msra.mxu0 0.0
  %3682 = vmatprep.subr.mxu0 0.0
  %3683 = vmatpush2.msra.mxu0 0.0
  %3684 = vmatprep.subr.mxu0 0.0
  %3685 = vmatpush2.msra.mxu0 0.0
  %3686 = vmatprep.subr.mxu0 0.0
  %3687 = vmatpush2.msra.mxu0 0.0
  %3688 = vmatprep.subr.mxu0 0.0
  %3689 = vmatpush2.msra.mxu0 0.0
  %3690 = vmatprep.subr.mxu0 0.0
  %3691 = vmatpush2.msra.mxu0 0.0
  %3692 = vmatprep.subr.mxu0 0.0
  %3693 = vmatpush2.msra.mxu0 0.0
  %3694 = vmatprep.subr.mxu0 0.0
  %3695 = vmatpush2.msra.mxu0 0.0
  %3696 = vmatprep.subr.mxu0 0.0
  %3697 = vmatpush2.msra.mxu0 0.0
  %3698 = vmatprep.subr.mxu0 0.0
  %3699 = vmatpush2.msra.mxu0 0.0
  %3700 = vmatprep.subr.mxu0 0.0
  %3701 = vmatpush2.msra.mxu0 0.0
  %3702 = vmatprep.subr.mxu0 0.0
  %3703 = vmatpush2.msra.mxu0 0.0
  %3704 = vmatprep.subr.mxu0 0.0
  %3705 = vmatpush2.msra.mxu0 0.0
  %3706 = vmatprep.subr.mxu0 0.0
  %3707 = vmatpush2.msra.mxu0 0.0
  %3708 = vmatprep.subr.mxu0 0.0
  %3709 = vmatpush2.msra.mxu0 0.0
  %3710 = vmatprep.mubr.f32.mxu0 0.0
  %3711 = vmatmul.mubr.f32.gmra.mxu0 %v3629
  %v3712 = vpop.f32.mrf.mxu0
  %v3713 = vadd.f32 0.0, %v3712
  %v3714 = vpop.f32.mrf.mxu0
  %3715 = vmatprep.mubr.f32.mxu0 0.0
  %3716 = vmatmul.mubr.f32.gmra.mxu0 %v3632
  %v3717 = vpop.f32.mrf.mxu0
  %v3718 = vadd.f32 0.0, %v3717
  %v3719 = vpop.f32.mrf.mxu0
  %3720 = vmatprep.mubr.f32.mxu0 0.0
  %3721 = vmatmul.mubr.f32.gmra.mxu0 %v3635
  %v3722 = vpop.f32.mrf.mxu0
  %v3723 = vadd.f32 0.0, %v3722
  %v3724 = vpop.f32.mrf.mxu0
  %3725 = vmatprep.mubr.f32.mxu0 0.0
  %3726 = vmatmul.mubr.f32.gmra.mxu0 %v3638
  %v3727 = vpop.f32.mrf.mxu0
  %v3728 = vadd.f32 0.0, %v3727
  %v3729 = vpop.f32.mrf.mxu0
  %3730 = vmatprep.mubr.f32.mxu0 0.0
  %3731 = vmatmul.mubr.f32.gmra.mxu0 %v3641
  %v3732 = vpop.f32.mrf.mxu0
  %v3733 = vadd.f32 0.0, %v3732
  %v3734 = vpop.f32.mrf.mxu0
  %3735 = vmatprep.mubr.f32.mxu0 0.0
  %3736 = vmatmul.mubr.f32.gmra.mxu0 %v3644
  %v3737 = vpop.f32.mrf.mxu0
  %v3738 = vadd.f32 0.0, %v3737
  %v3739 = vpop.f32.mrf.mxu0
  %3740 = vdwg.mxu0
  %v3741 = vtanh.pop %v3713
  %v3742 = vtanh.pop %v3718
  %v3743 = vtanh.pop %v3723
  %v3744 = vtanh.pop %v3728
  %v3745 = vtanh.pop %v3733
  %v3746 = vtanh.pop %v3738
  %v3747 = vmax.f32 %v3741, %v3742
  %v3748 = vmax.f32 %v3747, %v3743
  %v3749 = vmax.f32 %v3748, %v3744
  %v3750 = vmax.f32 %v3749, %v3745
  %v3751 = vmax.f32 %v3750, %v3746
  %v3752 = vsub.f32 %v3741, %v3751
  %v3753 = vmul.f32 %v3752, 1.442695
  %v3754 = vpow.pop %v3753
  %v3755 = vsub.f32 %v3742, %v3751
  %v3756 = vmul.f32 %v3755, 1.442695
  %v3757 = vpow.pop %v3756
  %v3758 = vsub.f32 %v3743, %v3751
  %v3759 = vmul.f32 %v3758, 1.442695
  %v3760 = vpow.pop %v3759
  %v3761 = vsub.f32 %v3744, %v3751
  %v3762 = vmul.f32 %v3761, 1.442695
  %v3763 = vpow.pop %v3762
  %v3764 = vsub.f32 %v3745, %v3751
  %v3765 = vmul.f32 %v3764, 1.442695
  %v3766 = vpow.pop %v3765
  %v3767 = vsub.f32 %v3746, %v3751
  %v3768 = vmul.f32 %v3767, 1.442695
  %v3769 = vpow.pop %v3768
  %v3770 = vadd.f32 %v3754, %v3757
  %v3771 = vadd.f32 %v3770, %v3760
  %v3772 = vadd.f32 %v3771, %v3763
  %v3773 = vadd.f32 %v3772, %v3766
  %v3774 = vadd.f32 %v3773, %v3769
  %v3775 = vrcp.pop %v3774
  %v3776 = vmul.f32 %v3754, %v3775
  %3778 = vset.pattern.permute.xlu0 0
  %3779 = vperm.xlu0 %3778, %v3776
  %v3780 = vpop.permute.xlu0 %3779
  %v3782 = vmul.f32 %v3780, %v3492
  %v3783 = vmul.f32 %v3757, %v3775
  %3785 = vset.pattern.permute.xlu0 0
  %3786 = vperm.xlu0 %3785, %v3783
  %v3787 = vpop.permute.xlu0 %3786
  %v3789 = vmul.f32 %v3787, %v3493
  %v3790 = vadd.f32 %v3782, %v3789
  %v3791 = vmul.f32 %v3760, %v3775
  %3793 = vset.pattern.permute.xlu0 0
  %3794 = vperm.xlu0 %3793, %v3791
  %v3795 = vpop.permute.xlu0 %3794
  %v3797 = vmul.f32 %v3795, %v3494
  %v3798 = vadd.f32 %v3790, %v3797
  %v3799 = vmul.f32 %v3763, %v3775
  %3801 = vset.pattern.permute.xlu0 0
  %3802 = vperm.xlu0 %3801, %v3799
  %v3803 = vpop.permute.xlu0 %3802
  %v3805 = vmul.f32 %v3803, %v3495
  %v3806 = vadd.f32 %v3798, %v3805
  %v3807 = vmul.f32 %v3766, %v3775
  %3809 = vset.pattern.permute.xlu0 0
  %3810 = vperm.xlu0 %3809, %v3807
  %v3811 = vpop.permute.xlu0 %3810
  %v3813 = vmul.f32 %v3811, %v3496
  %v3814 = vadd.f32 %v3806, %v3813
  %v3815 = vmul.f32 %v3769, %v3775
  %3817 = vset.pattern.permute.xlu0 0
  %3818 = vperm.xlu0 %3817, %v3815
  %v3819 = vpop.permute.xlu0 %3818
  %v3821 = vmul.f32 %v3819, %v3497
  %v3822 = vadd.f32 %v3814, %v3821
  %3823 = vst.msk [vmem:[#allocation3 + $0x8] sm:$0xff] %vm1910, %v3822
  %v3824 = vsel %vm622, %v2841, 0
  %3826 = vmatprep.subr.mxu0 0.0
  %3827 = vmatpush1.msra.mxu0 0.0
  %3828 = vmatprep.subr.mxu0 0.0
  %3829 = vmatpush1.msra.mxu0 0.0
  %3830 = vmatprep.subr.mxu0 0.0
  %3831 = vmatpush1.msra.mxu0 0.0
  %3832 = vmatprep.subr.mxu0 0.0
  %3833 = vmatpush1.msra.mxu0 0.0
  %3834 = vmatprep.subr.mxu0 0.0
  %3835 = vmatpush1.msra.mxu0 0.0
  %3836 = vmatprep.subr.mxu0 0.0
  %3837 = vmatpush1.msra.mxu0 0.0
  %3838 = vmatprep.subr.mxu0 0.0
  %3839 = vmatpush1.msra.mxu0 0.0
  %3840 = vmatprep.subr.mxu0 0.0
  %3841 = vmatpush1.msra.mxu0 0.0
  %3842 = vmatprep.subr.mxu0 0.0
  %3843 = vmatpush1.msra.mxu0 0.0
  %3844 = vmatprep.subr.mxu0 0.0
  %3845 = vmatpush1.msra.mxu0 0.0
  %3846 = vmatprep.subr.mxu0 0.0
  %3847 = vmatpush1.msra.mxu0 0.0
  %3848 = vmatprep.subr.mxu0 0.0
  %3849 = vmatpush1.msra.mxu0 0.0
  %3850 = vmatprep.subr.mxu0 0.0
  %3851 = vmatpush1.msra.mxu0 0.0
  %3852 = vmatprep.subr.mxu0 0.0
  %3853 = vmatpush1.msra.mxu0 0.0
  %3854 = vmatprep.subr.mxu0 0.0
  %3855 = vmatpush1.msra.mxu0 0.0
  %3856 = vmatprep.subr.mxu0 0.0
  %3857 = vmatpush1.msra.mxu0 %v610
  %3858 = vmatprep.subr.mxu0 0.0
  %3859 = vmatpush2.msra.mxu0 0.0
  %3860 = vmatprep.subr.mxu0 0.0
  %3861 = vmatpush2.msra.mxu0 0.0
  %3862 = vmatprep.subr.mxu0 0.0
  %3863 = vmatpush2.msra.mxu0 0.0
  %3864 = vmatprep.subr.mxu0 0.0
  %3865 = vmatpush2.msra.mxu0 0.0
  %3866 = vmatprep.subr.mxu0 0.0
  %3867 = vmatpush2.msra.mxu0 0.0
  %3868 = vmatprep.subr.mxu0 0.0
  %3869 = vmatpush2.msra.mxu0 0.0
  %3870 = vmatprep.subr.mxu0 0.0
  %3871 = vmatpush2.msra.mxu0 0.0
  %3872 = vmatprep.subr.mxu0 0.0
  %3873 = vmatpush2.msra.mxu0 0.0
  %3874 = vmatprep.subr.mxu0 0.0
  %3875 = vmatpush2.msra.mxu0 0.0
  %3876 = vmatprep.subr.mxu0 0.0
  %3877 = vmatpush2.msra.mxu0 0.0
  %3878 = vmatprep.subr.mxu0 0.0
  %3879 = vmatpush2.msra.mxu0 0.0
  %3880 = vmatprep.subr.mxu0 0.0
  %3881 = vmatpush2.msra.mxu0 0.0
  %3882 = vmatprep.subr.mxu0 0.0
  %3883 = vmatpush2.msra.mxu0 0.0
  %3884 = vmatprep.subr.mxu0 0.0
  %3885 = vmatpush2.msra.mxu0 0.0
  %3886 = vmatprep.subr.mxu0 0.0
  %3887 = vmatpush2.msra.mxu0 0.0
  %3888 = vmatprep.subr.mxu0 0.0
  %3889 = vmatpush2.msra.mxu0 0.0
  %3890 = vmatprep.mubr.f32.mxu0 0.0
  %3891 = vmatmul.mubr.f32.gmra.mxu0 %v3824
  %v3892 = vpop.f32.mrf.mxu0
  %v3893 = vadd.f32 %v620, %v3892
  %v3894 = vpop.f32.mrf.mxu0
  %3895 = vdwg.mxu0
  %v3896 = vadd.f32 %v582, %v3893
  %v3897 = vxor.u32 %v3896, 2147483648
  %v3898 = vmul.f32 %v3897, 1.442695
  %v3899 = vpow.pop %v3898
  %v3900 = vadd.f32 %v3899, 1.0
  %v3901 = vrcp.pop %v3900
  %v3902 = vmul.f32 1.0, %v3901
  %3904 = vrot.lane.b32.xlu0 %v3893, 112
  %v3905 = vpop.permute.xlu0 %3904
  %v3907 = vmul.f32 %v3902, %v3905
  %3909 = vrot.lane.b32.xlu0 %v3907, 16
  %v3910 = vpop.permute.xlu0 %3909
  %v3912 = vadd.f32 %v582, %v3910
  %v3913 = vtanh.pop %v3912
  %v3914 = vsub.f32 1.0, %v3902
  %3916 = vrot.lane.b32.xlu0 %v3913, 120
  %v3917 = vpop.permute.xlu0 %3916
  %v3919 = vmul.f32 %v3914, %v3917
  %v3920 = vmul.f32 %v3902, %v2838
  %v3921 = vadd.f32 %v3919, %v3920
  %3923 = vrot.lane.b32.xlu0 %v3921, 120
  %v3924 = vpop.permute.xlu0 %3923
  %3926 = vst.msk [vmem:[#allocation2] sm:$0xff] %vm622, %v3924
  %v3927 = vsel %vm622, %v3924, 0
  %3929 = vmatprep.subr.mxu0 0.0
  %3930 = vmatpush1.msra.mxu0 0.0
  %3931 = vmatprep.subr.mxu0 0.0
  %3932 = vmatpush1.msra.mxu0 0.0
  %3933 = vmatprep.subr.mxu0 0.0
  %3934 = vmatpush1.msra.mxu0 0.0
  %3935 = vmatprep.subr.mxu0 0.0
  %3936 = vmatpush1.msra.mxu0 0.0
  %3937 = vmatprep.subr.mxu0 0.0
  %3938 = vmatpush1.msra.mxu0 0.0
  %3939 = vmatprep.subr.mxu0 0.0
  %3940 = vmatpush1.msra.mxu0 0.0
  %3941 = vmatprep.subr.mxu0 0.0
  %3942 = vmatpush1.msra.mxu0 0.0
  %3943 = vmatprep.subr.mxu0 0.0
  %3944 = vmatpush1.msra.mxu0 0.0
  %3945 = vmatprep.subr.mxu0 0.0
  %3946 = vmatpush1.msra.mxu0 0.0
  %3947 = vmatprep.subr.mxu0 0.0
  %3948 = vmatpush1.msra.mxu0 0.0
  %3949 = vmatprep.subr.mxu0 0.0
  %3950 = vmatpush1.msra.mxu0 0.0
  %3951 = vmatprep.subr.mxu0 0.0
  %3952 = vmatpush1.msra.mxu0 0.0
  %3953 = vmatprep.subr.mxu0 0.0
  %3954 = vmatpush1.msra.mxu0 0.0
  %3955 = vmatprep.subr.mxu0 0.0
  %3956 = vmatpush1.msra.mxu0 0.0
  %3957 = vmatprep.subr.mxu0 0.0
  %3958 = vmatpush1.msra.mxu0 0.0
  %3959 = vmatprep.subr.mxu0 0.0
  %3960 = vmatpush1.msra.mxu0 %v610
  %3961 = vmatprep.subr.mxu0 0.0
  %3962 = vmatpush2.msra.mxu0 0.0
  %3963 = vmatprep.subr.mxu0 0.0
  %3964 = vmatpush2.msra.mxu0 0.0
  %3965 = vmatprep.subr.mxu0 0.0
  %3966 = vmatpush2.msra.mxu0 0.0
  %3967 = vmatprep.subr.mxu0 0.0
  %3968 = vmatpush2.msra.mxu0 0.0
  %3969 = vmatprep.subr.mxu0 0.0
  %3970 = vmatpush2.msra.mxu0 0.0
  %3971 = vmatprep.subr.mxu0 0.0
  %3972 = vmatpush2.msra.mxu0 0.0
  %3973 = vmatprep.subr.mxu0 0.0
  %3974 = vmatpush2.msra.mxu0 0.0
  %3975 = vmatprep.subr.mxu0 0.0
  %3976 = vmatpush2.msra.mxu0 0.0
  %3977 = vmatprep.subr.mxu0 0.0
  %3978 = vmatpush2.msra.mxu0 0.0
  %3979 = vmatprep.subr.mxu0 0.0
  %3980 = vmatpush2.msra.mxu0 0.0
  %3981 = vmatprep.subr.mxu0 0.0
  %3982 = vmatpush2.msra.mxu0 0.0
  %3983 = vmatprep.subr.mxu0 0.0
  %3984 = vmatpush2.msra.mxu0 0.0
  %3985 = vmatprep.subr.mxu0 0.0
  %3986 = vmatpush2.msra.mxu0 0.0
  %3987 = vmatprep.subr.mxu0 0.0
  %3988 = vmatpush2.msra.mxu0 0.0
  %3989 = vmatprep.subr.mxu0 0.0
  %3990 = vmatpush2.msra.mxu0 0.0
  %3991 = vmatprep.subr.mxu0 0.0
  %3992 = vmatpush2.msra.mxu0 0.0
  %3993 = vmatprep.mubr.f32.mxu0 0.0
  %3994 = vmatmul.mubr.f32.gmra.mxu0 %v3927
  %v3995 = vpop.f32.mrf.mxu0
  %v3996 = vadd.f32 %v620, %v3995
  %v3997 = vpop.f32.mrf.mxu0
  %3998 = vdwg.mxu0
  %v3999 = vadd.f32 %v587, %v3996
  %v4000 = vxor.u32 %v3999, 2147483648
  %v4001 = vmul.f32 %v4000, 1.442695
  %v4002 = vpow.pop %v4001
  %v4003 = vadd.f32 %v4002, 1.0
  %v4004 = vrcp.pop %v4003
  %v4005 = vmul.f32 1.0, %v4004
  %4007 = vrot.lane.b32.xlu0 %v3996, 112
  %v4008 = vpop.permute.xlu0 %4007
  %v4010 = vmul.f32 %v4005, %v4008
  %4012 = vrot.lane.b32.xlu0 %v4010, 16
  %v4013 = vpop.permute.xlu0 %4012
  %v4015 = vadd.f32 %v587, %v4013
  %v4016 = vtanh.pop %v4015
  %v4017 = vsub.f32 1.0, %v4005
  %4019 = vrot.lane.b32.xlu0 %v4016, 120
  %v4020 = vpop.permute.xlu0 %4019
  %v4022 = vmul.f32 %v4017, %v4020
  %v4023 = vmul.f32 %v4005, %v3921
  %v4024 = vadd.f32 %v4022, %v4023
  %4026 = vrot.lane.b32.xlu0 %v4024, 120
  %v4027 = vpop.permute.xlu0 %4026
  %4029 = vst.msk [vmem:[#allocation2 + $0x8] sm:$0xff] %vm622, %v4027
  %v4030 = vsel %vm622, %v4027, 0
  %4032 = vmatprep.subr.mxu0 0.0
  %4033 = vmatpush1.msra.mxu0 0.0
  %4034 = vmatprep.subr.mxu0 0.0
  %4035 = vmatpush1.msra.mxu0 0.0
  %4036 = vmatprep.subr.mxu0 0.0
  %4037 = vmatpush1.msra.mxu0 0.0
  %4038 = vmatprep.subr.mxu0 0.0
  %4039 = vmatpush1.msra.mxu0 0.0
  %4040 = vmatprep.subr.mxu0 0.0
  %4041 = vmatpush1.msra.mxu0 0.0
  %4042 = vmatprep.subr.mxu0 0.0
  %4043 = vmatpush1.msra.mxu0 0.0
  %4044 = vmatprep.subr.mxu0 0.0
  %4045 = vmatpush1.msra.mxu0 0.0
  %4046 = vmatprep.subr.mxu0 0.0
  %4047 = vmatpush1.msra.mxu0 0.0
  %4048 = vmatprep.subr.mxu0 0.0
  %4049 = vmatpush1.msra.mxu0 0.0
  %4050 = vmatprep.subr.mxu0 0.0
  %4051 = vmatpush1.msra.mxu0 0.0
  %4052 = vmatprep.subr.mxu0 0.0
  %4053 = vmatpush1.msra.mxu0 0.0
  %4054 = vmatprep.subr.mxu0 0.0
  %4055 = vmatpush1.msra.mxu0 0.0
  %4056 = vmatprep.subr.mxu0 0.0
  %4057 = vmatpush1.msra.mxu0 0.0
  %4058 = vmatprep.subr.mxu0 0.0
  %4059 = vmatpush1.msra.mxu0 0.0
  %4060 = vmatprep.subr.mxu0 0.0
  %4061 = vmatpush1.msra.mxu0 0.0
  %4062 = vmatprep.subr.mxu0 0.0
  %4063 = vmatpush1.msra.mxu0 %v610
  %4064 = vmatprep.subr.mxu0 0.0
  %4065 = vmatpush2.msra.mxu0 0.0
  %4066 = vmatprep.subr.mxu0 0.0
  %4067 = vmatpush2.msra.mxu0 0.0
  %4068 = vmatprep.subr.mxu0 0.0
  %4069 = vmatpush2.msra.mxu0 0.0
  %4070 = vmatprep.subr.mxu0 0.0
  %4071 = vmatpush2.msra.mxu0 0.0
  %4072 = vmatprep.subr.mxu0 0.0
  %4073 = vmatpush2.msra.mxu0 0.0
  %4074 = vmatprep.subr.mxu0 0.0
  %4075 = vmatpush2.msra.mxu0 0.0
  %4076 = vmatprep.subr.mxu0 0.0
  %4077 = vmatpush2.msra.mxu0 0.0
  %4078 = vmatprep.subr.mxu0 0.0
  %4079 = vmatpush2.msra.mxu0 0.0
  %4080 = vmatprep.subr.mxu0 0.0
  %4081 = vmatpush2.msra.mxu0 0.0
  %4082 = vmatprep.subr.mxu0 0.0
  %4083 = vmatpush2.msra.mxu0 0.0
  %4084 = vmatprep.subr.mxu0 0.0
  %4085 = vmatpush2.msra.mxu0 0.0
  %4086 = vmatprep.subr.mxu0 0.0
  %4087 = vmatpush2.msra.mxu0 0.0
  %4088 = vmatprep.subr.mxu0 0.0
  %4089 = vmatpush2.msra.mxu0 0.0
  %4090 = vmatprep.subr.mxu0 0.0
  %4091 = vmatpush2.msra.mxu0 0.0
  %4092 = vmatprep.subr.mxu0 0.0
  %4093 = vmatpush2.msra.mxu0 0.0
  %4094 = vmatprep.subr.mxu0 0.0
  %4095 = vmatpush2.msra.mxu0 0.0
  %4096 = vmatprep.mubr.f32.mxu0 0.0
  %4097 = vmatmul.mubr.f32.gmra.mxu0 %v4030
  %v4098 = vpop.f32.mrf.mxu0
  %v4099 = vadd.f32 %v620, %v4098
  %v4100 = vpop.f32.mrf.mxu0
  %4101 = vdwg.mxu0
  %v4102 = vadd.f32 %v592, %v4099
  %v4103 = vxor.u32 %v4102, 2147483648
  %v4104 = vmul.f32 %v4103, 1.442695
  %v4105 = vpow.pop %v4104
  %v4106 = vadd.f32 %v4105, 1.0
  %v4107 = vrcp.pop %v4106
  %v4108 = vmul.f32 1.0, %v4107
  %4110 = vrot.lane.b32.xlu0 %v4099, 112
  %v4111 = vpop.permute.xlu0 %4110
  %v4113 = vmul.f32 %v4108, %v4111
  %4115 = vrot.lane.b32.xlu0 %v4113, 16
  %v4116 = vpop.permute.xlu0 %4115
  %v4118 = vadd.f32 %v592, %v4116
  %v4119 = vtanh.pop %v4118
  %v4120 = vsub.f32 1.0, %v4108
  %4122 = vrot.lane.b32.xlu0 %v4119, 120
  %v4123 = vpop.permute.xlu0 %4122
  %v4125 = vmul.f32 %v4120, %v4123
  %v4126 = vmul.f32 %v4108, %v4024
  %v4127 = vadd.f32 %v4125, %v4126
  %4129 = vrot.lane.b32.xlu0 %v4127, 120
  %v4130 = vpop.permute.xlu0 %4129
  %4132 = vst.msk [vmem:[#allocation2 + $0x10] sm:$0xff] %vm622, %v4130
  %v4133 = vsel %vm622, %v4130, 0
  %4135 = vmatprep.subr.mxu0 0.0
  %4136 = vmatpush1.msra.mxu0 0.0
  %4137 = vmatprep.subr.mxu0 0.0
  %4138 = vmatpush1.msra.mxu0 0.0
  %4139 = vmatprep.subr.mxu0 0.0
  %4140 = vmatpush1.msra.mxu0 0.0
  %4141 = vmatprep.subr.mxu0 0.0
  %4142 = vmatpush1.msra.mxu0 0.0
  %4143 = vmatprep.subr.mxu0 0.0
  %4144 = vmatpush1.msra.mxu0 0.0
  %4145 = vmatprep.subr.mxu0 0.0
  %4146 = vmatpush1.msra.mxu0 0.0
  %4147 = vmatprep.subr.mxu0 0.0
  %4148 = vmatpush1.msra.mxu0 0.0
  %4149 = vmatprep.subr.mxu0 0.0
  %4150 = vmatpush1.msra.mxu0 0.0
  %4151 = vmatprep.subr.mxu0 0.0
  %4152 = vmatpush1.msra.mxu0 0.0
  %4153 = vmatprep.subr.mxu0 0.0
  %4154 = vmatpush1.msra.mxu0 0.0
  %4155 = vmatprep.subr.mxu0 0.0
  %4156 = vmatpush1.msra.mxu0 0.0
  %4157 = vmatprep.subr.mxu0 0.0
  %4158 = vmatpush1.msra.mxu0 0.0
  %4159 = vmatprep.subr.mxu0 0.0
  %4160 = vmatpush1.msra.mxu0 0.0
  %4161 = vmatprep.subr.mxu0 0.0
  %4162 = vmatpush1.msra.mxu0 0.0
  %4163 = vmatprep.subr.mxu0 0.0
  %4164 = vmatpush1.msra.mxu0 0.0
  %4165 = vmatprep.subr.mxu0 0.0
  %4166 = vmatpush1.msra.mxu0 %v610
  %4167 = vmatprep.subr.mxu0 0.0
  %4168 = vmatpush2.msra.mxu0 0.0
  %4169 = vmatprep.subr.mxu0 0.0
  %4170 = vmatpush2.msra.mxu0 0.0
  %4171 = vmatprep.subr.mxu0 0.0
  %4172 = vmatpush2.msra.mxu0 0.0
  %4173 = vmatprep.subr.mxu0 0.0
  %4174 = vmatpush2.msra.mxu0 0.0
  %4175 = vmatprep.subr.mxu0 0.0
  %4176 = vmatpush2.msra.mxu0 0.0
  %4177 = vmatprep.subr.mxu0 0.0
  %4178 = vmatpush2.msra.mxu0 0.0
  %4179 = vmatprep.subr.mxu0 0.0
  %4180 = vmatpush2.msra.mxu0 0.0
  %4181 = vmatprep.subr.mxu0 0.0
  %4182 = vmatpush2.msra.mxu0 0.0
  %4183 = vmatprep.subr.mxu0 0.0
  %4184 = vmatpush2.msra.mxu0 0.0
  %4185 = vmatprep.subr.mxu0 0.0
  %4186 = vmatpush2.msra.mxu0 0.0
  %4187 = vmatprep.subr.mxu0 0.0
  %4188 = vmatpush2.msra.mxu0 0.0
  %4189 = vmatprep.subr.mxu0 0.0
  %4190 = vmatpush2.msra.mxu0 0.0
  %4191 = vmatprep.subr.mxu0 0.0
  %4192 = vmatpush2.msra.mxu0 0.0
  %4193 = vmatprep.subr.mxu0 0.0
  %4194 = vmatpush2.msra.mxu0 0.0
  %4195 = vmatprep.subr.mxu0 0.0
  %4196 = vmatpush2.msra.mxu0 0.0
  %4197 = vmatprep.subr.mxu0 0.0
  %4198 = vmatpush2.msra.mxu0 0.0
  %4199 = vmatprep.mubr.f32.mxu0 0.0
  %4200 = vmatmul.mubr.f32.gmra.mxu0 %v4133
  %v4201 = vpop.f32.mrf.mxu0
  %v4202 = vadd.f32 %v620, %v4201
  %v4203 = vpop.f32.mrf.mxu0
  %4204 = vdwg.mxu0
  %v4205 = vadd.f32 %v597, %v4202
  %v4206 = vxor.u32 %v4205, 2147483648
  %v4207 = vmul.f32 %v4206, 1.442695
  %v4208 = vpow.pop %v4207
  %v4209 = vadd.f32 %v4208, 1.0
  %v4210 = vrcp.pop %v4209
  %v4211 = vmul.f32 1.0, %v4210
  %4213 = vrot.lane.b32.xlu0 %v4202, 112
  %v4214 = vpop.permute.xlu0 %4213
  %v4216 = vmul.f32 %v4211, %v4214
  %4218 = vrot.lane.b32.xlu0 %v4216, 16
  %v4219 = vpop.permute.xlu0 %4218
  %v4221 = vadd.f32 %v597, %v4219
  %v4222 = vtanh.pop %v4221
  %v4223 = vsub.f32 1.0, %v4211
  %4225 = vrot.lane.b32.xlu0 %v4222, 120
  %v4226 = vpop.permute.xlu0 %4225
  %v4228 = vmul.f32 %v4223, %v4226
  %v4229 = vmul.f32 %v4211, %v4127
  %v4230 = vadd.f32 %v4228, %v4229
  %4232 = vrot.lane.b32.xlu0 %v4230, 120
  %v4233 = vpop.permute.xlu0 %4232
  %4235 = vst.msk [vmem:[#allocation2 + $0x18] sm:$0xff] %vm622, %v4233
  %v4236 = vsel %vm622, %v4233, 0
  %4238 = vmatprep.subr.mxu0 0.0
  %4239 = vmatpush1.msra.mxu0 0.0
  %4240 = vmatprep.subr.mxu0 0.0
  %4241 = vmatpush1.msra.mxu0 0.0
  %4242 = vmatprep.subr.mxu0 0.0
  %4243 = vmatpush1.msra.mxu0 0.0
  %4244 = vmatprep.subr.mxu0 0.0
  %4245 = vmatpush1.msra.mxu0 0.0
  %4246 = vmatprep.subr.mxu0 0.0
  %4247 = vmatpush1.msra.mxu0 0.0
  %4248 = vmatprep.subr.mxu0 0.0
  %4249 = vmatpush1.msra.mxu0 0.0
  %4250 = vmatprep.subr.mxu0 0.0
  %4251 = vmatpush1.msra.mxu0 0.0
  %4252 = vmatprep.subr.mxu0 0.0
  %4253 = vmatpush1.msra.mxu0 0.0
  %4254 = vmatprep.subr.mxu0 0.0
  %4255 = vmatpush1.msra.mxu0 0.0
  %4256 = vmatprep.subr.mxu0 0.0
  %4257 = vmatpush1.msra.mxu0 0.0
  %4258 = vmatprep.subr.mxu0 0.0
  %4259 = vmatpush1.msra.mxu0 0.0
  %4260 = vmatprep.subr.mxu0 0.0
  %4261 = vmatpush1.msra.mxu0 0.0
  %4262 = vmatprep.subr.mxu0 0.0
  %4263 = vmatpush1.msra.mxu0 0.0
  %4264 = vmatprep.subr.mxu0 0.0
  %4265 = vmatpush1.msra.mxu0 0.0
  %4266 = vmatprep.subr.mxu0 0.0
  %4267 = vmatpush1.msra.mxu0 0.0
  %4268 = vmatprep.subr.mxu0 0.0
  %4269 = vmatpush1.msra.mxu0 %v610
  %4270 = vmatprep.subr.mxu0 0.0
  %4271 = vmatpush2.msra.mxu0 0.0
  %4272 = vmatprep.subr.mxu0 0.0
  %4273 = vmatpush2.msra.mxu0 0.0
  %4274 = vmatprep.subr.mxu0 0.0
  %4275 = vmatpush2.msra.mxu0 0.0
  %4276 = vmatprep.subr.mxu0 0.0
  %4277 = vmatpush2.msra.mxu0 0.0
  %4278 = vmatprep.subr.mxu0 0.0
  %4279 = vmatpush2.msra.mxu0 0.0
  %4280 = vmatprep.subr.mxu0 0.0
  %4281 = vmatpush2.msra.mxu0 0.0
  %4282 = vmatprep.subr.mxu0 0.0
  %4283 = vmatpush2.msra.mxu0 0.0
  %4284 = vmatprep.subr.mxu0 0.0
  %4285 = vmatpush2.msra.mxu0 0.0
  %4286 = vmatprep.subr.mxu0 0.0
  %4287 = vmatpush2.msra.mxu0 0.0
  %4288 = vmatprep.subr.mxu0 0.0
  %4289 = vmatpush2.msra.mxu0 0.0
  %4290 = vmatprep.subr.mxu0 0.0
  %4291 = vmatpush2.msra.mxu0 0.0
  %4292 = vmatprep.subr.mxu0 0.0
  %4293 = vmatpush2.msra.mxu0 0.0
  %4294 = vmatprep.subr.mxu0 0.0
  %4295 = vmatpush2.msra.mxu0 0.0
  %4296 = vmatprep.subr.mxu0 0.0
  %4297 = vmatpush2.msra.mxu0 0.0
  %4298 = vmatprep.subr.mxu0 0.0
  %4299 = vmatpush2.msra.mxu0 0.0
  %4300 = vmatprep.subr.mxu0 0.0
  %4301 = vmatpush2.msra.mxu0 0.0
  %4302 = vmatprep.mubr.f32.mxu0 0.0
  %4303 = vmatmul.mubr.f32.gmra.mxu0 %v4236
  %v4304 = vpop.f32.mrf.mxu0
  %v4305 = vadd.f32 %v620, %v4304
  %v4306 = vpop.f32.mrf.mxu0
  %4307 = vdwg.mxu0
  %v4308 = vadd.f32 %v602, %v4305
  %v4309 = vxor.u32 %v4308, 2147483648
  %v4310 = vmul.f32 %v4309, 1.442695
  %v4311 = vpow.pop %v4310
  %v4312 = vadd.f32 %v4311, 1.0
  %v4313 = vrcp.pop %v4312
  %v4314 = vmul.f32 1.0, %v4313
  %4316 = vrot.lane.b32.xlu0 %v4305, 112
  %v4317 = vpop.permute.xlu0 %4316
  %v4319 = vmul.f32 %v4314, %v4317
  %4321 = vrot.lane.b32.xlu0 %v4319, 16
  %v4322 = vpop.permute.xlu0 %4321
  %v4324 = vadd.f32 %v602, %v4322
  %v4325 = vtanh.pop %v4324
  %v4326 = vsub.f32 1.0, %v4314
  %4328 = vrot.lane.b32.xlu0 %v4325, 120
  %v4329 = vpop.permute.xlu0 %4328
  %v4331 = vmul.f32 %v4326, %v4329
  %v4332 = vmul.f32 %v4314, %v4230
  %v4333 = vadd.f32 %v4331, %v4332
  %4335 = vrot.lane.b32.xlu0 %v4333, 120
  %v4336 = vpop.permute.xlu0 %4335
  %4338 = vst.msk [vmem:[#allocation2 + $0x20] sm:$0xff] %vm622, %v4336
  %v4339 = vsel %vm622, %v4336, 0
  %4341 = vmatprep.subr.mxu0 0.0
  %4342 = vmatpush1.msra.mxu0 0.0
  %4343 = vmatprep.subr.mxu0 0.0
  %4344 = vmatpush1.msra.mxu0 0.0
  %4345 = vmatprep.subr.mxu0 0.0
  %4346 = vmatpush1.msra.mxu0 0.0
  %4347 = vmatprep.subr.mxu0 0.0
  %4348 = vmatpush1.msra.mxu0 0.0
  %4349 = vmatprep.subr.mxu0 0.0
  %4350 = vmatpush1.msra.mxu0 0.0
  %4351 = vmatprep.subr.mxu0 0.0
  %4352 = vmatpush1.msra.mxu0 0.0
  %4353 = vmatprep.subr.mxu0 0.0
  %4354 = vmatpush1.msra.mxu0 0.0
  %4355 = vmatprep.subr.mxu0 0.0
  %4356 = vmatpush1.msra.mxu0 0.0
  %4357 = vmatprep.subr.mxu0 0.0
  %4358 = vmatpush1.msra.mxu0 0.0
  %4359 = vmatprep.subr.mxu0 0.0
  %4360 = vmatpush1.msra.mxu0 0.0
  %4361 = vmatprep.subr.mxu0 0.0
  %4362 = vmatpush1.msra.mxu0 0.0
  %4363 = vmatprep.subr.mxu0 0.0
  %4364 = vmatpush1.msra.mxu0 0.0
  %4365 = vmatprep.subr.mxu0 0.0
  %4366 = vmatpush1.msra.mxu0 0.0
  %4367 = vmatprep.subr.mxu0 0.0
  %4368 = vmatpush1.msra.mxu0 0.0
  %4369 = vmatprep.subr.mxu0 0.0
  %4370 = vmatpush1.msra.mxu0 0.0
  %4371 = vmatprep.subr.mxu0 0.0
  %4372 = vmatpush1.msra.mxu0 %v610
  %4373 = vmatprep.subr.mxu0 0.0
  %4374 = vmatpush2.msra.mxu0 0.0
  %4375 = vmatprep.subr.mxu0 0.0
  %4376 = vmatpush2.msra.mxu0 0.0
  %4377 = vmatprep.subr.mxu0 0.0
  %4378 = vmatpush2.msra.mxu0 0.0
  %4379 = vmatprep.subr.mxu0 0.0
  %4380 = vmatpush2.msra.mxu0 0.0
  %4381 = vmatprep.subr.mxu0 0.0
  %4382 = vmatpush2.msra.mxu0 0.0
  %4383 = vmatprep.subr.mxu0 0.0
  %4384 = vmatpush2.msra.mxu0 0.0
  %4385 = vmatprep.subr.mxu0 0.0
  %4386 = vmatpush2.msra.mxu0 0.0
  %4387 = vmatprep.subr.mxu0 0.0
  %4388 = vmatpush2.msra.mxu0 0.0
  %4389 = vmatprep.subr.mxu0 0.0
  %4390 = vmatpush2.msra.mxu0 0.0
  %4391 = vmatprep.subr.mxu0 0.0
  %4392 = vmatpush2.msra.mxu0 0.0
  %4393 = vmatprep.subr.mxu0 0.0
  %4394 = vmatpush2.msra.mxu0 0.0
  %4395 = vmatprep.subr.mxu0 0.0
  %4396 = vmatpush2.msra.mxu0 0.0
  %4397 = vmatprep.subr.mxu0 0.0
  %4398 = vmatpush2.msra.mxu0 0.0
  %4399 = vmatprep.subr.mxu0 0.0
  %4400 = vmatpush2.msra.mxu0 0.0
  %4401 = vmatprep.subr.mxu0 0.0
  %4402 = vmatpush2.msra.mxu0 0.0
  %4403 = vmatprep.subr.mxu0 0.0
  %4404 = vmatpush2.msra.mxu0 0.0
  %4405 = vmatprep.mubr.f32.mxu0 0.0
  %4406 = vmatmul.mubr.f32.gmra.mxu0 %v4339
  %v4407 = vpop.f32.mrf.mxu0
  %v4408 = vadd.f32 %v620, %v4407
  %v4409 = vpop.f32.mrf.mxu0
  %4410 = vdwg.mxu0
  %v4411 = vadd.f32 %v607, %v4408
  %v4412 = vxor.u32 %v4411, 2147483648
  %v4413 = vmul.f32 %v4412, 1.442695
  %v4414 = vpow.pop %v4413
  %v4415 = vadd.f32 %v4414, 1.0
  %v4416 = vrcp.pop %v4415
  %v4417 = vmul.f32 1.0, %v4416
  %4419 = vrot.lane.b32.xlu0 %v4408, 112
  %v4420 = vpop.permute.xlu0 %4419
  %v4422 = vmul.f32 %v4417, %v4420
  %4424 = vrot.lane.b32.xlu0 %v4422, 16
  %v4425 = vpop.permute.xlu0 %4424
  %v4427 = vadd.f32 %v607, %v4425
  %v4428 = vtanh.pop %v4427
  %v4429 = vsub.f32 1.0, %v4417
  %4431 = vrot.lane.b32.xlu0 %v4428, 120
  %v4432 = vpop.permute.xlu0 %4431
  %v4434 = vmul.f32 %v4429, %v4432
  %v4435 = vmul.f32 %v4417, %v4333
  %v4436 = vadd.f32 %v4434, %v4435
  %4438 = vrot.lane.b32.xlu0 %v4436, 120
  %v4439 = vpop.permute.xlu0 %4438
  %4441 = vst.msk [vmem:[#allocation2 + $0x28] sm:$0xff] %vm622, %v4439
  %4442 = vrot.lane.b32.xlu0 %v3486, 96
  %v4443 = vpop.permute.xlu0 %4442
  %v4444 = vsel %vm622, %v4443, 0
  %4446 = vmatprep.subr.mxu0 0.0
  %4447 = vmatpush1.msra.mxu0 0.0
  %4448 = vmatprep.subr.mxu0 0.0
  %4449 = vmatpush1.msra.mxu0 0.0
  %4450 = vmatprep.subr.mxu0 0.0
  %4451 = vmatpush1.msra.mxu0 0.0
  %4452 = vmatprep.subr.mxu0 0.0
  %4453 = vmatpush1.msra.mxu0 0.0
  %4454 = vmatprep.subr.mxu0 0.0
  %4455 = vmatpush1.msra.mxu0 0.0
  %4456 = vmatprep.subr.mxu0 0.0
  %4457 = vmatpush1.msra.mxu0 0.0
  %4458 = vmatprep.subr.mxu0 0.0
  %4459 = vmatpush1.msra.mxu0 0.0
  %4460 = vmatprep.subr.mxu0 0.0
  %4461 = vmatpush1.msra.mxu0 0.0
  %4462 = vmatprep.subr.mxu0 0.0
  %4463 = vmatpush1.msra.mxu0 0.0
  %4464 = vmatprep.subr.mxu0 0.0
  %4465 = vmatpush1.msra.mxu0 0.0
  %4466 = vmatprep.subr.mxu0 0.0
  %4467 = vmatpush1.msra.mxu0 0.0
  %4468 = vmatprep.subr.mxu0 0.0
  %4469 = vmatpush1.msra.mxu0 0.0
  %4470 = vmatprep.subr.mxu0 0.0
  %4471 = vmatpush1.msra.mxu0 0.0
  %4472 = vmatprep.subr.mxu0 0.0
  %4473 = vmatpush1.msra.mxu0 0.0
  %4474 = vmatprep.subr.mxu0 0.0
  %4475 = vmatpush1.msra.mxu0 0.0
  %4476 = vmatprep.subr.mxu0 0.0
  %4477 = vmatpush1.msra.mxu0 %v612
  %4478 = vmatprep.subr.mxu0 0.0
  %4479 = vmatpush2.msra.mxu0 0.0
  %4480 = vmatprep.subr.mxu0 0.0
  %4481 = vmatpush2.msra.mxu0 0.0
  %4482 = vmatprep.subr.mxu0 0.0
  %4483 = vmatpush2.msra.mxu0 0.0
  %4484 = vmatprep.subr.mxu0 0.0
  %4485 = vmatpush2.msra.mxu0 0.0
  %4486 = vmatprep.subr.mxu0 0.0
  %4487 = vmatpush2.msra.mxu0 0.0
  %4488 = vmatprep.subr.mxu0 0.0
  %4489 = vmatpush2.msra.mxu0 0.0
  %4490 = vmatprep.subr.mxu0 0.0
  %4491 = vmatpush2.msra.mxu0 0.0
  %4492 = vmatprep.subr.mxu0 0.0
  %4493 = vmatpush2.msra.mxu0 0.0
  %4494 = vmatprep.subr.mxu0 0.0
  %4495 = vmatpush2.msra.mxu0 0.0
  %4496 = vmatprep.subr.mxu0 0.0
  %4497 = vmatpush2.msra.mxu0 0.0
  %4498 = vmatprep.subr.mxu0 0.0
  %4499 = vmatpush2.msra.mxu0 0.0
  %4500 = vmatprep.subr.mxu0 0.0
  %4501 = vmatpush2.msra.mxu0 0.0
  %4502 = vmatprep.subr.mxu0 0.0
  %4503 = vmatpush2.msra.mxu0 0.0
  %4504 = vmatprep.subr.mxu0 0.0
  %4505 = vmatpush2.msra.mxu0 0.0
  %4506 = vmatprep.subr.mxu0 0.0
  %4507 = vmatpush2.msra.mxu0 0.0
  %4508 = vmatprep.subr.mxu0 0.0
  %4509 = vmatpush2.msra.mxu0 0.0
  %4510 = vmatprep.mubr.f32.mxu0 0.0
  %4511 = vmatmul.mubr.f32.gmra.mxu0 %v4444
  %v4512 = vpop.f32.mrf.mxu0
  %v4513 = vadd.f32 %v1246, %v4512
  %v4514 = vpop.f32.mrf.mxu0
  %4515 = vdwg.mxu0
  %4517 = vrot.lane.b32.xlu0 %v4513, 24
  %v4518 = vpop.permute.xlu0 %4517
  %v4520 = vadd.f32 %v607, %v4518
  %v4521 = vxor.u32 %v4520, 2147483648
  %v4522 = vmul.f32 %v4521, 1.442695
  %v4523 = vpow.pop %v4522
  %v4524 = vadd.f32 %v4523, 1.0
  %v4525 = vrcp.pop %v4524
  %v4526 = vmul.f32 1.0, %v4525
  %4527 = vrot.lane.b32.xlu0 %v4513, 8
  %v4528 = vpop.permute.xlu0 %4527
  %v4530 = vmul.f32 %v4526, %v4528
  %4532 = vrot.lane.b32.xlu0 %v4530, 16
  %v4533 = vpop.permute.xlu0 %4532
  %v4535 = vadd.f32 %v607, %v4533
  %v4536 = vtanh.pop %v4535
  %v4537 = vsub.f32 1.0, %v4526
  %4539 = vrot.lane.b32.xlu0 %v4536, 120
  %v4540 = vpop.permute.xlu0 %4539
  %v4542 = vmul.f32 %v4537, %v4540
  %v4543 = vmul.f32 %v4526, %v3486
  %v4544 = vadd.f32 %v4542, %v4543
  %4546 = vrot.lane.b32.xlu0 %v4544, 104
  %v4547 = vpop.permute.xlu0 %4546
  %4549 = vst.msk [vmem:[#allocation2 + $0x28] sm:$0xff] %vm1351, %v4547
  %4550 = vrot.lane.b32.xlu0 %v4544, 96
  %v4551 = vpop.permute.xlu0 %4550
  %v4552 = vsel %vm622, %v4551, 0
  %4554 = vmatprep.subr.mxu0 0.0
  %4555 = vmatpush1.msra.mxu0 0.0
  %4556 = vmatprep.subr.mxu0 0.0
  %4557 = vmatpush1.msra.mxu0 0.0
  %4558 = vmatprep.subr.mxu0 0.0
  %4559 = vmatpush1.msra.mxu0 0.0
  %4560 = vmatprep.subr.mxu0 0.0
  %4561 = vmatpush1.msra.mxu0 0.0
  %4562 = vmatprep.subr.mxu0 0.0
  %4563 = vmatpush1.msra.mxu0 0.0
  %4564 = vmatprep.subr.mxu0 0.0
  %4565 = vmatpush1.msra.mxu0 0.0
  %4566 = vmatprep.subr.mxu0 0.0
  %4567 = vmatpush1.msra.mxu0 0.0
  %4568 = vmatprep.subr.mxu0 0.0
  %4569 = vmatpush1.msra.mxu0 0.0
  %4570 = vmatprep.subr.mxu0 0.0
  %4571 = vmatpush1.msra.mxu0 0.0
  %4572 = vmatprep.subr.mxu0 0.0
  %4573 = vmatpush1.msra.mxu0 0.0
  %4574 = vmatprep.subr.mxu0 0.0
  %4575 = vmatpush1.msra.mxu0 0.0
  %4576 = vmatprep.subr.mxu0 0.0
  %4577 = vmatpush1.msra.mxu0 0.0
  %4578 = vmatprep.subr.mxu0 0.0
  %4579 = vmatpush1.msra.mxu0 0.0
  %4580 = vmatprep.subr.mxu0 0.0
  %4581 = vmatpush1.msra.mxu0 0.0
  %4582 = vmatprep.subr.mxu0 0.0
  %4583 = vmatpush1.msra.mxu0 0.0
  %4584 = vmatprep.subr.mxu0 0.0
  %4585 = vmatpush1.msra.mxu0 %v612
  %4586 = vmatprep.subr.mxu0 0.0
  %4587 = vmatpush2.msra.mxu0 0.0
  %4588 = vmatprep.subr.mxu0 0.0
  %4589 = vmatpush2.msra.mxu0 0.0
  %4590 = vmatprep.subr.mxu0 0.0
  %4591 = vmatpush2.msra.mxu0 0.0
  %4592 = vmatprep.subr.mxu0 0.0
  %4593 = vmatpush2.msra.mxu0 0.0
  %4594 = vmatprep.subr.mxu0 0.0
  %4595 = vmatpush2.msra.mxu0 0.0
  %4596 = vmatprep.subr.mxu0 0.0
  %4597 = vmatpush2.msra.mxu0 0.0
  %4598 = vmatprep.subr.mxu0 0.0
  %4599 = vmatpush2.msra.mxu0 0.0
  %4600 = vmatprep.subr.mxu0 0.0
  %4601 = vmatpush2.msra.mxu0 0.0
  %4602 = vmatprep.subr.mxu0 0.0
  %4603 = vmatpush2.msra.mxu0 0.0
  %4604 = vmatprep.subr.mxu0 0.0
  %4605 = vmatpush2.msra.mxu0 0.0
  %4606 = vmatprep.subr.mxu0 0.0
  %4607 = vmatpush2.msra.mxu0 0.0
  %4608 = vmatprep.subr.mxu0 0.0
  %4609 = vmatpush2.msra.mxu0 0.0
  %4610 = vmatprep.subr.mxu0 0.0
  %4611 = vmatpush2.msra.mxu0 0.0
  %4612 = vmatprep.subr.mxu0 0.0
  %4613 = vmatpush2.msra.mxu0 0.0
  %4614 = vmatprep.subr.mxu0 0.0
  %4615 = vmatpush2.msra.mxu0 0.0
  %4616 = vmatprep.subr.mxu0 0.0
  %4617 = vmatpush2.msra.mxu0 0.0
  %4618 = vmatprep.mubr.f32.mxu0 0.0
  %4619 = vmatmul.mubr.f32.gmra.mxu0 %v4552
  %v4620 = vpop.f32.mrf.mxu0
  %v4621 = vadd.f32 %v1246, %v4620
  %v4622 = vpop.f32.mrf.mxu0
  %4623 = vdwg.mxu0
  %4625 = vrot.lane.b32.xlu0 %v4621, 24
  %v4626 = vpop.permute.xlu0 %4625
  %v4628 = vadd.f32 %v602, %v4626
  %v4629 = vxor.u32 %v4628, 2147483648
  %v4630 = vmul.f32 %v4629, 1.442695
  %v4631 = vpow.pop %v4630
  %v4632 = vadd.f32 %v4631, 1.0
  %v4633 = vrcp.pop %v4632
  %v4634 = vmul.f32 1.0, %v4633
  %4635 = vrot.lane.b32.xlu0 %v4621, 8
  %v4636 = vpop.permute.xlu0 %4635
  %v4638 = vmul.f32 %v4634, %v4636
  %4640 = vrot.lane.b32.xlu0 %v4638, 16
  %v4641 = vpop.permute.xlu0 %4640
  %v4643 = vadd.f32 %v602, %v4641
  %v4644 = vtanh.pop %v4643
  %v4645 = vsub.f32 1.0, %v4634
  %4647 = vrot.lane.b32.xlu0 %v4644, 120
  %v4648 = vpop.permute.xlu0 %4647
  %v4650 = vmul.f32 %v4645, %v4648
  %v4651 = vmul.f32 %v4634, %v4544
  %v4652 = vadd.f32 %v4650, %v4651
  %4654 = vrot.lane.b32.xlu0 %v4652, 104
  %v4655 = vpop.permute.xlu0 %4654
  %4657 = vst.msk [vmem:[#allocation2 + $0x20] sm:$0xff] %vm1351, %v4655
  %4658 = vrot.lane.b32.xlu0 %v4652, 96
  %v4659 = vpop.permute.xlu0 %4658
  %v4660 = vsel %vm622, %v4659, 0
  %4662 = vmatprep.subr.mxu0 0.0
  %4663 = vmatpush1.msra.mxu0 0.0
  %4664 = vmatprep.subr.mxu0 0.0
  %4665 = vmatpush1.msra.mxu0 0.0
  %4666 = vmatprep.subr.mxu0 0.0
  %4667 = vmatpush1.msra.mxu0 0.0
  %4668 = vmatprep.subr.mxu0 0.0
  %4669 = vmatpush1.msra.mxu0 0.0
  %4670 = vmatprep.subr.mxu0 0.0
  %4671 = vmatpush1.msra.mxu0 0.0
  %4672 = vmatprep.subr.mxu0 0.0
  %4673 = vmatpush1.msra.mxu0 0.0
  %4674 = vmatprep.subr.mxu0 0.0
  %4675 = vmatpush1.msra.mxu0 0.0
  %4676 = vmatprep.subr.mxu0 0.0
  %4677 = vmatpush1.msra.mxu0 0.0
  %4678 = vmatprep.subr.mxu0 0.0
  %4679 = vmatpush1.msra.mxu0 0.0
  %4680 = vmatprep.subr.mxu0 0.0
  %4681 = vmatpush1.msra.mxu0 0.0
  %4682 = vmatprep.subr.mxu0 0.0
  %4683 = vmatpush1.msra.mxu0 0.0
  %4684 = vmatprep.subr.mxu0 0.0
  %4685 = vmatpush1.msra.mxu0 0.0
  %4686 = vmatprep.subr.mxu0 0.0
  %4687 = vmatpush1.msra.mxu0 0.0
  %4688 = vmatprep.subr.mxu0 0.0
  %4689 = vmatpush1.msra.mxu0 0.0
  %4690 = vmatprep.subr.mxu0 0.0
  %4691 = vmatpush1.msra.mxu0 0.0
  %4692 = vmatprep.subr.mxu0 0.0
  %4693 = vmatpush1.msra.mxu0 %v612
  %4694 = vmatprep.subr.mxu0 0.0
  %4695 = vmatpush2.msra.mxu0 0.0
  %4696 = vmatprep.subr.mxu0 0.0
  %4697 = vmatpush2.msra.mxu0 0.0
  %4698 = vmatprep.subr.mxu0 0.0
  %4699 = vmatpush2.msra.mxu0 0.0
  %4700 = vmatprep.subr.mxu0 0.0
  %4701 = vmatpush2.msra.mxu0 0.0
  %4702 = vmatprep.subr.mxu0 0.0
  %4703 = vmatpush2.msra.mxu0 0.0
  %4704 = vmatprep.subr.mxu0 0.0
  %4705 = vmatpush2.msra.mxu0 0.0
  %4706 = vmatprep.subr.mxu0 0.0
  %4707 = vmatpush2.msra.mxu0 0.0
  %4708 = vmatprep.subr.mxu0 0.0
  %4709 = vmatpush2.msra.mxu0 0.0
  %4710 = vmatprep.subr.mxu0 0.0
  %4711 = vmatpush2.msra.mxu0 0.0
  %4712 = vmatprep.subr.mxu0 0.0
  %4713 = vmatpush2.msra.mxu0 0.0
  %4714 = vmatprep.subr.mxu0 0.0
  %4715 = vmatpush2.msra.mxu0 0.0
  %4716 = vmatprep.subr.mxu0 0.0
  %4717 = vmatpush2.msra.mxu0 0.0
  %4718 = vmatprep.subr.mxu0 0.0
  %4719 = vmatpush2.msra.mxu0 0.0
  %4720 = vmatprep.subr.mxu0 0.0
  %4721 = vmatpush2.msra.mxu0 0.0
  %4722 = vmatprep.subr.mxu0 0.0
  %4723 = vmatpush2.msra.mxu0 0.0
  %4724 = vmatprep.subr.mxu0 0.0
  %4725 = vmatpush2.msra.mxu0 0.0
  %4726 = vmatprep.mubr.f32.mxu0 0.0
  %4727 = vmatmul.mubr.f32.gmra.mxu0 %v4660
  %v4728 = vpop.f32.mrf.mxu0
  %v4729 = vadd.f32 %v1246, %v4728
  %v4730 = vpop.f32.mrf.mxu0
  %4731 = vdwg.mxu0
  %4733 = vrot.lane.b32.xlu0 %v4729, 24
  %v4734 = vpop.permute.xlu0 %4733
  %v4736 = vadd.f32 %v597, %v4734
  %v4737 = vxor.u32 %v4736, 2147483648
  %v4738 = vmul.f32 %v4737, 1.442695
  %v4739 = vpow.pop %v4738
  %v4740 = vadd.f32 %v4739, 1.0
  %v4741 = vrcp.pop %v4740
  %v4742 = vmul.f32 1.0, %v4741
  %4743 = vrot.lane.b32.xlu0 %v4729, 8
  %v4744 = vpop.permute.xlu0 %4743
  %v4746 = vmul.f32 %v4742, %v4744
  %4748 = vrot.lane.b32.xlu0 %v4746, 16
  %v4749 = vpop.permute.xlu0 %4748
  %v4751 = vadd.f32 %v597, %v4749
  %v4752 = vtanh.pop %v4751
  %v4753 = vsub.f32 1.0, %v4742
  %4755 = vrot.lane.b32.xlu0 %v4752, 120
  %v4756 = vpop.permute.xlu0 %4755
  %v4758 = vmul.f32 %v4753, %v4756
  %v4759 = vmul.f32 %v4742, %v4652
  %v4760 = vadd.f32 %v4758, %v4759
  %4762 = vrot.lane.b32.xlu0 %v4760, 104
  %v4763 = vpop.permute.xlu0 %4762
  %4765 = vst.msk [vmem:[#allocation2 + $0x18] sm:$0xff] %vm1351, %v4763
  %4766 = vrot.lane.b32.xlu0 %v4760, 96
  %v4767 = vpop.permute.xlu0 %4766
  %v4768 = vsel %vm622, %v4767, 0
  %4770 = vmatprep.subr.mxu0 0.0
  %4771 = vmatpush1.msra.mxu0 0.0
  %4772 = vmatprep.subr.mxu0 0.0
  %4773 = vmatpush1.msra.mxu0 0.0
  %4774 = vmatprep.subr.mxu0 0.0
  %4775 = vmatpush1.msra.mxu0 0.0
  %4776 = vmatprep.subr.mxu0 0.0
  %4777 = vmatpush1.msra.mxu0 0.0
  %4778 = vmatprep.subr.mxu0 0.0
  %4779 = vmatpush1.msra.mxu0 0.0
  %4780 = vmatprep.subr.mxu0 0.0
  %4781 = vmatpush1.msra.mxu0 0.0
  %4782 = vmatprep.subr.mxu0 0.0
  %4783 = vmatpush1.msra.mxu0 0.0
  %4784 = vmatprep.subr.mxu0 0.0
  %4785 = vmatpush1.msra.mxu0 0.0
  %4786 = vmatprep.subr.mxu0 0.0
  %4787 = vmatpush1.msra.mxu0 0.0
  %4788 = vmatprep.subr.mxu0 0.0
  %4789 = vmatpush1.msra.mxu0 0.0
  %4790 = vmatprep.subr.mxu0 0.0
  %4791 = vmatpush1.msra.mxu0 0.0
  %4792 = vmatprep.subr.mxu0 0.0
  %4793 = vmatpush1.msra.mxu0 0.0
  %4794 = vmatprep.subr.mxu0 0.0
  %4795 = vmatpush1.msra.mxu0 0.0
  %4796 = vmatprep.subr.mxu0 0.0
  %4797 = vmatpush1.msra.mxu0 0.0
  %4798 = vmatprep.subr.mxu0 0.0
  %4799 = vmatpush1.msra.mxu0 0.0
  %4800 = vmatprep.subr.mxu0 0.0
  %4801 = vmatpush1.msra.mxu0 %v612
  %4802 = vmatprep.subr.mxu0 0.0
  %4803 = vmatpush2.msra.mxu0 0.0
  %4804 = vmatprep.subr.mxu0 0.0
  %4805 = vmatpush2.msra.mxu0 0.0
  %4806 = vmatprep.subr.mxu0 0.0
  %4807 = vmatpush2.msra.mxu0 0.0
  %4808 = vmatprep.subr.mxu0 0.0
  %4809 = vmatpush2.msra.mxu0 0.0
  %4810 = vmatprep.subr.mxu0 0.0
  %4811 = vmatpush2.msra.mxu0 0.0
  %4812 = vmatprep.subr.mxu0 0.0
  %4813 = vmatpush2.msra.mxu0 0.0
  %4814 = vmatprep.subr.mxu0 0.0
  %4815 = vmatpush2.msra.mxu0 0.0
  %4816 = vmatprep.subr.mxu0 0.0
  %4817 = vmatpush2.msra.mxu0 0.0
  %4818 = vmatprep.subr.mxu0 0.0
  %4819 = vmatpush2.msra.mxu0 0.0
  %4820 = vmatprep.subr.mxu0 0.0
  %4821 = vmatpush2.msra.mxu0 0.0
  %4822 = vmatprep.subr.mxu0 0.0
  %4823 = vmatpush2.msra.mxu0 0.0
  %4824 = vmatprep.subr.mxu0 0.0
  %4825 = vmatpush2.msra.mxu0 0.0
  %4826 = vmatprep.subr.mxu0 0.0
  %4827 = vmatpush2.msra.mxu0 0.0
  %4828 = vmatprep.subr.mxu0 0.0
  %4829 = vmatpush2.msra.mxu0 0.0
  %4830 = vmatprep.subr.mxu0 0.0
  %4831 = vmatpush2.msra.mxu0 0.0
  %4832 = vmatprep.subr.mxu0 0.0
  %4833 = vmatpush2.msra.mxu0 0.0
  %4834 = vmatprep.mubr.f32.mxu0 0.0
  %4835 = vmatmul.mubr.f32.gmra.mxu0 %v4768
  %v4836 = vpop.f32.mrf.mxu0
  %v4837 = vadd.f32 %v1246, %v4836
  %v4838 = vpop.f32.mrf.mxu0
  %4839 = vdwg.mxu0
  %4841 = vrot.lane.b32.xlu0 %v4837, 24
  %v4842 = vpop.permute.xlu0 %4841
  %v4844 = vadd.f32 %v592, %v4842
  %v4845 = vxor.u32 %v4844, 2147483648
  %v4846 = vmul.f32 %v4845, 1.442695
  %v4847 = vpow.pop %v4846
  %v4848 = vadd.f32 %v4847, 1.0
  %v4849 = vrcp.pop %v4848
  %v4850 = vmul.f32 1.0, %v4849
  %4851 = vrot.lane.b32.xlu0 %v4837, 8
  %v4852 = vpop.permute.xlu0 %4851
  %v4854 = vmul.f32 %v4850, %v4852
  %4856 = vrot.lane.b32.xlu0 %v4854, 16
  %v4857 = vpop.permute.xlu0 %4856
  %v4859 = vadd.f32 %v592, %v4857
  %v4860 = vtanh.pop %v4859
  %v4861 = vsub.f32 1.0, %v4850
  %4863 = vrot.lane.b32.xlu0 %v4860, 120
  %v4864 = vpop.permute.xlu0 %4863
  %v4866 = vmul.f32 %v4861, %v4864
  %v4867 = vmul.f32 %v4850, %v4760
  %v4868 = vadd.f32 %v4866, %v4867
  %4870 = vrot.lane.b32.xlu0 %v4868, 104
  %v4871 = vpop.permute.xlu0 %4870
  %4873 = vst.msk [vmem:[#allocation2 + $0x10] sm:$0xff] %vm1351, %v4871
  %4874 = vrot.lane.b32.xlu0 %v4868, 96
  %v4875 = vpop.permute.xlu0 %4874
  %v4876 = vsel %vm622, %v4875, 0
  %4878 = vmatprep.subr.mxu0 0.0
  %4879 = vmatpush1.msra.mxu0 0.0
  %4880 = vmatprep.subr.mxu0 0.0
  %4881 = vmatpush1.msra.mxu0 0.0
  %4882 = vmatprep.subr.mxu0 0.0
  %4883 = vmatpush1.msra.mxu0 0.0
  %4884 = vmatprep.subr.mxu0 0.0
  %4885 = vmatpush1.msra.mxu0 0.0
  %4886 = vmatprep.subr.mxu0 0.0
  %4887 = vmatpush1.msra.mxu0 0.0
  %4888 = vmatprep.subr.mxu0 0.0
  %4889 = vmatpush1.msra.mxu0 0.0
  %4890 = vmatprep.subr.mxu0 0.0
  %4891 = vmatpush1.msra.mxu0 0.0
  %4892 = vmatprep.subr.mxu0 0.0
  %4893 = vmatpush1.msra.mxu0 0.0
  %4894 = vmatprep.subr.mxu0 0.0
  %4895 = vmatpush1.msra.mxu0 0.0
  %4896 = vmatprep.subr.mxu0 0.0
  %4897 = vmatpush1.msra.mxu0 0.0
  %4898 = vmatprep.subr.mxu0 0.0
  %4899 = vmatpush1.msra.mxu0 0.0
  %4900 = vmatprep.subr.mxu0 0.0
  %4901 = vmatpush1.msra.mxu0 0.0
  %4902 = vmatprep.subr.mxu0 0.0
  %4903 = vmatpush1.msra.mxu0 0.0
  %4904 = vmatprep.subr.mxu0 0.0
  %4905 = vmatpush1.msra.mxu0 0.0
  %4906 = vmatprep.subr.mxu0 0.0
  %4907 = vmatpush1.msra.mxu0 0.0
  %4908 = vmatprep.subr.mxu0 0.0
  %4909 = vmatpush1.msra.mxu0 %v612
  %4910 = vmatprep.subr.mxu0 0.0
  %4911 = vmatpush2.msra.mxu0 0.0
  %4912 = vmatprep.subr.mxu0 0.0
  %4913 = vmatpush2.msra.mxu0 0.0
  %4914 = vmatprep.subr.mxu0 0.0
  %4915 = vmatpush2.msra.mxu0 0.0
  %4916 = vmatprep.subr.mxu0 0.0
  %4917 = vmatpush2.msra.mxu0 0.0
  %4918 = vmatprep.subr.mxu0 0.0
  %4919 = vmatpush2.msra.mxu0 0.0
  %4920 = vmatprep.subr.mxu0 0.0
  %4921 = vmatpush2.msra.mxu0 0.0
  %4922 = vmatprep.subr.mxu0 0.0
  %4923 = vmatpush2.msra.mxu0 0.0
  %4924 = vmatprep.subr.mxu0 0.0
  %4925 = vmatpush2.msra.mxu0 0.0
  %4926 = vmatprep.subr.mxu0 0.0
  %4927 = vmatpush2.msra.mxu0 0.0
  %4928 = vmatprep.subr.mxu0 0.0
  %4929 = vmatpush2.msra.mxu0 0.0
  %4930 = vmatprep.subr.mxu0 0.0
  %4931 = vmatpush2.msra.mxu0 0.0
  %4932 = vmatprep.subr.mxu0 0.0
  %4933 = vmatpush2.msra.mxu0 0.0
  %4934 = vmatprep.subr.mxu0 0.0
  %4935 = vmatpush2.msra.mxu0 0.0
  %4936 = vmatprep.subr.mxu0 0.0
  %4937 = vmatpush2.msra.mxu0 0.0
  %4938 = vmatprep.subr.mxu0 0.0
  %4939 = vmatpush2.msra.mxu0 0.0
  %4940 = vmatprep.subr.mxu0 0.0
  %4941 = vmatpush2.msra.mxu0 0.0
  %4942 = vmatprep.mubr.f32.mxu0 0.0
  %4943 = vmatmul.mubr.f32.gmra.mxu0 %v4876
  %v4944 = vpop.f32.mrf.mxu0
  %v4945 = vadd.f32 %v1246, %v4944
  %v4946 = vpop.f32.mrf.mxu0
  %4947 = vdwg.mxu0
  %4949 = vrot.lane.b32.xlu0 %v4945, 24
  %v4950 = vpop.permute.xlu0 %4949
  %v4952 = vadd.f32 %v587, %v4950
  %v4953 = vxor.u32 %v4952, 2147483648
  %v4954 = vmul.f32 %v4953, 1.442695
  %v4955 = vpow.pop %v4954
  %v4956 = vadd.f32 %v4955, 1.0
  %v4957 = vrcp.pop %v4956
  %v4958 = vmul.f32 1.0, %v4957
  %4959 = vrot.lane.b32.xlu0 %v4945, 8
  %v4960 = vpop.permute.xlu0 %4959
  %v4962 = vmul.f32 %v4958, %v4960
  %4964 = vrot.lane.b32.xlu0 %v4962, 16
  %v4965 = vpop.permute.xlu0 %4964
  %v4967 = vadd.f32 %v587, %v4965
  %v4968 = vtanh.pop %v4967
  %v4969 = vsub.f32 1.0, %v4958
  %4971 = vrot.lane.b32.xlu0 %v4968, 120
  %v4972 = vpop.permute.xlu0 %4971
  %v4974 = vmul.f32 %v4969, %v4972
  %v4975 = vmul.f32 %v4958, %v4868
  %v4976 = vadd.f32 %v4974, %v4975
  %4978 = vrot.lane.b32.xlu0 %v4976, 104
  %v4979 = vpop.permute.xlu0 %4978
  %4981 = vst.msk [vmem:[#allocation2 + $0x8] sm:$0xff] %vm1351, %v4979
  %4982 = vrot.lane.b32.xlu0 %v4976, 96
  %v4983 = vpop.permute.xlu0 %4982
  %v4984 = vsel %vm622, %v4983, 0
  %4986 = vmatprep.subr.mxu0 0.0
  %4987 = vmatpush1.msra.mxu0 0.0
  %4988 = vmatprep.subr.mxu0 0.0
  %4989 = vmatpush1.msra.mxu0 0.0
  %4990 = vmatprep.subr.mxu0 0.0
  %4991 = vmatpush1.msra.mxu0 0.0
  %4992 = vmatprep.subr.mxu0 0.0
  %4993 = vmatpush1.msra.mxu0 0.0
  %4994 = vmatprep.subr.mxu0 0.0
  %4995 = vmatpush1.msra.mxu0 0.0
  %4996 = vmatprep.subr.mxu0 0.0
  %4997 = vmatpush1.msra.mxu0 0.0
  %4998 = vmatprep.subr.mxu0 0.0
  %4999 = vmatpush1.msra.mxu0 0.0
  %5000 = vmatprep.subr.mxu0 0.0
  %5001 = vmatpush1.msra.mxu0 0.0
  %5002 = vmatprep.subr.mxu0 0.0
  %5003 = vmatpush1.msra.mxu0 0.0
  %5004 = vmatprep.subr.mxu0 0.0
  %5005 = vmatpush1.msra.mxu0 0.0
  %5006 = vmatprep.subr.mxu0 0.0
  %5007 = vmatpush1.msra.mxu0 0.0
  %5008 = vmatprep.subr.mxu0 0.0
  %5009 = vmatpush1.msra.mxu0 0.0
  %5010 = vmatprep.subr.mxu0 0.0
  %5011 = vmatpush1.msra.mxu0 0.0
  %5012 = vmatprep.subr.mxu0 0.0
  %5013 = vmatpush1.msra.mxu0 0.0
  %5014 = vmatprep.subr.mxu0 0.0
  %5015 = vmatpush1.msra.mxu0 0.0
  %5016 = vmatprep.subr.mxu0 0.0
  %5017 = vmatpush1.msra.mxu0 %v612
  %5018 = vmatprep.subr.mxu0 0.0
  %5019 = vmatpush2.msra.mxu0 0.0
  %5020 = vmatprep.subr.mxu0 0.0
  %5021 = vmatpush2.msra.mxu0 0.0
  %5022 = vmatprep.subr.mxu0 0.0
  %5023 = vmatpush2.msra.mxu0 0.0
  %5024 = vmatprep.subr.mxu0 0.0
  %5025 = vmatpush2.msra.mxu0 0.0
  %5026 = vmatprep.subr.mxu0 0.0
  %5027 = vmatpush2.msra.mxu0 0.0
  %5028 = vmatprep.subr.mxu0 0.0
  %5029 = vmatpush2.msra.mxu0 0.0
  %5030 = vmatprep.subr.mxu0 0.0
  %5031 = vmatpush2.msra.mxu0 0.0
  %5032 = vmatprep.subr.mxu0 0.0
  %5033 = vmatpush2.msra.mxu0 0.0
  %5034 = vmatprep.subr.mxu0 0.0
  %5035 = vmatpush2.msra.mxu0 0.0
  %5036 = vmatprep.subr.mxu0 0.0
  %5037 = vmatpush2.msra.mxu0 0.0
  %5038 = vmatprep.subr.mxu0 0.0
  %5039 = vmatpush2.msra.mxu0 0.0
  %5040 = vmatprep.subr.mxu0 0.0
  %5041 = vmatpush2.msra.mxu0 0.0
  %5042 = vmatprep.subr.mxu0 0.0
  %5043 = vmatpush2.msra.mxu0 0.0
  %5044 = vmatprep.subr.mxu0 0.0
  %5045 = vmatpush2.msra.mxu0 0.0
  %5046 = vmatprep.subr.mxu0 0.0
  %5047 = vmatpush2.msra.mxu0 0.0
  %5048 = vmatprep.subr.mxu0 0.0
  %5049 = vmatpush2.msra.mxu0 0.0
  %5050 = vmatprep.mubr.f32.mxu0 0.0
  %5051 = vmatmul.mubr.f32.gmra.mxu0 %v4984
  %v5052 = vpop.f32.mrf.mxu0
  %v5053 = vadd.f32 %v1246, %v5052
  %v5054 = vpop.f32.mrf.mxu0
  %5055 = vdwg.mxu0
  %5057 = vrot.lane.b32.xlu0 %v5053, 24
  %v5058 = vpop.permute.xlu0 %5057
  %v5060 = vadd.f32 %v582, %v5058
  %v5061 = vxor.u32 %v5060, 2147483648
  %v5062 = vmul.f32 %v5061, 1.442695
  %v5063 = vpow.pop %v5062
  %v5064 = vadd.f32 %v5063, 1.0
  %v5065 = vrcp.pop %v5064
  %v5066 = vmul.f32 1.0, %v5065
  %5067 = vrot.lane.b32.xlu0 %v5053, 8
  %v5068 = vpop.permute.xlu0 %5067
  %v5070 = vmul.f32 %v5066, %v5068
  %5072 = vrot.lane.b32.xlu0 %v5070, 16
  %v5073 = vpop.permute.xlu0 %5072
  %v5075 = vadd.f32 %v582, %v5073
  %v5076 = vtanh.pop %v5075
  %v5077 = vsub.f32 1.0, %v5066
  %5079 = vrot.lane.b32.xlu0 %v5076, 120
  %v5080 = vpop.permute.xlu0 %5079
  %v5082 = vmul.f32 %v5077, %v5080
  %v5083 = vmul.f32 %v5066, %v4976
  %v5084 = vadd.f32 %v5082, %v5083
  %5086 = vrot.lane.b32.xlu0 %v5084, 104
  %v5087 = vpop.permute.xlu0 %5086
  %5089 = vst.msk [vmem:[#allocation2] sm:$0xff] %vm1351, %v5087
  %v5090 = vld [vmem:[#allocation2] sm:$0xff]
  %v5091 = vld [vmem:[#allocation2 + $0x8] sm:$0xff]
  %v5092 = vld [vmem:[#allocation2 + $0x10] sm:$0xff]
  %v5093 = vld [vmem:[#allocation2 + $0x18] sm:$0xff]
  %v5094 = vld [vmem:[#allocation2 + $0x20] sm:$0xff]
  %v5095 = vld [vmem:[#allocation2 + $0x28] sm:$0xff]
  %v5096 = vld [vmem:[%s10] sm:$0xff]
  %v5097 = vld [vmem:[%s10 + $0x8] sm:$0xff]
  %v5098 = vld [vmem:[%s11] sm:$0x1]
  %v5099 = vld [vmem:[%s12] sm:$0xff]
  %v5100 = vld [vmem:[%s12 + $0x8] sm:$0xff]
  %v5102 = vlaneseq
  %v5103 = vshrl.u32 %v5102, 7
  %v5104 = vsub.s32 0, %v5103
  %v5105 = vrot.slane %v5098, %v5104
  %v5108 = vsel %vm1910, %v5090, 0
  %v5111 = vsel %vm1910, %v5091, 0
  %v5114 = vsel %vm1910, %v5092, 0
  %v5117 = vsel %vm1910, %v5093, 0
  %v5120 = vsel %vm1910, %v5094, 0
  %v5123 = vsel %vm1910, %v5095, 0
  %5125 = vmatprep.subr.mxu0 0.0
  %5126 = vmatpush1.msra.mxu0 0.0
  %5127 = vmatprep.subr.mxu0 0.0
  %5128 = vmatpush1.msra.mxu0 0.0
  %5129 = vmatprep.subr.mxu0 0.0
  %5130 = vmatpush1.msra.mxu0 0.0
  %5131 = vmatprep.subr.mxu0 0.0
  %5132 = vmatpush1.msra.mxu0 0.0
  %5133 = vmatprep.subr.mxu0 0.0
  %5134 = vmatpush1.msra.mxu0 0.0
  %5135 = vmatprep.subr.mxu0 0.0
  %5136 = vmatpush1.msra.mxu0 0.0
  %5137 = vmatprep.subr.mxu0 0.0
  %5138 = vmatpush1.msra.mxu0 0.0
  %5139 = vmatprep.subr.mxu0 0.0
  %5140 = vmatpush1.msra.mxu0 0.0
  %5141 = vmatprep.subr.mxu0 0.0
  %5142 = vmatpush1.msra.mxu0 0.0
  %5143 = vmatprep.subr.mxu0 0.0
  %5144 = vmatpush1.msra.mxu0 0.0
  %5145 = vmatprep.subr.mxu0 0.0
  %5146 = vmatpush1.msra.mxu0 0.0
  %5147 = vmatprep.subr.mxu0 0.0
  %5148 = vmatpush1.msra.mxu0 0.0
  %5149 = vmatprep.subr.mxu0 0.0
  %5150 = vmatpush1.msra.mxu0 0.0
  %5151 = vmatprep.subr.mxu0 0.0
  %5152 = vmatpush1.msra.mxu0 0.0
  %5153 = vmatprep.subr.mxu0 0.0
  %5154 = vmatpush1.msra.mxu0 %v5097
  %5155 = vmatprep.subr.mxu0 0.0
  %5156 = vmatpush1.msra.mxu0 %v5096
  %5157 = vmatprep.subr.mxu0 0.0
  %5158 = vmatpush2.msra.mxu0 0.0
  %5159 = vmatprep.subr.mxu0 0.0
  %5160 = vmatpush2.msra.mxu0 0.0
  %5161 = vmatprep.subr.mxu0 0.0
  %5162 = vmatpush2.msra.mxu0 0.0
  %5163 = vmatprep.subr.mxu0 0.0
  %5164 = vmatpush2.msra.mxu0 0.0
  %5165 = vmatprep.subr.mxu0 0.0
  %5166 = vmatpush2.msra.mxu0 0.0
  %5167 = vmatprep.subr.mxu0 0.0
  %5168 = vmatpush2.msra.mxu0 0.0
  %5169 = vmatprep.subr.mxu0 0.0
  %5170 = vmatpush2.msra.mxu0 0.0
  %5171 = vmatprep.subr.mxu0 0.0
  %5172 = vmatpush2.msra.mxu0 0.0
  %5173 = vmatprep.subr.mxu0 0.0
  %5174 = vmatpush2.msra.mxu0 0.0
  %5175 = vmatprep.subr.mxu0 0.0
  %5176 = vmatpush2.msra.mxu0 0.0
  %5177 = vmatprep.subr.mxu0 0.0
  %5178 = vmatpush2.msra.mxu0 0.0
  %5179 = vmatprep.subr.mxu0 0.0
  %5180 = vmatpush2.msra.mxu0 0.0
  %5181 = vmatprep.subr.mxu0 0.0
  %5182 = vmatpush2.msra.mxu0 0.0
  %5183 = vmatprep.subr.mxu0 0.0
  %5184 = vmatpush2.msra.mxu0 0.0
  %5185 = vmatprep.subr.mxu0 0.0
  %5186 = vmatpush2.msra.mxu0 0.0
  %5187 = vmatprep.subr.mxu0 0.0
  %5188 = vmatpush2.msra.mxu0 0.0
  %5189 = vmatprep.mubr.f32.mxu0 0.0
  %5190 = vmatmul.mubr.f32.gmra.mxu0 %v5108
  %v5191 = vpop.f32.mrf.mxu0
  %v5192 = vadd.f32 %v5105, %v5191
  %v5193 = vpop.f32.mrf.mxu0
  %5194 = vmatprep.mubr.f32.mxu0 0.0
  %5195 = vmatmul.mubr.f32.gmra.mxu0 %v5111
  %v5196 = vpop.f32.mrf.mxu0
  %v5197 = vadd.f32 %v5105, %v5196
  %v5198 = vpop.f32.mrf.mxu0
  %5199 = vmatprep.mubr.f32.mxu0 0.0
  %5200 = vmatmul.mubr.f32.gmra.mxu0 %v5114
  %v5201 = vpop.f32.mrf.mxu0
  %v5202 = vadd.f32 %v5105, %v5201
  %v5203 = vpop.f32.mrf.mxu0
  %5204 = vmatprep.mubr.f32.mxu0 0.0
  %5205 = vmatmul.mubr.f32.gmra.mxu0 %v5117
  %v5206 = vpop.f32.mrf.mxu0
  %v5207 = vadd.f32 %v5105, %v5206
  %v5208 = vpop.f32.mrf.mxu0
  %5209 = vmatprep.mubr.f32.mxu0 0.0
  %5210 = vmatmul.mubr.f32.gmra.mxu0 %v5120
  %v5211 = vpop.f32.mrf.mxu0
  %v5212 = vadd.f32 %v5105, %v5211
  %v5213 = vpop.f32.mrf.mxu0
  %5214 = vmatprep.mubr.f32.mxu0 0.0
  %5215 = vmatmul.mubr.f32.gmra.mxu0 %v5123
  %v5216 = vpop.f32.mrf.mxu0
  %v5217 = vadd.f32 %v5105, %v5216
  %v5218 = vpop.f32.mrf.mxu0
  %5219 = vdwg.mxu0
  %v5220 = vtanh.pop %v5192
  %v5221 = vtanh.pop %v5197
  %v5222 = vtanh.pop %v5202
  %v5223 = vtanh.pop %v5207
  %v5224 = vtanh.pop %v5212
  %v5225 = vtanh.pop %v5217
  %v5227 = vsel %vm1910, %v5220, 0
  %v5230 = vsel %vm1910, %v5221, 0
  %v5233 = vsel %vm1910, %v5222, 0
  %v5236 = vsel %vm1910, %v5223, 0
  %v5239 = vsel %vm1910, %v5224, 0
  %v5242 = vsel %vm1910, %v5225, 0
  %5244 = vmatprep.subr.mxu0 0.0
  %5245 = vmatpush1.msra.mxu0 0.0
  %5246 = vmatprep.subr.mxu0 0.0
  %5247 = vmatpush1.msra.mxu0 0.0
  %5248 = vmatprep.subr.mxu0 0.0
  %5249 = vmatpush1.msra.mxu0 0.0
  %5250 = vmatprep.subr.mxu0 0.0
  %5251 = vmatpush1.msra.mxu0 0.0
  %5252 = vmatprep.subr.mxu0 0.0
  %5253 = vmatpush1.msra.mxu0 0.0
  %5254 = vmatprep.subr.mxu0 0.0
  %5255 = vmatpush1.msra.mxu0 0.0
  %5256 = vmatprep.subr.mxu0 0.0
  %5257 = vmatpush1.msra.mxu0 0.0
  %5258 = vmatprep.subr.mxu0 0.0
  %5259 = vmatpush1.msra.mxu0 0.0
  %5260 = vmatprep.subr.mxu0 0.0
  %5261 = vmatpush1.msra.mxu0 0.0
  %5262 = vmatprep.subr.mxu0 0.0
  %5263 = vmatpush1.msra.mxu0 0.0
  %5264 = vmatprep.subr.mxu0 0.0
  %5265 = vmatpush1.msra.mxu0 0.0
  %5266 = vmatprep.subr.mxu0 0.0
  %5267 = vmatpush1.msra.mxu0 0.0
  %5268 = vmatprep.subr.mxu0 0.0
  %5269 = vmatpush1.msra.mxu0 0.0
  %5270 = vmatprep.subr.mxu0 0.0
  %5271 = vmatpush1.msra.mxu0 0.0
  %5272 = vmatprep.subr.mxu0 0.0
  %5273 = vmatpush1.msra.mxu0 %v5100
  %5274 = vmatprep.subr.mxu0 0.0
  %5275 = vmatpush1.msra.mxu0 %v5099
  %5276 = vmatprep.subr.mxu0 0.0
  %5277 = vmatpush2.msra.mxu0 0.0
  %5278 = vmatprep.subr.mxu0 0.0
  %5279 = vmatpush2.msra.mxu0 0.0
  %5280 = vmatprep.subr.mxu0 0.0
  %5281 = vmatpush2.msra.mxu0 0.0
  %5282 = vmatprep.subr.mxu0 0.0
  %5283 = vmatpush2.msra.mxu0 0.0
  %5284 = vmatprep.subr.mxu0 0.0
  %5285 = vmatpush2.msra.mxu0 0.0
  %5286 = vmatprep.subr.mxu0 0.0
  %5287 = vmatpush2.msra.mxu0 0.0
  %5288 = vmatprep.subr.mxu0 0.0
  %5289 = vmatpush2.msra.mxu0 0.0
  %5290 = vmatprep.subr.mxu0 0.0
  %5291 = vmatpush2.msra.mxu0 0.0
  %5292 = vmatprep.subr.mxu0 0.0
  %5293 = vmatpush2.msra.mxu0 0.0
  %5294 = vmatprep.subr.mxu0 0.0
  %5295 = vmatpush2.msra.mxu0 0.0
  %5296 = vmatprep.subr.mxu0 0.0
  %5297 = vmatpush2.msra.mxu0 0.0
  %5298 = vmatprep.subr.mxu0 0.0
  %5299 = vmatpush2.msra.mxu0 0.0
  %5300 = vmatprep.subr.mxu0 0.0
  %5301 = vmatpush2.msra.mxu0 0.0
  %5302 = vmatprep.subr.mxu0 0.0
  %5303 = vmatpush2.msra.mxu0 0.0
  %5304 = vmatprep.subr.mxu0 0.0
  %5305 = vmatpush2.msra.mxu0 0.0
  %5306 = vmatprep.subr.mxu0 0.0
  %5307 = vmatpush2.msra.mxu0 0.0
  %5308 = vmatprep.mubr.f32.mxu0 0.0
  %5309 = vmatmul.mubr.f32.gmra.mxu0 %v5227
  %v5310 = vpop.f32.mrf.mxu0
  %v5311 = vadd.f32 0.0, %v5310
  %v5312 = vpop.f32.mrf.mxu0
  %5313 = vmatprep.mubr.f32.mxu0 0.0
  %5314 = vmatmul.mubr.f32.gmra.mxu0 %v5230
  %v5315 = vpop.f32.mrf.mxu0
  %v5316 = vadd.f32 0.0, %v5315
  %v5317 = vpop.f32.mrf.mxu0
  %5318 = vmatprep.mubr.f32.mxu0 0.0
  %5319 = vmatmul.mubr.f32.gmra.mxu0 %v5233
  %v5320 = vpop.f32.mrf.mxu0
  %v5321 = vadd.f32 0.0, %v5320
  %v5322 = vpop.f32.mrf.mxu0
  %5323 = vmatprep.mubr.f32.mxu0 0.0
  %5324 = vmatmul.mubr.f32.gmra.mxu0 %v5236
  %v5325 = vpop.f32.mrf.mxu0
  %v5326 = vadd.f32 0.0, %v5325
  %v5327 = vpop.f32.mrf.mxu0
  %5328 = vmatprep.mubr.f32.mxu0 0.0
  %5329 = vmatmul.mubr.f32.gmra.mxu0 %v5239
  %v5330 = vpop.f32.mrf.mxu0
  %v5331 = vadd.f32 0.0, %v5330
  %v5332 = vpop.f32.mrf.mxu0
  %5333 = vmatprep.mubr.f32.mxu0 0.0
  %5334 = vmatmul.mubr.f32.gmra.mxu0 %v5242
  %v5335 = vpop.f32.mrf.mxu0
  %v5336 = vadd.f32 0.0, %v5335
  %v5337 = vpop.f32.mrf.mxu0
  %5338 = vdwg.mxu0
  %v5339 = vtanh.pop %v5311
  %v5340 = vtanh.pop %v5316
  %v5341 = vtanh.pop %v5321
  %v5342 = vtanh.pop %v5326
  %v5343 = vtanh.pop %v5331
  %v5344 = vtanh.pop %v5336
  %v5345 = vmax.f32 %v5339, %v5340
  %v5346 = vmax.f32 %v5345, %v5341
  %v5347 = vmax.f32 %v5346, %v5342
  %v5348 = vmax.f32 %v5347, %v5343
  %v5349 = vmax.f32 %v5348, %v5344
  %v5350 = vsub.f32 %v5339, %v5349
  %v5351 = vmul.f32 %v5350, 1.442695
  %v5352 = vpow.pop %v5351
  %v5353 = vsub.f32 %v5340, %v5349
  %v5354 = vmul.f32 %v5353, 1.442695
  %v5355 = vpow.pop %v5354
  %v5356 = vsub.f32 %v5341, %v5349
  %v5357 = vmul.f32 %v5356, 1.442695
  %v5358 = vpow.pop %v5357
  %v5359 = vsub.f32 %v5342, %v5349
  %v5360 = vmul.f32 %v5359, 1.442695
  %v5361 = vpow.pop %v5360
  %v5362 = vsub.f32 %v5343, %v5349
  %v5363 = vmul.f32 %v5362, 1.442695
  %v5364 = vpow.pop %v5363
  %v5365 = vsub.f32 %v5344, %v5349
  %v5366 = vmul.f32 %v5365, 1.442695
  %v5367 = vpow.pop %v5366
  %v5368 = vadd.f32 %v5352, %v5355
  %v5369 = vadd.f32 %v5368, %v5358
  %v5370 = vadd.f32 %v5369, %v5361
  %v5371 = vadd.f32 %v5370, %v5364
  %v5372 = vadd.f32 %v5371, %v5367
  %v5373 = vrcp.pop %v5372
  %v5374 = vmul.f32 %v5352, %v5373
  %5376 = vset.pattern.permute.xlu0 0
  %5377 = vperm.xlu0 %5376, %v5374
  %v5378 = vpop.permute.xlu0 %5377
  %v5380 = vmul.f32 %v5378, %v5090
  %v5381 = vmul.f32 %v5355, %v5373
  %5383 = vset.pattern.permute.xlu0 0
  %5384 = vperm.xlu0 %5383, %v5381
  %v5385 = vpop.permute.xlu0 %5384
  %v5387 = vmul.f32 %v5385, %v5091
  %v5388 = vadd.f32 %v5380, %v5387
  %v5389 = vmul.f32 %v5358, %v5373
  %5391 = vset.pattern.permute.xlu0 0
  %5392 = vperm.xlu0 %5391, %v5389
  %v5393 = vpop.permute.xlu0 %5392
  %v5395 = vmul.f32 %v5393, %v5092
  %v5396 = vadd.f32 %v5388, %v5395
  %v5397 = vmul.f32 %v5361, %v5373
  %5399 = vset.pattern.permute.xlu0 0
  %5400 = vperm.xlu0 %5399, %v5397
  %v5401 = vpop.permute.xlu0 %5400
  %v5403 = vmul.f32 %v5401, %v5093
  %v5404 = vadd.f32 %v5396, %v5403
  %v5405 = vmul.f32 %v5364, %v5373
  %5407 = vset.pattern.permute.xlu0 0
  %5408 = vperm.xlu0 %5407, %v5405
  %v5409 = vpop.permute.xlu0 %5408
  %v5411 = vmul.f32 %v5409, %v5094
  %v5412 = vadd.f32 %v5404, %v5411
  %v5413 = vmul.f32 %v5367, %v5373
  %5415 = vset.pattern.permute.xlu0 0
  %5416 = vperm.xlu0 %5415, %v5413
  %v5417 = vpop.permute.xlu0 %5416
  %v5419 = vmul.f32 %v5417, %v5095
  %v5420 = vadd.f32 %v5412, %v5419
  %5421 = vst.msk [vmem:[#allocation3 + $0x10] sm:$0xff] %vm1910, %v5420
  %v5422 = vld [vmem:[#allocation3] sm:$0xff]
  %v5423 = vld [vmem:[#allocation3 + $0x8] sm:$0xff]
  %v5424 = vld [vmem:[#allocation3 + $0x10] sm:$0xff]
  %v5425 = vld [vmem:[%s6] sm:$0xff]
  %v5426 = vld [vmem:[%s6 + $0x8] sm:$0xff]
  %v5427 = vld [vmem:[%s8] sm:$0x1]
  %v5429 = vlaneseq
  %v5430 = vshrl.u32 %v5429, 7
  %v5431 = vsub.s32 0, %v5430
  %v5432 = vrot.slane %v5427, %v5431
  %v5435 = vsel %vm1910, %v5422, 0
  %v5438 = vsel %vm1910, %v5423, 0
  %v5441 = vsel %vm1910, %v5424, 0
  %5443 = vmatprep.subr.mxu0 0.0
  %5444 = vmatpush1.msra.mxu0 0.0
  %5445 = vmatprep.subr.mxu0 0.0
  %5446 = vmatpush1.msra.mxu0 0.0
  %5447 = vmatprep.subr.mxu0 0.0
  %5448 = vmatpush1.msra.mxu0 0.0
  %5449 = vmatprep.subr.mxu0 0.0
  %5450 = vmatpush1.msra.mxu0 0.0
  %5451 = vmatprep.subr.mxu0 0.0
  %5452 = vmatpush1.msra.mxu0 0.0
  %5453 = vmatprep.subr.mxu0 0.0
  %5454 = vmatpush1.msra.mxu0 0.0
  %5455 = vmatprep.subr.mxu0 0.0
  %5456 = vmatpush1.msra.mxu0 0.0
  %5457 = vmatprep.subr.mxu0 0.0
  %5458 = vmatpush1.msra.mxu0 0.0
  %5459 = vmatprep.subr.mxu0 0.0
  %5460 = vmatpush1.msra.mxu0 0.0
  %5461 = vmatprep.subr.mxu0 0.0
  %5462 = vmatpush1.msra.mxu0 0.0
  %5463 = vmatprep.subr.mxu0 0.0
  %5464 = vmatpush1.msra.mxu0 0.0
  %5465 = vmatprep.subr.mxu0 0.0
  %5466 = vmatpush1.msra.mxu0 0.0
  %5467 = vmatprep.subr.mxu0 0.0
  %5468 = vmatpush1.msra.mxu0 0.0
  %5469 = vmatprep.subr.mxu0 0.0
  %5470 = vmatpush1.msra.mxu0 0.0
  %5471 = vmatprep.subr.mxu0 0.0
  %5472 = vmatpush1.msra.mxu0 %v5426
  %5473 = vmatprep.subr.mxu0 0.0
  %5474 = vmatpush1.msra.mxu0 %v5425
  %5475 = vmatprep.subr.mxu0 0.0
  %5476 = vmatpush2.msra.mxu0 0.0
  %5477 = vmatprep.subr.mxu0 0.0
  %5478 = vmatpush2.msra.mxu0 0.0
  %5479 = vmatprep.subr.mxu0 0.0
  %5480 = vmatpush2.msra.mxu0 0.0
  %5481 = vmatprep.subr.mxu0 0.0
  %5482 = vmatpush2.msra.mxu0 0.0
  %5483 = vmatprep.subr.mxu0 0.0
  %5484 = vmatpush2.msra.mxu0 0.0
  %5485 = vmatprep.subr.mxu0 0.0
  %5486 = vmatpush2.msra.mxu0 0.0
  %5487 = vmatprep.subr.mxu0 0.0
  %5488 = vmatpush2.msra.mxu0 0.0
  %5489 = vmatprep.subr.mxu0 0.0
  %5490 = vmatpush2.msra.mxu0 0.0
  %5491 = vmatprep.subr.mxu0 0.0
  %5492 = vmatpush2.msra.mxu0 0.0
  %5493 = vmatprep.subr.mxu0 0.0
  %5494 = vmatpush2.msra.mxu0 0.0
  %5495 = vmatprep.subr.mxu0 0.0
  %5496 = vmatpush2.msra.mxu0 0.0
  %5497 = vmatprep.subr.mxu0 0.0
  %5498 = vmatpush2.msra.mxu0 0.0
  %5499 = vmatprep.subr.mxu0 0.0
  %5500 = vmatpush2.msra.mxu0 0.0
  %5501 = vmatprep.subr.mxu0 0.0
  %5502 = vmatpush2.msra.mxu0 0.0
  %5503 = vmatprep.subr.mxu0 0.0
  %5504 = vmatpush2.msra.mxu0 0.0
  %5505 = vmatprep.subr.mxu0 0.0
  %5506 = vmatpush2.msra.mxu0 0.0
  %5507 = vmatprep.mubr.f32.mxu0 0.0
  %5508 = vmatmul.mubr.f32.gmra.mxu0 %v5435
  %v5509 = vpop.f32.mrf.mxu0
  %v5510 = vadd.f32 %v5432, %v5509
  %v5511 = vpop.f32.mrf.mxu0
  %5512 = vmatprep.mubr.f32.mxu0 0.0
  %5513 = vmatmul.mubr.f32.gmra.mxu0 %v5438
  %v5514 = vpop.f32.mrf.mxu0
  %v5515 = vadd.f32 %v5432, %v5514
  %v5516 = vpop.f32.mrf.mxu0
  %5517 = vmatprep.mubr.f32.mxu0 0.0
  %5518 = vmatmul.mubr.f32.gmra.mxu0 %v5441
  %v5519 = vpop.f32.mrf.mxu0
  %v5520 = vadd.f32 %v5432, %v5519
  %v5521 = vpop.f32.mrf.mxu0
  %5522 = vdwg.mxu0
  %v5523 = vld [vmem:[%s7] sm:$0xff]
  %s5524 = scalar_lea.vmem %s7, 8
  %v5525 = vld [vmem:[%s5524] sm:$0xff]
  %v5526 = vld [vmem:[%s9] sm:$0x1]
  %s5527 = scalar_lea.vmem %s9, 1
  %v5528 = vld [vmem:[%s5527] sm:$0x1]
  %v5530 = vlaneseq
  %v5531 = vshrl.u32 %v5530, 7
  %v5532 = vsub.s32 0, %v5531
  %v5533 = vrot.slane %v5526, %v5532
  %5535 = vmatprep.subr.mxu0 0.0
  %5536 = vmatpush1.msra.mxu0 0.0
  %5537 = vmatprep.subr.mxu0 0.0
  %5538 = vmatpush1.msra.mxu0 0.0
  %5539 = vmatprep.subr.mxu0 0.0
  %5540 = vmatpush1.msra.mxu0 0.0
  %5541 = vmatprep.subr.mxu0 0.0
  %5542 = vmatpush1.msra.mxu0 0.0
  %5543 = vmatprep.subr.mxu0 0.0
  %5544 = vmatpush1.msra.mxu0 0.0
  %5545 = vmatprep.subr.mxu0 0.0
  %5546 = vmatpush1.msra.mxu0 0.0
  %5547 = vmatprep.subr.mxu0 0.0
  %5548 = vmatpush1.msra.mxu0 0.0
  %5549 = vmatprep.subr.mxu0 0.0
  %5550 = vmatpush1.msra.mxu0 0.0
  %5551 = vmatprep.subr.mxu0 0.0
  %5552 = vmatpush1.msra.mxu0 0.0
  %5553 = vmatprep.subr.mxu0 0.0
  %5554 = vmatpush1.msra.mxu0 0.0
  %5555 = vmatprep.subr.mxu0 0.0
  %5556 = vmatpush1.msra.mxu0 0.0
  %5557 = vmatprep.subr.mxu0 0.0
  %5558 = vmatpush1.msra.mxu0 0.0
  %5559 = vmatprep.subr.mxu0 0.0
  %5560 = vmatpush1.msra.mxu0 0.0
  %5561 = vmatprep.subr.mxu0 0.0
  %5562 = vmatpush1.msra.mxu0 0.0
  %5563 = vmatprep.subr.mxu0 0.0
  %5564 = vmatpush1.msra.mxu0 0.0
  %5565 = vmatprep.subr.mxu0 0.0
  %5566 = vmatpush1.msra.mxu0 %v5523
  %5567 = vmatprep.subr.mxu0 0.0
  %5568 = vmatpush2.msra.mxu0 0.0
  %5569 = vmatprep.subr.mxu0 0.0
  %5570 = vmatpush2.msra.mxu0 0.0
  %5571 = vmatprep.subr.mxu0 0.0
  %5572 = vmatpush2.msra.mxu0 0.0
  %5573 = vmatprep.subr.mxu0 0.0
  %5574 = vmatpush2.msra.mxu0 0.0
  %5575 = vmatprep.subr.mxu0 0.0
  %5576 = vmatpush2.msra.mxu0 0.0
  %5577 = vmatprep.subr.mxu0 0.0
  %5578 = vmatpush2.msra.mxu0 0.0
  %5579 = vmatprep.subr.mxu0 0.0
  %5580 = vmatpush2.msra.mxu0 0.0
  %5581 = vmatprep.subr.mxu0 0.0
  %5582 = vmatpush2.msra.mxu0 0.0
  %5583 = vmatprep.subr.mxu0 0.0
  %5584 = vmatpush2.msra.mxu0 0.0
  %5585 = vmatprep.subr.mxu0 0.0
  %5586 = vmatpush2.msra.mxu0 0.0
  %5587 = vmatprep.subr.mxu0 0.0
  %5588 = vmatpush2.msra.mxu0 0.0
  %5589 = vmatprep.subr.mxu0 0.0
  %5590 = vmatpush2.msra.mxu0 0.0
  %5591 = vmatprep.subr.mxu0 0.0
  %5592 = vmatpush2.msra.mxu0 0.0
  %5593 = vmatprep.subr.mxu0 0.0
  %5594 = vmatpush2.msra.mxu0 0.0
  %5595 = vmatprep.subr.mxu0 0.0
  %5596 = vmatpush2.msra.mxu0 0.0
  %5597 = vmatprep.subr.mxu0 0.0
  %5598 = vmatpush2.msra.mxu0 0.0
  %5599 = vmatprep.mubr.f32.mxu0 0.0
  %5600 = vmatmul.mubr.f32.gmra.mxu0 %v624
  %v5601 = vpop.f32.mrf.mxu0
  %v5602 = vadd.f32 %v5533, %v5601
  %v5603 = vpop.f32.mrf.mxu0
  %5604 = vdwg.mxu0
  %v5605 = vadd.f32 %v5510, %v5602
  %v5606 = vxor.u32 %v5605, 2147483648
  %v5607 = vmul.f32 %v5606, 1.442695
  %v5608 = vpow.pop %v5607
  %v5609 = vadd.f32 %v5608, 1.0
  %v5610 = vrcp.pop %v5609
  %v5611 = vmul.f32 1.0, %v5610
  %5613 = vrot.lane.b32.xlu0 %v5602, 112
  %v5614 = vpop.permute.xlu0 %5613
  %v5616 = vmul.f32 %v5611, %v5614
  %5618 = vrot.lane.b32.xlu0 %v5616, 16
  %v5619 = vpop.permute.xlu0 %5618
  %v5621 = vadd.f32 %v5510, %v5619
  %v5622 = vtanh.pop %v5621
  %v5623 = vsub.f32 1.0, %v5611
  %5625 = vrot.lane.b32.xlu0 %v5622, 120
  %v5626 = vpop.permute.xlu0 %5625
  %v5628 = vmul.f32 %v5623, %v5626
  %v5629 = vmul.f32 %v5611, 0.0
  %v5630 = vadd.f32 %v5628, %v5629
  %5632 = vrot.lane.b32.xlu0 %v5630, 120
  %v5633 = vpop.permute.xlu0 %5632
  %5635 = vst.msk [vmem:[#allocation4] sm:$0xff] %vm622, %v5633
  %v5636 = vsel %vm622, %v5633, 0
  %5638 = vmatprep.subr.mxu0 0.0
  %5639 = vmatpush1.msra.mxu0 0.0
  %5640 = vmatprep.subr.mxu0 0.0
  %5641 = vmatpush1.msra.mxu0 0.0
  %5642 = vmatprep.subr.mxu0 0.0
  %5643 = vmatpush1.msra.mxu0 0.0
  %5644 = vmatprep.subr.mxu0 0.0
  %5645 = vmatpush1.msra.mxu0 0.0
  %5646 = vmatprep.subr.mxu0 0.0
  %5647 = vmatpush1.msra.mxu0 0.0
  %5648 = vmatprep.subr.mxu0 0.0
  %5649 = vmatpush1.msra.mxu0 0.0
  %5650 = vmatprep.subr.mxu0 0.0
  %5651 = vmatpush1.msra.mxu0 0.0
  %5652 = vmatprep.subr.mxu0 0.0
  %5653 = vmatpush1.msra.mxu0 0.0
  %5654 = vmatprep.subr.mxu0 0.0
  %5655 = vmatpush1.msra.mxu0 0.0
  %5656 = vmatprep.subr.mxu0 0.0
  %5657 = vmatpush1.msra.mxu0 0.0
  %5658 = vmatprep.subr.mxu0 0.0
  %5659 = vmatpush1.msra.mxu0 0.0
  %5660 = vmatprep.subr.mxu0 0.0
  %5661 = vmatpush1.msra.mxu0 0.0
  %5662 = vmatprep.subr.mxu0 0.0
  %5663 = vmatpush1.msra.mxu0 0.0
  %5664 = vmatprep.subr.mxu0 0.0
  %5665 = vmatpush1.msra.mxu0 0.0
  %5666 = vmatprep.subr.mxu0 0.0
  %5667 = vmatpush1.msra.mxu0 0.0
  %5668 = vmatprep.subr.mxu0 0.0
  %5669 = vmatpush1.msra.mxu0 %v5523
  %5670 = vmatprep.subr.mxu0 0.0
  %5671 = vmatpush2.msra.mxu0 0.0
  %5672 = vmatprep.subr.mxu0 0.0
  %5673 = vmatpush2.msra.mxu0 0.0
  %5674 = vmatprep.subr.mxu0 0.0
  %5675 = vmatpush2.msra.mxu0 0.0
  %5676 = vmatprep.subr.mxu0 0.0
  %5677 = vmatpush2.msra.mxu0 0.0
  %5678 = vmatprep.subr.mxu0 0.0
  %5679 = vmatpush2.msra.mxu0 0.0
  %5680 = vmatprep.subr.mxu0 0.0
  %5681 = vmatpush2.msra.mxu0 0.0
  %5682 = vmatprep.subr.mxu0 0.0
  %5683 = vmatpush2.msra.mxu0 0.0
  %5684 = vmatprep.subr.mxu0 0.0
  %5685 = vmatpush2.msra.mxu0 0.0
  %5686 = vmatprep.subr.mxu0 0.0
  %5687 = vmatpush2.msra.mxu0 0.0
  %5688 = vmatprep.subr.mxu0 0.0
  %5689 = vmatpush2.msra.mxu0 0.0
  %5690 = vmatprep.subr.mxu0 0.0
  %5691 = vmatpush2.msra.mxu0 0.0
  %5692 = vmatprep.subr.mxu0 0.0
  %5693 = vmatpush2.msra.mxu0 0.0
  %5694 = vmatprep.subr.mxu0 0.0
  %5695 = vmatpush2.msra.mxu0 0.0
  %5696 = vmatprep.subr.mxu0 0.0
  %5697 = vmatpush2.msra.mxu0 0.0
  %5698 = vmatprep.subr.mxu0 0.0
  %5699 = vmatpush2.msra.mxu0 0.0
  %5700 = vmatprep.subr.mxu0 0.0
  %5701 = vmatpush2.msra.mxu0 0.0
  %5702 = vmatprep.mubr.f32.mxu0 0.0
  %5703 = vmatmul.mubr.f32.gmra.mxu0 %v5636
  %v5704 = vpop.f32.mrf.mxu0
  %v5705 = vadd.f32 %v5533, %v5704
  %v5706 = vpop.f32.mrf.mxu0
  %5707 = vdwg.mxu0
  %v5708 = vadd.f32 %v5515, %v5705
  %v5709 = vxor.u32 %v5708, 2147483648
  %v5710 = vmul.f32 %v5709, 1.442695
  %v5711 = vpow.pop %v5710
  %v5712 = vadd.f32 %v5711, 1.0
  %v5713 = vrcp.pop %v5712
  %v5714 = vmul.f32 1.0, %v5713
  %5716 = vrot.lane.b32.xlu0 %v5705, 112
  %v5717 = vpop.permute.xlu0 %5716
  %v5719 = vmul.f32 %v5714, %v5717
  %5721 = vrot.lane.b32.xlu0 %v5719, 16
  %v5722 = vpop.permute.xlu0 %5721
  %v5724 = vadd.f32 %v5515, %v5722
  %v5725 = vtanh.pop %v5724
  %v5726 = vsub.f32 1.0, %v5714
  %5728 = vrot.lane.b32.xlu0 %v5725, 120
  %v5729 = vpop.permute.xlu0 %5728
  %v5731 = vmul.f32 %v5726, %v5729
  %v5732 = vmul.f32 %v5714, %v5630
  %v5733 = vadd.f32 %v5731, %v5732
  %5735 = vrot.lane.b32.xlu0 %v5733, 120
  %v5736 = vpop.permute.xlu0 %5735
  %5738 = vst.msk [vmem:[#allocation4 + $0x8] sm:$0xff] %vm622, %v5736
  %v5739 = vsel %vm622, %v5736, 0
  %5741 = vmatprep.subr.mxu0 0.0
  %5742 = vmatpush1.msra.mxu0 0.0
  %5743 = vmatprep.subr.mxu0 0.0
  %5744 = vmatpush1.msra.mxu0 0.0
  %5745 = vmatprep.subr.mxu0 0.0
  %5746 = vmatpush1.msra.mxu0 0.0
  %5747 = vmatprep.subr.mxu0 0.0
  %5748 = vmatpush1.msra.mxu0 0.0
  %5749 = vmatprep.subr.mxu0 0.0
  %5750 = vmatpush1.msra.mxu0 0.0
  %5751 = vmatprep.subr.mxu0 0.0
  %5752 = vmatpush1.msra.mxu0 0.0
  %5753 = vmatprep.subr.mxu0 0.0
  %5754 = vmatpush1.msra.mxu0 0.0
  %5755 = vmatprep.subr.mxu0 0.0
  %5756 = vmatpush1.msra.mxu0 0.0
  %5757 = vmatprep.subr.mxu0 0.0
  %5758 = vmatpush1.msra.mxu0 0.0
  %5759 = vmatprep.subr.mxu0 0.0
  %5760 = vmatpush1.msra.mxu0 0.0
  %5761 = vmatprep.subr.mxu0 0.0
  %5762 = vmatpush1.msra.mxu0 0.0
  %5763 = vmatprep.subr.mxu0 0.0
  %5764 = vmatpush1.msra.mxu0 0.0
  %5765 = vmatprep.subr.mxu0 0.0
  %5766 = vmatpush1.msra.mxu0 0.0
  %5767 = vmatprep.subr.mxu0 0.0
  %5768 = vmatpush1.msra.mxu0 0.0
  %5769 = vmatprep.subr.mxu0 0.0
  %5770 = vmatpush1.msra.mxu0 0.0
  %5771 = vmatprep.subr.mxu0 0.0
  %5772 = vmatpush1.msra.mxu0 %v5523
  %5773 = vmatprep.subr.mxu0 0.0
  %5774 = vmatpush2.msra.mxu0 0.0
  %5775 = vmatprep.subr.mxu0 0.0
  %5776 = vmatpush2.msra.mxu0 0.0
  %5777 = vmatprep.subr.mxu0 0.0
  %5778 = vmatpush2.msra.mxu0 0.0
  %5779 = vmatprep.subr.mxu0 0.0
  %5780 = vmatpush2.msra.mxu0 0.0
  %5781 = vmatprep.subr.mxu0 0.0
  %5782 = vmatpush2.msra.mxu0 0.0
  %5783 = vmatprep.subr.mxu0 0.0
  %5784 = vmatpush2.msra.mxu0 0.0
  %5785 = vmatprep.subr.mxu0 0.0
  %5786 = vmatpush2.msra.mxu0 0.0
  %5787 = vmatprep.subr.mxu0 0.0
  %5788 = vmatpush2.msra.mxu0 0.0
  %5789 = vmatprep.subr.mxu0 0.0
  %5790 = vmatpush2.msra.mxu0 0.0
  %5791 = vmatprep.subr.mxu0 0.0
  %5792 = vmatpush2.msra.mxu0 0.0
  %5793 = vmatprep.subr.mxu0 0.0
  %5794 = vmatpush2.msra.mxu0 0.0
  %5795 = vmatprep.subr.mxu0 0.0
  %5796 = vmatpush2.msra.mxu0 0.0
  %5797 = vmatprep.subr.mxu0 0.0
  %5798 = vmatpush2.msra.mxu0 0.0
  %5799 = vmatprep.subr.mxu0 0.0
  %5800 = vmatpush2.msra.mxu0 0.0
  %5801 = vmatprep.subr.mxu0 0.0
  %5802 = vmatpush2.msra.mxu0 0.0
  %5803 = vmatprep.subr.mxu0 0.0
  %5804 = vmatpush2.msra.mxu0 0.0
  %5805 = vmatprep.mubr.f32.mxu0 0.0
  %5806 = vmatmul.mubr.f32.gmra.mxu0 %v5739
  %v5807 = vpop.f32.mrf.mxu0
  %v5808 = vadd.f32 %v5533, %v5807
  %v5809 = vpop.f32.mrf.mxu0
  %5810 = vdwg.mxu0
  %v5811 = vadd.f32 %v5520, %v5808
  %v5812 = vxor.u32 %v5811, 2147483648
  %v5813 = vmul.f32 %v5812, 1.442695
  %v5814 = vpow.pop %v5813
  %v5815 = vadd.f32 %v5814, 1.0
  %v5816 = vrcp.pop %v5815
  %v5817 = vmul.f32 1.0, %v5816
  %5819 = vrot.lane.b32.xlu0 %v5808, 112
  %v5820 = vpop.permute.xlu0 %5819
  %v5822 = vmul.f32 %v5817, %v5820
  %5824 = vrot.lane.b32.xlu0 %v5822, 16
  %v5825 = vpop.permute.xlu0 %5824
  %v5827 = vadd.f32 %v5520, %v5825
  %v5828 = vtanh.pop %v5827
  %v5829 = vsub.f32 1.0, %v5817
  %5831 = vrot.lane.b32.xlu0 %v5828, 120
  %v5832 = vpop.permute.xlu0 %5831
  %v5834 = vmul.f32 %v5829, %v5832
  %v5835 = vmul.f32 %v5817, %v5733
  %v5836 = vadd.f32 %v5834, %v5835
  %5838 = vrot.lane.b32.xlu0 %v5836, 120
  %v5839 = vpop.permute.xlu0 %5838
  %5841 = vst.msk [vmem:[#allocation4 + $0x10] sm:$0xff] %vm622, %v5839
  %v5843 = vlaneseq
  %v5844 = vshrl.u32 %v5843, 7
  %v5845 = vsub.s32 0, %v5844
  %v5846 = vrot.slane %v5528, %v5845
  %5848 = vmatprep.subr.mxu0 0.0
  %5849 = vmatpush1.msra.mxu0 0.0
  %5850 = vmatprep.subr.mxu0 0.0
  %5851 = vmatpush1.msra.mxu0 0.0
  %5852 = vmatprep.subr.mxu0 0.0
  %5853 = vmatpush1.msra.mxu0 0.0
  %5854 = vmatprep.subr.mxu0 0.0
  %5855 = vmatpush1.msra.mxu0 0.0
  %5856 = vmatprep.subr.mxu0 0.0
  %5857 = vmatpush1.msra.mxu0 0.0
  %5858 = vmatprep.subr.mxu0 0.0
  %5859 = vmatpush1.msra.mxu0 0.0
  %5860 = vmatprep.subr.mxu0 0.0
  %5861 = vmatpush1.msra.mxu0 0.0
  %5862 = vmatprep.subr.mxu0 0.0
  %5863 = vmatpush1.msra.mxu0 0.0
  %5864 = vmatprep.subr.mxu0 0.0
  %5865 = vmatpush1.msra.mxu0 0.0
  %5866 = vmatprep.subr.mxu0 0.0
  %5867 = vmatpush1.msra.mxu0 0.0
  %5868 = vmatprep.subr.mxu0 0.0
  %5869 = vmatpush1.msra.mxu0 0.0
  %5870 = vmatprep.subr.mxu0 0.0
  %5871 = vmatpush1.msra.mxu0 0.0
  %5872 = vmatprep.subr.mxu0 0.0
  %5873 = vmatpush1.msra.mxu0 0.0
  %5874 = vmatprep.subr.mxu0 0.0
  %5875 = vmatpush1.msra.mxu0 0.0
  %5876 = vmatprep.subr.mxu0 0.0
  %5877 = vmatpush1.msra.mxu0 0.0
  %5878 = vmatprep.subr.mxu0 0.0
  %5879 = vmatpush1.msra.mxu0 %v5525
  %5880 = vmatprep.subr.mxu0 0.0
  %5881 = vmatpush2.msra.mxu0 0.0
  %5882 = vmatprep.subr.mxu0 0.0
  %5883 = vmatpush2.msra.mxu0 0.0
  %5884 = vmatprep.subr.mxu0 0.0
  %5885 = vmatpush2.msra.mxu0 0.0
  %5886 = vmatprep.subr.mxu0 0.0
  %5887 = vmatpush2.msra.mxu0 0.0
  %5888 = vmatprep.subr.mxu0 0.0
  %5889 = vmatpush2.msra.mxu0 0.0
  %5890 = vmatprep.subr.mxu0 0.0
  %5891 = vmatpush2.msra.mxu0 0.0
  %5892 = vmatprep.subr.mxu0 0.0
  %5893 = vmatpush2.msra.mxu0 0.0
  %5894 = vmatprep.subr.mxu0 0.0
  %5895 = vmatpush2.msra.mxu0 0.0
  %5896 = vmatprep.subr.mxu0 0.0
  %5897 = vmatpush2.msra.mxu0 0.0
  %5898 = vmatprep.subr.mxu0 0.0
  %5899 = vmatpush2.msra.mxu0 0.0
  %5900 = vmatprep.subr.mxu0 0.0
  %5901 = vmatpush2.msra.mxu0 0.0
  %5902 = vmatprep.subr.mxu0 0.0
  %5903 = vmatpush2.msra.mxu0 0.0
  %5904 = vmatprep.subr.mxu0 0.0
  %5905 = vmatpush2.msra.mxu0 0.0
  %5906 = vmatprep.subr.mxu0 0.0
  %5907 = vmatpush2.msra.mxu0 0.0
  %5908 = vmatprep.subr.mxu0 0.0
  %5909 = vmatpush2.msra.mxu0 0.0
  %5910 = vmatprep.subr.mxu0 0.0
  %5911 = vmatpush2.msra.mxu0 0.0
  %5912 = vmatprep.mubr.f32.mxu0 0.0
  %5913 = vmatmul.mubr.f32.gmra.mxu0 %v624
  %v5914 = vpop.f32.mrf.mxu0
  %v5915 = vadd.f32 %v5846, %v5914
  %v5916 = vpop.f32.mrf.mxu0
  %5917 = vdwg.mxu0
  %5919 = vrot.lane.b32.xlu0 %v5915, 24
  %v5920 = vpop.permute.xlu0 %5919
  %v5922 = vadd.f32 %v5520, %v5920
  %v5923 = vxor.u32 %v5922, 2147483648
  %v5924 = vmul.f32 %v5923, 1.442695
  %v5925 = vpow.pop %v5924
  %v5926 = vadd.f32 %v5925, 1.0
  %v5927 = vrcp.pop %v5926
  %v5928 = vmul.f32 1.0, %v5927
  %5929 = vrot.lane.b32.xlu0 %v5915, 8
  %v5930 = vpop.permute.xlu0 %5929
  %v5932 = vmul.f32 %v5928, %v5930
  %5934 = vrot.lane.b32.xlu0 %v5932, 16
  %v5935 = vpop.permute.xlu0 %5934
  %v5937 = vadd.f32 %v5520, %v5935
  %v5938 = vtanh.pop %v5937
  %v5939 = vsub.f32 1.0, %v5928
  %5941 = vrot.lane.b32.xlu0 %v5938, 120
  %v5942 = vpop.permute.xlu0 %5941
  %v5944 = vmul.f32 %v5939, %v5942
  %v5945 = vmul.f32 %v5928, 0.0
  %v5946 = vadd.f32 %v5944, %v5945
  %5948 = vrot.lane.b32.xlu0 %v5946, 104
  %v5949 = vpop.permute.xlu0 %5948
  %5951 = vst.msk [vmem:[#allocation4 + $0x10] sm:$0xff] %vm1351, %v5949
  %5952 = vrot.lane.b32.xlu0 %v5946, 96
  %v5953 = vpop.permute.xlu0 %5952
  %v5954 = vsel %vm622, %v5953, 0
  %5956 = vmatprep.subr.mxu0 0.0
  %5957 = vmatpush1.msra.mxu0 0.0
  %5958 = vmatprep.subr.mxu0 0.0
  %5959 = vmatpush1.msra.mxu0 0.0
  %5960 = vmatprep.subr.mxu0 0.0
  %5961 = vmatpush1.msra.mxu0 0.0
  %5962 = vmatprep.subr.mxu0 0.0
  %5963 = vmatpush1.msra.mxu0 0.0
  %5964 = vmatprep.subr.mxu0 0.0
  %5965 = vmatpush1.msra.mxu0 0.0
  %5966 = vmatprep.subr.mxu0 0.0
  %5967 = vmatpush1.msra.mxu0 0.0
  %5968 = vmatprep.subr.mxu0 0.0
  %5969 = vmatpush1.msra.mxu0 0.0
  %5970 = vmatprep.subr.mxu0 0.0
  %5971 = vmatpush1.msra.mxu0 0.0
  %5972 = vmatprep.subr.mxu0 0.0
  %5973 = vmatpush1.msra.mxu0 0.0
  %5974 = vmatprep.subr.mxu0 0.0
  %5975 = vmatpush1.msra.mxu0 0.0
  %5976 = vmatprep.subr.mxu0 0.0
  %5977 = vmatpush1.msra.mxu0 0.0
  %5978 = vmatprep.subr.mxu0 0.0
  %5979 = vmatpush1.msra.mxu0 0.0
  %5980 = vmatprep.subr.mxu0 0.0
  %5981 = vmatpush1.msra.mxu0 0.0
  %5982 = vmatprep.subr.mxu0 0.0
  %5983 = vmatpush1.msra.mxu0 0.0
  %5984 = vmatprep.subr.mxu0 0.0
  %5985 = vmatpush1.msra.mxu0 0.0
  %5986 = vmatprep.subr.mxu0 0.0
  %5987 = vmatpush1.msra.mxu0 %v5525
  %5988 = vmatprep.subr.mxu0 0.0
  %5989 = vmatpush2.msra.mxu0 0.0
  %5990 = vmatprep.subr.mxu0 0.0
  %5991 = vmatpush2.msra.mxu0 0.0
  %5992 = vmatprep.subr.mxu0 0.0
  %5993 = vmatpush2.msra.mxu0 0.0
  %5994 = vmatprep.subr.mxu0 0.0
  %5995 = vmatpush2.msra.mxu0 0.0
  %5996 = vmatprep.subr.mxu0 0.0
  %5997 = vmatpush2.msra.mxu0 0.0
  %5998 = vmatprep.subr.mxu0 0.0
  %5999 = vmatpush2.msra.mxu0 0.0
  %6000 = vmatprep.subr.mxu0 0.0
  %6001 = vmatpush2.msra.mxu0 0.0
  %6002 = vmatprep.subr.mxu0 0.0
  %6003 = vmatpush2.msra.mxu0 0.0
  %6004 = vmatprep.subr.mxu0 0.0
  %6005 = vmatpush2.msra.mxu0 0.0
  %6006 = vmatprep.subr.mxu0 0.0
  %6007 = vmatpush2.msra.mxu0 0.0
  %6008 = vmatprep.subr.mxu0 0.0
  %6009 = vmatpush2.msra.mxu0 0.0
  %6010 = vmatprep.subr.mxu0 0.0
  %6011 = vmatpush2.msra.mxu0 0.0
  %6012 = vmatprep.subr.mxu0 0.0
  %6013 = vmatpush2.msra.mxu0 0.0
  %6014 = vmatprep.subr.mxu0 0.0
  %6015 = vmatpush2.msra.mxu0 0.0
  %6016 = vmatprep.subr.mxu0 0.0
  %6017 = vmatpush2.msra.mxu0 0.0
  %6018 = vmatprep.subr.mxu0 0.0
  %6019 = vmatpush2.msra.mxu0 0.0
  %6020 = vmatprep.mubr.f32.mxu0 0.0
  %6021 = vmatmul.mubr.f32.gmra.mxu0 %v5954
  %v6022 = vpop.f32.mrf.mxu0
  %v6023 = vadd.f32 %v5846, %v6022
  %v6024 = vpop.f32.mrf.mxu0
  %6025 = vdwg.mxu0
  %6027 = vrot.lane.b32.xlu0 %v6023, 24
  %v6028 = vpop.permute.xlu0 %6027
  %v6030 = vadd.f32 %v5515, %v6028
  %v6031 = vxor.u32 %v6030, 2147483648
  %v6032 = vmul.f32 %v6031, 1.442695
  %v6033 = vpow.pop %v6032
  %v6034 = vadd.f32 %v6033, 1.0
  %v6035 = vrcp.pop %v6034
  %v6036 = vmul.f32 1.0, %v6035
  %6037 = vrot.lane.b32.xlu0 %v6023, 8
  %v6038 = vpop.permute.xlu0 %6037
  %v6040 = vmul.f32 %v6036, %v6038
  %6042 = vrot.lane.b32.xlu0 %v6040, 16
  %v6043 = vpop.permute.xlu0 %6042
  %v6045 = vadd.f32 %v5515, %v6043
  %v6046 = vtanh.pop %v6045
  %v6047 = vsub.f32 1.0, %v6036
  %6049 = vrot.lane.b32.xlu0 %v6046, 120
  %v6050 = vpop.permute.xlu0 %6049
  %v6052 = vmul.f32 %v6047, %v6050
  %v6053 = vmul.f32 %v6036, %v5946
  %v6054 = vadd.f32 %v6052, %v6053
  %6056 = vrot.lane.b32.xlu0 %v6054, 104
  %v6057 = vpop.permute.xlu0 %6056
  %6059 = vst.msk [vmem:[#allocation4 + $0x8] sm:$0xff] %vm1351, %v6057
  %6060 = vrot.lane.b32.xlu0 %v6054, 96
  %v6061 = vpop.permute.xlu0 %6060
  %v6062 = vsel %vm622, %v6061, 0
  %6064 = vmatprep.subr.mxu0 0.0
  %6065 = vmatpush1.msra.mxu0 0.0
  %6066 = vmatprep.subr.mxu0 0.0
  %6067 = vmatpush1.msra.mxu0 0.0
  %6068 = vmatprep.subr.mxu0 0.0
  %6069 = vmatpush1.msra.mxu0 0.0
  %6070 = vmatprep.subr.mxu0 0.0
  %6071 = vmatpush1.msra.mxu0 0.0
  %6072 = vmatprep.subr.mxu0 0.0
  %6073 = vmatpush1.msra.mxu0 0.0
  %6074 = vmatprep.subr.mxu0 0.0
  %6075 = vmatpush1.msra.mxu0 0.0
  %6076 = vmatprep.subr.mxu0 0.0
  %6077 = vmatpush1.msra.mxu0 0.0
  %6078 = vmatprep.subr.mxu0 0.0
  %6079 = vmatpush1.msra.mxu0 0.0
  %6080 = vmatprep.subr.mxu0 0.0
  %6081 = vmatpush1.msra.mxu0 0.0
  %6082 = vmatprep.subr.mxu0 0.0
  %6083 = vmatpush1.msra.mxu0 0.0
  %6084 = vmatprep.subr.mxu0 0.0
  %6085 = vmatpush1.msra.mxu0 0.0
  %6086 = vmatprep.subr.mxu0 0.0
  %6087 = vmatpush1.msra.mxu0 0.0
  %6088 = vmatprep.subr.mxu0 0.0
  %6089 = vmatpush1.msra.mxu0 0.0
  %6090 = vmatprep.subr.mxu0 0.0
  %6091 = vmatpush1.msra.mxu0 0.0
  %6092 = vmatprep.subr.mxu0 0.0
  %6093 = vmatpush1.msra.mxu0 0.0
  %6094 = vmatprep.subr.mxu0 0.0
  %6095 = vmatpush1.msra.mxu0 %v5525
  %6096 = vmatprep.subr.mxu0 0.0
  %6097 = vmatpush2.msra.mxu0 0.0
  %6098 = vmatprep.subr.mxu0 0.0
  %6099 = vmatpush2.msra.mxu0 0.0
  %6100 = vmatprep.subr.mxu0 0.0
  %6101 = vmatpush2.msra.mxu0 0.0
  %6102 = vmatprep.subr.mxu0 0.0
  %6103 = vmatpush2.msra.mxu0 0.0
  %6104 = vmatprep.subr.mxu0 0.0
  %6105 = vmatpush2.msra.mxu0 0.0
  %6106 = vmatprep.subr.mxu0 0.0
  %6107 = vmatpush2.msra.mxu0 0.0
  %6108 = vmatprep.subr.mxu0 0.0
  %6109 = vmatpush2.msra.mxu0 0.0
  %6110 = vmatprep.subr.mxu0 0.0
  %6111 = vmatpush2.msra.mxu0 0.0
  %6112 = vmatprep.subr.mxu0 0.0
  %6113 = vmatpush2.msra.mxu0 0.0
  %6114 = vmatprep.subr.mxu0 0.0
  %6115 = vmatpush2.msra.mxu0 0.0
  %6116 = vmatprep.subr.mxu0 0.0
  %6117 = vmatpush2.msra.mxu0 0.0
  %6118 = vmatprep.subr.mxu0 0.0
  %6119 = vmatpush2.msra.mxu0 0.0
  %6120 = vmatprep.subr.mxu0 0.0
  %6121 = vmatpush2.msra.mxu0 0.0
  %6122 = vmatprep.subr.mxu0 0.0
  %6123 = vmatpush2.msra.mxu0 0.0
  %6124 = vmatprep.subr.mxu0 0.0
  %6125 = vmatpush2.msra.mxu0 0.0
  %6126 = vmatprep.subr.mxu0 0.0
  %6127 = vmatpush2.msra.mxu0 0.0
  %6128 = vmatprep.mubr.f32.mxu0 0.0
  %6129 = vmatmul.mubr.f32.gmra.mxu0 %v6062
  %v6130 = vpop.f32.mrf.mxu0
  %v6131 = vadd.f32 %v5846, %v6130
  %v6132 = vpop.f32.mrf.mxu0
  %6133 = vdwg.mxu0
  %6135 = vrot.lane.b32.xlu0 %v6131, 24
  %v6136 = vpop.permute.xlu0 %6135
  %v6138 = vadd.f32 %v5510, %v6136
  %v6139 = vxor.u32 %v6138, 2147483648
  %v6140 = vmul.f32 %v6139, 1.442695
  %v6141 = vpow.pop %v6140
  %v6142 = vadd.f32 %v6141, 1.0
  %v6143 = vrcp.pop %v6142
  %v6144 = vmul.f32 1.0, %v6143
  %6145 = vrot.lane.b32.xlu0 %v6131, 8
  %v6146 = vpop.permute.xlu0 %6145
  %v6148 = vmul.f32 %v6144, %v6146
  %6150 = vrot.lane.b32.xlu0 %v6148, 16
  %v6151 = vpop.permute.xlu0 %6150
  %v6153 = vadd.f32 %v5510, %v6151
  %v6154 = vtanh.pop %v6153
  %v6155 = vsub.f32 1.0, %v6144
  %6157 = vrot.lane.b32.xlu0 %v6154, 120
  %v6158 = vpop.permute.xlu0 %6157
  %v6160 = vmul.f32 %v6155, %v6158
  %v6161 = vmul.f32 %v6144, %v6054
  %v6162 = vadd.f32 %v6160, %v6161
  %6164 = vrot.lane.b32.xlu0 %v6162, 104
  %v6165 = vpop.permute.xlu0 %6164
  %6167 = vst.msk [vmem:[#allocation4] sm:$0xff] %vm1351, %v6165
  %v6168 = vld [vmem:[#allocation4] sm:$0xff]
  %v6169 = vld [vmem:[#allocation4 + $0x8] sm:$0xff]
  %v6170 = vld [vmem:[#allocation4 + $0x10] sm:$0xff]
  %v6171 = vld [vmem:[%s13] sm:$0xff]
  %v6172 = vld [vmem:[%s13 + $0x8] sm:$0xff]
  %v6173 = vld [vmem:[%s14] sm:$0x1]
  %v6174 = vld [vmem:[%s15] sm:$0xff]
  %v6175 = vld [vmem:[%s15 + $0x8] sm:$0xff]
  %v6177 = vlaneseq
  %v6178 = vshrl.u32 %v6177, 7
  %v6179 = vsub.s32 0, %v6178
  %v6180 = vrot.slane %v6173, %v6179
  %v6183 = vsel %vm1910, %v6168, 0
  %v6186 = vsel %vm1910, %v6169, 0
  %v6189 = vsel %vm1910, %v6170, 0
  %6191 = vmatprep.subr.mxu0 0.0
  %6192 = vmatpush1.msra.mxu0 0.0
  %6193 = vmatprep.subr.mxu0 0.0
  %6194 = vmatpush1.msra.mxu0 0.0
  %6195 = vmatprep.subr.mxu0 0.0
  %6196 = vmatpush1.msra.mxu0 0.0
  %6197 = vmatprep.subr.mxu0 0.0
  %6198 = vmatpush1.msra.mxu0 0.0
  %6199 = vmatprep.subr.mxu0 0.0
  %6200 = vmatpush1.msra.mxu0 0.0
  %6201 = vmatprep.subr.mxu0 0.0
  %6202 = vmatpush1.msra.mxu0 0.0
  %6203 = vmatprep.subr.mxu0 0.0
  %6204 = vmatpush1.msra.mxu0 0.0
  %6205 = vmatprep.subr.mxu0 0.0
  %6206 = vmatpush1.msra.mxu0 0.0
  %6207 = vmatprep.subr.mxu0 0.0
  %6208 = vmatpush1.msra.mxu0 0.0
  %6209 = vmatprep.subr.mxu0 0.0
  %6210 = vmatpush1.msra.mxu0 0.0
  %6211 = vmatprep.subr.mxu0 0.0
  %6212 = vmatpush1.msra.mxu0 0.0
  %6213 = vmatprep.subr.mxu0 0.0
  %6214 = vmatpush1.msra.mxu0 0.0
  %6215 = vmatprep.subr.mxu0 0.0
  %6216 = vmatpush1.msra.mxu0 0.0
  %6217 = vmatprep.subr.mxu0 0.0
  %6218 = vmatpush1.msra.mxu0 0.0
  %6219 = vmatprep.subr.mxu0 0.0
  %6220 = vmatpush1.msra.mxu0 %v6172
  %6221 = vmatprep.subr.mxu0 0.0
  %6222 = vmatpush1.msra.mxu0 %v6171
  %6223 = vmatprep.subr.mxu0 0.0
  %6224 = vmatpush2.msra.mxu0 0.0
  %6225 = vmatprep.subr.mxu0 0.0
  %6226 = vmatpush2.msra.mxu0 0.0
  %6227 = vmatprep.subr.mxu0 0.0
  %6228 = vmatpush2.msra.mxu0 0.0
  %6229 = vmatprep.subr.mxu0 0.0
  %6230 = vmatpush2.msra.mxu0 0.0
  %6231 = vmatprep.subr.mxu0 0.0
  %6232 = vmatpush2.msra.mxu0 0.0
  %6233 = vmatprep.subr.mxu0 0.0
  %6234 = vmatpush2.msra.mxu0 0.0
  %6235 = vmatprep.subr.mxu0 0.0
  %6236 = vmatpush2.msra.mxu0 0.0
  %6237 = vmatprep.subr.mxu0 0.0
  %6238 = vmatpush2.msra.mxu0 0.0
  %6239 = vmatprep.subr.mxu0 0.0
  %6240 = vmatpush2.msra.mxu0 0.0
  %6241 = vmatprep.subr.mxu0 0.0
  %6242 = vmatpush2.msra.mxu0 0.0
  %6243 = vmatprep.subr.mxu0 0.0
  %6244 = vmatpush2.msra.mxu0 0.0
  %6245 = vmatprep.subr.mxu0 0.0
  %6246 = vmatpush2.msra.mxu0 0.0
  %6247 = vmatprep.subr.mxu0 0.0
  %6248 = vmatpush2.msra.mxu0 0.0
  %6249 = vmatprep.subr.mxu0 0.0
  %6250 = vmatpush2.msra.mxu0 0.0
  %6251 = vmatprep.subr.mxu0 0.0
  %6252 = vmatpush2.msra.mxu0 0.0
  %6253 = vmatprep.subr.mxu0 0.0
  %6254 = vmatpush2.msra.mxu0 0.0
  %6255 = vmatprep.mubr.f32.mxu0 0.0
  %6256 = vmatmul.mubr.f32.gmra.mxu0 %v6183
  %v6257 = vpop.f32.mrf.mxu0
  %v6258 = vadd.f32 %v6180, %v6257
  %v6259 = vpop.f32.mrf.mxu0
  %6260 = vmatprep.mubr.f32.mxu0 0.0
  %6261 = vmatmul.mubr.f32.gmra.mxu0 %v6186
  %v6262 = vpop.f32.mrf.mxu0
  %v6263 = vadd.f32 %v6180, %v6262
  %v6264 = vpop.f32.mrf.mxu0
  %6265 = vmatprep.mubr.f32.mxu0 0.0
  %6266 = vmatmul.mubr.f32.gmra.mxu0 %v6189
  %v6267 = vpop.f32.mrf.mxu0
  %v6268 = vadd.f32 %v6180, %v6267
  %v6269 = vpop.f32.mrf.mxu0
  %6270 = vdwg.mxu0
  %v6271 = vtanh.pop %v6258
  %v6272 = vtanh.pop %v6263
  %v6273 = vtanh.pop %v6268
  %v6275 = vsel %vm1910, %v6271, 0
  %v6278 = vsel %vm1910, %v6272, 0
  %v6281 = vsel %vm1910, %v6273, 0
  %6283 = vmatprep.subr.mxu0 0.0
  %6284 = vmatpush1.msra.mxu0 0.0
  %6285 = vmatprep.subr.mxu0 0.0
  %6286 = vmatpush1.msra.mxu0 0.0
  %6287 = vmatprep.subr.mxu0 0.0
  %6288 = vmatpush1.msra.mxu0 0.0
  %6289 = vmatprep.subr.mxu0 0.0
  %6290 = vmatpush1.msra.mxu0 0.0
  %6291 = vmatprep.subr.mxu0 0.0
  %6292 = vmatpush1.msra.mxu0 0.0
  %6293 = vmatprep.subr.mxu0 0.0
  %6294 = vmatpush1.msra.mxu0 0.0
  %6295 = vmatprep.subr.mxu0 0.0
  %6296 = vmatpush1.msra.mxu0 0.0
  %6297 = vmatprep.subr.mxu0 0.0
  %6298 = vmatpush1.msra.mxu0 0.0
  %6299 = vmatprep.subr.mxu0 0.0
  %6300 = vmatpush1.msra.mxu0 0.0
  %6301 = vmatprep.subr.mxu0 0.0
  %6302 = vmatpush1.msra.mxu0 0.0
  %6303 = vmatprep.subr.mxu0 0.0
  %6304 = vmatpush1.msra.mxu0 0.0
  %6305 = vmatprep.subr.mxu0 0.0
  %6306 = vmatpush1.msra.mxu0 0.0
  %6307 = vmatprep.subr.mxu0 0.0
  %6308 = vmatpush1.msra.mxu0 0.0
  %6309 = vmatprep.subr.mxu0 0.0
  %6310 = vmatpush1.msra.mxu0 0.0
  %6311 = vmatprep.subr.mxu0 0.0
  %6312 = vmatpush1.msra.mxu0 %v6175
  %6313 = vmatprep.subr.mxu0 0.0
  %6314 = vmatpush1.msra.mxu0 %v6174
  %6315 = vmatprep.subr.mxu0 0.0
  %6316 = vmatpush2.msra.mxu0 0.0
  %6317 = vmatprep.subr.mxu0 0.0
  %6318 = vmatpush2.msra.mxu0 0.0
  %6319 = vmatprep.subr.mxu0 0.0
  %6320 = vmatpush2.msra.mxu0 0.0
  %6321 = vmatprep.subr.mxu0 0.0
  %6322 = vmatpush2.msra.mxu0 0.0
  %6323 = vmatprep.subr.mxu0 0.0
  %6324 = vmatpush2.msra.mxu0 0.0
  %6325 = vmatprep.subr.mxu0 0.0
  %6326 = vmatpush2.msra.mxu0 0.0
  %6327 = vmatprep.subr.mxu0 0.0
  %6328 = vmatpush2.msra.mxu0 0.0
  %6329 = vmatprep.subr.mxu0 0.0
  %6330 = vmatpush2.msra.mxu0 0.0
  %6331 = vmatprep.subr.mxu0 0.0
  %6332 = vmatpush2.msra.mxu0 0.0
  %6333 = vmatprep.subr.mxu0 0.0
  %6334 = vmatpush2.msra.mxu0 0.0
  %6335 = vmatprep.subr.mxu0 0.0
  %6336 = vmatpush2.msra.mxu0 0.0
  %6337 = vmatprep.subr.mxu0 0.0
  %6338 = vmatpush2.msra.mxu0 0.0
  %6339 = vmatprep.subr.mxu0 0.0
  %6340 = vmatpush2.msra.mxu0 0.0
  %6341 = vmatprep.subr.mxu0 0.0
  %6342 = vmatpush2.msra.mxu0 0.0
  %6343 = vmatprep.subr.mxu0 0.0
  %6344 = vmatpush2.msra.mxu0 0.0
  %6345 = vmatprep.subr.mxu0 0.0
  %6346 = vmatpush2.msra.mxu0 0.0
  %6347 = vmatprep.mubr.f32.mxu0 0.0
  %6348 = vmatmul.mubr.f32.gmra.mxu0 %v6275
  %v6349 = vpop.f32.mrf.mxu0
  %v6350 = vadd.f32 0.0, %v6349
  %v6351 = vpop.f32.mrf.mxu0
  %6352 = vmatprep.mubr.f32.mxu0 0.0
  %6353 = vmatmul.mubr.f32.gmra.mxu0 %v6278
  %v6354 = vpop.f32.mrf.mxu0
  %v6355 = vadd.f32 0.0, %v6354
  %v6356 = vpop.f32.mrf.mxu0
  %6357 = vmatprep.mubr.f32.mxu0 0.0
  %6358 = vmatmul.mubr.f32.gmra.mxu0 %v6281
  %v6359 = vpop.f32.mrf.mxu0
  %v6360 = vadd.f32 0.0, %v6359
  %v6361 = vpop.f32.mrf.mxu0
  %6362 = vdwg.mxu0
  %v6363 = vtanh.pop %v6350
  %v6364 = vtanh.pop %v6355
  %v6365 = vtanh.pop %v6360
  %v6366 = vmax.f32 %v6363, %v6364
  %v6367 = vmax.f32 %v6366, %v6365
  %v6368 = vsub.f32 %v6363, %v6367
  %v6369 = vmul.f32 %v6368, 1.442695
  %v6370 = vpow.pop %v6369
  %v6371 = vsub.f32 %v6364, %v6367
  %v6372 = vmul.f32 %v6371, 1.442695
  %v6373 = vpow.pop %v6372
  %v6374 = vsub.f32 %v6365, %v6367
  %v6375 = vmul.f32 %v6374, 1.442695
  %v6376 = vpow.pop %v6375
  %v6377 = vadd.f32 %v6370, %v6373
  %v6378 = vadd.f32 %v6377, %v6376
  %v6379 = vrcp.pop %v6378
  %v6380 = vmul.f32 %v6370, %v6379
  %6382 = vset.pattern.permute.xlu0 0
  %6383 = vperm.xlu0 %6382, %v6380
  %v6384 = vpop.permute.xlu0 %6383
  %v6386 = vmul.f32 %v6384, %v6168
  %v6387 = vmul.f32 %v6373, %v6379
  %6389 = vset.pattern.permute.xlu0 0
  %6390 = vperm.xlu0 %6389, %v6387
  %v6391 = vpop.permute.xlu0 %6390
  %v6393 = vmul.f32 %v6391, %v6169
  %v6394 = vadd.f32 %v6386, %v6393
  %v6395 = vmul.f32 %v6376, %v6379
  %6397 = vset.pattern.permute.xlu0 0
  %6398 = vperm.xlu0 %6397, %v6395
  %v6399 = vpop.permute.xlu0 %6398
  %v6401 = vmul.f32 %v6399, %v6170
  %v6402 = vadd.f32 %v6394, %v6401
  %v6403 = vld [vmem:[%s16] sm:$0xff]
  %v6404 = vld [vmem:[%s16 + $0x8] sm:$0xff]
  %v6405 = vld [vmem:[%s17] sm:$0x1]
  %v6407 = vlaneseq
  %v6408 = vshrl.u32 %v6407, 7
  %v6409 = vsub.s32 0, %v6408
  %v6410 = vrot.slane %v6405, %v6409
  %v6413 = vsel %vm1910, %v6402, 0
  %6415 = vmatprep.subr.mxu0 0.0
  %6416 = vmatpush1.msra.mxu0 0.0
  %6417 = vmatprep.subr.mxu0 0.0
  %6418 = vmatpush1.msra.mxu0 0.0
  %6419 = vmatprep.subr.mxu0 0.0
  %6420 = vmatpush1.msra.mxu0 0.0
  %6421 = vmatprep.subr.mxu0 0.0
  %6422 = vmatpush1.msra.mxu0 0.0
  %6423 = vmatprep.subr.mxu0 0.0
  %6424 = vmatpush1.msra.mxu0 0.0
  %6425 = vmatprep.subr.mxu0 0.0
  %6426 = vmatpush1.msra.mxu0 0.0
  %6427 = vmatprep.subr.mxu0 0.0
  %6428 = vmatpush1.msra.mxu0 0.0
  %6429 = vmatprep.subr.mxu0 0.0
  %6430 = vmatpush1.msra.mxu0 0.0
  %6431 = vmatprep.subr.mxu0 0.0
  %6432 = vmatpush1.msra.mxu0 0.0
  %6433 = vmatprep.subr.mxu0 0.0
  %6434 = vmatpush1.msra.mxu0 0.0
  %6435 = vmatprep.subr.mxu0 0.0
  %6436 = vmatpush1.msra.mxu0 0.0
  %6437 = vmatprep.subr.mxu0 0.0
  %6438 = vmatpush1.msra.mxu0 0.0
  %6439 = vmatprep.subr.mxu0 0.0
  %6440 = vmatpush1.msra.mxu0 0.0
  %6441 = vmatprep.subr.mxu0 0.0
  %6442 = vmatpush1.msra.mxu0 0.0
  %6443 = vmatprep.subr.mxu0 0.0
  %6444 = vmatpush1.msra.mxu0 %v6404
  %6445 = vmatprep.subr.mxu0 0.0
  %6446 = vmatpush1.msra.mxu0 %v6403
  %6447 = vmatprep.subr.mxu0 0.0
  %6448 = vmatpush2.msra.mxu0 0.0
  %6449 = vmatprep.subr.mxu0 0.0
  %6450 = vmatpush2.msra.mxu0 0.0
  %6451 = vmatprep.subr.mxu0 0.0
  %6452 = vmatpush2.msra.mxu0 0.0
  %6453 = vmatprep.subr.mxu0 0.0
  %6454 = vmatpush2.msra.mxu0 0.0
  %6455 = vmatprep.subr.mxu0 0.0
  %6456 = vmatpush2.msra.mxu0 0.0
  %6457 = vmatprep.subr.mxu0 0.0
  %6458 = vmatpush2.msra.mxu0 0.0
  %6459 = vmatprep.subr.mxu0 0.0
  %6460 = vmatpush2.msra.mxu0 0.0
  %6461 = vmatprep.subr.mxu0 0.0
  %6462 = vmatpush2.msra.mxu0 0.0
  %6463 = vmatprep.subr.mxu0 0.0
  %6464 = vmatpush2.msra.mxu0 0.0
  %6465 = vmatprep.subr.mxu0 0.0
  %6466 = vmatpush2.msra.mxu0 0.0
  %6467 = vmatprep.subr.mxu0 0.0
  %6468 = vmatpush2.msra.mxu0 0.0
  %6469 = vmatprep.subr.mxu0 0.0
  %6470 = vmatpush2.msra.mxu0 0.0
  %6471 = vmatprep.subr.mxu0 0.0
  %6472 = vmatpush2.msra.mxu0 0.0
  %6473 = vmatprep.subr.mxu0 0.0
  %6474 = vmatpush2.msra.mxu0 0.0
  %6475 = vmatprep.subr.mxu0 0.0
  %6476 = vmatpush2.msra.mxu0 0.0
  %6477 = vmatprep.subr.mxu0 0.0
  %6478 = vmatpush2.msra.mxu0 0.0
  %6479 = vmatprep.mubr.f32.mxu0 0.0
  %6480 = vmatmul.mubr.f32.gmra.mxu0 %v6413
  %v6481 = vpop.f32.mrf.mxu0
  %v6482 = vadd.f32 %v6410, %v6481
  %v6483 = vpop.f32.mrf.mxu0
  %6484 = vdwg.mxu0
  %6485 = vst [vmem:[%s18] sm:$0xff] %v6482
  // Predicated region
  $region74: #{hier_att_forward.1} parent=0 // pred_check
    _
  $region75: #{hier_att_forward.1} parent=0 // pred_check_branch
    %6487 = sbr.rel (0) target = $region77
  $region76: #{hier_att_forward.1} parent=0 // pred_region
    _
  $region77: #{hier_att_forward.1} parent=0 // pred_fallthru
    _
  // Predicated region
  $region78: #{hier_att_forward.1} parent=0 // pred_check
    _
  $region79: #{hier_att_forward.1} parent=0 // pred_check_branch
    %6489 = sbr.rel (0) target = $region81
  $region80: #{hier_att_forward.1} parent=0 // pred_region
    _
  $region81: #{hier_att_forward.1} parent=0 // pred_fallthru
    _

</llo_original>
